<compile_context>
chip_gen: v7x
topology: tpu7x:2x2x1
jax: 0.10.0
libtpu: 0.0.40
codegen_flags: <defaults>
</compile_context>

<pallas_src>
import functools

import jax
import jax.numpy as jnp
from jax.experimental import pallas as pl
from jax.experimental.pallas import tpu as pltpu

LN_EPS = 1e-5
VMEM_LIMIT = 48 * 1024 * 1024   # explicit scoped-VMEM budget; headroom under v7x's 64 MiB/TC
ROW_TILE = 256                  # row (token) target for the fused LN1+QKV kernel
MLP_ROW_TILE = 128              # row target for the fused LN2+MLP kernel (keeps VMEM modest)
MM_TILE = 256                   # Hf / column tile for the fused kernels (matches 256-deep MXU)
MM_TILE_N = 512                 # output-column target for the generic matmul
MM_TILE_K = 256                 # contraction target for the generic matmul


def _pick_tile(dim, target, align):
    """Largest multiple of `align` that divides `dim` and is <= target; else full dim."""
    if dim <= target:
        return dim
    best = None
    t = align
    while t <= target:
        if dim % t == 0:
            best = t
        t += align
    return best if best is not None else dim


def _row_tile(dim, target, align=16):
    """Row-tile pick that keeps >= 2 blocks on the parallel row axis when possible (v7x: 2 TCs)."""
    capped = min(target, dim // 2) if dim >= 2 * align else dim
    return _pick_tile(dim, max(capped, align), align)


# --------------------------------------------------------------------------
# Kernel 1: fused (dropout ->) add -> LayerNorm -> matmul (+bias).
# Used for LN1 + QKV projection.  Grid (row tiles, output-column tiles); the
# residual add + LN are computed once per row tile (j == 0) into VMEM scratch,
# the f32 residual is emitted as a second output, and each column tile does one
# MXU matmul against the resident LN'd activations.
# --------------------------------------------------------------------------
def _add_ln_matmul_kernel(h_ref, r_ref, g_ref, b_ref, w_ref, bw_ref,
                          res_ref, y_ref, ln_sc):
    @pl.when(pl.program_id(1) == 0)
    def _():
        res = h_ref[...].astype(jnp.float32) + r_ref[...]
        res_ref[...] = res
        mean = jnp.mean(res, axis=-1, keepdims=True)
        xc = res - mean
        var = jnp.mean(xc * xc, axis=-1, keepdims=True)
        y = xc * jax.lax.rsqrt(var + LN_EPS)
        ln_sc[...] = (y * g_ref[...] + b_ref[...]).astype(ln_sc.dtype)

    y_ref[...] = (jnp.dot(ln_sc[...], w_ref[...], preferred_element_type=jnp.float32)
                  + bw_ref[...]).astype(y_ref.dtype)


def add_ln_matmul(h2d, r2d, gamma, beta, w, bw, *, out_dtype):
    M, D = h2d.shape
    N = w.shape[1]
    cdt = w.dtype
    tm = _row_tile(M, ROW_TILE, 16)
    tn = _pick_tile(N, MM_TILE, 128)
    return pl.pallas_call(
        _add_ln_matmul_kernel,
        out_shape=(jax.ShapeDtypeStruct((M, D), jnp.float32),
                   jax.ShapeDtypeStruct((M, N), out_dtype)),
        grid_spec=pltpu.PrefetchScalarGridSpec(
            num_scalar_prefetch=0,
            grid=(M // tm, N // tn),
            in_specs=[pl.BlockSpec((tm, D), lambda i, j: (i, 0)),
                      pl.BlockSpec((tm, D), lambda i, j: (i, 0)),
                      pl.BlockSpec((1, D), lambda i, j: (0, 0)),
                      pl.BlockSpec((1, D), lambda i, j: (0, 0)),
                      pl.BlockSpec((D, tn), lambda i, j: (0, j)),
                      pl.BlockSpec((1, tn), lambda i, j: (0, j))],
            out_specs=(pl.BlockSpec((tm, D), lambda i, j: (i, 0)),
                       pl.BlockSpec((tm, tn), lambda i, j: (i, j))),
            scratch_shapes=[pltpu.VMEM((tm, D), cdt)],
        ),
        compiler_params=pltpu.CompilerParams(
            dimension_semantics=("parallel", "arbitrary"),
            vmem_limit_bytes=VMEM_LIMIT),
    )(h2d, r2d, gamma.reshape(1, D), beta.reshape(1, D), w, bw.reshape(1, N))


# --------------------------------------------------------------------------
# Kernel 2: generic tiled matmul + bias (attention output projection).
# grid (M/tm, N/tn, K/tk), f32 VMEM accumulator, pl.when init/finalize.
# --------------------------------------------------------------------------
def _matmul_bias_kernel(x_ref, w_ref, b_ref, o_ref, acc_ref):
    @pl.when(pl.program_id(2) == 0)
    def _():
        acc_ref[...] = jnp.zeros_like(acc_ref)

    acc_ref[...] += jnp.dot(x_ref[...].astype(w_ref.dtype), w_ref[...],
                            preferred_element_type=jnp.float32)

    @pl.when(pl.program_id(2) == pl.num_programs(2) - 1)
    def _():
        o_ref[...] = (acc_ref[...] + b_ref[...]).astype(o_ref.dtype)


def matmul_bias(x, w, b, *, out_dtype):
    M, K = x.shape
    _, N = w.shape
    tm = _row_tile(M, 512, 16)
    tn = _pick_tile(N, MM_TILE_N, 128)
    tk = _pick_tile(K, MM_TILE_K, 128)
    return pl.pallas_call(
        _matmul_bias_kernel,
        out_shape=jax.ShapeDtypeStruct((M, N), out_dtype),
        grid_spec=pltpu.PrefetchScalarGridSpec(
            num_scalar_prefetch=0,
            grid=(M // tm, N // tn, K // tk),
            in_specs=[pl.BlockSpec((tm, tk), lambda i, j, k: (i, k)),
                      pl.BlockSpec((tk, tn), lambda i, j, k: (k, j)),
                      pl.BlockSpec((1, tn), lambda i, j, k: (0, j))],
            out_specs=pl.BlockSpec((tm, tn), lambda i, j, k: (i, j)),
            scratch_shapes=[pltpu.VMEM((tm, tn), jnp.float32)],
        ),
        compiler_params=pltpu.CompilerParams(
            dimension_semantics=("parallel", "parallel", "arbitrary"),
            vmem_limit_bytes=VMEM_LIMIT),
    )(x, w, b.reshape(1, N))


# --------------------------------------------------------------------------
# Kernel 3: flash attention (non-causal) directly on the (M, 3D) QKV layout.
# Grid (batch, head-pair, q-tile, kv-tile); each step handles two heads so all
# q/k/v DMAs and the ctx store are 128-lane dense (hd = 64).  Online softmax
# with per-head m/l/acc VMEM scratch; never materializes (S, S).
# --------------------------------------------------------------------------
def _flash_kernel(q_ref, k_ref, v_ref, o_ref,
                  m0, l0, a0, m1, l1, a1, *, scale, hd):
    ki = pl.program_id(3)

    @pl.when(ki == 0)
    def _():
        for m_sc, l_sc, acc_sc in ((m0, l0, a0), (m1, l1, a1)):
            m_sc[...] = jnp.full_like(m_sc, -jnp.inf)
            l_sc[...] = jnp.zeros_like(l_sc)
            acc_sc[...] = jnp.zeros_like(acc_sc)

    # fold 1/sqrt(hd) into q (O(tq*2hd)) instead of scaling the (tq,tkv) scores
    q = q_ref[...].astype(jnp.float32) * scale        # (tq, 2*hd)
    k = k_ref[...]                                    # (tkv, 2*hd)
    v = v_ref[...]                                    # (tkv, 2*hd)

    for h, (m_sc, l_sc, acc_sc) in enumerate(((m0, l0, a0), (m1, l1, a1))):
        qh = q[:, h * hd:(h + 1) * hd].astype(k.dtype)
        kh = k[:, h * hd:(h + 1) * hd]
        vh = v[:, h * hd:(h + 1) * hd]
        s = jax.lax.dot_general(qh, kh, (((1,), (1,)), ((), ())),
                                preferred_element_type=jnp.float32)   # (tq, tkv)
        m_prev = m_sc[...]
        m_new = jnp.maximum(m_prev, jnp.max(s, axis=-1, keepdims=True))
        alpha = jnp.exp(m_prev - m_new)
        p = jnp.exp(s - m_new)
        l_sc[...] = alpha * l_sc[...] + jnp.sum(p, axis=-1, keepdims=True)
        acc_sc[...] = alpha * acc_sc[...] + jnp.dot(
            p.astype(vh.dtype), vh, preferred_element_type=jnp.float32)
        m_sc[...] = m_new

    @pl.when(ki == pl.num_programs(3) - 1)
    def _():
        o0 = a0[...] * pl.reciprocal(l0[...], approx=True)
        o1 = a1[...] * pl.reciprocal(l1[...], approx=True)
        o_ref[...] = jnp.concatenate([o0, o1], axis=-1).astype(o_ref.dtype)


def flash_attention(qkv, *, batch, seq, num_heads, head_dim, out_dtype):
    M, three_d = qkv.shape
    D = num_heads * head_dim
    assert three_d == 3 * D and M == batch * seq
    # TODO(synk): odd head counts need a 1-head-per-block fallback path.
    assert num_heads % 2 == 0, "flash kernel processes two heads per grid step"
    hg = num_heads // 2
    cw = 2 * head_dim                       # 128-lane-dense blocks for hd = 64
    tq = _pick_tile(seq, 512, 16)           # big q tile -> K/V re-streamed only S/tq times
    tkv = _pick_tile(seq, 256, 16)
    sq, skv = seq // tq, seq // tkv
    scale = 1.0 / float(head_dim) ** 0.5

    return pl.pallas_call(
        functools.partial(_flash_kernel, scale=scale, hd=head_dim),
        out_shape=jax.ShapeDtypeStruct((M, D), out_dtype),
        grid_spec=pltpu.PrefetchScalarGridSpec(
            num_scalar_prefetch=0,
            grid=(batch, hg, sq, skv),
            # q / k / v read straight out of the (M, 3D) QKV projection output:
            # q head-pair g at cols g*128, k at D + g*128, v at 2D + g*128.
            in_specs=[
                pl.BlockSpec((tq, cw), lambda b, g, qi, ki: (b * sq + qi, g)),
                pl.BlockSpec((tkv, cw), lambda b, g, qi, ki: (b * skv + ki, hg + g)),
                pl.BlockSpec((tkv, cw), lambda b, g, qi, ki: (b * skv + ki, 2 * hg + g)),
            ],
            out_specs=pl.BlockSpec((tq, cw), lambda b, g, qi, ki: (b * sq + qi, g)),
            scratch_shapes=[pltpu.VMEM((tq, 1), jnp.float32),
                            pltpu.VMEM((tq, 1), jnp.float32),
                            pltpu.VMEM((tq, head_dim), jnp.float32),
                            pltpu.VMEM((tq, 1), jnp.float32),
                            pltpu.VMEM((tq, 1), jnp.float32),
                            pltpu.VMEM((tq, head_dim), jnp.float32)],
        ),
        compiler_params=pltpu.CompilerParams(
            dimension_semantics=("parallel", "parallel", "parallel", "arbitrary"),
            vmem_limit_bytes=VMEM_LIMIT),
    )(qkv, qkv, qkv)


# --------------------------------------------------------------------------
# Kernel 4: fused add -> LayerNorm2 -> Dejavu sparse MLP -> sparsity predictor.
# Grid (row tiles, Hf tiles).  At j == 0: residual add (f32 output) + LN into
# scratch.  Every j: fc1 tile -> gelu -> (int8 top-K mask) -> fc2 partial
# product into a resident f32 accumulator, plus the next-layer predictor logit
# tile from the residual.  At the last j: write mlp output (+ fc2 bias).
# --------------------------------------------------------------------------
def _add_ln_mlp_kernel(has_mask, *refs):
    if has_mask:
        (attn_ref, r_ref, g_ref, b_ref, mask_ref, w1_ref, b1_ref, w2_ref, b2_ref,
         wsp_ref, bsp_ref, mlp_ref, res_ref, logit_ref, ln_sc, rb_sc, acc_sc) = refs
    else:
        (attn_ref, r_ref, g_ref, b_ref, w1_ref, b1_ref, w2_ref, b2_ref,
         wsp_ref, bsp_ref, mlp_ref, res_ref, logit_ref, ln_sc, rb_sc, acc_sc) = refs
        mask_ref = None
    j = pl.program_id(1)

    @pl.when(j == 0)
    def _():
        res = attn_ref[...].astype(jnp.float32) + r_ref[...]
        res_ref[...] = res
        rb_sc[...] = res.astype(rb_sc.dtype)
        mean = jnp.mean(res, axis=-1, keepdims=True)
        xc = res - mean
        var = jnp.mean(xc * xc, axis=-1, keepdims=True)
        y = xc * jax.lax.rsqrt(var + LN_EPS)
        ln_sc[...] = (y * g_ref[...] + b_ref[...]).astype(ln_sc.dtype)
        acc_sc[...] = jnp.zeros_like(acc_sc)

    # fc1 tile -> GELU -> top-K mask -> fc2 partial accumulation
    h = jnp.dot(ln_sc[...], w1_ref[...], preferred_element_type=jnp.float32) + b1_ref[...]
    # TODO(synk): reference flash-attn Mlp uses exact (erf) GELU; tanh approx here.
    h = jax.nn.gelu(h)
    if has_mask:
        h = h * mask_ref[...].astype(jnp.float32)
    acc_sc[...] += jnp.dot(h.astype(w2_ref.dtype), w2_ref[...],
                           preferred_element_type=jnp.float32)

    # next-layer MLP sparsity-predictor logits on the (post-attention) residual
    logit_ref[...] = (jnp.dot(rb_sc[...], wsp_ref[...],
                              preferred_element_type=jnp.float32) + bsp_ref[...])

    @pl.when(j == pl.num_programs(1) - 1)
    def _():
        mlp_ref[...] = (acc_sc[...] + b2_ref[...]).astype(mlp_ref.dtype)


def add_ln_mlp_sparse(attn2d, r2d, gamma, beta, mask2d,
                      w1, b1, w2, b2, wsp, bsp, *, out_dtype):
    M, D = attn2d.shape
    Hf = w1.shape[1]
    cdt = w1.dtype
    has_mask = mask2d is not None
    tm = _row_tile(M, MLP_ROW_TILE, 32)     # 32-aligned rows (int8 mask sublane packing)
    th = _pick_tile(Hf, MM_TILE, 128)

    in_specs = [pl.BlockSpec((tm, D), lambda i, j: (i, 0)),     # attention output
                pl.BlockSpec((tm, D), lambda i, j: (i, 0)),     # residual (f32)
                pl.BlockSpec((1, D), lambda i, j: (0, 0)),      # LN2 weight
                pl.BlockSpec((1, D), lambda i, j: (0, 0))]      # LN2 bias
    args = [attn2d, r2d, gamma.reshape(1, D), beta.reshape(1, D)]
    if has_mask:
        in_specs.append(pl.BlockSpec((tm, th), lambda i, j: (i, j)))
        args.append(mask2d)
    in_specs += [pl.BlockSpec((D, th), lambda i, j: (0, j)),    # w1 tile
                 pl.BlockSpec((1, th), lambda i, j: (0, j)),    # b1 tile
                 pl.BlockSpec((th, D), lambda i, j: (j, 0)),    # w2 tile
                 pl.BlockSpec((1, D), lambda i, j: (0, 0)),     # b2
                 pl.BlockSpec((D, th), lambda i, j: (0, j)),    # wsp tile
                 pl.BlockSpec((1, th), lambda i, j: (0, j))]    # bsp tile
    args += [w1, b1.reshape(1, Hf), w2, b2.reshape(1, D), wsp, bsp.reshape(1, Hf)]

    return pl.pallas_call(
        functools.partial(_add_ln_mlp_kernel, has_mask),
        out_shape=(jax.ShapeDtypeStruct((M, D), out_dtype),     # MLP output
                   jax.ShapeDtypeStruct((M, D), jnp.float32),   # new residual
                   jax.ShapeDtypeStruct((M, Hf), jnp.float32)), # next sparsity logits
        grid_spec=pltpu.PrefetchScalarGridSpec(
            num_scalar_prefetch=0,
            grid=(M // tm, Hf // th),
            in_specs=in_specs,
            out_specs=(pl.BlockSpec((tm, D), lambda i, j: (i, 0)),
                       pl.BlockSpec((tm, D), lambda i, j: (i, 0)),
                       pl.BlockSpec((tm, th), lambda i, j: (i, j))),
            scratch_shapes=[pltpu.VMEM((tm, D), cdt),           # LN2(residual), compute dtype
                            pltpu.VMEM((tm, D), cdt),           # residual copy for predictor
                            pltpu.VMEM((tm, D), jnp.float32)],  # fc2 accumulator
        ),
        compiler_params=pltpu.CompilerParams(
            dimension_semantics=("parallel", "arbitrary"),
            vmem_limit_bytes=VMEM_LIMIT),
    )(*args)


# --------------------------------------------------------------------------
# Parameters + full BlockMlpAttSparse forward (prenorm, eval mode)
# --------------------------------------------------------------------------
def init_params(key, dim, hidden_features, dtype=jnp.bfloat16):
    ks = jax.random.split(key, 5)
    s = 0.02

    def w(k, shape):
        return (s * jax.random.normal(k, shape, jnp.float32)).astype(dtype)

    return {
        "norm1_w": jnp.ones((dim,), jnp.float32),
        "norm1_b": jnp.zeros((dim,), jnp.float32),
        "norm2_w": jnp.ones((dim,), jnp.float32),
        "norm2_b": jnp.zeros((dim,), jnp.float32),
        "wqkv": w(ks[0], (dim, 3 * dim)),
        "bqkv": jnp.zeros((3 * dim,), jnp.float32),
        "wo": w(ks[1], (dim, dim)),
        "bo": jnp.zeros((dim,), jnp.float32),
        "w1": w(ks[2], (dim, hidden_features)),
        "b1": jnp.zeros((hidden_features,), jnp.float32),
        "w2": w(ks[3], (hidden_features, dim)),
        "b2": jnp.zeros((dim,), jnp.float32),
        "wsp": w(ks[4], (dim, hidden_features)),
        "bsp": jnp.zeros((hidden_features,), jnp.float32),
    }


def block_dejavu_forward(params, hidden_states, residual=None, mlp_sp_logit=None,
                         *, num_heads, sp_k):
    B, S, D = hidden_states.shape
    hd = D // num_heads
    M = B * S
    Hf = params["w1"].shape[1]
    cdt = params["wqkv"].dtype                       # bf16 matmul/activation dtype

    h2d = hidden_states.reshape(M, D)
    if residual is None:
        r2d = jnp.zeros((M, D), jnp.float32)
    else:
        r2d = residual.reshape(M, D).astype(jnp.float32)

    # dropout1 / drop_path1 are identity (p = 0, eval):
    # fused add + LayerNorm1 + QKV projection (LN'd activations never hit HBM)
    r2d, qkv = add_ln_matmul(h2d, r2d, params["norm1_w"], params["norm1_b"],
                             params["wqkv"], params["bqkv"], out_dtype=cdt)   # (M,D) f32, (M,3D)

    # flash attention straight off the (M, 3D) QKV layout (2 heads per grid step)
    ctx = flash_attention(qkv, batch=B, seq=S, num_heads=num_heads,
                          head_dim=hd, out_dtype=cdt)                          # (M, D)
    attn2d = matmul_bias(ctx, params["wo"], params["bo"], out_dtype=cdt)       # (M, D)

    # mlp_idx = topk(mlp_sp_logit, self.mlp.sp.K), as a threshold-compare 0/1 mask (int8)
    if mlp_sp_logit is None:
        mask2d = None                                 # dense MLP path (no mask streamed)
    else:
        logit_prev = mlp_sp_logit.reshape(M, Hf)
        kth = jax.lax.top_k(logit_prev, sp_k)[0][..., -1:]
        mask2d = (logit_prev >= kth).astype(jnp.int8)

    # dropout2 / drop_path2 are identity (p = 0, eval):
    # fused add + LayerNorm2 + Dejavu sparse MLP + next-layer sparsity predictor
    mlp2d, r2d, logit2d = add_ln_mlp_sparse(
        attn2d, r2d, params["norm2_w"], params["norm2_b"], mask2d,
        params["w1"], params["b1"], params["w2"], params["b2"],
        params["wsp"], params["bsp"], out_dtype=cdt)

    # TODO(synk): default MHA mixer has no attention sparsity predictor -> next_att_idx=None
    return (mlp2d.reshape(B, S, D),
            r2d.reshape(B, S, D),
            logit2d.reshape(B, S, Hf),
            None)


if __name__ == "__main__":
    B, S, D = 2, 128, 128
    NUM_HEADS = D // 64            # reference default: partial(MHA, num_heads=dim // 64)
    HF = 4 * D                     # reference default: Mlp(hidden_features=4 * dim)
    SP_K = HF // 4                 # self.mlp.sp.K (top-K active MLP neurons per token)

    key = jax.random.PRNGKey(0)
    kp, kx, kr, kl = jax.random.split(key, 4)
    params = init_params(kp, D, HF)

    hidden_states = jax.random.normal(kx, (B, S, D), jnp.float32).astype(jnp.bfloat16)
    residual = 0.1 * jax.random.normal(kr, (B, S, D), jnp.float32)
    mlp_sp_logit = jax.random.normal(kl, (B, S, HF), jnp.float32)

    fwd = jax.jit(functools.partial(block_dejavu_forward,
                                    num_heads=NUM_HEADS, sp_k=SP_K))
    hs, res, next_logit, next_att_idx = fwd(params, hidden_states, residual, mlp_sp_logit)
    jax.block_until_ready((hs, res, next_logit))

    assert hs.shape == (B, S, D)
    assert res.shape == (B, S, D)
    assert next_logit.shape == (B, S, HF)
    print("KERNEL_OK")
</pallas_src>

<mosaic_0001>
module attributes {stable_mosaic.version = 11 : i64} {
  func.func @_add_ln_matmul_kernel(%arg0: i32, %arg1: i32, %arg2: memref<128x128xbf16, #tpu.memory_space<vmem>>, %arg3: memref<128x128xf32, #tpu.memory_space<vmem>>, %arg4: memref<1x128xf32, #tpu.memory_space<vmem>>, %arg5: memref<1x128xf32, #tpu.memory_space<vmem>>, %arg6: memref<128x128xbf16, #tpu.memory_space<vmem>>, %arg7: memref<1x128xf32, #tpu.memory_space<vmem>>, %arg8: memref<128x128xf32, #tpu.memory_space<vmem>>, %arg9: memref<128x128xbf16, #tpu.memory_space<vmem>>, %arg10: memref<128x128xbf16, #tpu.memory_space<vmem>>) attributes {dimension_semantics = [#tpu.dimension_semantics<parallel>, #tpu.dimension_semantics<arbitrary>], iteration_bounds = array<i64: 2, 3>, scalar_prefetch = 0 : i64, scratch_operands = 1 : i64, tpu.core_type = #tpu.core_type<tc>, window_params = [{transform_indices = @transform_0, window_bounds = array<i64: 128, 128>}, {transform_indices = @transform_1, window_bounds = array<i64: 128, 128>}, {pipeline_mode = #tpu.pipeline_mode<synchronous>, transform_indices = @transform_2, window_bounds = array<i64: 1, 128>}, {pipeline_mode = #tpu.pipeline_mode<synchronous>, transform_indices = @transform_3, window_bounds = array<i64: 1, 128>}, {transform_indices = @transform_4, window_bounds = array<i64: 128, 128>}, {transform_indices = @transform_5, window_bounds = array<i64: 1, 128>}, {transform_indices = @transform_6, window_bounds = array<i64: 128, 128>}, {transform_indices = @transform_7, window_bounds = array<i64: 128, 128>}]} {
    %c0_i32 = arith.constant 0 : i32
    %0 = arith.cmpi eq, %arg1, %c0_i32 : i32
    %1 = arith.extui %0 : i1 to i32
    %c0_i32_0 = arith.constant 0 : i32
    %2 = arith.cmpi ne, %1, %c0_i32_0 : i32
    scf.if %2 {
      %c0_8 = arith.constant 0 : index
      %c0_9 = arith.constant 0 : index
      %11 = vector.load %arg2[%c0_8, %c0_9] : memref<128x128xbf16, #tpu.memory_space<vmem>>, vector<128x128xbf16>
      %12 = arith.extf %11 : vector<128x128xbf16> to vector<128x128xf32>
      %c0_10 = arith.constant 0 : index
      %c0_11 = arith.constant 0 : index
      %13 = vector.load %arg3[%c0_10, %c0_11] : memref<128x128xf32, #tpu.memory_space<vmem>>, vector<128x128xf32>
      %14 = arith.addf %12, %13 : vector<128x128xf32>
      %c0_12 = arith.constant 0 : index
      %c0_13 = arith.constant 0 : index
      %15 = vector.load %arg8[%c0_12, %c0_13] : memref<128x128xf32, #tpu.memory_space<vmem>>, vector<128x128xf32>
      tpu.vector_store %arg8[%c0_12, %c0_13], %14 {strides = array<i32>} : memref<128x128xf32, #tpu.memory_space<vmem>>, vector<128x128xf32>,
      %cst_14 = arith.constant dense<0.000000e+00> : vector<128xf32>
      %16 = vector.multi_reduction <add>, %14, %cst_14 [1] : vector<128x128xf32> to vector<128xf32>
      %17 = vector.shape_cast %16 : vector<128xf32> to vector<128x1xf32>
      %cst_15 = arith.constant 1.280000e+02 : f32
      %18 = vector.broadcast %cst_15 : f32 to vector<128x1xf32>
      %19 = arith.divf %17, %18 : vector<128x1xf32>
      %20 = vector.broadcast %19 : vector<128x1xf32> to vector<128x128xf32>
      %21 = arith.subf %14, %20 : vector<128x128xf32>
      %22 = arith.mulf %21, %21 : vector<128x128xf32>
      %cst_16 = arith.constant dense<0.000000e+00> : vector<128xf32>
      %23 = vector.multi_reduction <add>, %22, %cst_16 [1] : vector<128x128xf32> to vector<128xf32>
      %24 = vector.shape_cast %23 : vector<128xf32> to vector<128x1xf32>
      %cst_17 = arith.constant 1.280000e+02 : f32
      %25 = vector.broadcast %cst_17 : f32 to vector<128x1xf32>
      %26 = arith.divf %24, %25 : vector<128x1xf32>
      %cst_18 = arith.constant 9.99999974E-6 : f32
      %27 = vector.broadcast %cst_18 : f32 to vector<128x1xf32>
      %28 = arith.addf %26, %27 : vector<128x1xf32>
      %29 = math.rsqrt %28 : vector<128x1xf32>
      %30 = vector.broadcast %29 : vector<128x1xf32> to vector<128x128xf32>
      %31 = arith.mulf %21, %30 : vector<128x128xf32>
      %c0_19 = arith.constant 0 : index
      %c0_20 = arith.constant 0 : index
      %32 = vector.load %arg4[%c0_19, %c0_20] : memref<1x128xf32, #tpu.memory_space<vmem>>, vector<1x128xf32>
      %33 = vector.broadcast %32 : vector<1x128xf32> to vector<128x128xf32>
      %34 = arith.mulf %31, %33 : vector<128x128xf32>
      %c0_21 = arith.constant 0 : index
      %c0_22 = arith.constant 0 : index
      %35 = vector.load %arg5[%c0_21, %c0_22] : memref<1x128xf32, #tpu.memory_space<vmem>>, vector<1x128xf32>
      %36 = vector.broadcast %35 : vector<1x128xf32> to vector<128x128xf32>
      %37 = arith.addf %34, %36 : vector<128x128xf32>
      %38 = arith.truncf %37 : vector<128x128xf32> to vector<128x128xbf16>
      %c0_23 = arith.constant 0 : index
      %c0_24 = arith.constant 0 : index
      %39 = vector.load %arg10[%c0_23, %c0_24] : memref<128x128xbf16, #tpu.memory_space<vmem>>, vector<128x128xbf16>
      tpu.vector_store %arg10[%c0_23, %c0_24], %38 {strides = array<i32>} : memref<128x128xbf16, #tpu.memory_space<vmem>>, vector<128x128xbf16>,
    } else {
    }
    %c0 = arith.constant 0 : index
    %c0_1 = arith.constant 0 : index
    %3 = vector.load %arg10[%c0, %c0_1] : memref<128x128xbf16, #tpu.memory_space<vmem>>, vector<128x128xbf16>
    %c0_2 = arith.constant 0 : index
    %c0_3 = arith.constant 0 : index
    %4 = vector.load %arg6[%c0_2, %c0_3] : memref<128x128xbf16, #tpu.memory_space<vmem>>, vector<128x128xbf16>
    %cst = arith.constant dense<0.000000e+00> : vector<128x128xf32>
    %5 = tpu.matmul %3, %4, %cst {dimension_numbers = #tpu.dot_dimension_numbers<[1], [0], [0], [1], [0, 0, 1, 1], [], []>} : vector<128x128xbf16>, vector<128x128xbf16>, vector<128x128xf32> -> vector<128x128xf32>
    %c0_4 = arith.constant 0 : index
    %c0_5 = arith.constant 0 : index
    %6 = vector.load %arg7[%c0_4, %c0_5] : memref<1x128xf32, #tpu.memory_space<vmem>>, vector<1x128xf32>
    %7 = vector.broadcast %6 : vector<1x128xf32> to vector<128x128xf32>
    %8 = arith.addf %5, %7 : vector<128x128xf32>
    %9 = arith.truncf %8 : vector<128x128xf32> to vector<128x128xbf16>
    %c0_6 = arith.constant 0 : index
    %c0_7 = arith.constant 0 : index
    %10 = vector.load %arg9[%c0_6, %c0_7] : memref<128x128xbf16, #tpu.memory_space<vmem>>, vector<128x128xbf16>
    tpu.vector_store %arg9[%c0_6, %c0_7], %9 {strides = array<i32>} : memref<128x128xbf16, #tpu.memory_space<vmem>>, vector<128x128xbf16>,
    return
  }
  func.func @transform_0(%arg0: i32, %arg1: i32) -> (i32, i32) {
    %c0_i32 = arith.constant 0 : i32
    %c0_i32_0 = arith.constant 0 : i32
    return %arg0, %c0_i32 : i32, i32
  }
  func.func @transform_1(%arg0: i32, %arg1: i32) -> (i32, i32) {
    %c0_i32 = arith.constant 0 : i32
    %c0_i32_0 = arith.constant 0 : i32
    return %arg0, %c0_i32 : i32, i32
  }
  func.func @transform_2(%arg0: i32, %arg1: i32) -> (i32, i32) {
    %c0_i32 = arith.constant 0 : i32
    %c0_i32_0 = arith.constant 0 : i32
    %c0_i32_1 = arith.constant 0 : i32
    return %c0_i32, %c0_i32_0 : i32, i32
  }
  func.func @transform_3(%arg0: i32, %arg1: i32) -> (i32, i32) {
    %c0_i32 = arith.constant 0 : i32
    %c0_i32_0 = arith.constant 0 : i32
    %c0_i32_1 = arith.constant 0 : i32
    return %c0_i32, %c0_i32_0 : i32, i32
  }
  func.func @transform_4(%arg0: i32, %arg1: i32) -> (i32, i32) {
    %c0_i32 = arith.constant 0 : i32
    %c0_i32_0 = arith.constant 0 : i32
    return %c0_i32, %arg1 : i32, i32
  }
  func.func @transform_5(%arg0: i32, %arg1: i32) -> (i32, i32) {
    %c0_i32 = arith.constant 0 : i32
    %c0_i32_0 = arith.constant 0 : i32
    return %c0_i32, %arg1 : i32, i32
  }
  func.func @transform_6(%arg0: i32, %arg1: i32) -> (i32, i32) {
    %c0_i32 = arith.constant 0 : i32
    %c0_i32_0 = arith.constant 0 : i32
    return %arg0, %c0_i32 : i32, i32
  }
  func.func @transform_7(%arg0: i32, %arg1: i32) -> (i32, i32) {
    %c0_i32 = arith.constant 0 : i32
    return %arg0, %arg1 : i32, i32
  }
}

module attributes {stable_mosaic.version = 11 : i64} {
  func.func @_flash_kernel(%arg0: i32, %arg1: i32, %arg2: i32, %arg3: i32, %arg4: memref<128x128xbf16, #tpu.memory_space<vmem>>, %arg5: memref<128x128xbf16, #tpu.memory_space<vmem>>, %arg6: memref<128x128xbf16, #tpu.memory_space<vmem>>, %arg7: memref<128x128xbf16, #tpu.memory_space<vmem>>, %arg8: memref<128x1xf32, #tpu.memory_space<vmem>>, %arg9: memref<128x1xf32, #tpu.memory_space<vmem>>, %arg10: memref<128x64xf32, #tpu.memory_space<vmem>>, %arg11: memref<128x1xf32, #tpu.memory_space<vmem>>, %arg12: memref<128x1xf32, #tpu.memory_space<vmem>>, %arg13: memref<128x64xf32, #tpu.memory_space<vmem>>) attributes {dimension_semantics = [#tpu.dimension_semantics<parallel>, #tpu.dimension_semantics<parallel>, #tpu.dimension_semantics<parallel>, #tpu.dimension_semantics<arbitrary>], iteration_bounds = array<i64: 2, 1, 1, 1>, scalar_prefetch = 0 : i64, scratch_operands = 6 : i64, tpu.core_type = #tpu.core_type<tc>, window_params = [{transform_indices = @transform_0, window_bounds = array<i64: 128, 128>}, {transform_indices = @transform_1, window_bounds = array<i64: 128, 128>}, {transform_indices = @transform_2, window_bounds = array<i64: 128, 128>}, {transform_indices = @transform_3, window_bounds = array<i64: 128, 128>}]} {
    %c0_i32 = arith.constant 0 : i32
    %0 = arith.cmpi eq, %arg3, %c0_i32 : i32
    %1 = arith.extui %0 : i1 to i32
    %c0_i32_0 = arith.constant 0 : i32
    %2 = arith.cmpi ne, %1, %c0_i32_0 : i32
    scf.if %2 {
      %cst_40 = arith.constant 0xFF800000 : f32
      %68 = vector.broadcast %cst_40 : f32 to vector<128x1xf32>
      %c0_41 = arith.constant 0 : index
      %c0_42 = arith.constant 0 : index
      %69 = vector.load %arg8[%c0_41, %c0_42] : memref<128x1xf32, #tpu.memory_space<vmem>>, vector<128x1xf32>
      tpu.vector_store %arg8[%c0_41, %c0_42], %68 {strides = array<i32>} : memref<128x1xf32, #tpu.memory_space<vmem>>, vector<128x1xf32>,
      %cst_43 = arith.constant 0.000000e+00 : f32
      %70 = vector.broadcast %cst_43 : f32 to vector<128x1xf32>
      %c0_44 = arith.constant 0 : index
      %c0_45 = arith.constant 0 : index
      %71 = vector.load %arg9[%c0_44, %c0_45] : memref<128x1xf32, #tpu.memory_space<vmem>>, vector<128x1xf32>
      tpu.vector_store %arg9[%c0_44, %c0_45], %70 {strides = array<i32>} : memref<128x1xf32, #tpu.memory_space<vmem>>, vector<128x1xf32>,
      %cst_46 = arith.constant 0.000000e+00 : f32
      %72 = vector.broadcast %cst_46 : f32 to vector<128x64xf32>
      %c0_47 = arith.constant 0 : index
      %c0_48 = arith.constant 0 : index
      %73 = vector.load %arg10[%c0_47, %c0_48] : memref<128x64xf32, #tpu.memory_space<vmem>>, vector<128x64xf32>
      tpu.vector_store %arg10[%c0_47, %c0_48], %72 {strides = array<i32>} : memref<128x64xf32, #tpu.memory_space<vmem>>, vector<128x64xf32>,
      %cst_49 = arith.constant 0xFF800000 : f32
      %74 = vector.broadcast %cst_49 : f32 to vector<128x1xf32>
      %c0_50 = arith.constant 0 : index
      %c0_51 = arith.constant 0 : index
      %75 = vector.load %arg11[%c0_50, %c0_51] : memref<128x1xf32, #tpu.memory_space<vmem>>, vector<128x1xf32>
      tpu.vector_store %arg11[%c0_50, %c0_51], %74 {strides = array<i32>} : memref<128x1xf32, #tpu.memory_space<vmem>>, vector<128x1xf32>,
      %cst_52 = arith.constant 0.000000e+00 : f32
      %76 = vector.broadcast %cst_52 : f32 to vector<128x1xf32>
      %c0_53 = arith.constant 0 : index
      %c0_54 = arith.constant 0 : index
      %77 = vector.load %arg12[%c0_53, %c0_54] : memref<128x1xf32, #tpu.memory_space<vmem>>, vector<128x1xf32>
      tpu.vector_store %arg12[%c0_53, %c0_54], %76 {strides = array<i32>} : memref<128x1xf32, #tpu.memory_space<vmem>>, vector<128x1xf32>,
      %cst_55 = arith.constant 0.000000e+00 : f32
      %78 = vector.broadcast %cst_55 : f32 to vector<128x64xf32>
      %c0_56 = arith.constant 0 : index
      %c0_57 = arith.constant 0 : index
      %79 = vector.load %arg13[%c0_56, %c0_57] : memref<128x64xf32, #tpu.memory_space<vmem>>, vector<128x64xf32>
      tpu.vector_store %arg13[%c0_56, %c0_57], %78 {strides = array<i32>} : memref<128x64xf32, #tpu.memory_space<vmem>>, vector<128x64xf32>,
    } else {
    }
    %c0 = arith.constant 0 : index
    %c0_1 = arith.constant 0 : index
    %3 = vector.load %arg4[%c0, %c0_1] : memref<128x128xbf16, #tpu.memory_space<vmem>>, vector<128x128xbf16>
    %4 = arith.extf %3 : vector<128x128xbf16> to vector<128x128xf32>
    %cst = arith.constant 1.250000e-01 : f32
    %5 = vector.broadcast %cst : f32 to vector<128x128xf32>
    %6 = arith.mulf %4, %5 : vector<128x128xf32>
    %c0_2 = arith.constant 0 : index
    %c0_3 = arith.constant 0 : index
    %7 = vector.load %arg5[%c0_2, %c0_3] : memref<128x128xbf16, #tpu.memory_space<vmem>>, vector<128x128xbf16>
    %c0_4 = arith.constant 0 : index
    %c0_5 = arith.constant 0 : index
    %8 = vector.load %arg6[%c0_4, %c0_5] : memref<128x128xbf16, #tpu.memory_space<vmem>>, vector<128x128xbf16>
    %9 = vector.extract_strided_slice %6 {offsets = [0, 0], sizes = [128, 64], strides = [1, 1]} : vector<128x128xf32> to vector<128x64xf32>
    %10 = arith.truncf %9 : vector<128x64xf32> to vector<128x64xbf16>
    %11 = vector.extract_strided_slice %7 {offsets = [0, 0], sizes = [128, 64], strides = [1, 1]} : vector<128x128xbf16> to vector<128x64xbf16>
    %12 = vector.extract_strided_slice %8 {offsets = [0, 0], sizes = [128, 64], strides = [1, 1]} : vector<128x128xbf16> to vector<128x64xbf16>
    %cst_6 = arith.constant dense<0.000000e+00> : vector<128x128xf32>
    %13 = tpu.matmul %10, %11, %cst_6 {dimension_numbers = #tpu.dot_dimension_numbers<[1], [1], [0], [0], [0, 0, 1, 0], [], []>} : vector<128x64xbf16>, vector<128x64xbf16>, vector<128x128xf32> -> vector<128x128xf32>
    %c0_7 = arith.constant 0 : index
    %c0_8 = arith.constant 0 : index
    %14 = vector.load %arg8[%c0_7, %c0_8] : memref<128x1xf32, #tpu.memory_space<vmem>>, vector<128x1xf32>
    %cst_9 = arith.constant dense<0xFF800000> : vector<128xf32>
    %15 = vector.multi_reduction <maximumf>, %13, %cst_9 [1] : vector<128x128xf32> to vector<128xf32>
    %16 = vector.shape_cast %15 : vector<128xf32> to vector<128x1xf32>
    %17 = arith.maximumf %14, %16 : vector<128x1xf32>
    %18 = arith.subf %14, %17 : vector<128x1xf32>
    %19 = math.exp %18 : vector<128x1xf32>
    %20 = vector.broadcast %17 : vector<128x1xf32> to vector<128x128xf32>
    %21 = arith.subf %13, %20 : vector<128x128xf32>
    %22 = math.exp %21 : vector<128x128xf32>
    %c0_10 = arith.constant 0 : index
    %c0_11 = arith.constant 0 : index
    %23 = vector.load %arg9[%c0_10, %c0_11] : memref<128x1xf32, #tpu.memory_space<vmem>>, vector<128x1xf32>
    %24 = arith.mulf %19, %23 : vector<128x1xf32>
    %cst_12 = arith.constant dense<0.000000e+00> : vector<128xf32>
    %25 = vector.multi_reduction <add>, %22, %cst_12 [1] : vector<128x128xf32> to vector<128xf32>
    %26 = vector.shape_cast %25 : vector<128xf32> to vector<128x1xf32>
    %27 = arith.addf %24, %26 : vector<128x1xf32>
    %c0_13 = arith.constant 0 : index
    %c0_14 = arith.constant 0 : index
    %28 = vector.load %arg9[%c0_13, %c0_14] : memref<128x1xf32, #tpu.memory_space<vmem>>, vector<128x1xf32>
    tpu.vector_store %arg9[%c0_13, %c0_14], %27 {strides = array<i32>} : memref<128x1xf32, #tpu.memory_space<vmem>>, vector<128x1xf32>,
    %c0_15 = arith.constant 0 : index
    %c0_16 = arith.constant 0 : index
    %29 = vector.load %arg10[%c0_15, %c0_16] : memref<128x64xf32, #tpu.memory_space<vmem>>, vector<128x64xf32>
    %30 = vector.broadcast %19 : vector<128x1xf32> to vector<128x64xf32>
    %31 = arith.mulf %30, %29 : vector<128x64xf32>
    %32 = arith.truncf %22 : vector<128x128xf32> to vector<128x128xbf16>
    %cst_17 = arith.constant dense<0.000000e+00> : vector<128x64xf32>
    %33 = tpu.matmul %32, %12, %cst_17 {dimension_numbers = #tpu.dot_dimension_numbers<[1], [0], [0], [1], [0, 0, 1, 1], [], []>} : vector<128x128xbf16>, vector<128x64xbf16>, vector<128x64xf32> -> vector<128x64xf32>
    %34 = arith.addf %31, %33 : vector<128x64xf32>
    %c0_18 = arith.constant 0 : index
    %c0_19 = arith.constant 0 : index
    %35 = vector.load %arg10[%c0_18, %c0_19] : memref<128x64xf32, #tpu.memory_space<vmem>>, vector<128x64xf32>
    tpu.vector_store %arg10[%c0_18, %c0_19], %34 {strides = array<i32>} : memref<128x64xf32, #tpu.memory_space<vmem>>, vector<128x64xf32>,
    %c0_20 = arith.constant 0 : index
    %c0_21 = arith.constant 0 : index
    %36 = vector.load %arg8[%c0_20, %c0_21] : memref<128x1xf32, #tpu.memory_space<vmem>>, vector<128x1xf32>
    tpu.vector_store %arg8[%c0_20, %c0_21], %17 {strides = array<i32>} : memref<128x1xf32, #tpu.memory_space<vmem>>, vector<128x1xf32>,
    %37 = vector.extract_strided_slice %6 {offsets = [0, 64], sizes = [128, 64], strides = [1, 1]} : vector<128x128xf32> to vector<128x64xf32>
    %38 = arith.truncf %37 : vector<128x64xf32> to vector<128x64xbf16>
    %39 = vector.extract_strided_slice %7 {offsets = [0, 64], sizes = [128, 64], strides = [1, 1]} : vector<128x128xbf16> to vector<128x64xbf16>
    %40 = vector.extract_strided_slice %8 {offsets = [0, 64], sizes = [128, 64], strides = [1, 1]} : vector<128x128xbf16> to vector<128x64xbf16>
    %cst_22 = arith.constant dense<0.000000e+00> : vector<128x128xf32>
    %41 = tpu.matmul %38, %39, %cst_22 {dimension_numbers = #tpu.dot_dimension_numbers<[1], [1], [0], [0], [0, 0, 1, 0], [], []>} : vector<128x64xbf16>, vector<128x64xbf16>, vector<128x128xf32> -> vector<128x128xf32>
    %c0_23 = arith.constant 0 : index
    %c0_24 = arith.constant 0 : index
    %42 = vector.load %arg11[%c0_23, %c0_24] : memref<128x1xf32, #tpu.memory_space<vmem>>, vector<128x1xf32>
    %cst_25 = arith.constant dense<0xFF800000> : vector<128xf32>
    %43 = vector.multi_reduction <maximumf>, %41, %cst_25 [1] : vector<128x128xf32> to vector<128xf32>
    %44 = vector.shape_cast %43 : vector<128xf32> to vector<128x1xf32>
    %45 = arith.maximumf %42, %44 : vector<128x1xf32>
    %46 = arith.subf %42, %45 : vector<128x1xf32>
    %47 = math.exp %46 : vector<128x1xf32>
    %48 = vector.broadcast %45 : vector<128x1xf32> to vector<128x128xf32>
    %49 = arith.subf %41, %48 : vector<128x128xf32>
    %50 = math.exp %49 : vector<128x128xf32>
    %c0_26 = arith.constant 0 : index
    %c0_27 = arith.constant 0 : index
    %51 = vector.load %arg12[%c0_26, %c0_27] : memref<128x1xf32, #tpu.memory_space<vmem>>, vector<128x1xf32>
    %52 = arith.mulf %47, %51 : vector<128x1xf32>
    %cst_28 = arith.constant dense<0.000000e+00> : vector<128xf32>
    %53 = vector.multi_reduction <add>, %50, %cst_28 [1] : vector<128x128xf32> to vector<128xf32>
    %54 = vector.shape_cast %53 : vector<128xf32> to vector<128x1xf32>
    %55 = arith.addf %52, %54 : vector<128x1xf32>
    %c0_29 = arith.constant 0 : index
    %c0_30 = arith.constant 0 : index
    %56 = vector.load %arg12[%c0_29, %c0_30] : memref<128x1xf32, #tpu.memory_space<vmem>>, vector<128x1xf32>
    tpu.vector_store %arg12[%c0_29, %c0_30], %55 {strides = array<i32>} : memref<128x1xf32, #tpu.memory_space<vmem>>, vector<128x1xf32>,
    %c0_31 = arith.constant 0 : index
    %c0_32 = arith.constant 0 : index
    %57 = vector.load %arg13[%c0_31, %c0_32] : memref<128x64xf32, #tpu.memory_space<vmem>>, vector<128x64xf32>
    %58 = vector.broadcast %47 : vector<128x1xf32> to vector<128x64xf32>
    %59 = arith.mulf %58, %57 : vector<128x64xf32>
    %60 = arith.truncf %50 : vector<128x128xf32> to vector<128x128xbf16>
    %cst_33 = arith.constant dense<0.000000e+00> : vector<128x64xf32>
    %61 = tpu.matmul %60, %40, %cst_33 {dimension_numbers = #tpu.dot_dimension_numbers<[1], [0], [0], [1], [0, 0, 1, 1], [], []>} : vector<128x128xbf16>, vector<128x64xbf16>, vector<128x64xf32> -> vector<128x64xf32>
    %62 = arith.addf %59, %61 : vector<128x64xf32>
    %c0_34 = arith.constant 0 : index
    %c0_35 = arith.constant 0 : index
    %63 = vector.load %arg13[%c0_34, %c0_35] : memref<128x64xf32, #tpu.memory_space<vmem>>, vector<128x64xf32>
    tpu.vector_store %arg13[%c0_34, %c0_35], %62 {strides = array<i32>} : memref<128x64xf32, #tpu.memory_space<vmem>>, vector<128x64xf32>,
    %c0_36 = arith.constant 0 : index
    %c0_37 = arith.constant 0 : index
    %64 = vector.load %arg11[%c0_36, %c0_37] : memref<128x1xf32, #tpu.memory_space<vmem>>, vector<128x1xf32>
    tpu.vector_store %arg11[%c0_36, %c0_37], %45 {strides = array<i32>} : memref<128x1xf32, #tpu.memory_space<vmem>>, vector<128x1xf32>,
    %c0_i32_38 = arith.constant 0 : i32
    %65 = arith.cmpi eq, %arg3, %c0_i32_38 : i32
    %66 = arith.extui %65 : i1 to i32
    %c0_i32_39 = arith.constant 0 : i32
    %67 = arith.cmpi ne, %66, %c0_i32_39 : i32
    scf.if %67 {
      %c0_40 = arith.constant 0 : index
      %c0_41 = arith.constant 0 : index
      %68 = vector.load %arg10[%c0_40, %c0_41] : memref<128x64xf32, #tpu.memory_space<vmem>>, vector<128x64xf32>
      %c0_42 = arith.constant 0 : index
      %c0_43 = arith.constant 0 : index
      %69 = vector.load %arg9[%c0_42, %c0_43] : memref<128x1xf32, #tpu.memory_space<vmem>>, vector<128x1xf32>
      %70 = tpu.reciprocal %69 {approx = true} : vector<128x1xf32> -> vector<128x1xf32>
      %71 = vector.broadcast %70 : vector<128x1xf32> to vector<128x64xf32>
      %72 = arith.mulf %68, %71 : vector<128x64xf32>
      %c0_44 = arith.constant 0 : index
      %c0_45 = arith.constant 0 : index
      %73 = vector.load %arg13[%c0_44, %c0_45] : memref<128x64xf32, #tpu.memory_space<vmem>>, vector<128x64xf32>
      %c0_46 = arith.constant 0 : index
      %c0_47 = arith.constant 0 : index
      %74 = vector.load %arg12[%c0_46, %c0_47] : memref<128x1xf32, #tpu.memory_space<vmem>>, vector<128x1xf32>
      %75 = tpu.reciprocal %74 {approx = true} : vector<128x1xf32> -> vector<128x1xf32>
      %76 = vector.broadcast %75 : vector<128x1xf32> to vector<128x64xf32>
      %77 = arith.mulf %73, %76 : vector<128x64xf32>
      %78 = tpu.concatenate %72, %77 in 1 : vector<128x64xf32>, vector<128x64xf32> -> vector<128x128xf32>
      %79 = arith.truncf %78 : vector<128x128xf32> to vector<128x128xbf16>
      %c0_48 = arith.constant 0 : index
      %c0_49 = arith.constant 0 : index
      %80 = vector.load %arg7[%c0_48, %c0_49] : memref<128x128xbf16, #tpu.memory_space<vmem>>, vector<128x128xbf16>
      tpu.vector_store %arg7[%c0_48, %c0_49], %79 {strides = array<i32>} : memref<128x128xbf16, #tpu.memory_space<vmem>>, vector<128x128xbf16>,
    } else {
    }
    return
  }
  func.func @transform_0(%arg0: i32, %arg1: i32, %arg2: i32, %arg3: i32) -> (i32, i32) {
    %c1_i32 = arith.constant 1 : i32
    %0 = arith.muli %arg0, %c1_i32 : i32
    %1 = arith.addi %0, %arg2 : i32
    %c0_i32 = arith.constant 0 : i32
    return %1, %arg1 : i32, i32
  }
  func.func @transform_1(%arg0: i32, %arg1: i32, %arg2: i32, %arg3: i32) -> (i32, i32) {
    %c1_i32 = arith.constant 1 : i32
    %0 = arith.muli %arg0, %c1_i32 : i32
    %1 = arith.addi %0, %arg3 : i32
    %c1_i32_0 = arith.constant 1 : i32
    %2 = arith.addi %c1_i32_0, %arg1 : i32
    %c0_i32 = arith.constant 0 : i32
    return %1, %2 : i32, i32
  }
  func.func @transform_2(%arg0: i32, %arg1: i32, %arg2: i32, %arg3: i32) -> (i32, i32) {
    %c1_i32 = arith.constant 1 : i32
    %0 = arith.muli %arg0, %c1_i32 : i32
    %1 = arith.addi %0, %arg3 : i32
    %c2_i32 = arith.constant 2 : i32
    %2 = arith.addi %c2_i32, %arg1 : i32
    %c0_i32 = arith.constant 0 : i32
    return %1, %2 : i32, i32
  }
  func.func @transform_3(%arg0: i32, %arg1: i32, %arg2: i32, %arg3: i32) -> (i32, i32) {
    %c1_i32 = arith.constant 1 : i32
    %0 = arith.muli %arg0, %c1_i32 : i32
    %1 = arith.addi %0, %arg2 : i32
    %c0_i32 = arith.constant 0 : i32
    return %1, %arg1 : i32, i32
  }
}

module attributes {stable_mosaic.version = 11 : i64} {
  func.func @_matmul_bias_kernel(%arg0: i32, %arg1: i32, %arg2: i32, %arg3: memref<128x128xbf16, #tpu.memory_space<vmem>>, %arg4: memref<128x128xbf16, #tpu.memory_space<vmem>>, %arg5: memref<1x128xf32, #tpu.memory_space<vmem>>, %arg6: memref<128x128xbf16, #tpu.memory_space<vmem>>, %arg7: memref<128x128xf32, #tpu.memory_space<vmem>>) attributes {dimension_semantics = [#tpu.dimension_semantics<parallel>, #tpu.dimension_semantics<parallel>, #tpu.dimension_semantics<arbitrary>], iteration_bounds = array<i64: 2, 1, 1>, scalar_prefetch = 0 : i64, scratch_operands = 1 : i64, tpu.core_type = #tpu.core_type<tc>, window_params = [{transform_indices = @transform_0, window_bounds = array<i64: 128, 128>}, {transform_indices = @transform_1, window_bounds = array<i64: 128, 128>}, {transform_indices = @transform_2, window_bounds = array<i64: 1, 128>}, {transform_indices = @transform_3, window_bounds = array<i64: 128, 128>}]} {
    %c0_i32 = arith.constant 0 : i32
    %0 = arith.cmpi eq, %arg2, %c0_i32 : i32
    %1 = arith.extui %0 : i1 to i32
    %c0_i32_0 = arith.constant 0 : i32
    %2 = arith.cmpi ne, %1, %c0_i32_0 : i32
    scf.if %2 {
      %cst_10 = arith.constant 0.000000e+00 : f32
      %12 = vector.broadcast %cst_10 : f32 to vector<128x128xf32>
      %c0_11 = arith.constant 0 : index
      %c0_12 = arith.constant 0 : index
      %13 = vector.load %arg7[%c0_11, %c0_12] : memref<128x128xf32, #tpu.memory_space<vmem>>, vector<128x128xf32>
      tpu.vector_store %arg7[%c0_11, %c0_12], %12 {strides = array<i32>} : memref<128x128xf32, #tpu.memory_space<vmem>>, vector<128x128xf32>,
    } else {
    }
    %c0 = arith.constant 0 : index
    %c0_1 = arith.constant 0 : index
    %3 = vector.load %arg7[%c0, %c0_1] : memref<128x128xf32, #tpu.memory_space<vmem>>, vector<128x128xf32>
    %c0_2 = arith.constant 0 : index
    %c0_3 = arith.constant 0 : index
    %4 = vector.load %arg3[%c0_2, %c0_3] : memref<128x128xbf16, #tpu.memory_space<vmem>>, vector<128x128xbf16>
    %c0_4 = arith.constant 0 : index
    %c0_5 = arith.constant 0 : index
    %5 = vector.load %arg4[%c0_4, %c0_5] : memref<128x128xbf16, #tpu.memory_space<vmem>>, vector<128x128xbf16>
    %cst = arith.constant dense<0.000000e+00> : vector<128x128xf32>
    %6 = tpu.matmul %4, %5, %cst {dimension_numbers = #tpu.dot_dimension_numbers<[1], [0], [0], [1], [0, 0, 1, 1], [], []>} : vector<128x128xbf16>, vector<128x128xbf16>, vector<128x128xf32> -> vector<128x128xf32>
    %7 = arith.addf %3, %6 : vector<128x128xf32>
    %c0_6 = arith.constant 0 : index
    %c0_7 = arith.constant 0 : index
    %8 = vector.load %arg7[%c0_6, %c0_7] : memref<128x128xf32, #tpu.memory_space<vmem>>, vector<128x128xf32>
    tpu.vector_store %arg7[%c0_6, %c0_7], %7 {strides = array<i32>} : memref<128x128xf32, #tpu.memory_space<vmem>>, vector<128x128xf32>,
    %c0_i32_8 = arith.constant 0 : i32
    %9 = arith.cmpi eq, %arg2, %c0_i32_8 : i32
    %10 = arith.extui %9 : i1 to i32
    %c0_i32_9 = arith.constant 0 : i32
    %11 = arith.cmpi ne, %10, %c0_i32_9 : i32
    scf.if %11 {
      %c0_10 = arith.constant 0 : index
      %c0_11 = arith.constant 0 : index
      %12 = vector.load %arg7[%c0_10, %c0_11] : memref<128x128xf32, #tpu.memory_space<vmem>>, vector<128x128xf32>
      %c0_12 = arith.constant 0 : index
      %c0_13 = arith.constant 0 : index
      %13 = vector.load %arg5[%c0_12, %c0_13] : memref<1x128xf32, #tpu.memory_space<vmem>>, vector<1x128xf32>
      %14 = vector.broadcast %13 : vector<1x128xf32> to vector<128x128xf32>
      %15 = arith.addf %12, %14 : vector<128x128xf32>
      %16 = arith.truncf %15 : vector<128x128xf32> to vector<128x128xbf16>
      %c0_14 = arith.constant 0 : index
      %c0_15 = arith.constant 0 : index
      %17 = vector.load %arg6[%c0_14, %c0_15] : memref<128x128xbf16, #tpu.memory_space<vmem>>, vector<128x128xbf16>
      tpu.vector_store %arg6[%c0_14, %c0_15], %16 {strides = array<i32>} : memref<128x128xbf16, #tpu.memory_space<vmem>>, vector<128x128xbf16>,
    } else {
    }
    return
  }
  func.func @transform_0(%arg0: i32, %arg1: i32, %arg2: i32) -> (i32, i32) {
    %c0_i32 = arith.constant 0 : i32
    return %arg0, %arg2 : i32, i32
  }
  func.func @transform_1(%arg0: i32, %arg1: i32, %arg2: i32) -> (i32, i32) {
    %c0_i32 = arith.constant 0 : i32
    return %arg2, %arg1 : i32, i32
  }
  func.func @transform_2(%arg0: i32, %arg1: i32, %arg2: i32) -> (i32, i32) {
    %c0_i32 = arith.constant 0 : i32
    %c0_i32_0 = arith.constant 0 : i32
    return %c0_i32, %arg1 : i32, i32
  }
  func.func @transform_3(%arg0: i32, %arg1: i32, %arg2: i32) -> (i32, i32) {
    %c0_i32 = arith.constant 0 : i32
    return %arg0, %arg1 : i32, i32
  }
}

module attributes {stable_mosaic.version = 11 : i64} {
  func.func @_add_ln_mlp_kernel(%arg0: i32, %arg1: i32, %arg2: memref<128x128xbf16, #tpu.memory_space<vmem>>, %arg3: memref<128x128xf32, #tpu.memory_space<vmem>>, %arg4: memref<1x128xf32, #tpu.memory_space<vmem>>, %arg5: memref<1x128xf32, #tpu.memory_space<vmem>>, %arg6: memref<128x256xi8, #tpu.memory_space<vmem>>, %arg7: memref<128x256xbf16, #tpu.memory_space<vmem>>, %arg8: memref<1x256xf32, #tpu.memory_space<vmem>>, %arg9: memref<256x128xbf16, #tpu.memory_space<vmem>>, %arg10: memref<1x128xf32, #tpu.memory_space<vmem>>, %arg11: memref<128x256xbf16, #tpu.memory_space<vmem>>, %arg12: memref<1x256xf32, #tpu.memory_space<vmem>>, %arg13: memref<128x128xbf16, #tpu.memory_space<vmem>>, %arg14: memref<128x128xf32, #tpu.memory_space<vmem>>, %arg15: memref<128x256xf32, #tpu.memory_space<vmem>>, %arg16: memref<128x128xbf16, #tpu.memory_space<vmem>>, %arg17: memref<128x128xbf16, #tpu.memory_space<vmem>>, %arg18: memref<128x128xf32, #tpu.memory_space<vmem>>) attributes {dimension_semantics = [#tpu.dimension_semantics<parallel>, #tpu.dimension_semantics<arbitrary>], iteration_bounds = array<i64: 2, 2>, scalar_prefetch = 0 : i64, scratch_operands = 3 : i64, tpu.core_type = #tpu.core_type<tc>, window_params = [{transform_indices = @transform_0, window_bounds = array<i64: 128, 128>}, {transform_indices = @transform_1, window_bounds = array<i64: 128, 128>}, {pipeline_mode = #tpu.pipeline_mode<synchronous>, transform_indices = @transform_2, window_bounds = array<i64: 1, 128>}, {pipeline_mode = #tpu.pipeline_mode<synchronous>, transform_indices = @transform_3, window_bounds = array<i64: 1, 128>}, {transform_indices = @transform_4, window_bounds = array<i64: 128, 256>}, {transform_indices = @transform_5, window_bounds = array<i64: 128, 256>}, {transform_indices = @transform_6, window_bounds = array<i64: 1, 256>}, {transform_indices = @transform_7, window_bounds = array<i64: 256, 128>}, {pipeline_mode = #tpu.pipeline_mode<synchronous>, transform_indices = @transform_8, window_bounds = array<i64: 1, 128>}, {transform_indices = @transform_9, window_bounds = array<i64: 128, 256>}, {transform_indices = @transform_10, window_bounds = array<i64: 1, 256>}, {transform_indices = @transform_11, window_bounds = array<i64: 128, 128>}, {transform_indices = @transform_12, window_bounds = array<i64: 128, 128>}, {transform_indices = @transform_13, window_bounds = array<i64: 128, 256>}]} {
    %c0_i32 = arith.constant 0 : i32
    %0 = arith.cmpi eq, %arg1, %c0_i32 : i32
    %1 = arith.extui %0 : i1 to i32
    %c0_i32_0 = arith.constant 0 : i32
    %2 = arith.cmpi ne, %1, %c0_i32_0 : i32
    scf.if %2 {
      %c0_29 = arith.constant 0 : index
      %c0_30 = arith.constant 0 : index
      %41 = vector.load %arg2[%c0_29, %c0_30] : memref<128x128xbf16, #tpu.memory_space<vmem>>, vector<128x128xbf16>
      %42 = arith.extf %41 : vector<128x128xbf16> to vector<128x128xf32>
      %c0_31 = arith.constant 0 : index
      %c0_32 = arith.constant 0 : index
      %43 = vector.load %arg3[%c0_31, %c0_32] : memref<128x128xf32, #tpu.memory_space<vmem>>, vector<128x128xf32>
      %44 = arith.addf %42, %43 : vector<128x128xf32>
      %c0_33 = arith.constant 0 : index
      %c0_34 = arith.constant 0 : index
      %45 = vector.load %arg14[%c0_33, %c0_34] : memref<128x128xf32, #tpu.memory_space<vmem>>, vector<128x128xf32>
      tpu.vector_store %arg14[%c0_33, %c0_34], %44 {strides = array<i32>} : memref<128x128xf32, #tpu.memory_space<vmem>>, vector<128x128xf32>,
      %46 = arith.truncf %44 : vector<128x128xf32> to vector<128x128xbf16>
      %c0_35 = arith.constant 0 : index
      %c0_36 = arith.constant 0 : index
      %47 = vector.load %arg17[%c0_35, %c0_36] : memref<128x128xbf16, #tpu.memory_space<vmem>>, vector<128x128xbf16>
      tpu.vector_store %arg17[%c0_35, %c0_36], %46 {strides = array<i32>} : memref<128x128xbf16, #tpu.memory_space<vmem>>, vector<128x128xbf16>,
      %cst_37 = arith.constant dense<0.000000e+00> : vector<128xf32>
      %48 = vector.multi_reduction <add>, %44, %cst_37 [1] : vector<128x128xf32> to vector<128xf32>
      %49 = vector.shape_cast %48 : vector<128xf32> to vector<128x1xf32>
      %cst_38 = arith.constant 1.280000e+02 : f32
      %50 = vector.broadcast %cst_38 : f32 to vector<128x1xf32>
      %51 = arith.divf %49, %50 : vector<128x1xf32>
      %52 = vector.broadcast %51 : vector<128x1xf32> to vector<128x128xf32>
      %53 = arith.subf %44, %52 : vector<128x128xf32>
      %54 = arith.mulf %53, %53 : vector<128x128xf32>
      %cst_39 = arith.constant dense<0.000000e+00> : vector<128xf32>
      %55 = vector.multi_reduction <add>, %54, %cst_39 [1] : vector<128x128xf32> to vector<128xf32>
      %56 = vector.shape_cast %55 : vector<128xf32> to vector<128x1xf32>
      %cst_40 = arith.constant 1.280000e+02 : f32
      %57 = vector.broadcast %cst_40 : f32 to vector<128x1xf32>
      %58 = arith.divf %56, %57 : vector<128x1xf32>
      %cst_41 = arith.constant 9.99999974E-6 : f32
      %59 = vector.broadcast %cst_41 : f32 to vector<128x1xf32>
      %60 = arith.addf %58, %59 : vector<128x1xf32>
      %61 = math.rsqrt %60 : vector<128x1xf32>
      %62 = vector.broadcast %61 : vector<128x1xf32> to vector<128x128xf32>
      %63 = arith.mulf %53, %62 : vector<128x128xf32>
      %c0_42 = arith.constant 0 : index
      %c0_43 = arith.constant 0 : index
      %64 = vector.load %arg4[%c0_42, %c0_43] : memref<1x128xf32, #tpu.memory_space<vmem>>, vector<1x128xf32>
      %65 = vector.broadcast %64 : vector<1x128xf32> to vector<128x128xf32>
      %66 = arith.mulf %63, %65 : vector<128x128xf32>
      %c0_44 = arith.constant 0 : index
      %c0_45 = arith.constant 0 : index
      %67 = vector.load %arg5[%c0_44, %c0_45] : memref<1x128xf32, #tpu.memory_space<vmem>>, vector<1x128xf32>
      %68 = vector.broadcast %67 : vector<1x128xf32> to vector<128x128xf32>
      %69 = arith.addf %66, %68 : vector<128x128xf32>
      %70 = arith.truncf %69 : vector<128x128xf32> to vector<128x128xbf16>
      %c0_46 = arith.constant 0 : index
      %c0_47 = arith.constant 0 : index
      %71 = vector.load %arg16[%c0_46, %c0_47] : memref<128x128xbf16, #tpu.memory_space<vmem>>, vector<128x128xbf16>
      tpu.vector_store %arg16[%c0_46, %c0_47], %70 {strides = array<i32>} : memref<128x128xbf16, #tpu.memory_space<vmem>>, vector<128x128xbf16>,
      %cst_48 = arith.constant 0.000000e+00 : f32
      %72 = vector.broadcast %cst_48 : f32 to vector<128x128xf32>
      %c0_49 = arith.constant 0 : index
      %c0_50 = arith.constant 0 : index
      %73 = vector.load %arg18[%c0_49, %c0_50] : memref<128x128xf32, #tpu.memory_space<vmem>>, vector<128x128xf32>
      tpu.vector_store %arg18[%c0_49, %c0_50], %72 {strides = array<i32>} : memref<128x128xf32, #tpu.memory_space<vmem>>, vector<128x128xf32>,
    } else {
    }
    %c0 = arith.constant 0 : index
    %c0_1 = arith.constant 0 : index
    %3 = vector.load %arg16[%c0, %c0_1] : memref<128x128xbf16, #tpu.memory_space<vmem>>, vector<128x128xbf16>
    %c0_2 = arith.constant 0 : index
    %c0_3 = arith.constant 0 : index
    %4 = vector.load %arg7[%c0_2, %c0_3] : memref<128x256xbf16, #tpu.memory_space<vmem>>, vector<128x256xbf16>
    %cst = arith.constant dense<0.000000e+00> : vector<128x256xf32>
    %5 = tpu.matmul %3, %4, %cst {dimension_numbers = #tpu.dot_dimension_numbers<[1], [0], [0], [1], [0, 0, 1, 1], [], []>} : vector<128x128xbf16>, vector<128x256xbf16>, vector<128x256xf32> -> vector<128x256xf32>
    %c0_4 = arith.constant 0 : index
    %c0_5 = arith.constant 0 : index
    %6 = vector.load %arg8[%c0_4, %c0_5] : memref<1x256xf32, #tpu.memory_space<vmem>>, vector<1x256xf32>
    %7 = vector.broadcast %6 : vector<1x256xf32> to vector<128x256xf32>
    %8 = arith.addf %5, %7 : vector<128x256xf32>
    %9 = arith.mulf %8, %8 : vector<128x256xf32>
    %10 = arith.mulf %8, %9 : vector<128x256xf32>
    %cst_6 = arith.constant 4.471500e-02 : f32
    %11 = vector.broadcast %cst_6 : f32 to vector<128x256xf32>
    %12 = arith.mulf %11, %10 : vector<128x256xf32>
    %13 = arith.addf %8, %12 : vector<128x256xf32>
    %cst_7 = arith.constant 0.797884583 : f32
    %14 = vector.broadcast %cst_7 : f32 to vector<128x256xf32>
    %15 = arith.mulf %14, %13 : vector<128x256xf32>
    %16 = math.tanh %15 : vector<128x256xf32>
    %cst_8 = arith.constant 1.000000e+00 : f32
    %17 = vector.broadcast %cst_8 : f32 to vector<128x256xf32>
    %18 = arith.addf %17, %16 : vector<128x256xf32>
    %cst_9 = arith.constant 5.000000e-01 : f32
    %19 = vector.broadcast %cst_9 : f32 to vector<128x256xf32>
    %20 = arith.mulf %19, %18 : vector<128x256xf32>
    %21 = arith.mulf %8, %20 : vector<128x256xf32>
    %c0_10 = arith.constant 0 : index
    %c0_11 = arith.constant 0 : index
    %22 = vector.load %arg6[%c0_10, %c0_11] : memref<128x256xi8, #tpu.memory_space<vmem>>, vector<128x256xi8>
    %23 = arith.sitofp %22 : vector<128x256xi8> to vector<128x256xf32>
    %24 = arith.mulf %21, %23 : vector<128x256xf32>
    %c0_12 = arith.constant 0 : index
    %c0_13 = arith.constant 0 : index
    %25 = vector.load %arg18[%c0_12, %c0_13] : memref<128x128xf32, #tpu.memory_space<vmem>>, vector<128x128xf32>
    %26 = arith.truncf %24 : vector<128x256xf32> to vector<128x256xbf16>
    %c0_14 = arith.constant 0 : index
    %c0_15 = arith.constant 0 : index
    %27 = vector.load %arg9[%c0_14, %c0_15] : memref<256x128xbf16, #tpu.memory_space<vmem>>, vector<256x128xbf16>
    %cst_16 = arith.constant dense<0.000000e+00> : vector<128x128xf32>
    %28 = tpu.matmul %26, %27, %cst_16 {dimension_numbers = #tpu.dot_dimension_numbers<[1], [0], [0], [1], [0, 0, 1, 1], [], []>} : vector<128x256xbf16>, vector<256x128xbf16>, vector<128x128xf32> -> vector<128x128xf32>
    %29 = arith.addf %25, %28 : vector<128x128xf32>
    %c0_17 = arith.constant 0 : index
    %c0_18 = arith.constant 0 : index
    %30 = vector.load %arg18[%c0_17, %c0_18] : memref<128x128xf32, #tpu.memory_space<vmem>>, vector<128x128xf32>
    tpu.vector_store %arg18[%c0_17, %c0_18], %29 {strides = array<i32>} : memref<128x128xf32, #tpu.memory_space<vmem>>, vector<128x128xf32>,
    %c0_19 = arith.constant 0 : index
    %c0_20 = arith.constant 0 : index
    %31 = vector.load %arg17[%c0_19, %c0_20] : memref<128x128xbf16, #tpu.memory_space<vmem>>, vector<128x128xbf16>
    %c0_21 = arith.constant 0 : index
    %c0_22 = arith.constant 0 : index
    %32 = vector.load %arg11[%c0_21, %c0_22] : memref<128x256xbf16, #tpu.memory_space<vmem>>, vector<128x256xbf16>
    %cst_23 = arith.constant dense<0.000000e+00> : vector<128x256xf32>
    %33 = tpu.matmul %31, %32, %cst_23 {dimension_numbers = #tpu.dot_dimension_numbers<[1], [0], [0], [1], [0, 0, 1, 1], [], []>} : vector<128x128xbf16>, vector<128x256xbf16>, vector<128x256xf32> -> vector<128x256xf32>
    %c0_24 = arith.constant 0 : index
    %c0_25 = arith.constant 0 : index
    %34 = vector.load %arg12[%c0_24, %c0_25] : memref<1x256xf32, #tpu.memory_space<vmem>>, vector<1x256xf32>
    %35 = vector.broadcast %34 : vector<1x256xf32> to vector<128x256xf32>
    %36 = arith.addf %33, %35 : vector<128x256xf32>
    %c0_26 = arith.constant 0 : index
    %c0_27 = arith.constant 0 : index
    %37 = vector.load %arg15[%c0_26, %c0_27] : memref<128x256xf32, #tpu.memory_space<vmem>>, vector<128x256xf32>
    tpu.vector_store %arg15[%c0_26, %c0_27], %36 {strides = array<i32>} : memref<128x256xf32, #tpu.memory_space<vmem>>, vector<128x256xf32>,
    %c1_i32 = arith.constant 1 : i32
    %38 = arith.cmpi eq, %arg1, %c1_i32 : i32
    %39 = arith.extui %38 : i1 to i32
    %c0_i32_28 = arith.constant 0 : i32
    %40 = arith.cmpi ne, %39, %c0_i32_28 : i32
    scf.if %40 {
      %c0_29 = arith.constant 0 : index
      %c0_30 = arith.constant 0 : index
      %41 = vector.load %arg18[%c0_29, %c0_30] : memref<128x128xf32, #tpu.memory_space<vmem>>, vector<128x128xf32>
      %c0_31 = arith.constant 0 : index
      %c0_32 = arith.constant 0 : index
      %42 = vector.load %arg10[%c0_31, %c0_32] : memref<1x128xf32, #tpu.memory_space<vmem>>, vector<1x128xf32>
      %43 = vector.broadcast %42 : vector<1x128xf32> to vector<128x128xf32>
      %44 = arith.addf %41, %43 : vector<128x128xf32>
      %45 = arith.truncf %44 : vector<128x128xf32> to vector<128x128xbf16>
      %c0_33 = arith.constant 0 : index
      %c0_34 = arith.constant 0 : index
      %46 = vector.load %arg13[%c0_33, %c0_34] : memref<128x128xbf16, #tpu.memory_space<vmem>>, vector<128x128xbf16>
      tpu.vector_store %arg13[%c0_33, %c0_34], %45 {strides = array<i32>} : memref<128x128xbf16, #tpu.memory_space<vmem>>, vector<128x128xbf16>,
    } else {
    }
    return
  }
  func.func @transform_0(%arg0: i32, %arg1: i32) -> (i32, i32) {
    %c0_i32 = arith.constant 0 : i32
    %c0_i32_0 = arith.constant 0 : i32
    return %arg0, %c0_i32 : i32, i32
  }
  func.func @transform_1(%arg0: i32, %arg1: i32) -> (i32, i32) {
    %c0_i32 = arith.constant 0 : i32
    %c0_i32_0 = arith.constant 0 : i32
    return %arg0, %c0_i32 : i32, i32
  }
  func.func @transform_2(%arg0: i32, %arg1: i32) -> (i32, i32) {
    %c0_i32 = arith.constant 0 : i32
    %c0_i32_0 = arith.constant 0 : i32
    %c0_i32_1 = arith.constant 0 : i32
    return %c0_i32, %c0_i32_0 : i32, i32
  }
  func.func @transform_3(%arg0: i32, %arg1: i32) -> (i32, i32) {
    %c0_i32 = arith.constant 0 : i32
    %c0_i32_0 = arith.constant 0 : i32
    %c0_i32_1 = arith.constant 0 : i32
    return %c0_i32, %c0_i32_0 : i32, i32
  }
  func.func @transform_4(%arg0: i32, %arg1: i32) -> (i32, i32) {
    %c0_i32 = arith.constant 0 : i32
    return %arg0, %arg1 : i32, i32
  }
  func.func @transform_5(%arg0: i32, %arg1: i32) -> (i32, i32) {
    %c0_i32 = arith.constant 0 : i32
    %c0_i32_0 = arith.constant 0 : i32
    return %c0_i32, %arg1 : i32, i32
  }
  func.func @transform_6(%arg0: i32, %arg1: i32) -> (i32, i32) {
    %c0_i32 = arith.constant 0 : i32
    %c0_i32_0 = arith.constant 0 : i32
    return %c0_i32, %arg1 : i32, i32
  }
  func.func @transform_7(%arg0: i32, %arg1: i32) -> (i32, i32) {
    %c0_i32 = arith.constant 0 : i32
    %c0_i32_0 = arith.constant 0 : i32
    return %arg1, %c0_i32 : i32, i32
  }
  func.func @transform_8(%arg0: i32, %arg1: i32) -> (i32, i32) {
    %c0_i32 = arith.constant 0 : i32
    %c0_i32_0 = arith.constant 0 : i32
    %c0_i32_1 = arith.constant 0 : i32
    return %c0_i32, %c0_i32_0 : i32, i32
  }
  func.func @transform_9(%arg0: i32, %arg1: i32) -> (i32, i32) {
    %c0_i32 = arith.constant 0 : i32
    %c0_i32_0 = arith.constant 0 : i32
    return %c0_i32, %arg1 : i32, i32
  }
  func.func @transform_10(%arg0: i32, %arg1: i32) -> (i32, i32) {
    %c0_i32 = arith.constant 0 : i32
    %c0_i32_0 = arith.constant 0 : i32
    return %c0_i32, %arg1 : i32, i32
  }
  func.func @transform_11(%arg0: i32, %arg1: i32) -> (i32, i32) {
    %c0_i32 = arith.constant 0 : i32
    %c0_i32_0 = arith.constant 0 : i32
    return %arg0, %c0_i32 : i32, i32
  }
  func.func @transform_12(%arg0: i32, %arg1: i32) -> (i32, i32) {
    %c0_i32 = arith.constant 0 : i32
    %c0_i32_0 = arith.constant 0 : i32
    return %arg0, %c0_i32 : i32, i32
  }
  func.func @transform_13(%arg0: i32, %arg1: i32) -> (i32, i32) {
    %c0_i32 = arith.constant 0 : i32
    return %arg0, %arg1 : i32, i32
  }
}

</mosaic_0001>

<llo_original>
// kernel: block_dejavu_forward.6
$region0: #{block_dejavu_forward.6}
  #allocation0 [shape = 'u32[]', space=smem, size = 0x4, offset = 0x4, fixed_abs, tag = 'smem constant byte address 0x4 - core index']
  #allocation1 [shape = 'u32[144,128]{1,0:T(1,128)}', space=vmem, size = 0x12000, scoped, tag = 'internal scratch']
  #allocation2 [shape = 'f32[128,128]{1,0:T(8,128)}', space=vmem, size = 0x10000, scoped, tag = 'scratch operand']
  %s0 = inlined_call_operand.vmem [shape: bf16[256,128], index: 0, kind: input, shape index: {}]
  %s1 = inlined_call_operand.vmem [shape: bf16[128,128], index: 1, kind: input, shape index: {}]
  %s2 = inlined_call_operand.vmem [shape: f32[1,128], index: 2, kind: input, shape index: {}]
  %s3 = inlined_call_operand.vmem [shape: bf16[256,128], index: 3, kind: output, shape index: {}]
  %s4 = sld [smem:[#allocation0]]
  $region53: #{block_dejavu_forward.6} parent=0
    _
  %s6 = ssub.s32 1, %s4
  %s7 = scalar_select 0, %s6, %s4
  loop: start=0, step=1, limit=4
  $region2: #{block_dejavu_forward.6} parent=0 // loop_pre_header
    _
  $region3: #{block_dejavu_forward.6} parent=0 // loop_header
    %s9 = sphi 0, %s13
    %p10 = scmp.ge.s32.totalorder %s9, 4
    %s16 = sphi 0, %s35
    %s17 = sphi 0, %s31
    %s18 = sphi 0, %s27
    %s19 = sphi 0, %s16
    %s20 = sphi 0, %s17
    %s21 = sphi 0, %s18
    %s22 = sphi 0, %s19
    %s23 = sphi 0, %s20
    %s24 = sphi 0, %s21
    %s40 = sphi 0, %s42
    %s43 = sphi 0, %s40
    %s44 = sphi 0, %s43
    %s60 = sphi 0, %s44
    %s68 = sphi 0, %s70
    %s71 = sphi 0, %s68
    %s72 = sphi 0, %s71
    %s88 = sphi 0, %s72
    %s94 = sphi 0, %s96
    %s97 = sphi 0, %s94
    %s98 = sphi 0, %s97
    %s114 = sphi 0, %s98
    %s122 = sphi 0, %s124
    %s125 = sphi 0, %s122
    %s126 = sphi 0, %s125
    %s142 = sphi 0, %s126
  $region4: #{block_dejavu_forward.6} parent=0 // loop_header_branch
    %12 = sbr.rel (%p10) target = $region8
  $region5: #{block_dejavu_forward.6} parent=0 // loop_body
    %s14 = ssub.s32 %s9, 1
    %s15 = ssub.s32 %s9, 2
    %s25 = sadd.s32 1, %s18
    %p26 = scmp.ge.s32.totalorder %s25, 1
    %s27 = scalar_select %p26, 0, %s25
    %s28 = sadd.s32 1, %s17
    %s29 = scalar_select %p26, %s28, %s17
    %p30 = scmp.ge.s32.totalorder %s29, 1
    %s31 = scalar_select %p30, 0, %s29
    %s32 = sadd.s32 1, %s16
    %s33 = scalar_select %p30, %s32, %s16
    %p34 = scmp.ge.s32.totalorder %s33, 2
    %s35 = scalar_select %p34, 0, %s33
    %s36 = ssub.s32 %s16, %s35
    %s37 = ssub.s32 %s18, %s27
    %s38 = sor.u32 %s36, %s37
    %p39 = scmp.eq.s32.totalorder %s38, 0
    %s41 = sadd.s32 %s40, 1
    %s42 = scalar_select %p39, %s40, %s41
    %p45 = pneg %p39
    %p46 = scmp.eq.s32.totalorder %s9, 1
    %p47 = por %p45, %p46
    %p48 = scmp.ne.s32.totalorder %s40, %s43
    %p49 = scmp.eq.s32.totalorder %s9, 0
    %p50 = por %p48, %p49
    %p51 = scmp.ne.s32.totalorder %s40, %s43
    %p52 = scmp.eq.s32.totalorder %s14, 1
    %p53 = por %p51, %p52
    %p54 = scmp.ne.s32.totalorder %s43, %s44
    %p55 = scmp.eq.s32.totalorder %s14, 0
    %p56 = por %p54, %p55
    %p57 = scmp.ne.s32.totalorder %s43, %s44
    %p58 = scmp.eq.s32.totalorder %s15, 1
    %p59 = por %p57, %p58
    %p61 = scmp.ne.s32.totalorder %s44, %s60
    %p62 = scmp.eq.s32.totalorder %s15, 0
    %p63 = por %p61, %p62
    %s64 = ssub.s32 %s18, %s27
    %s65 = ssub.s32 %s17, %s31
    %s66 = sor.u32 %s64, %s65
    %p67 = scmp.eq.s32.totalorder %s66, 0
    %s69 = sadd.s32 %s68, 1
    %s70 = scalar_select %p67, %s68, %s69
    %p73 = pneg %p67
    %p74 = scmp.eq.s32.totalorder %s9, 1
    %p75 = por %p73, %p74
    %p76 = scmp.ne.s32.totalorder %s68, %s71
    %p77 = scmp.eq.s32.totalorder %s9, 0
    %p78 = por %p76, %p77
    %p79 = scmp.ne.s32.totalorder %s68, %s71
    %p80 = scmp.eq.s32.totalorder %s14, 1
    %p81 = por %p79, %p80
    %p82 = scmp.ne.s32.totalorder %s71, %s72
    %p83 = scmp.eq.s32.totalorder %s14, 0
    %p84 = por %p82, %p83
    %p85 = scmp.ne.s32.totalorder %s71, %s72
    %p86 = scmp.eq.s32.totalorder %s15, 1
    %p87 = por %p85, %p86
    %p89 = scmp.ne.s32.totalorder %s72, %s88
    %p90 = scmp.eq.s32.totalorder %s15, 0
    %p91 = por %p89, %p90
    %s92 = ssub.s32 %s17, %s31
    %p93 = scmp.eq.s32.totalorder %s92, 0
    %s95 = sadd.s32 %s94, 1
    %s96 = scalar_select %p93, %s94, %s95
    %p99 = pneg %p93
    %p100 = scmp.eq.s32.totalorder %s9, 1
    %p101 = por %p99, %p100
    %p102 = scmp.ne.s32.totalorder %s94, %s97
    %p103 = scmp.eq.s32.totalorder %s9, 0
    %p104 = por %p102, %p103
    %p105 = scmp.ne.s32.totalorder %s94, %s97
    %p106 = scmp.eq.s32.totalorder %s14, 1
    %p107 = por %p105, %p106
    %p108 = scmp.ne.s32.totalorder %s97, %s98
    %p109 = scmp.eq.s32.totalorder %s14, 0
    %p110 = por %p108, %p109
    %p111 = scmp.ne.s32.totalorder %s97, %s98
    %p112 = scmp.eq.s32.totalorder %s15, 1
    %p113 = por %p111, %p112
    %p115 = scmp.ne.s32.totalorder %s98, %s114
    %p116 = scmp.eq.s32.totalorder %s15, 0
    %p117 = por %p115, %p116
    %s118 = ssub.s32 %s16, %s35
    %s119 = ssub.s32 %s17, %s31
    %s120 = sor.u32 %s118, %s119
    %p121 = scmp.eq.s32.totalorder %s120, 0
    %s123 = sadd.s32 %s122, 1
    %s124 = scalar_select %p121, %s122, %s123
    %p127 = pneg %p121
    %p128 = scmp.eq.s32.totalorder %s9, 1
    %p129 = por %p127, %p128
    %p130 = scmp.ne.s32.totalorder %s122, %s125
    %p131 = scmp.eq.s32.totalorder %s9, 0
    %p132 = por %p130, %p131
    %p133 = scmp.ne.s32.totalorder %s122, %s125
    %p134 = scmp.eq.s32.totalorder %s14, 1
    %p135 = por %p133, %p134
    %p136 = scmp.ne.s32.totalorder %s125, %s126
    %p137 = scmp.eq.s32.totalorder %s14, 0
    %p138 = por %p136, %p137
    %p139 = scmp.ne.s32.totalorder %s125, %s126
    %p140 = scmp.eq.s32.totalorder %s15, 1
    %p141 = por %p139, %p140
    %p143 = scmp.ne.s32.totalorder %s126, %s142
    %p144 = scmp.eq.s32.totalorder %s15, 0
    %p145 = por %p143, %p144
    %p146 = scmp.le.s32.totalorder 1, %s9
    %p147 = scmp.lt.s32.totalorder %s9, 3
    %p148 = pnand %p146, %p147
    %p149 = pneg %p148
    // Predicated region
    $region9: #{block_dejavu_forward.6} parent=5 // pred_check
      _
    $region10: #{block_dejavu_forward.6} parent=5 // pred_check_branch
      %151 = sbr.rel (%p148) target = $region12
    $region11: #{block_dejavu_forward.6} parent=5 // pred_region
      %s152 = ssub.s32 %s9, 1
      // Predicated region
      $region13: #{block_dejavu_forward.6} parent=11 // pred_check
        %p153 = pneg %p84
      $region14: #{block_dejavu_forward.6} parent=11 // pred_check_branch
        %155 = sbr.rel (%p153) target = $region16
      $region15: #{block_dejavu_forward.6} parent=11 // pred_region
        %s156 = smul.u32 16, %s21
        %p157 = scmp.lt.s32.totalorder %s156, 15
        %s158 = scalar_select %p157, %s156, 15
        %p159 = scmp.lt.s32.totalorder %s20, 0
        %s160 = scalar_select %p159, %s20, 0
        %s161 = sadd.s32 %s160, %s158
        %s162 = smul.addr %s161, 4
        %s163 = scalar_lea.vmem %s1, %s162
        %s164 = smul.u32 16, %s21
      $region16: #{block_dejavu_forward.6} parent=11 // pred_fallthru
        _
      // Predicated region
      $region17: #{block_dejavu_forward.6} parent=11 // pred_check
        %p165 = pneg %p110
      $region18: #{block_dejavu_forward.6} parent=11 // pred_check_branch
        %167 = sbr.rel (%p165) target = $region20
      $region19: #{block_dejavu_forward.6} parent=11 // pred_region
        %p168 = scmp.lt.s32.totalorder %s20, 0
        %s169 = scalar_select %p168, %s20, 0
        %s170 = scalar_lea.vmem %s2, %s169
      $region20: #{block_dejavu_forward.6} parent=11 // pred_fallthru
        _
    $region12: #{block_dejavu_forward.6} parent=5 // pred_fallthru
      _
    %p171 = scmp.lt.s32.totalorder %s9, 2
    // Predicated region
    $region21: #{block_dejavu_forward.6} parent=5 // pred_check
      %p172 = pneg %p171
    $region22: #{block_dejavu_forward.6} parent=5 // pred_check_branch
      %174 = sbr.rel (%p172) target = $region24
    $region23: #{block_dejavu_forward.6} parent=5 // pred_region
      // Predicated region
      $region25: #{block_dejavu_forward.6} parent=23 // pred_check
        %p175 = pneg %p50
      $region26: #{block_dejavu_forward.6} parent=23 // pred_check_branch
        %177 = sbr.rel (%p175) target = $region28
      $region27: #{block_dejavu_forward.6} parent=23 // pred_region
        %s178 = smul.u32 16, %s16
        %p179 = scmp.lt.s32.totalorder %s178, 31
        %s180 = scalar_select %p179, %s178, 31
        %p181 = scmp.lt.s32.totalorder %s18, 0
        %s182 = scalar_select %p181, %s18, 0
        %s183 = sadd.s32 %s182, %s180
        %s184 = smul.addr %s183, 4
        %s185 = scalar_lea.vmem %s0, %s184
        %s186 = smul.u32 16, %s16
      $region28: #{block_dejavu_forward.6} parent=23 // pred_fallthru
        _
    $region24: #{block_dejavu_forward.6} parent=5 // pred_fallthru
      _
    %p187 = scmp.le.s32.totalorder 1, %s9
    %p188 = scmp.lt.s32.totalorder %s9, 3
    %p189 = pnand %p187, %p188
    %p190 = pneg %p189
    // Predicated region
    $region29: #{block_dejavu_forward.6} parent=5 // pred_check
      _
    $region30: #{block_dejavu_forward.6} parent=5 // pred_check_branch
      %192 = sbr.rel (%p189) target = $region32
    $region31: #{block_dejavu_forward.6} parent=5 // pred_region
      %s193 = ssub.s32 %s9, 1
      %s194 = smul.u32 16, %s19
      %p195 = scmp.lt.s32.totalorder %s194, 31
      %s196 = scalar_select %p195, %s194, 31
      %p197 = scmp.lt.s32.totalorder %s21, 0
      %s198 = scalar_select %p197, %s21, 0
      %s199 = sadd.s32 %s198, %s196
      %s200 = smul.addr %s199, 4
      %s201 = scalar_lea.vmem %s0, %s200
      %p202 = pneg %p56
      %p203 = pneg %p53
      %s204 = smul.u32 16, %s21
      %p205 = scmp.lt.s32.totalorder %s204, 15
      %s206 = scalar_select %p205, %s204, 15
      %p207 = scmp.lt.s32.totalorder %s20, 0
      %s208 = scalar_select %p207, %s20, 0
      %s209 = sadd.s32 %s208, %s206
      %s210 = smul.addr %s209, 4
      %s211 = scalar_lea.vmem %s1, %s210
      %p212 = pneg %p84
      %p213 = pneg %p81
      %p214 = scmp.lt.s32.totalorder %s20, 0
      %s215 = scalar_select %p214, %s20, 0
      %s216 = scalar_lea.vmem %s2, %s215
      %p217 = pneg %p110
      %p218 = pneg %p107
      %p219 = pneg %p138
      %p220 = pneg %p135
      %s221 = smul.u32 16, %s19
      %p222 = scmp.lt.s32.totalorder %s221, 31
      %s223 = scalar_select %p222, %s221, 31
      %p224 = scmp.lt.s32.totalorder %s20, 0
      %s225 = scalar_select %p224, %s20, 0
      %s226 = sadd.s32 %s225, %s223
      %s227 = smul.addr %s226, 4
      %s228 = scalar_lea.vmem %s3, %s227
      %s229 = smul.u32 16, %s19
      %p230 = scmp.lt.s32.totalorder %s229, 31
      %s231 = scalar_select %p230, %s229, 31
      %p232 = scmp.lt.s32.totalorder %s21, 0
      %s233 = scalar_select %p232, %s21, 0
      %s234 = sadd.s32 %s233, %s231
      %s235 = smul.addr %s234, 4
      %s236 = scalar_lea.vmem %s0, %s235
      %s237 = smul.u32 16, %s19
      %s238 = smul.u32 16, %s21
      %p239 = scmp.lt.s32.totalorder %s238, 15
      %s240 = scalar_select %p239, %s238, 15
      %p241 = scmp.lt.s32.totalorder %s20, 0
      %s242 = scalar_select %p241, %s20, 0
      %s243 = sadd.s32 %s242, %s240
      %s244 = smul.addr %s243, 4
      %s245 = scalar_lea.vmem %s1, %s244
      %s246 = smul.u32 16, %s21
      %p247 = scmp.lt.s32.totalorder %s20, 0
      %s248 = scalar_select %p247, %s20, 0
      %s249 = scalar_lea.vmem %s2, %s248
      %s250 = smul.u32 16, %s19
      %p251 = scmp.lt.s32.totalorder %s250, 31
      %s252 = scalar_select %p251, %s250, 31
      %p253 = scmp.lt.s32.totalorder %s20, 0
      %s254 = scalar_select %p253, %s20, 0
      %s255 = sadd.s32 %s254, %s252
      %s256 = smul.addr %s255, 4
      %s257 = scalar_lea.vmem %s3, %s256
      %s258 = smul.u32 16, %s19
      %p260 = scmp.eq.s32.totalorder %s21, 0
      // Predicated region
      $region33: #{block_dejavu_forward.6} parent=31 // pred_check
        %p261 = pneg %p260
      $region34: #{block_dejavu_forward.6} parent=31 // pred_check_branch
        %263 = sbr.rel (%p261) target = $region36
      $region35: #{block_dejavu_forward.6} parent=31 // pred_region
        %264 = vst [vmem:[#allocation2] sm:$0xff] 0.0
        %265 = vst [vmem:[#allocation2 + $0x8] sm:$0xff] 0.0
        %266 = vst [vmem:[#allocation2 + $0x10] sm:$0xff] 0.0
        %267 = vst [vmem:[#allocation2 + $0x18] sm:$0xff] 0.0
        %268 = vst [vmem:[#allocation2 + $0x20] sm:$0xff] 0.0
        %269 = vst [vmem:[#allocation2 + $0x28] sm:$0xff] 0.0
        %270 = vst [vmem:[#allocation2 + $0x30] sm:$0xff] 0.0
        %271 = vst [vmem:[#allocation2 + $0x38] sm:$0xff] 0.0
        %272 = vst [vmem:[#allocation2 + $0x40] sm:$0xff] 0.0
        %273 = vst [vmem:[#allocation2 + $0x48] sm:$0xff] 0.0
        %274 = vst [vmem:[#allocation2 + $0x50] sm:$0xff] 0.0
        %275 = vst [vmem:[#allocation2 + $0x58] sm:$0xff] 0.0
        %276 = vst [vmem:[#allocation2 + $0x60] sm:$0xff] 0.0
        %277 = vst [vmem:[#allocation2 + $0x68] sm:$0xff] 0.0
        %278 = vst [vmem:[#allocation2 + $0x70] sm:$0xff] 0.0
        %279 = vst [vmem:[#allocation2 + $0x78] sm:$0xff] 0.0
      $region36: #{block_dejavu_forward.6} parent=31 // pred_fallthru
        _
      %v280 = vld [vmem:[#allocation2] sm:$0xff]
      %v281 = vld [vmem:[#allocation2 + $0x8] sm:$0xff]
      %v282 = vld [vmem:[#allocation2 + $0x10] sm:$0xff]
      %v283 = vld [vmem:[#allocation2 + $0x18] sm:$0xff]
      %v284 = vld [vmem:[#allocation2 + $0x20] sm:$0xff]
      %v285 = vld [vmem:[#allocation2 + $0x28] sm:$0xff]
      %v286 = vld [vmem:[#allocation2 + $0x30] sm:$0xff]
      %v287 = vld [vmem:[#allocation2 + $0x38] sm:$0xff]
      %v288 = vld [vmem:[#allocation2 + $0x40] sm:$0xff]
      %v289 = vld [vmem:[#allocation2 + $0x48] sm:$0xff]
      %v290 = vld [vmem:[#allocation2 + $0x50] sm:$0xff]
      %v291 = vld [vmem:[#allocation2 + $0x58] sm:$0xff]
      %v292 = vld [vmem:[#allocation2 + $0x60] sm:$0xff]
      %v293 = vld [vmem:[#allocation2 + $0x68] sm:$0xff]
      %v294 = vld [vmem:[#allocation2 + $0x70] sm:$0xff]
      %v295 = vld [vmem:[#allocation2 + $0x78] sm:$0xff]
      %v296 = vld [vmem:[%s236] sm:$0xf]
      %v297 = vld [vmem:[%s236 + $0x4] sm:$0xf]
      %v298 = vld [vmem:[%s236 + $0x8] sm:$0xf]
      %v299 = vld [vmem:[%s236 + $0xc] sm:$0xf]
      %v300 = vld [vmem:[%s236 + $0x10] sm:$0xf]
      %v301 = vld [vmem:[%s236 + $0x14] sm:$0xf]
      %v302 = vld [vmem:[%s236 + $0x18] sm:$0xf]
      %v303 = vld [vmem:[%s236 + $0x1c] sm:$0xf]
      %v304 = vld [vmem:[%s236 + $0x20] sm:$0xf]
      %v305 = vld [vmem:[%s236 + $0x24] sm:$0xf]
      %v306 = vld [vmem:[%s236 + $0x28] sm:$0xf]
      %v307 = vld [vmem:[%s236 + $0x2c] sm:$0xf]
      %v308 = vld [vmem:[%s236 + $0x30] sm:$0xf]
      %v309 = vld [vmem:[%s236 + $0x34] sm:$0xf]
      %v310 = vld [vmem:[%s236 + $0x38] sm:$0xf]
      %v311 = vld [vmem:[%s236 + $0x3c] sm:$0xf]
      %v312 = vld [vmem:[%s245] sm:$0xf]
      %v313 = vld [vmem:[%s245 + $0x4] sm:$0xf]
      %v314 = vld [vmem:[%s245 + $0x8] sm:$0xf]
      %v315 = vld [vmem:[%s245 + $0xc] sm:$0xf]
      %v316 = vld [vmem:[%s245 + $0x10] sm:$0xf]
      %v317 = vld [vmem:[%s245 + $0x14] sm:$0xf]
      %v318 = vld [vmem:[%s245 + $0x18] sm:$0xf]
      %v319 = vld [vmem:[%s245 + $0x1c] sm:$0xf]
      %v320 = vld [vmem:[%s245 + $0x20] sm:$0xf]
      %v321 = vld [vmem:[%s245 + $0x24] sm:$0xf]
      %v322 = vld [vmem:[%s245 + $0x28] sm:$0xf]
      %v323 = vld [vmem:[%s245 + $0x2c] sm:$0xf]
      %v324 = vld [vmem:[%s245 + $0x30] sm:$0xf]
      %v325 = vld [vmem:[%s245 + $0x34] sm:$0xf]
      %v326 = vld [vmem:[%s245 + $0x38] sm:$0xf]
      %v327 = vld [vmem:[%s245 + $0x3c] sm:$0xf]
      %v344 = vunpack.c.l.b16 %v296
      %v345 = vunpack.c.l.b16 %v297
      %v346 = vunpack.c.l.b16 %v298
      %v347 = vunpack.c.l.b16 %v299
      %v348 = vunpack.c.l.b16 %v300
      %v349 = vunpack.c.l.b16 %v301
      %v350 = vunpack.c.l.b16 %v302
      %v351 = vunpack.c.l.b16 %v303
      %v352 = vunpack.c.l.b16 %v304
      %v353 = vunpack.c.l.b16 %v305
      %v354 = vunpack.c.l.b16 %v306
      %v355 = vunpack.c.l.b16 %v307
      %v356 = vunpack.c.l.b16 %v308
      %v357 = vunpack.c.l.b16 %v309
      %v358 = vunpack.c.l.b16 %v310
      %v359 = vunpack.c.l.b16 %v311
      %v360 = vpack.c.b16 %v345, %v344
      %v361 = vpack.c.b16 %v347, %v346
      %v362 = vpack.c.b16 %v349, %v348
      %v363 = vpack.c.b16 %v351, %v350
      %v364 = vpack.c.b16 %v353, %v352
      %v365 = vpack.c.b16 %v355, %v354
      %v366 = vpack.c.b16 %v357, %v356
      %v367 = vpack.c.b16 %v359, %v358
      %v392 = vunpack.c.l.b16 %v312
      %v393 = vunpack.c.l.b16 %v313
      %v394 = vunpack.c.l.b16 %v314
      %v395 = vunpack.c.l.b16 %v315
      %v396 = vunpack.c.l.b16 %v316
      %v397 = vunpack.c.l.b16 %v317
      %v398 = vunpack.c.l.b16 %v318
      %v399 = vunpack.c.l.b16 %v319
      %v400 = vunpack.c.l.b16 %v320
      %v401 = vunpack.c.l.b16 %v321
      %v402 = vunpack.c.l.b16 %v322
      %v403 = vunpack.c.l.b16 %v323
      %v404 = vunpack.c.l.b16 %v324
      %v405 = vunpack.c.l.b16 %v325
      %v406 = vunpack.c.l.b16 %v326
      %v407 = vunpack.c.l.b16 %v327
      %v408 = vpack.c.b16 %v393, %v392
      %v409 = vpack.c.b16 %v395, %v394
      %v410 = vpack.c.b16 %v397, %v396
      %v411 = vpack.c.b16 %v399, %v398
      %v412 = vpack.c.b16 %v401, %v400
      %v413 = vpack.c.b16 %v403, %v402
      %v414 = vpack.c.b16 %v405, %v404
      %v415 = vpack.c.b16 %v407, %v406
      %424 = vmatprep.subr.bf16.mxu0 0
      %425 = vmatpush1.bf16.msra.mxu0 %v408
      %426 = vmatprep.subr.bf16.mxu0 0
      %427 = vmatpush1.bf16.msra.mxu0 %v409
      %428 = vmatprep.subr.bf16.mxu0 0
      %429 = vmatpush1.bf16.msra.mxu0 %v410
      %430 = vmatprep.subr.bf16.mxu0 0
      %431 = vmatpush1.bf16.msra.mxu0 %v411
      %432 = vmatprep.subr.bf16.mxu0 0
      %433 = vmatpush1.bf16.msra.mxu0 %v412
      %434 = vmatprep.subr.bf16.mxu0 0
      %435 = vmatpush1.bf16.msra.mxu0 %v413
      %436 = vmatprep.subr.bf16.mxu0 0
      %437 = vmatpush1.bf16.msra.mxu0 %v414
      %438 = vmatprep.subr.bf16.mxu0 0
      %439 = vmatpush1.bf16.msra.mxu0 %v415
      %440 = vmatprep.subr.bf16.mxu0 0
      %441 = vmatpush1.bf16.msra.mxu0 0
      %442 = vmatprep.subr.bf16.mxu0 0
      %443 = vmatpush1.bf16.msra.mxu0 0
      %444 = vmatprep.subr.bf16.mxu0 0
      %445 = vmatpush1.bf16.msra.mxu0 0
      %446 = vmatprep.subr.bf16.mxu0 0
      %447 = vmatpush1.bf16.msra.mxu0 0
      %448 = vmatprep.subr.bf16.mxu0 0
      %449 = vmatpush1.bf16.msra.mxu0 0
      %450 = vmatprep.subr.bf16.mxu0 0
      %451 = vmatpush1.bf16.msra.mxu0 0
      %452 = vmatprep.subr.bf16.mxu0 0
      %453 = vmatpush1.bf16.msra.mxu0 0
      %454 = vmatprep.subr.bf16.mxu0 0
      %455 = vmatpush1.bf16.msra.mxu0 0
      %456 = vmatprep.mubr.bf16.mxu0 0
      %457 = vmatmul.mubr.bf16.gmra.mrb[0].mxu0 %v360
      %v458 = vpop.f32.mrb[0].mxu0
      %v459 = vadd.f32 0.0, %v458
      %v460 = vpop.f32.mrb[0].mxu0
      %v461 = vpop.f32.mrb[0].mxu0
      %v462 = vadd.f32 0.0, %v461
      %v463 = vpop.f32.mrb[0].mxu0
      %464 = vmatprep.mubr.bf16.mxu0 0
      %465 = vmatmul.mubr.bf16.gmra.mrb[0].mxu0 %v361
      %v466 = vpop.f32.mrb[0].mxu0
      %v467 = vadd.f32 0.0, %v466
      %v468 = vpop.f32.mrb[0].mxu0
      %v469 = vpop.f32.mrb[0].mxu0
      %v470 = vadd.f32 0.0, %v469
      %v471 = vpop.f32.mrb[0].mxu0
      %472 = vmatprep.mubr.bf16.mxu0 0
      %473 = vmatmul.mubr.bf16.gmra.mrb[0].mxu0 %v362
      %v474 = vpop.f32.mrb[0].mxu0
      %v475 = vadd.f32 0.0, %v474
      %v476 = vpop.f32.mrb[0].mxu0
      %v477 = vpop.f32.mrb[0].mxu0
      %v478 = vadd.f32 0.0, %v477
      %v479 = vpop.f32.mrb[0].mxu0
      %480 = vmatprep.mubr.bf16.mxu0 0
      %481 = vmatmul.mubr.bf16.gmra.mrb[0].mxu0 %v363
      %v482 = vpop.f32.mrb[0].mxu0
      %v483 = vadd.f32 0.0, %v482
      %v484 = vpop.f32.mrb[0].mxu0
      %v485 = vpop.f32.mrb[0].mxu0
      %v486 = vadd.f32 0.0, %v485
      %v487 = vpop.f32.mrb[0].mxu0
      %488 = vmatprep.mubr.bf16.mxu0 0
      %489 = vmatmul.mubr.bf16.gmra.mrb[0].mxu0 %v364
      %v490 = vpop.f32.mrb[0].mxu0
      %v491 = vadd.f32 0.0, %v490
      %v492 = vpop.f32.mrb[0].mxu0
      %v493 = vpop.f32.mrb[0].mxu0
      %v494 = vadd.f32 0.0, %v493
      %v495 = vpop.f32.mrb[0].mxu0
      %496 = vmatprep.mubr.bf16.mxu0 0
      %497 = vmatmul.mubr.bf16.gmra.mrb[0].mxu0 %v365
      %v498 = vpop.f32.mrb[0].mxu0
      %v499 = vadd.f32 0.0, %v498
      %v500 = vpop.f32.mrb[0].mxu0
      %v501 = vpop.f32.mrb[0].mxu0
      %v502 = vadd.f32 0.0, %v501
      %v503 = vpop.f32.mrb[0].mxu0
      %504 = vmatprep.mubr.bf16.mxu0 0
      %505 = vmatmul.mubr.bf16.gmra.mrb[0].mxu0 %v366
      %v506 = vpop.f32.mrb[0].mxu0
      %v507 = vadd.f32 0.0, %v506
      %v508 = vpop.f32.mrb[0].mxu0
      %v509 = vpop.f32.mrb[0].mxu0
      %v510 = vadd.f32 0.0, %v509
      %v511 = vpop.f32.mrb[0].mxu0
      %512 = vmatprep.mubr.bf16.mxu0 0
      %513 = vmatmul.mubr.bf16.gmra.mrb[0].mxu0 %v367
      %v514 = vpop.f32.mrb[0].mxu0
      %v515 = vadd.f32 0.0, %v514
      %v516 = vpop.f32.mrb[0].mxu0
      %v517 = vpop.f32.mrb[0].mxu0
      %v518 = vadd.f32 0.0, %v517
      %v519 = vpop.f32.mrb[0].mxu0
      %520 = vdwg.mxu0
      %v521 = vadd.f32 %v280, %v459
      %v522 = vadd.f32 %v281, %v462
      %v523 = vadd.f32 %v282, %v467
      %v524 = vadd.f32 %v283, %v470
      %v525 = vadd.f32 %v284, %v475
      %v526 = vadd.f32 %v285, %v478
      %v527 = vadd.f32 %v286, %v483
      %v528 = vadd.f32 %v287, %v486
      %v529 = vadd.f32 %v288, %v491
      %v530 = vadd.f32 %v289, %v494
      %v531 = vadd.f32 %v290, %v499
      %v532 = vadd.f32 %v291, %v502
      %v533 = vadd.f32 %v292, %v507
      %v534 = vadd.f32 %v293, %v510
      %v535 = vadd.f32 %v294, %v515
      %v536 = vadd.f32 %v295, %v518
      %537 = vst [vmem:[#allocation2] sm:$0xff] %v521
      %538 = vst [vmem:[#allocation2 + $0x8] sm:$0xff] %v522
      %539 = vst [vmem:[#allocation2 + $0x10] sm:$0xff] %v523
      %540 = vst [vmem:[#allocation2 + $0x18] sm:$0xff] %v524
      %541 = vst [vmem:[#allocation2 + $0x20] sm:$0xff] %v525
      %542 = vst [vmem:[#allocation2 + $0x28] sm:$0xff] %v526
      %543 = vst [vmem:[#allocation2 + $0x30] sm:$0xff] %v527
      %544 = vst [vmem:[#allocation2 + $0x38] sm:$0xff] %v528
      %545 = vst [vmem:[#allocation2 + $0x40] sm:$0xff] %v529
      %546 = vst [vmem:[#allocation2 + $0x48] sm:$0xff] %v530
      %547 = vst [vmem:[#allocation2 + $0x50] sm:$0xff] %v531
      %548 = vst [vmem:[#allocation2 + $0x58] sm:$0xff] %v532
      %549 = vst [vmem:[#allocation2 + $0x60] sm:$0xff] %v533
      %550 = vst [vmem:[#allocation2 + $0x68] sm:$0xff] %v534
      %551 = vst [vmem:[#allocation2 + $0x70] sm:$0xff] %v535
      %552 = vst [vmem:[#allocation2 + $0x78] sm:$0xff] %v536
      // Predicated region
      $region37: #{block_dejavu_forward.6} parent=31 // pred_check
        %p553 = pneg %p260
      $region38: #{block_dejavu_forward.6} parent=31 // pred_check_branch
        %555 = sbr.rel (%p553) target = $region40
      $region39: #{block_dejavu_forward.6} parent=31 // pred_region
        %v556 = vld [vmem:[#allocation2] sm:$0xff]
        %v557 = vld [vmem:[#allocation2 + $0x8] sm:$0xff]
        %v558 = vld [vmem:[#allocation2 + $0x10] sm:$0xff]
        %v559 = vld [vmem:[#allocation2 + $0x18] sm:$0xff]
        %v560 = vld [vmem:[#allocation2 + $0x20] sm:$0xff]
        %v561 = vld [vmem:[#allocation2 + $0x28] sm:$0xff]
        %v562 = vld [vmem:[#allocation2 + $0x30] sm:$0xff]
        %v563 = vld [vmem:[#allocation2 + $0x38] sm:$0xff]
        %v564 = vld [vmem:[#allocation2 + $0x40] sm:$0xff]
        %v565 = vld [vmem:[#allocation2 + $0x48] sm:$0xff]
        %v566 = vld [vmem:[#allocation2 + $0x50] sm:$0xff]
        %v567 = vld [vmem:[#allocation2 + $0x58] sm:$0xff]
        %v568 = vld [vmem:[#allocation2 + $0x60] sm:$0xff]
        %v569 = vld [vmem:[#allocation2 + $0x68] sm:$0xff]
        %v570 = vld [vmem:[#allocation2 + $0x70] sm:$0xff]
        %v571 = vld [vmem:[#allocation2 + $0x78] sm:$0xff]
        %v572 = vld [vmem:[%s249] sm:$0x1]
        %v574 = vlaneseq
        %v575 = vshrl.u32 %v574, 7
        %v576 = vsub.s32 0, %v575
        %v577 = vrot.slane %v572, %v576
        %v579 = vadd.f32 %v556, %v577
        %v580 = vadd.f32 %v557, %v577
        %v581 = vadd.f32 %v558, %v577
        %v582 = vadd.f32 %v559, %v577
        %v583 = vadd.f32 %v560, %v577
        %v584 = vadd.f32 %v561, %v577
        %v585 = vadd.f32 %v562, %v577
        %v586 = vadd.f32 %v563, %v577
        %v587 = vadd.f32 %v564, %v577
        %v588 = vadd.f32 %v565, %v577
        %v589 = vadd.f32 %v566, %v577
        %v590 = vadd.f32 %v567, %v577
        %v591 = vadd.f32 %v568, %v577
        %v592 = vadd.f32 %v569, %v577
        %v593 = vadd.f32 %v570, %v577
        %v594 = vadd.f32 %v571, %v577
        %v595 = vpack.c.bf16 %v580, %v579
        %v596 = vpack.c.bf16 %v582, %v581
        %v597 = vpack.c.bf16 %v584, %v583
        %v598 = vpack.c.bf16 %v586, %v585
        %v599 = vpack.c.bf16 %v588, %v587
        %v600 = vpack.c.bf16 %v590, %v589
        %v601 = vpack.c.bf16 %v592, %v591
        %v602 = vpack.c.bf16 %v594, %v593
        %v611 = vunpack.c.l.b16 %v595
        %v612 = vunpack.c.h.b16 %v595
        %v613 = vunpack.c.l.b16 %v596
        %v614 = vunpack.c.h.b16 %v596
        %v615 = vunpack.c.l.b16 %v597
        %v616 = vunpack.c.h.b16 %v597
        %v617 = vunpack.c.l.b16 %v598
        %v618 = vunpack.c.h.b16 %v598
        %v619 = vunpack.c.l.b16 %v599
        %v620 = vunpack.c.h.b16 %v599
        %v621 = vunpack.c.l.b16 %v600
        %v622 = vunpack.c.h.b16 %v600
        %v623 = vunpack.c.l.b16 %v601
        %v624 = vunpack.c.h.b16 %v601
        %v625 = vunpack.c.l.b16 %v602
        %v626 = vunpack.c.h.b16 %v602
        %v627 = vpack.c.b16 %v611, %v611
        %v628 = vpack.c.b16 %v612, %v612
        %v629 = vpack.c.b16 %v613, %v613
        %v630 = vpack.c.b16 %v614, %v614
        %v631 = vpack.c.b16 %v615, %v615
        %v632 = vpack.c.b16 %v616, %v616
        %v633 = vpack.c.b16 %v617, %v617
        %v634 = vpack.c.b16 %v618, %v618
        %v635 = vpack.c.b16 %v619, %v619
        %v636 = vpack.c.b16 %v620, %v620
        %v637 = vpack.c.b16 %v621, %v621
        %v638 = vpack.c.b16 %v622, %v622
        %v639 = vpack.c.b16 %v623, %v623
        %v640 = vpack.c.b16 %v624, %v624
        %v641 = vpack.c.b16 %v625, %v625
        %v642 = vpack.c.b16 %v626, %v626
        %659 = vst [vmem:[%s257] sm:$0xf] %v627
        %660 = vst [vmem:[%s257 + $0x4] sm:$0xf] %v628
        %661 = vst [vmem:[%s257 + $0x8] sm:$0xf] %v629
        %662 = vst [vmem:[%s257 + $0xc] sm:$0xf] %v630
        %663 = vst [vmem:[%s257 + $0x10] sm:$0xf] %v631
        %664 = vst [vmem:[%s257 + $0x14] sm:$0xf] %v632
        %665 = vst [vmem:[%s257 + $0x18] sm:$0xf] %v633
        %666 = vst [vmem:[%s257 + $0x1c] sm:$0xf] %v634
        %667 = vst [vmem:[%s257 + $0x20] sm:$0xf] %v635
        %668 = vst [vmem:[%s257 + $0x24] sm:$0xf] %v636
        %669 = vst [vmem:[%s257 + $0x28] sm:$0xf] %v637
        %670 = vst [vmem:[%s257 + $0x2c] sm:$0xf] %v638
        %671 = vst [vmem:[%s257 + $0x30] sm:$0xf] %v639
        %672 = vst [vmem:[%s257 + $0x34] sm:$0xf] %v640
        %673 = vst [vmem:[%s257 + $0x38] sm:$0xf] %v641
        %674 = vst [vmem:[%s257 + $0x3c] sm:$0xf] %v642
      $region40: #{block_dejavu_forward.6} parent=31 // pred_fallthru
        _
      %s675 = smul.u32 16, %s19
      %p676 = scmp.lt.s32.totalorder %s675, 31
      %s677 = scalar_select %p676, %s675, 31
      %p678 = scmp.lt.s32.totalorder %s20, 0
      %s679 = scalar_select %p678, %s20, 0
      %s680 = sadd.s32 %s679, %s677
      %s681 = smul.addr %s680, 4
      %s682 = scalar_lea.vmem %s3, %s681
      // Predicated region
      $region41: #{block_dejavu_forward.6} parent=31 // pred_check
        %p683 = pneg %p135
      $region42: #{block_dejavu_forward.6} parent=31 // pred_check_branch
        %685 = sbr.rel (%p683) target = $region44
      $region43: #{block_dejavu_forward.6} parent=31 // pred_region
        %s686 = smul.u32 16, %s19
      $region44: #{block_dejavu_forward.6} parent=31 // pred_fallthru
        _
    $region32: #{block_dejavu_forward.6} parent=5 // pred_fallthru
      _
    %p687 = scmp.le.s32.totalorder 2, %s9
    // Predicated region
    $region45: #{block_dejavu_forward.6} parent=5 // pred_check
      %p688 = pneg %p687
    $region46: #{block_dejavu_forward.6} parent=5 // pred_check_branch
      %690 = sbr.rel (%p688) target = $region48
    $region47: #{block_dejavu_forward.6} parent=5 // pred_region
      %s691 = ssub.s32 %s9, 2
      // Predicated region
      $region49: #{block_dejavu_forward.6} parent=47 // pred_check
        %p692 = pneg %p141
      $region50: #{block_dejavu_forward.6} parent=47 // pred_check_branch
        %694 = sbr.rel (%p692) target = $region52
      $region51: #{block_dejavu_forward.6} parent=47 // pred_region
        %s695 = smul.u32 16, %s22
        %p696 = scmp.lt.s32.totalorder %s695, 31
        %s697 = scalar_select %p696, %s695, 31
        %p698 = scmp.lt.s32.totalorder %s23, 0
        %s699 = scalar_select %p698, %s23, 0
        %s700 = sadd.s32 %s699, %s697
        %s701 = smul.addr %s700, 4
        %s702 = scalar_lea.vmem %s3, %s701
      $region52: #{block_dejavu_forward.6} parent=47 // pred_fallthru
        _
    $region48: #{block_dejavu_forward.6} parent=5 // pred_fallthru
      _
  $region6: #{block_dejavu_forward.6} parent=0 // loop_footer
    %s13 = sadd.s32 1, %s9
  $region7: #{block_dejavu_forward.6} parent=0 // loop_footer_branch
    %8 = sbr.rel target = $region3
  $region8: #{block_dejavu_forward.6} parent=0 // loop_exit
    _

// kernel: block_dejavu_forward.4
$region0: #{block_dejavu_forward.4}
  #allocation0 [shape = 'u32[]', space=smem, size = 0x4, offset = 0x4, fixed_abs, tag = 'smem constant byte address 0x4 - core index']
  #allocation1 [shape = 'u32[144,128]{1,0:T(1,128)}', space=vmem, size = 0x12000, scoped, tag = 'internal scratch']
  #allocation2 [shape = 'bf16[128,128]{1,0:T(16,128)(2,1)}', space=vmem, size = 0x8000, scoped, tag = 'scratch operand']
  %s0 = inlined_call_operand.vmem [shape: bf16[256,128], index: 0, kind: input, shape index: {}]
  %s1 = inlined_call_operand.vmem [shape: f32[256,128], index: 1, kind: input, shape index: {}]
  %s2 = inlined_call_operand.vmem [shape: f32[1,128], index: 2, kind: input, shape index: {}]
  %s3 = inlined_call_operand.vmem [shape: f32[1,128], index: 3, kind: input, shape index: {}]
  %s4 = inlined_call_operand.vmem [shape: bf16[128,384], index: 4, kind: input, shape index: {}]
  %s5 = inlined_call_operand.vmem [shape: f32[1,384], index: 5, kind: input, shape index: {}]
  %s6 = inlined_call_operand.vmem [shape: f32[256,128], index: 6, kind: output, shape index: {0}]
  %s7 = inlined_call_operand.vmem [shape: bf16[256,384], index: 7, kind: output, shape index: {1}]
  %8 = xla_tuple %s6, %s7
  %s9 = sld [smem:[#allocation0]]
  $region147: #{block_dejavu_forward.4} parent=0
    _
  %s11 = ssub.s32 1, %s9
  %s12 = scalar_select 0, %s11, %s9
  $region1: #{block_dejavu_forward.4} parent=0
    #allocation3 [shape = 'u8[65536]{0}', space=vmem, size = 0x10000, scoped, tag = 'input window, operand 4']
    #allocation4 [shape = 'u8[65536]{0}', space=vmem, size = 0x10000, scoped, tag = 'output window, operand 1']
    loop: start=0, step=1, limit=8
    $region2: #{block_dejavu_forward.4} parent=1 // loop_pre_header
      _
    $region3: #{block_dejavu_forward.4} parent=1 // loop_header
      %s14 = sphi 0, %s18
      %p15 = scmp.ge.s32.totalorder %s14, 8
      %s21 = sphi 0, %s33
      %s22 = sphi 0, %s29
      %s23 = sphi 0, %s21
      %s24 = sphi 0, %s22
      %s25 = sphi 0, %s23
      %s26 = sphi 0, %s24
      %s36 = sphi 0, %s38
      %s39 = sphi 0, %s36
      %s40 = sphi 0, %s39
      %s56 = sphi 0, %s40
      %s62 = sphi 0, %s64
      %s65 = sphi 0, %s62
      %s66 = sphi 0, %s65
      %s82 = sphi 0, %s66
      %s86 = sphi 0, %s86
      %s88 = sphi 0, %s86
      %s89 = sphi 0, %s88
      %s103 = sphi 0, %s89
      %s107 = sphi 0, %s107
      %s109 = sphi 0, %s107
      %s110 = sphi 0, %s109
      %s124 = sphi 0, %s110
      %s130 = sphi 0, %s132
      %s133 = sphi 0, %s130
      %s134 = sphi 0, %s133
      %s150 = sphi 0, %s134
      %s156 = sphi 0, %s158
      %s159 = sphi 0, %s156
      %s160 = sphi 0, %s159
      %s176 = sphi 0, %s160
      %s182 = sphi 0, %s184
      %s185 = sphi 0, %s182
      %s186 = sphi 0, %s185
      %s202 = sphi 0, %s186
      %s210 = sphi 0, %s212
      %s213 = sphi 0, %s210
      %s214 = sphi 0, %s213
      %s230 = sphi 0, %s214
    $region4: #{block_dejavu_forward.4} parent=1 // loop_header_branch
      %17 = sbr.rel (%p15) target = $region8
    $region5: #{block_dejavu_forward.4} parent=1 // loop_body
      %s19 = ssub.s32 %s14, 1
      %s20 = ssub.s32 %s14, 2
      %s27 = sadd.s32 1, %s22
      %p28 = scmp.ge.s32.totalorder %s27, 3
      %s29 = scalar_select %p28, 0, %s27
      %s30 = sadd.s32 1, %s21
      %s31 = scalar_select %p28, %s30, %s21
      %p32 = scmp.ge.s32.totalorder %s31, 2
      %s33 = scalar_select %p32, 0, %s31
      %s34 = ssub.s32 %s21, %s33
      %p35 = scmp.eq.s32.totalorder %s34, 0
      %s37 = sadd.s32 %s36, 1
      %s38 = scalar_select %p35, %s36, %s37
      %p41 = pneg %p35
      %p42 = scmp.eq.s32.totalorder %s14, 5
      %p43 = por %p41, %p42
      %p44 = scmp.ne.s32.totalorder %s36, %s39
      %p45 = scmp.eq.s32.totalorder %s14, 0
      %p46 = por %p44, %p45
      %p47 = scmp.ne.s32.totalorder %s36, %s39
      %p48 = scmp.eq.s32.totalorder %s19, 5
      %p49 = por %p47, %p48
      %p50 = scmp.ne.s32.totalorder %s39, %s40
      %p51 = scmp.eq.s32.totalorder %s19, 0
      %p52 = por %p50, %p51
      %p53 = scmp.ne.s32.totalorder %s39, %s40
      %p54 = scmp.eq.s32.totalorder %s20, 5
      %p55 = por %p53, %p54
      %p57 = scmp.ne.s32.totalorder %s40, %s56
      %p58 = scmp.eq.s32.totalorder %s20, 0
      %p59 = por %p57, %p58
      %s60 = ssub.s32 %s21, %s33
      %p61 = scmp.eq.s32.totalorder %s60, 0
      %s63 = sadd.s32 %s62, 1
      %s64 = scalar_select %p61, %s62, %s63
      %p67 = pneg %p61
      %p68 = scmp.eq.s32.totalorder %s14, 5
      %p69 = por %p67, %p68
      %p70 = scmp.ne.s32.totalorder %s62, %s65
      %p71 = scmp.eq.s32.totalorder %s14, 0
      %p72 = por %p70, %p71
      %p73 = scmp.ne.s32.totalorder %s62, %s65
      %p74 = scmp.eq.s32.totalorder %s19, 5
      %p75 = por %p73, %p74
      %p76 = scmp.ne.s32.totalorder %s65, %s66
      %p77 = scmp.eq.s32.totalorder %s19, 0
      %p78 = por %p76, %p77
      %p79 = scmp.ne.s32.totalorder %s65, %s66
      %p80 = scmp.eq.s32.totalorder %s20, 5
      %p81 = por %p79, %p80
      %p83 = scmp.ne.s32.totalorder %s66, %s82
      %p84 = scmp.eq.s32.totalorder %s20, 0
      %p85 = por %p83, %p84
      %s87 = sadd.s32 %s86, 1
      %p90 = scmp.eq.s32.totalorder %s14, 5
      %p91 = scmp.ne.s32.totalorder %s86, %s88
      %p92 = scmp.eq.s32.totalorder %s14, 0
      %p93 = por %p91, %p92
      %p94 = scmp.ne.s32.totalorder %s86, %s88
      %p95 = scmp.eq.s32.totalorder %s19, 5
      %p96 = por %p94, %p95
      %p97 = scmp.ne.s32.totalorder %s88, %s89
      %p98 = scmp.eq.s32.totalorder %s19, 0
      %p99 = por %p97, %p98
      %p100 = scmp.ne.s32.totalorder %s88, %s89
      %p101 = scmp.eq.s32.totalorder %s20, 5
      %p102 = por %p100, %p101
      %p104 = scmp.ne.s32.totalorder %s89, %s103
      %p105 = scmp.eq.s32.totalorder %s20, 0
      %p106 = por %p104, %p105
      %s108 = sadd.s32 %s107, 1
      %p111 = scmp.eq.s32.totalorder %s14, 5
      %p112 = scmp.ne.s32.totalorder %s107, %s109
      %p113 = scmp.eq.s32.totalorder %s14, 0
      %p114 = por %p112, %p113
      %p115 = scmp.ne.s32.totalorder %s107, %s109
      %p116 = scmp.eq.s32.totalorder %s19, 5
      %p117 = por %p115, %p116
      %p118 = scmp.ne.s32.totalorder %s109, %s110
      %p119 = scmp.eq.s32.totalorder %s19, 0
      %p120 = por %p118, %p119
      %p121 = scmp.ne.s32.totalorder %s109, %s110
      %p122 = scmp.eq.s32.totalorder %s20, 5
      %p123 = por %p121, %p122
      %p125 = scmp.ne.s32.totalorder %s110, %s124
      %p126 = scmp.eq.s32.totalorder %s20, 0
      %p127 = por %p125, %p126
      %s128 = ssub.s32 %s22, %s29
      %p129 = scmp.eq.s32.totalorder %s128, 0
      %s131 = sadd.s32 %s130, 1
      %s132 = scalar_select %p129, %s130, %s131
      %p135 = pneg %p129
      %p136 = scmp.eq.s32.totalorder %s14, 5
      %p137 = por %p135, %p136
      %p138 = scmp.ne.s32.totalorder %s130, %s133
      %p139 = scmp.eq.s32.totalorder %s14, 0
      %p140 = por %p138, %p139
      %p141 = scmp.ne.s32.totalorder %s130, %s133
      %p142 = scmp.eq.s32.totalorder %s19, 5
      %p143 = por %p141, %p142
      %p144 = scmp.ne.s32.totalorder %s133, %s134
      %p145 = scmp.eq.s32.totalorder %s19, 0
      %p146 = por %p144, %p145
      %p147 = scmp.ne.s32.totalorder %s133, %s134
      %p148 = scmp.eq.s32.totalorder %s20, 5
      %p149 = por %p147, %p148
      %p151 = scmp.ne.s32.totalorder %s134, %s150
      %p152 = scmp.eq.s32.totalorder %s20, 0
      %p153 = por %p151, %p152
      %s154 = ssub.s32 %s22, %s29
      %p155 = scmp.eq.s32.totalorder %s154, 0
      %s157 = sadd.s32 %s156, 1
      %s158 = scalar_select %p155, %s156, %s157
      %p161 = pneg %p155
      %p162 = scmp.eq.s32.totalorder %s14, 5
      %p163 = por %p161, %p162
      %p164 = scmp.ne.s32.totalorder %s156, %s159
      %p165 = scmp.eq.s32.totalorder %s14, 0
      %p166 = por %p164, %p165
      %p167 = scmp.ne.s32.totalorder %s156, %s159
      %p168 = scmp.eq.s32.totalorder %s19, 5
      %p169 = por %p167, %p168
      %p170 = scmp.ne.s32.totalorder %s159, %s160
      %p171 = scmp.eq.s32.totalorder %s19, 0
      %p172 = por %p170, %p171
      %p173 = scmp.ne.s32.totalorder %s159, %s160
      %p174 = scmp.eq.s32.totalorder %s20, 5
      %p175 = por %p173, %p174
      %p177 = scmp.ne.s32.totalorder %s160, %s176
      %p178 = scmp.eq.s32.totalorder %s20, 0
      %p179 = por %p177, %p178
      %s180 = ssub.s32 %s21, %s33
      %p181 = scmp.eq.s32.totalorder %s180, 0
      %s183 = sadd.s32 %s182, 1
      %s184 = scalar_select %p181, %s182, %s183
      %p187 = pneg %p181
      %p188 = scmp.eq.s32.totalorder %s14, 5
      %p189 = por %p187, %p188
      %p190 = scmp.ne.s32.totalorder %s182, %s185
      %p191 = scmp.eq.s32.totalorder %s14, 0
      %p192 = por %p190, %p191
      %p193 = scmp.ne.s32.totalorder %s182, %s185
      %p194 = scmp.eq.s32.totalorder %s19, 5
      %p195 = por %p193, %p194
      %p196 = scmp.ne.s32.totalorder %s185, %s186
      %p197 = scmp.eq.s32.totalorder %s19, 0
      %p198 = por %p196, %p197
      %p199 = scmp.ne.s32.totalorder %s185, %s186
      %p200 = scmp.eq.s32.totalorder %s20, 5
      %p201 = por %p199, %p200
      %p203 = scmp.ne.s32.totalorder %s186, %s202
      %p204 = scmp.eq.s32.totalorder %s20, 0
      %p205 = por %p203, %p204
      %s206 = ssub.s32 %s21, %s33
      %s207 = ssub.s32 %s22, %s29
      %s208 = sor.u32 %s206, %s207
      %p209 = scmp.eq.s32.totalorder %s208, 0
      %s211 = sadd.s32 %s210, 1
      %s212 = scalar_select %p209, %s210, %s211
      %p215 = pneg %p209
      %p216 = scmp.eq.s32.totalorder %s14, 5
      %p217 = por %p215, %p216
      %p218 = scmp.ne.s32.totalorder %s210, %s213
      %p219 = scmp.eq.s32.totalorder %s14, 0
      %p220 = por %p218, %p219
      %p221 = scmp.ne.s32.totalorder %s210, %s213
      %p222 = scmp.eq.s32.totalorder %s19, 5
      %p223 = por %p221, %p222
      %p224 = scmp.ne.s32.totalorder %s213, %s214
      %p225 = scmp.eq.s32.totalorder %s19, 0
      %p226 = por %p224, %p225
      %p227 = scmp.ne.s32.totalorder %s213, %s214
      %p228 = scmp.eq.s32.totalorder %s20, 5
      %p229 = por %p227, %p228
      %p231 = scmp.ne.s32.totalorder %s214, %s230
      %p232 = scmp.eq.s32.totalorder %s20, 0
      %p233 = por %p231, %p232
      %p234 = scmp.le.s32.totalorder 1, %s14
      %p235 = scmp.lt.s32.totalorder %s14, 7
      %p236 = pnand %p234, %p235
      %p237 = pneg %p236
      // Predicated region
      $region9: #{block_dejavu_forward.4} parent=5 // pred_check
        _
      $region10: #{block_dejavu_forward.4} parent=5 // pred_check_branch
        %239 = sbr.rel (%p236) target = $region12
      $region11: #{block_dejavu_forward.4} parent=5 // pred_region
        %s240 = ssub.s32 %s14, 1
        // Predicated region
        $region13: #{block_dejavu_forward.4} parent=11 // pred_check
          %p241 = pneg %p99
        $region14: #{block_dejavu_forward.4} parent=11 // pred_check_branch
          %243 = sbr.rel (%p241) target = $region16
        $region15: #{block_dejavu_forward.4} parent=11 // pred_region
          _
        $region16: #{block_dejavu_forward.4} parent=11 // pred_fallthru
          _
        // Predicated region
        $region17: #{block_dejavu_forward.4} parent=11 // pred_check
          %p244 = pneg %p120
        $region18: #{block_dejavu_forward.4} parent=11 // pred_check_branch
          %246 = sbr.rel (%p244) target = $region20
        $region19: #{block_dejavu_forward.4} parent=11 // pred_region
          _
        $region20: #{block_dejavu_forward.4} parent=11 // pred_fallthru
          _
      $region12: #{block_dejavu_forward.4} parent=5 // pred_fallthru
        _
      %p247 = scmp.lt.s32.totalorder %s14, 6
      // Predicated region
      $region21: #{block_dejavu_forward.4} parent=5 // pred_check
        %p248 = pneg %p247
      $region22: #{block_dejavu_forward.4} parent=5 // pred_check_branch
        %250 = sbr.rel (%p248) target = $region24
      $region23: #{block_dejavu_forward.4} parent=5 // pred_region
        // Predicated region
        $region25: #{block_dejavu_forward.4} parent=23 // pred_check
          %p251 = pneg %p46
        $region26: #{block_dejavu_forward.4} parent=23 // pred_check_branch
          %253 = sbr.rel (%p251) target = $region28
        $region27: #{block_dejavu_forward.4} parent=23 // pred_region
          %s254 = smul.u32 16, %s21
          %p255 = scmp.lt.s32.totalorder %s254, 31
          %s256 = scalar_select %p255, %s254, 31
          %s257 = smul.addr %s256, 4
          %s258 = scalar_lea.vmem %s0, %s257
          %s259 = smul.u32 16, %s21
        $region28: #{block_dejavu_forward.4} parent=23 // pred_fallthru
          _
        // Predicated region
        $region29: #{block_dejavu_forward.4} parent=23 // pred_check
          %p260 = pneg %p72
        $region30: #{block_dejavu_forward.4} parent=23 // pred_check_branch
          %262 = sbr.rel (%p260) target = $region32
        $region31: #{block_dejavu_forward.4} parent=23 // pred_region
          %s263 = smul.u32 16, %s21
          %p264 = scmp.lt.s32.totalorder %s263, 31
          %s265 = scalar_select %p264, %s263, 31
          %s266 = smul.addr %s265, 8
          %s267 = scalar_lea.vmem %s1, %s266
          %s268 = smul.u32 16, %s21
        $region32: #{block_dejavu_forward.4} parent=23 // pred_fallthru
          _
        // Predicated region
        $region33: #{block_dejavu_forward.4} parent=23 // pred_check
          %p269 = pneg %p140
        $region34: #{block_dejavu_forward.4} parent=23 // pred_check_branch
          %271 = sbr.rel (%p269) target = $region36
        $region35: #{block_dejavu_forward.4} parent=23 // pred_region
          %s272 = sand.u32 %s130, 1
          %s273 = sand.u32 %s130, 1
          %s274 = smul.addr %s273, 64
          %s275 = scalar_lea.vmem [#allocation3], %s274
          %s276 = smul.addr %s22, 4
          %s277 = scalar_lea.vmem %s4, %s276
          // Predicated region
          $region37: #{block_dejavu_forward.4} parent=35 // pred_check
            _
          $region38: #{block_dejavu_forward.4} parent=35 // pred_check_branch
            %279 = sbr.rel (0) target = $region40
          $region39: #{block_dejavu_forward.4} parent=35 // pred_region
            // Predicated region
            $region41: #{block_dejavu_forward.4} parent=39 // pred_check
              _
            $region42: #{block_dejavu_forward.4} parent=39 // pred_check_branch
              %281 = sbr.rel target = $region44
            $region43: #{block_dejavu_forward.4} parent=39 // pred_region
              // Predicated region
              $region56: #{block_dejavu_forward.4} parent=43 // pred_check
                _
              $region57: #{block_dejavu_forward.4} parent=43 // pred_check_branch
                %326 = sbr.rel (0) target = $region59
              $region58: #{block_dejavu_forward.4} parent=43 // pred_region
                loop: start=0, step=1, limit=1
                $region60: #{block_dejavu_forward.4} parent=58 // loop_pre_header
                  _
                $region61: #{block_dejavu_forward.4} parent=58 // loop_header
                  %s328 = sphi 0, %s332
                  %p329 = scmp.ge.s32.totalorder %s328, 1
                  %s333 = sphi %s277, %s277
                  %s334 = sphi %s275, %s275
                $region62: #{block_dejavu_forward.4} parent=58 // loop_header_branch
                  %331 = sbr.rel (%p329) target = $region66
                $region63: #{block_dejavu_forward.4} parent=58 // loop_body
                  _
                $region64: #{block_dejavu_forward.4} parent=58 // loop_footer
                  %s332 = sadd.s32 1, %s328
                $region65: #{block_dejavu_forward.4} parent=58 // loop_footer_branch
                  %327 = sbr.rel target = $region61
                $region66: #{block_dejavu_forward.4} parent=58 // loop_exit
                  _
                loop: start=0, step=1, limit=1
                $region67: #{block_dejavu_forward.4} parent=58 // loop_pre_header
                  _
                $region68: #{block_dejavu_forward.4} parent=58 // loop_header
                  %s337 = sphi 0, %s341
                  %p338 = scmp.ge.s32.totalorder %s337, 1
                  %s342 = sphi %s277, %s277
                  %s343 = sphi %s275, %s275
                $region69: #{block_dejavu_forward.4} parent=58 // loop_header_branch
                  %340 = sbr.rel (%p338) target = $region73
                $region70: #{block_dejavu_forward.4} parent=58 // loop_body
                  %v344 = vld [vmem:[%s342] sm:$0xf]
                  %345 = vst [vmem:[%s343] sm:$0xf] %v344
                  %v346 = vld [vmem:[%s342 + $0xc] sm:$0xf]
                  %347 = vst [vmem:[%s343 + $0x4] sm:$0xf] %v346
                  %v348 = vld [vmem:[%s342 + $0x18] sm:$0xf]
                  %349 = vst [vmem:[%s343 + $0x8] sm:$0xf] %v348
                  %v350 = vld [vmem:[%s342 + $0x24] sm:$0xf]
                  %351 = vst [vmem:[%s343 + $0xc] sm:$0xf] %v350
                  %v352 = vld [vmem:[%s342 + $0x30] sm:$0xf]
                  %353 = vst [vmem:[%s343 + $0x10] sm:$0xf] %v352
                  %v354 = vld [vmem:[%s342 + $0x3c] sm:$0xf]
                  %355 = vst [vmem:[%s343 + $0x14] sm:$0xf] %v354
                  %v356 = vld [vmem:[%s342 + $0x48] sm:$0xf]
                  %357 = vst [vmem:[%s343 + $0x18] sm:$0xf] %v356
                  %v358 = vld [vmem:[%s342 + $0x54] sm:$0xf]
                  %359 = vst [vmem:[%s343 + $0x1c] sm:$0xf] %v358
                  %v360 = vld [vmem:[%s342 + $0x60] sm:$0xf]
                  %361 = vst [vmem:[%s343 + $0x20] sm:$0xf] %v360
                  %v362 = vld [vmem:[%s342 + $0x6c] sm:$0xf]
                  %363 = vst [vmem:[%s343 + $0x24] sm:$0xf] %v362
                  %v364 = vld [vmem:[%s342 + $0x78] sm:$0xf]
                  %365 = vst [vmem:[%s343 + $0x28] sm:$0xf] %v364
                  %v366 = vld [vmem:[%s342 + $0x84] sm:$0xf]
                  %367 = vst [vmem:[%s343 + $0x2c] sm:$0xf] %v366
                  %v368 = vld [vmem:[%s342 + $0x90] sm:$0xf]
                  %369 = vst [vmem:[%s343 + $0x30] sm:$0xf] %v368
                  %v370 = vld [vmem:[%s342 + $0x9c] sm:$0xf]
                  %371 = vst [vmem:[%s343 + $0x34] sm:$0xf] %v370
                  %v372 = vld [vmem:[%s342 + $0xa8] sm:$0xf]
                  %373 = vst [vmem:[%s343 + $0x38] sm:$0xf] %v372
                  %v374 = vld [vmem:[%s342 + $0xb4] sm:$0xf]
                  %375 = vst [vmem:[%s343 + $0x3c] sm:$0xf] %v374
                $region71: #{block_dejavu_forward.4} parent=58 // loop_footer
                  %s341 = sadd.s32 1, %s337
                $region72: #{block_dejavu_forward.4} parent=58 // loop_footer_branch
                  %336 = sbr.rel target = $region68
                $region73: #{block_dejavu_forward.4} parent=58 // loop_exit
                  _
              $region59: #{block_dejavu_forward.4} parent=43 // pred_fallthru
                _
            $region44: #{block_dejavu_forward.4} parent=39 // pred_fallthru
              _
            // Predicated region
            $region45: #{block_dejavu_forward.4} parent=39 // pred_check
              _
            $region46: #{block_dejavu_forward.4} parent=39 // pred_check_branch
              %283 = sbr.rel (0) target = $region48
            $region47: #{block_dejavu_forward.4} parent=39 // pred_region
              loop: start=0, step=1, limit=1
              $region49: #{block_dejavu_forward.4} parent=47 // loop_pre_header
                _
              $region50: #{block_dejavu_forward.4} parent=47 // loop_header
                %s286 = sphi 0, %s290
                %p287 = scmp.ge.s32.totalorder %s286, 1
                %s291 = sphi %s277, %s277
                %s292 = sphi %s275, %s275
              $region51: #{block_dejavu_forward.4} parent=47 // loop_header_branch
                %289 = sbr.rel (%p287) target = $region55
              $region52: #{block_dejavu_forward.4} parent=47 // loop_body
                %v293 = vld [vmem:[%s291] sm:$0xf]
                %294 = vst [vmem:[%s292] sm:$0xf] %v293
                %v295 = vld [vmem:[%s291 + $0xc] sm:$0xf]
                %296 = vst [vmem:[%s292 + $0x4] sm:$0xf] %v295
                %v297 = vld [vmem:[%s291 + $0x18] sm:$0xf]
                %298 = vst [vmem:[%s292 + $0x8] sm:$0xf] %v297
                %v299 = vld [vmem:[%s291 + $0x24] sm:$0xf]
                %300 = vst [vmem:[%s292 + $0xc] sm:$0xf] %v299
                %v301 = vld [vmem:[%s291 + $0x30] sm:$0xf]
                %302 = vst [vmem:[%s292 + $0x10] sm:$0xf] %v301
                %v303 = vld [vmem:[%s291 + $0x3c] sm:$0xf]
                %304 = vst [vmem:[%s292 + $0x14] sm:$0xf] %v303
                %v305 = vld [vmem:[%s291 + $0x48] sm:$0xf]
                %306 = vst [vmem:[%s292 + $0x18] sm:$0xf] %v305
                %v307 = vld [vmem:[%s291 + $0x54] sm:$0xf]
                %308 = vst [vmem:[%s292 + $0x1c] sm:$0xf] %v307
                %v309 = vld [vmem:[%s291 + $0x60] sm:$0xf]
                %310 = vst [vmem:[%s292 + $0x20] sm:$0xf] %v309
                %v311 = vld [vmem:[%s291 + $0x6c] sm:$0xf]
                %312 = vst [vmem:[%s292 + $0x24] sm:$0xf] %v311
                %v313 = vld [vmem:[%s291 + $0x78] sm:$0xf]
                %314 = vst [vmem:[%s292 + $0x28] sm:$0xf] %v313
                %v315 = vld [vmem:[%s291 + $0x84] sm:$0xf]
                %316 = vst [vmem:[%s292 + $0x2c] sm:$0xf] %v315
                %v317 = vld [vmem:[%s291 + $0x90] sm:$0xf]
                %318 = vst [vmem:[%s292 + $0x30] sm:$0xf] %v317
                %v319 = vld [vmem:[%s291 + $0x9c] sm:$0xf]
                %320 = vst [vmem:[%s292 + $0x34] sm:$0xf] %v319
                %v321 = vld [vmem:[%s291 + $0xa8] sm:$0xf]
                %322 = vst [vmem:[%s292 + $0x38] sm:$0xf] %v321
                %v323 = vld [vmem:[%s291 + $0xb4] sm:$0xf]
                %324 = vst [vmem:[%s292 + $0x3c] sm:$0xf] %v323
              $region53: #{block_dejavu_forward.4} parent=47 // loop_footer
                %s290 = sadd.s32 1, %s286
              $region54: #{block_dejavu_forward.4} parent=47 // loop_footer_branch
                %285 = sbr.rel target = $region50
              $region55: #{block_dejavu_forward.4} parent=47 // loop_exit
                _
            $region48: #{block_dejavu_forward.4} parent=39 // pred_fallthru
              _
          $region40: #{block_dejavu_forward.4} parent=35 // pred_fallthru
            _
          %376 = vnop
        $region36: #{block_dejavu_forward.4} parent=23 // pred_fallthru
          _
        // Predicated region
        $region74: #{block_dejavu_forward.4} parent=23 // pred_check
          %p377 = pneg %p166
        $region75: #{block_dejavu_forward.4} parent=23 // pred_check_branch
          %379 = sbr.rel (%p377) target = $region77
        $region76: #{block_dejavu_forward.4} parent=23 // pred_region
          %p380 = scmp.lt.s32.totalorder %s22, 2
          %s381 = scalar_select %p380, %s22, 2
          %s382 = scalar_lea.vmem %s5, %s381
        $region77: #{block_dejavu_forward.4} parent=23 // pred_fallthru
          _
      $region24: #{block_dejavu_forward.4} parent=5 // pred_fallthru
        _
      %p383 = scmp.le.s32.totalorder 1, %s14
      %p384 = scmp.lt.s32.totalorder %s14, 7
      %p385 = pnand %p383, %p384
      %p386 = pneg %p385
      // Predicated region
      $region78: #{block_dejavu_forward.4} parent=5 // pred_check
        _
      $region79: #{block_dejavu_forward.4} parent=5 // pred_check_branch
        %388 = sbr.rel (%p385) target = $region81
      $region80: #{block_dejavu_forward.4} parent=5 // pred_region
        %s389 = ssub.s32 %s14, 1
        %s390 = sand.u32 %s133, 1
        %s391 = sand.u32 %s133, 1
        %s392 = smul.addr %s391, 64
        %s393 = scalar_lea.vmem [#allocation3], %s392
        // Predicated region
        $region82: #{block_dejavu_forward.4} parent=80 // pred_check
          %p394 = pneg %p146
        $region83: #{block_dejavu_forward.4} parent=80 // pred_check_branch
          %396 = sbr.rel (%p394) target = $region85
        $region84: #{block_dejavu_forward.4} parent=80 // pred_region
          _
        $region85: #{block_dejavu_forward.4} parent=80 // pred_fallthru
          _
        %s397 = smul.u32 16, %s23
        %p398 = scmp.lt.s32.totalorder %s397, 31
        %s399 = scalar_select %p398, %s397, 31
        %s400 = smul.addr %s399, 4
        %s401 = scalar_lea.vmem %s0, %s400
        %p402 = pneg %p52
        %p403 = pneg %p49
        %s404 = smul.u32 16, %s23
        %p405 = scmp.lt.s32.totalorder %s404, 31
        %s406 = scalar_select %p405, %s404, 31
        %s407 = smul.addr %s406, 8
        %s408 = scalar_lea.vmem %s1, %s407
        %p409 = pneg %p78
        %p410 = pneg %p75
        %p411 = pneg %p99
        %p412 = pneg %p96
        %p413 = pneg %p120
        %p414 = pneg %p117
        %s415 = sand.u32 %s133, 1
        %s416 = sand.u32 %s133, 1
        %s417 = smul.addr %s416, 64
        %s418 = scalar_lea.vmem [#allocation3], %s417
        %p419 = pneg %p146
        %p420 = pneg %p143
        %p421 = scmp.lt.s32.totalorder %s24, 2
        %s422 = scalar_select %p421, %s24, 2
        %s423 = scalar_lea.vmem %s5, %s422
        %p424 = pneg %p172
        %p425 = pneg %p169
        %p426 = pneg %p198
        %p427 = pneg %p195
        %s428 = smul.u32 16, %s23
        %p429 = scmp.lt.s32.totalorder %s428, 31
        %s430 = scalar_select %p429, %s428, 31
        %s431 = smul.addr %s430, 8
        %s432 = scalar_lea.vmem %s6, %s431
        %p433 = pneg %p226
        %p434 = pneg %p223
        %s435 = sand.u32 %s213, 1
        %s436 = sand.u32 %s213, 1
        %s437 = smul.addr %s436, 64
        %s438 = scalar_lea.vmem [#allocation4], %s437
        %s439 = smul.u32 16, %s23
        %p440 = scmp.lt.s32.totalorder %s439, 31
        %s441 = scalar_select %p440, %s439, 31
        %s442 = smul.addr %s441, 4
        %s443 = scalar_lea.vmem %s0, %s442
        %s444 = smul.u32 16, %s23
        %s445 = smul.u32 16, %s23
        %p446 = scmp.lt.s32.totalorder %s445, 31
        %s447 = scalar_select %p446, %s445, 31
        %s448 = smul.addr %s447, 8
        %s449 = scalar_lea.vmem %s1, %s448
        %s450 = smul.u32 16, %s23
        %p451 = scmp.lt.s32.totalorder %s24, 2
        %s452 = scalar_select %p451, %s24, 2
        %s453 = scalar_lea.vmem %s5, %s452
        %s454 = smul.u32 16, %s23
        %p455 = scmp.lt.s32.totalorder %s454, 31
        %s456 = scalar_select %p455, %s454, 31
        %s457 = smul.addr %s456, 8
        %s458 = scalar_lea.vmem %s6, %s457
        %s459 = smul.u32 16, %s23
        %s460 = smul.u32 16, %s23
        %p462 = scmp.eq.s32.totalorder %s24, 0
        // Predicated region
        $region86: #{block_dejavu_forward.4} parent=80 // pred_check
          %p463 = pneg %p462
        $region87: #{block_dejavu_forward.4} parent=80 // pred_check_branch
          %465 = sbr.rel (%p463) target = $region89
        $region88: #{block_dejavu_forward.4} parent=80 // pred_region
          %v466 = vld [vmem:[%s443] sm:$0xf]
          %v467 = vld [vmem:[%s443 + $0x4] sm:$0xf]
          %v468 = vld [vmem:[%s443 + $0x8] sm:$0xf]
          %v469 = vld [vmem:[%s443 + $0xc] sm:$0xf]
          %v470 = vld [vmem:[%s443 + $0x10] sm:$0xf]
          %v471 = vld [vmem:[%s443 + $0x14] sm:$0xf]
          %v472 = vld [vmem:[%s443 + $0x18] sm:$0xf]
          %v473 = vld [vmem:[%s443 + $0x1c] sm:$0xf]
          %v474 = vld [vmem:[%s443 + $0x20] sm:$0xf]
          %v475 = vld [vmem:[%s443 + $0x24] sm:$0xf]
          %v476 = vld [vmem:[%s443 + $0x28] sm:$0xf]
          %v477 = vld [vmem:[%s443 + $0x2c] sm:$0xf]
          %v478 = vld [vmem:[%s443 + $0x30] sm:$0xf]
          %v479 = vld [vmem:[%s443 + $0x34] sm:$0xf]
          %v480 = vld [vmem:[%s443 + $0x38] sm:$0xf]
          %v481 = vld [vmem:[%s443 + $0x3c] sm:$0xf]
          %v482 = vunpack.c.l.bf16 %v466
          %v483 = vunpack.c.l.bf16 %v467
          %v484 = vunpack.c.l.bf16 %v468
          %v485 = vunpack.c.l.bf16 %v469
          %v486 = vunpack.c.l.bf16 %v470
          %v487 = vunpack.c.l.bf16 %v471
          %v488 = vunpack.c.l.bf16 %v472
          %v489 = vunpack.c.l.bf16 %v473
          %v490 = vunpack.c.l.bf16 %v474
          %v491 = vunpack.c.l.bf16 %v475
          %v492 = vunpack.c.l.bf16 %v476
          %v493 = vunpack.c.l.bf16 %v477
          %v494 = vunpack.c.l.bf16 %v478
          %v495 = vunpack.c.l.bf16 %v479
          %v496 = vunpack.c.l.bf16 %v480
          %v497 = vunpack.c.l.bf16 %v481
          %v498 = vld [vmem:[%s449] sm:$0xff]
          %v499 = vld [vmem:[%s449 + $0x8] sm:$0xff]
          %v500 = vld [vmem:[%s449 + $0x10] sm:$0xff]
          %v501 = vld [vmem:[%s449 + $0x18] sm:$0xff]
          %v502 = vld [vmem:[%s449 + $0x20] sm:$0xff]
          %v503 = vld [vmem:[%s449 + $0x28] sm:$0xff]
          %v504 = vld [vmem:[%s449 + $0x30] sm:$0xff]
          %v505 = vld [vmem:[%s449 + $0x38] sm:$0xff]
          %v506 = vld [vmem:[%s449 + $0x40] sm:$0xff]
          %v507 = vld [vmem:[%s449 + $0x48] sm:$0xff]
          %v508 = vld [vmem:[%s449 + $0x50] sm:$0xff]
          %v509 = vld [vmem:[%s449 + $0x58] sm:$0xff]
          %v510 = vld [vmem:[%s449 + $0x60] sm:$0xff]
          %v511 = vld [vmem:[%s449 + $0x68] sm:$0xff]
          %v512 = vld [vmem:[%s449 + $0x70] sm:$0xff]
          %v513 = vld [vmem:[%s449 + $0x78] sm:$0xff]
          %v514 = vadd.f32 %v482, %v498
          %v515 = vadd.f32 %v483, %v499
          %v516 = vadd.f32 %v484, %v500
          %v517 = vadd.f32 %v485, %v501
          %v518 = vadd.f32 %v486, %v502
          %v519 = vadd.f32 %v487, %v503
          %v520 = vadd.f32 %v488, %v504
          %v521 = vadd.f32 %v489, %v505
          %v522 = vadd.f32 %v490, %v506
          %v523 = vadd.f32 %v491, %v507
          %v524 = vadd.f32 %v492, %v508
          %v525 = vadd.f32 %v493, %v509
          %v526 = vadd.f32 %v494, %v510
          %v527 = vadd.f32 %v495, %v511
          %v528 = vadd.f32 %v496, %v512
          %v529 = vadd.f32 %v497, %v513
          %530 = vst [vmem:[%s458] sm:$0xff] %v514
          %531 = vst [vmem:[%s458 + $0x8] sm:$0xff] %v515
          %532 = vst [vmem:[%s458 + $0x10] sm:$0xff] %v516
          %533 = vst [vmem:[%s458 + $0x18] sm:$0xff] %v517
          %534 = vst [vmem:[%s458 + $0x20] sm:$0xff] %v518
          %535 = vst [vmem:[%s458 + $0x28] sm:$0xff] %v519
          %536 = vst [vmem:[%s458 + $0x30] sm:$0xff] %v520
          %537 = vst [vmem:[%s458 + $0x38] sm:$0xff] %v521
          %538 = vst [vmem:[%s458 + $0x40] sm:$0xff] %v522
          %539 = vst [vmem:[%s458 + $0x48] sm:$0xff] %v523
          %540 = vst [vmem:[%s458 + $0x50] sm:$0xff] %v524
          %541 = vst [vmem:[%s458 + $0x58] sm:$0xff] %v525
          %542 = vst [vmem:[%s458 + $0x60] sm:$0xff] %v526
          %543 = vst [vmem:[%s458 + $0x68] sm:$0xff] %v527
          %544 = vst [vmem:[%s458 + $0x70] sm:$0xff] %v528
          %545 = vst [vmem:[%s458 + $0x78] sm:$0xff] %v529
          %546 = vadd.xlane.f32.xlu0 %v514
          %v547 = vpop.xlane.xlu0 %546
          %548 = vadd.xlane.f32.xlu0 %v515
          %v549 = vpop.xlane.xlu0 %548
          %550 = vadd.xlane.f32.xlu0 %v516
          %v551 = vpop.xlane.xlu0 %550
          %552 = vadd.xlane.f32.xlu0 %v517
          %v553 = vpop.xlane.xlu0 %552
          %554 = vadd.xlane.f32.xlu0 %v518
          %v555 = vpop.xlane.xlu0 %554
          %556 = vadd.xlane.f32.xlu0 %v519
          %v557 = vpop.xlane.xlu0 %556
          %558 = vadd.xlane.f32.xlu0 %v520
          %v559 = vpop.xlane.xlu0 %558
          %560 = vadd.xlane.f32.xlu0 %v521
          %v561 = vpop.xlane.xlu0 %560
          %562 = vadd.xlane.f32.xlu0 %v522
          %v563 = vpop.xlane.xlu0 %562
          %564 = vadd.xlane.f32.xlu0 %v523
          %v565 = vpop.xlane.xlu0 %564
          %566 = vadd.xlane.f32.xlu0 %v524
          %v567 = vpop.xlane.xlu0 %566
          %568 = vadd.xlane.f32.xlu0 %v525
          %v569 = vpop.xlane.xlu0 %568
          %570 = vadd.xlane.f32.xlu0 %v526
          %v571 = vpop.xlane.xlu0 %570
          %572 = vadd.xlane.f32.xlu0 %v527
          %v573 = vpop.xlane.xlu0 %572
          %574 = vadd.xlane.f32.xlu0 %v528
          %v575 = vpop.xlane.xlu0 %574
          %576 = vadd.xlane.f32.xlu0 %v529
          %v577 = vpop.xlane.xlu0 %576
          %v578 = vrcp.pop 128.0
          %v579 = vmul.f32 %v547, %v578
          %v580 = vmul.f32 %v549, %v578
          %v581 = vmul.f32 %v551, %v578
          %v582 = vmul.f32 %v553, %v578
          %v583 = vmul.f32 %v555, %v578
          %v584 = vmul.f32 %v557, %v578
          %v585 = vmul.f32 %v559, %v578
          %v586 = vmul.f32 %v561, %v578
          %v587 = vmul.f32 %v563, %v578
          %v588 = vmul.f32 %v565, %v578
          %v589 = vmul.f32 %v567, %v578
          %v590 = vmul.f32 %v569, %v578
          %v591 = vmul.f32 %v571, %v578
          %v592 = vmul.f32 %v573, %v578
          %v593 = vmul.f32 %v575, %v578
          %v594 = vmul.f32 %v577, %v578
          %v595 = vsub.f32 %v514, %v579
          %v596 = vsub.f32 %v515, %v580
          %v597 = vsub.f32 %v516, %v581
          %v598 = vsub.f32 %v517, %v582
          %v599 = vsub.f32 %v518, %v583
          %v600 = vsub.f32 %v519, %v584
          %v601 = vsub.f32 %v520, %v585
          %v602 = vsub.f32 %v521, %v586
          %v603 = vsub.f32 %v522, %v587
          %v604 = vsub.f32 %v523, %v588
          %v605 = vsub.f32 %v524, %v589
          %v606 = vsub.f32 %v525, %v590
          %v607 = vsub.f32 %v526, %v591
          %v608 = vsub.f32 %v527, %v592
          %v609 = vsub.f32 %v528, %v593
          %v610 = vsub.f32 %v529, %v594
          %v611 = vmul.f32 %v595, %v595
          %v612 = vmul.f32 %v596, %v596
          %v613 = vmul.f32 %v597, %v597
          %v614 = vmul.f32 %v598, %v598
          %v615 = vmul.f32 %v599, %v599
          %v616 = vmul.f32 %v600, %v600
          %v617 = vmul.f32 %v601, %v601
          %v618 = vmul.f32 %v602, %v602
          %v619 = vmul.f32 %v603, %v603
          %v620 = vmul.f32 %v604, %v604
          %v621 = vmul.f32 %v605, %v605
          %v622 = vmul.f32 %v606, %v606
          %v623 = vmul.f32 %v607, %v607
          %v624 = vmul.f32 %v608, %v608
          %v625 = vmul.f32 %v609, %v609
          %v626 = vmul.f32 %v610, %v610
          %627 = vadd.xlane.f32.xlu0 %v611
          %v628 = vpop.xlane.xlu0 %627
          %629 = vadd.xlane.f32.xlu0 %v612
          %v630 = vpop.xlane.xlu0 %629
          %631 = vadd.xlane.f32.xlu0 %v613
          %v632 = vpop.xlane.xlu0 %631
          %633 = vadd.xlane.f32.xlu0 %v614
          %v634 = vpop.xlane.xlu0 %633
          %635 = vadd.xlane.f32.xlu0 %v615
          %v636 = vpop.xlane.xlu0 %635
          %637 = vadd.xlane.f32.xlu0 %v616
          %v638 = vpop.xlane.xlu0 %637
          %639 = vadd.xlane.f32.xlu0 %v617
          %v640 = vpop.xlane.xlu0 %639
          %641 = vadd.xlane.f32.xlu0 %v618
          %v642 = vpop.xlane.xlu0 %641
          %643 = vadd.xlane.f32.xlu0 %v619
          %v644 = vpop.xlane.xlu0 %643
          %645 = vadd.xlane.f32.xlu0 %v620
          %v646 = vpop.xlane.xlu0 %645
          %647 = vadd.xlane.f32.xlu0 %v621
          %v648 = vpop.xlane.xlu0 %647
          %649 = vadd.xlane.f32.xlu0 %v622
          %v650 = vpop.xlane.xlu0 %649
          %651 = vadd.xlane.f32.xlu0 %v623
          %v652 = vpop.xlane.xlu0 %651
          %653 = vadd.xlane.f32.xlu0 %v624
          %v654 = vpop.xlane.xlu0 %653
          %655 = vadd.xlane.f32.xlu0 %v625
          %v656 = vpop.xlane.xlu0 %655
          %657 = vadd.xlane.f32.xlu0 %v626
          %v658 = vpop.xlane.xlu0 %657
          %v659 = vmul.f32 %v628, %v578
          %v660 = vmul.f32 %v630, %v578
          %v661 = vmul.f32 %v632, %v578
          %v662 = vmul.f32 %v634, %v578
          %v663 = vmul.f32 %v636, %v578
          %v664 = vmul.f32 %v638, %v578
          %v665 = vmul.f32 %v640, %v578
          %v666 = vmul.f32 %v642, %v578
          %v667 = vmul.f32 %v644, %v578
          %v668 = vmul.f32 %v646, %v578
          %v669 = vmul.f32 %v648, %v578
          %v670 = vmul.f32 %v650, %v578
          %v671 = vmul.f32 %v652, %v578
          %v672 = vmul.f32 %v654, %v578
          %v673 = vmul.f32 %v656, %v578
          %v674 = vmul.f32 %v658, %v578
          %v675 = vadd.f32 %v659, 1e-05
          %v676 = vadd.f32 %v660, 1e-05
          %v677 = vadd.f32 %v661, 1e-05
          %v678 = vadd.f32 %v662, 1e-05
          %v679 = vadd.f32 %v663, 1e-05
          %v680 = vadd.f32 %v664, 1e-05
          %v681 = vadd.f32 %v665, 1e-05
          %v682 = vadd.f32 %v666, 1e-05
          %v683 = vadd.f32 %v667, 1e-05
          %v684 = vadd.f32 %v668, 1e-05
          %v685 = vadd.f32 %v669, 1e-05
          %v686 = vadd.f32 %v670, 1e-05
          %v687 = vadd.f32 %v671, 1e-05
          %v688 = vadd.f32 %v672, 1e-05
          %v689 = vadd.f32 %v673, 1e-05
          %v690 = vadd.f32 %v674, 1e-05
          %v691 = vrsqrt.pop %v675
          %v692 = vrsqrt.pop %v676
          %v693 = vrsqrt.pop %v677
          %v694 = vrsqrt.pop %v678
          %v695 = vrsqrt.pop %v679
          %v696 = vrsqrt.pop %v680
          %v697 = vrsqrt.pop %v681
          %v698 = vrsqrt.pop %v682
          %v699 = vrsqrt.pop %v683
          %v700 = vrsqrt.pop %v684
          %v701 = vrsqrt.pop %v685
          %v702 = vrsqrt.pop %v686
          %v703 = vrsqrt.pop %v687
          %v704 = vrsqrt.pop %v688
          %v705 = vrsqrt.pop %v689
          %v706 = vrsqrt.pop %v690
          %v707 = vmul.f32 %v595, %v691
          %v708 = vmul.f32 %v596, %v692
          %v709 = vmul.f32 %v597, %v693
          %v710 = vmul.f32 %v598, %v694
          %v711 = vmul.f32 %v599, %v695
          %v712 = vmul.f32 %v600, %v696
          %v713 = vmul.f32 %v601, %v697
          %v714 = vmul.f32 %v602, %v698
          %v715 = vmul.f32 %v603, %v699
          %v716 = vmul.f32 %v604, %v700
          %v717 = vmul.f32 %v605, %v701
          %v718 = vmul.f32 %v606, %v702
          %v719 = vmul.f32 %v607, %v703
          %v720 = vmul.f32 %v608, %v704
          %v721 = vmul.f32 %v609, %v705
          %v722 = vmul.f32 %v610, %v706
          %v723 = vld [vmem:[%s2] sm:$0x1]
          %v725 = vlaneseq
          %v726 = vshrl.u32 %v725, 7
          %v727 = vsub.s32 0, %v726
          %v728 = vrot.slane %v723, %v727
          %v730 = vmul.f32 %v707, %v728
          %v731 = vmul.f32 %v708, %v728
          %v732 = vmul.f32 %v709, %v728
          %v733 = vmul.f32 %v710, %v728
          %v734 = vmul.f32 %v711, %v728
          %v735 = vmul.f32 %v712, %v728
          %v736 = vmul.f32 %v713, %v728
          %v737 = vmul.f32 %v714, %v728
          %v738 = vmul.f32 %v715, %v728
          %v739 = vmul.f32 %v716, %v728
          %v740 = vmul.f32 %v717, %v728
          %v741 = vmul.f32 %v718, %v728
          %v742 = vmul.f32 %v719, %v728
          %v743 = vmul.f32 %v720, %v728
          %v744 = vmul.f32 %v721, %v728
          %v745 = vmul.f32 %v722, %v728
          %v746 = vld [vmem:[%s3] sm:$0x1]
          %v748 = vlaneseq
          %v749 = vshrl.u32 %v748, 7
          %v750 = vsub.s32 0, %v749
          %v751 = vrot.slane %v746, %v750
          %v753 = vadd.f32 %v730, %v751
          %v754 = vadd.f32 %v731, %v751
          %v755 = vadd.f32 %v732, %v751
          %v756 = vadd.f32 %v733, %v751
          %v757 = vadd.f32 %v734, %v751
          %v758 = vadd.f32 %v735, %v751
          %v759 = vadd.f32 %v736, %v751
          %v760 = vadd.f32 %v737, %v751
          %v761 = vadd.f32 %v738, %v751
          %v762 = vadd.f32 %v739, %v751
          %v763 = vadd.f32 %v740, %v751
          %v764 = vadd.f32 %v741, %v751
          %v765 = vadd.f32 %v742, %v751
          %v766 = vadd.f32 %v743, %v751
          %v767 = vadd.f32 %v744, %v751
          %v768 = vadd.f32 %v745, %v751
          %v769 = vpack.c.bf16 %v754, %v753
          %v770 = vpack.c.bf16 %v756, %v755
          %v771 = vpack.c.bf16 %v758, %v757
          %v772 = vpack.c.bf16 %v760, %v759
          %v773 = vpack.c.bf16 %v762, %v761
          %v774 = vpack.c.bf16 %v764, %v763
          %v775 = vpack.c.bf16 %v766, %v765
          %v776 = vpack.c.bf16 %v768, %v767
          %777 = vst [vmem:[#allocation2] sm:$0xff] %v769
          %778 = vst [vmem:[#allocation2 + $0x8] sm:$0xff] %v770
          %779 = vst [vmem:[#allocation2 + $0x10] sm:$0xff] %v771
          %780 = vst [vmem:[#allocation2 + $0x18] sm:$0xff] %v772
          %781 = vst [vmem:[#allocation2 + $0x20] sm:$0xff] %v773
          %782 = vst [vmem:[#allocation2 + $0x28] sm:$0xff] %v774
          %783 = vst [vmem:[#allocation2 + $0x30] sm:$0xff] %v775
          %784 = vst [vmem:[#allocation2 + $0x38] sm:$0xff] %v776
        $region89: #{block_dejavu_forward.4} parent=80 // pred_fallthru
          _
        %v785 = vld [vmem:[#allocation2] sm:$0xff]
        %v786 = vld [vmem:[#allocation2 + $0x8] sm:$0xff]
        %v787 = vld [vmem:[#allocation2 + $0x10] sm:$0xff]
        %v788 = vld [vmem:[#allocation2 + $0x18] sm:$0xff]
        %v789 = vld [vmem:[#allocation2 + $0x20] sm:$0xff]
        %v790 = vld [vmem:[#allocation2 + $0x28] sm:$0xff]
        %v791 = vld [vmem:[#allocation2 + $0x30] sm:$0xff]
        %v792 = vld [vmem:[#allocation2 + $0x38] sm:$0xff]
        %v793 = vld [vmem:[%s393] sm:$0xf]
        %v794 = vld [vmem:[%s393 + $0x4] sm:$0xf]
        %v795 = vld [vmem:[%s393 + $0x8] sm:$0xf]
        %v796 = vld [vmem:[%s393 + $0xc] sm:$0xf]
        %v797 = vld [vmem:[%s393 + $0x10] sm:$0xf]
        %v798 = vld [vmem:[%s393 + $0x14] sm:$0xf]
        %v799 = vld [vmem:[%s393 + $0x18] sm:$0xf]
        %v800 = vld [vmem:[%s393 + $0x1c] sm:$0xf]
        %v801 = vld [vmem:[%s393 + $0x20] sm:$0xf]
        %v802 = vld [vmem:[%s393 + $0x24] sm:$0xf]
        %v803 = vld [vmem:[%s393 + $0x28] sm:$0xf]
        %v804 = vld [vmem:[%s393 + $0x2c] sm:$0xf]
        %v805 = vld [vmem:[%s393 + $0x30] sm:$0xf]
        %v806 = vld [vmem:[%s393 + $0x34] sm:$0xf]
        %v807 = vld [vmem:[%s393 + $0x38] sm:$0xf]
        %v808 = vld [vmem:[%s393 + $0x3c] sm:$0xf]
        %v809 = vld [vmem:[%s453] sm:$0x1]
        %v811 = vlaneseq
        %v812 = vshrl.u32 %v811, 7
        %v813 = vsub.s32 0, %v812
        %v814 = vrot.slane %v809, %v813
        %v832 = vunpack.c.l.b16 %v793
        %v833 = vunpack.c.l.b16 %v794
        %v834 = vunpack.c.l.b16 %v795
        %v835 = vunpack.c.l.b16 %v796
        %v836 = vunpack.c.l.b16 %v797
        %v837 = vunpack.c.l.b16 %v798
        %v838 = vunpack.c.l.b16 %v799
        %v839 = vunpack.c.l.b16 %v800
        %v840 = vunpack.c.l.b16 %v801
        %v841 = vunpack.c.l.b16 %v802
        %v842 = vunpack.c.l.b16 %v803
        %v843 = vunpack.c.l.b16 %v804
        %v844 = vunpack.c.l.b16 %v805
        %v845 = vunpack.c.l.b16 %v806
        %v846 = vunpack.c.l.b16 %v807
        %v847 = vunpack.c.l.b16 %v808
        %v848 = vpack.c.b16 %v833, %v832
        %v849 = vpack.c.b16 %v835, %v834
        %v850 = vpack.c.b16 %v837, %v836
        %v851 = vpack.c.b16 %v839, %v838
        %v852 = vpack.c.b16 %v841, %v840
        %v853 = vpack.c.b16 %v843, %v842
        %v854 = vpack.c.b16 %v845, %v844
        %v855 = vpack.c.b16 %v847, %v846
        %864 = vmatprep.subr.bf16.mxu0 0
        %865 = vmatpush1.bf16.msra.mxu0 %v848
        %866 = vmatprep.subr.bf16.mxu0 0
        %867 = vmatpush1.bf16.msra.mxu0 %v849
        %868 = vmatprep.subr.bf16.mxu0 0
        %869 = vmatpush1.bf16.msra.mxu0 %v850
        %870 = vmatprep.subr.bf16.mxu0 0
        %871 = vmatpush1.bf16.msra.mxu0 %v851
        %872 = vmatprep.subr.bf16.mxu0 0
        %873 = vmatpush1.bf16.msra.mxu0 %v852
        %874 = vmatprep.subr.bf16.mxu0 0
        %875 = vmatpush1.bf16.msra.mxu0 %v853
        %876 = vmatprep.subr.bf16.mxu0 0
        %877 = vmatpush1.bf16.msra.mxu0 %v854
        %878 = vmatprep.subr.bf16.mxu0 0
        %879 = vmatpush1.bf16.msra.mxu0 %v855
        %880 = vmatprep.subr.bf16.mxu0 0
        %881 = vmatpush1.bf16.msra.mxu0 0
        %882 = vmatprep.subr.bf16.mxu0 0
        %883 = vmatpush1.bf16.msra.mxu0 0
        %884 = vmatprep.subr.bf16.mxu0 0
        %885 = vmatpush1.bf16.msra.mxu0 0
        %886 = vmatprep.subr.bf16.mxu0 0
        %887 = vmatpush1.bf16.msra.mxu0 0
        %888 = vmatprep.subr.bf16.mxu0 0
        %889 = vmatpush1.bf16.msra.mxu0 0
        %890 = vmatprep.subr.bf16.mxu0 0
        %891 = vmatpush1.bf16.msra.mxu0 0
        %892 = vmatprep.subr.bf16.mxu0 0
        %893 = vmatpush1.bf16.msra.mxu0 0
        %894 = vmatprep.subr.bf16.mxu0 0
        %895 = vmatpush1.bf16.msra.mxu0 0
        %896 = vmatprep.mubr.bf16.mxu0 0
        %897 = vmatmul.mubr.bf16.gmra.mrb[0].mxu0 %v785
        %v898 = vpop.f32.mrb[0].mxu0
        %v899 = vadd.f32 %v814, %v898
        %v900 = vpop.f32.mrb[0].mxu0
        %v901 = vpop.f32.mrb[0].mxu0
        %v902 = vadd.f32 %v814, %v901
        %v903 = vpop.f32.mrb[0].mxu0
        %904 = vmatprep.mubr.bf16.mxu0 0
        %905 = vmatmul.mubr.bf16.gmra.mrb[0].mxu0 %v786
        %v906 = vpop.f32.mrb[0].mxu0
        %v907 = vadd.f32 %v814, %v906
        %v908 = vpop.f32.mrb[0].mxu0
        %v909 = vpop.f32.mrb[0].mxu0
        %v910 = vadd.f32 %v814, %v909
        %v911 = vpop.f32.mrb[0].mxu0
        %912 = vmatprep.mubr.bf16.mxu0 0
        %913 = vmatmul.mubr.bf16.gmra.mrb[0].mxu0 %v787
        %v914 = vpop.f32.mrb[0].mxu0
        %v915 = vadd.f32 %v814, %v914
        %v916 = vpop.f32.mrb[0].mxu0
        %v917 = vpop.f32.mrb[0].mxu0
        %v918 = vadd.f32 %v814, %v917
        %v919 = vpop.f32.mrb[0].mxu0
        %920 = vmatprep.mubr.bf16.mxu0 0
        %921 = vmatmul.mubr.bf16.gmra.mrb[0].mxu0 %v788
        %v922 = vpop.f32.mrb[0].mxu0
        %v923 = vadd.f32 %v814, %v922
        %v924 = vpop.f32.mrb[0].mxu0
        %v925 = vpop.f32.mrb[0].mxu0
        %v926 = vadd.f32 %v814, %v925
        %v927 = vpop.f32.mrb[0].mxu0
        %928 = vmatprep.mubr.bf16.mxu0 0
        %929 = vmatmul.mubr.bf16.gmra.mrb[0].mxu0 %v789
        %v930 = vpop.f32.mrb[0].mxu0
        %v931 = vadd.f32 %v814, %v930
        %v932 = vpop.f32.mrb[0].mxu0
        %v933 = vpop.f32.mrb[0].mxu0
        %v934 = vadd.f32 %v814, %v933
        %v935 = vpop.f32.mrb[0].mxu0
        %936 = vmatprep.mubr.bf16.mxu0 0
        %937 = vmatmul.mubr.bf16.gmra.mrb[0].mxu0 %v790
        %v938 = vpop.f32.mrb[0].mxu0
        %v939 = vadd.f32 %v814, %v938
        %v940 = vpop.f32.mrb[0].mxu0
        %v941 = vpop.f32.mrb[0].mxu0
        %v942 = vadd.f32 %v814, %v941
        %v943 = vpop.f32.mrb[0].mxu0
        %944 = vmatprep.mubr.bf16.mxu0 0
        %945 = vmatmul.mubr.bf16.gmra.mrb[0].mxu0 %v791
        %v946 = vpop.f32.mrb[0].mxu0
        %v947 = vadd.f32 %v814, %v946
        %v948 = vpop.f32.mrb[0].mxu0
        %v949 = vpop.f32.mrb[0].mxu0
        %v950 = vadd.f32 %v814, %v949
        %v951 = vpop.f32.mrb[0].mxu0
        %952 = vmatprep.mubr.bf16.mxu0 0
        %953 = vmatmul.mubr.bf16.gmra.mrb[0].mxu0 %v792
        %v954 = vpop.f32.mrb[0].mxu0
        %v955 = vadd.f32 %v814, %v954
        %v956 = vpop.f32.mrb[0].mxu0
        %v957 = vpop.f32.mrb[0].mxu0
        %v958 = vadd.f32 %v814, %v957
        %v959 = vpop.f32.mrb[0].mxu0
        %960 = vdwg.mxu0
        %v961 = vpack.c.bf16 %v902, %v899
        %v962 = vpack.c.bf16 %v910, %v907
        %v963 = vpack.c.bf16 %v918, %v915
        %v964 = vpack.c.bf16 %v926, %v923
        %v965 = vpack.c.bf16 %v934, %v931
        %v966 = vpack.c.bf16 %v942, %v939
        %v967 = vpack.c.bf16 %v950, %v947
        %v968 = vpack.c.bf16 %v958, %v955
        %v977 = vunpack.c.l.b16 %v961
        %v978 = vunpack.c.h.b16 %v961
        %v979 = vunpack.c.l.b16 %v962
        %v980 = vunpack.c.h.b16 %v962
        %v981 = vunpack.c.l.b16 %v963
        %v982 = vunpack.c.h.b16 %v963
        %v983 = vunpack.c.l.b16 %v964
        %v984 = vunpack.c.h.b16 %v964
        %v985 = vunpack.c.l.b16 %v965
        %v986 = vunpack.c.h.b16 %v965
        %v987 = vunpack.c.l.b16 %v966
        %v988 = vunpack.c.h.b16 %v966
        %v989 = vunpack.c.l.b16 %v967
        %v990 = vunpack.c.h.b16 %v967
        %v991 = vunpack.c.l.b16 %v968
        %v992 = vunpack.c.h.b16 %v968
        %v993 = vpack.c.b16 %v977, %v977
        %v994 = vpack.c.b16 %v978, %v978
        %v995 = vpack.c.b16 %v979, %v979
        %v996 = vpack.c.b16 %v980, %v980
        %v997 = vpack.c.b16 %v981, %v981
        %v998 = vpack.c.b16 %v982, %v982
        %v999 = vpack.c.b16 %v983, %v983
        %v1000 = vpack.c.b16 %v984, %v984
        %v1001 = vpack.c.b16 %v985, %v985
        %v1002 = vpack.c.b16 %v986, %v986
        %v1003 = vpack.c.b16 %v987, %v987
        %v1004 = vpack.c.b16 %v988, %v988
        %v1005 = vpack.c.b16 %v989, %v989
        %v1006 = vpack.c.b16 %v990, %v990
        %v1007 = vpack.c.b16 %v991, %v991
        %v1008 = vpack.c.b16 %v992, %v992
        %1025 = vst [vmem:[%s438] sm:$0xf] %v993
        %1026 = vst [vmem:[%s438 + $0x4] sm:$0xf] %v994
        %1027 = vst [vmem:[%s438 + $0x8] sm:$0xf] %v995
        %1028 = vst [vmem:[%s438 + $0xc] sm:$0xf] %v996
        %1029 = vst [vmem:[%s438 + $0x10] sm:$0xf] %v997
        %1030 = vst [vmem:[%s438 + $0x14] sm:$0xf] %v998
        %1031 = vst [vmem:[%s438 + $0x18] sm:$0xf] %v999
        %1032 = vst [vmem:[%s438 + $0x1c] sm:$0xf] %v1000
        %1033 = vst [vmem:[%s438 + $0x20] sm:$0xf] %v1001
        %1034 = vst [vmem:[%s438 + $0x24] sm:$0xf] %v1002
        %1035 = vst [vmem:[%s438 + $0x28] sm:$0xf] %v1003
        %1036 = vst [vmem:[%s438 + $0x2c] sm:$0xf] %v1004
        %1037 = vst [vmem:[%s438 + $0x30] sm:$0xf] %v1005
        %1038 = vst [vmem:[%s438 + $0x34] sm:$0xf] %v1006
        %1039 = vst [vmem:[%s438 + $0x38] sm:$0xf] %v1007
        %1040 = vst [vmem:[%s438 + $0x3c] sm:$0xf] %v1008
        %s1041 = smul.u32 16, %s23
        %p1042 = scmp.lt.s32.totalorder %s1041, 31
        %s1043 = scalar_select %p1042, %s1041, 31
        %s1044 = smul.addr %s1043, 8
        %s1045 = scalar_lea.vmem %s6, %s1044
        %s1046 = sand.u32 %s213, 1
        %s1047 = sand.u32 %s213, 1
        %s1048 = smul.addr %s1047, 64
        %s1049 = scalar_lea.vmem [#allocation4], %s1048
        // Predicated region
        $region90: #{block_dejavu_forward.4} parent=80 // pred_check
          %p1050 = pneg %p195
        $region91: #{block_dejavu_forward.4} parent=80 // pred_check_branch
          %1052 = sbr.rel (%p1050) target = $region93
        $region92: #{block_dejavu_forward.4} parent=80 // pred_region
          %s1053 = smul.u32 16, %s23
        $region93: #{block_dejavu_forward.4} parent=80 // pred_fallthru
          _
        // Predicated region
        $region94: #{block_dejavu_forward.4} parent=80 // pred_check
          %p1054 = pneg %p223
        $region95: #{block_dejavu_forward.4} parent=80 // pred_check_branch
          %1056 = sbr.rel (%p1054) target = $region97
        $region96: #{block_dejavu_forward.4} parent=80 // pred_region
          %s1057 = smul.u32 16, %s23
          %s1058 = smul.addr %s1057, 3
          %s1059 = sadd.s32 %s24, %s1058
          %s1060 = smul.addr %s1059, 4
          %s1061 = scalar_lea.vmem %s7, %s1060
          // Predicated region
          $region98: #{block_dejavu_forward.4} parent=96 // pred_check
            _
          $region99: #{block_dejavu_forward.4} parent=96 // pred_check_branch
            %1063 = sbr.rel (0) target = $region101
          $region100: #{block_dejavu_forward.4} parent=96 // pred_region
            // Predicated region
            $region102: #{block_dejavu_forward.4} parent=100 // pred_check
              _
            $region103: #{block_dejavu_forward.4} parent=100 // pred_check_branch
              %1065 = sbr.rel target = $region105
            $region104: #{block_dejavu_forward.4} parent=100 // pred_region
              // Predicated region
              $region117: #{block_dejavu_forward.4} parent=104 // pred_check
                _
              $region118: #{block_dejavu_forward.4} parent=104 // pred_check_branch
                %1110 = sbr.rel (0) target = $region120
              $region119: #{block_dejavu_forward.4} parent=104 // pred_region
                loop: start=0, step=1, limit=1
                $region121: #{block_dejavu_forward.4} parent=119 // loop_pre_header
                  _
                $region122: #{block_dejavu_forward.4} parent=119 // loop_header
                  %s1112 = sphi 0, %s1116
                  %p1113 = scmp.ge.s32.totalorder %s1112, 1
                  %s1117 = sphi %s1049, %s1049
                  %s1118 = sphi %s1061, %s1061
                $region123: #{block_dejavu_forward.4} parent=119 // loop_header_branch
                  %1115 = sbr.rel (%p1113) target = $region127
                $region124: #{block_dejavu_forward.4} parent=119 // loop_body
                  _
                $region125: #{block_dejavu_forward.4} parent=119 // loop_footer
                  %s1116 = sadd.s32 1, %s1112
                $region126: #{block_dejavu_forward.4} parent=119 // loop_footer_branch
                  %1111 = sbr.rel target = $region122
                $region127: #{block_dejavu_forward.4} parent=119 // loop_exit
                  _
                loop: start=0, step=1, limit=1
                $region128: #{block_dejavu_forward.4} parent=119 // loop_pre_header
                  _
                $region129: #{block_dejavu_forward.4} parent=119 // loop_header
                  %s1121 = sphi 0, %s1125
                  %p1122 = scmp.ge.s32.totalorder %s1121, 1
                  %s1126 = sphi %s1049, %s1049
                  %s1127 = sphi %s1061, %s1061
                $region130: #{block_dejavu_forward.4} parent=119 // loop_header_branch
                  %1124 = sbr.rel (%p1122) target = $region134
                $region131: #{block_dejavu_forward.4} parent=119 // loop_body
                  %v1128 = vld [vmem:[%s1126] sm:$0xf]
                  %1129 = vst [vmem:[%s1127] sm:$0xf] %v1128
                  %v1130 = vld [vmem:[%s1126 + $0x4] sm:$0xf]
                  %1131 = vst [vmem:[%s1127 + $0xc] sm:$0xf] %v1130
                  %v1132 = vld [vmem:[%s1126 + $0x8] sm:$0xf]
                  %1133 = vst [vmem:[%s1127 + $0x18] sm:$0xf] %v1132
                  %v1134 = vld [vmem:[%s1126 + $0xc] sm:$0xf]
                  %1135 = vst [vmem:[%s1127 + $0x24] sm:$0xf] %v1134
                  %v1136 = vld [vmem:[%s1126 + $0x10] sm:$0xf]
                  %1137 = vst [vmem:[%s1127 + $0x30] sm:$0xf] %v1136
                  %v1138 = vld [vmem:[%s1126 + $0x14] sm:$0xf]
                  %1139 = vst [vmem:[%s1127 + $0x3c] sm:$0xf] %v1138
                  %v1140 = vld [vmem:[%s1126 + $0x18] sm:$0xf]
                  %1141 = vst [vmem:[%s1127 + $0x48] sm:$0xf] %v1140
                  %v1142 = vld [vmem:[%s1126 + $0x1c] sm:$0xf]
                  %1143 = vst [vmem:[%s1127 + $0x54] sm:$0xf] %v1142
                  %v1144 = vld [vmem:[%s1126 + $0x20] sm:$0xf]
                  %1145 = vst [vmem:[%s1127 + $0x60] sm:$0xf] %v1144
                  %v1146 = vld [vmem:[%s1126 + $0x24] sm:$0xf]
                  %1147 = vst [vmem:[%s1127 + $0x6c] sm:$0xf] %v1146
                  %v1148 = vld [vmem:[%s1126 + $0x28] sm:$0xf]
                  %1149 = vst [vmem:[%s1127 + $0x78] sm:$0xf] %v1148
                  %v1150 = vld [vmem:[%s1126 + $0x2c] sm:$0xf]
                  %1151 = vst [vmem:[%s1127 + $0x84] sm:$0xf] %v1150
                  %v1152 = vld [vmem:[%s1126 + $0x30] sm:$0xf]
                  %1153 = vst [vmem:[%s1127 + $0x90] sm:$0xf] %v1152
                  %v1154 = vld [vmem:[%s1126 + $0x34] sm:$0xf]
                  %1155 = vst [vmem:[%s1127 + $0x9c] sm:$0xf] %v1154
                  %v1156 = vld [vmem:[%s1126 + $0x38] sm:$0xf]
                  %1157 = vst [vmem:[%s1127 + $0xa8] sm:$0xf] %v1156
                  %v1158 = vld [vmem:[%s1126 + $0x3c] sm:$0xf]
                  %1159 = vst [vmem:[%s1127 + $0xb4] sm:$0xf] %v1158
                $region132: #{block_dejavu_forward.4} parent=119 // loop_footer
                  %s1125 = sadd.s32 1, %s1121
                $region133: #{block_dejavu_forward.4} parent=119 // loop_footer_branch
                  %1120 = sbr.rel target = $region129
                $region134: #{block_dejavu_forward.4} parent=119 // loop_exit
                  _
              $region120: #{block_dejavu_forward.4} parent=104 // pred_fallthru
                _
            $region105: #{block_dejavu_forward.4} parent=100 // pred_fallthru
              _
            // Predicated region
            $region106: #{block_dejavu_forward.4} parent=100 // pred_check
              _
            $region107: #{block_dejavu_forward.4} parent=100 // pred_check_branch
              %1067 = sbr.rel (0) target = $region109
            $region108: #{block_dejavu_forward.4} parent=100 // pred_region
              loop: start=0, step=1, limit=1
              $region110: #{block_dejavu_forward.4} parent=108 // loop_pre_header
                _
              $region111: #{block_dejavu_forward.4} parent=108 // loop_header
                %s1070 = sphi 0, %s1074
                %p1071 = scmp.ge.s32.totalorder %s1070, 1
                %s1075 = sphi %s1049, %s1049
                %s1076 = sphi %s1061, %s1061
              $region112: #{block_dejavu_forward.4} parent=108 // loop_header_branch
                %1073 = sbr.rel (%p1071) target = $region116
              $region113: #{block_dejavu_forward.4} parent=108 // loop_body
                %v1077 = vld [vmem:[%s1075] sm:$0xf]
                %1078 = vst [vmem:[%s1076] sm:$0xf] %v1077
                %v1079 = vld [vmem:[%s1075 + $0x4] sm:$0xf]
                %1080 = vst [vmem:[%s1076 + $0xc] sm:$0xf] %v1079
                %v1081 = vld [vmem:[%s1075 + $0x8] sm:$0xf]
                %1082 = vst [vmem:[%s1076 + $0x18] sm:$0xf] %v1081
                %v1083 = vld [vmem:[%s1075 + $0xc] sm:$0xf]
                %1084 = vst [vmem:[%s1076 + $0x24] sm:$0xf] %v1083
                %v1085 = vld [vmem:[%s1075 + $0x10] sm:$0xf]
                %1086 = vst [vmem:[%s1076 + $0x30] sm:$0xf] %v1085
                %v1087 = vld [vmem:[%s1075 + $0x14] sm:$0xf]
                %1088 = vst [vmem:[%s1076 + $0x3c] sm:$0xf] %v1087
                %v1089 = vld [vmem:[%s1075 + $0x18] sm:$0xf]
                %1090 = vst [vmem:[%s1076 + $0x48] sm:$0xf] %v1089
                %v1091 = vld [vmem:[%s1075 + $0x1c] sm:$0xf]
                %1092 = vst [vmem:[%s1076 + $0x54] sm:$0xf] %v1091
                %v1093 = vld [vmem:[%s1075 + $0x20] sm:$0xf]
                %1094 = vst [vmem:[%s1076 + $0x60] sm:$0xf] %v1093
                %v1095 = vld [vmem:[%s1075 + $0x24] sm:$0xf]
                %1096 = vst [vmem:[%s1076 + $0x6c] sm:$0xf] %v1095
                %v1097 = vld [vmem:[%s1075 + $0x28] sm:$0xf]
                %1098 = vst [vmem:[%s1076 + $0x78] sm:$0xf] %v1097
                %v1099 = vld [vmem:[%s1075 + $0x2c] sm:$0xf]
                %1100 = vst [vmem:[%s1076 + $0x84] sm:$0xf] %v1099
                %v1101 = vld [vmem:[%s1075 + $0x30] sm:$0xf]
                %1102 = vst [vmem:[%s1076 + $0x90] sm:$0xf] %v1101
                %v1103 = vld [vmem:[%s1075 + $0x34] sm:$0xf]
                %1104 = vst [vmem:[%s1076 + $0x9c] sm:$0xf] %v1103
                %v1105 = vld [vmem:[%s1075 + $0x38] sm:$0xf]
                %1106 = vst [vmem:[%s1076 + $0xa8] sm:$0xf] %v1105
                %v1107 = vld [vmem:[%s1075 + $0x3c] sm:$0xf]
                %1108 = vst [vmem:[%s1076 + $0xb4] sm:$0xf] %v1107
              $region114: #{block_dejavu_forward.4} parent=108 // loop_footer
                %s1074 = sadd.s32 1, %s1070
              $region115: #{block_dejavu_forward.4} parent=108 // loop_footer_branch
                %1069 = sbr.rel target = $region111
              $region116: #{block_dejavu_forward.4} parent=108 // loop_exit
                _
            $region109: #{block_dejavu_forward.4} parent=100 // pred_fallthru
              _
          $region101: #{block_dejavu_forward.4} parent=96 // pred_fallthru
            _
          %1160 = vnop
        $region97: #{block_dejavu_forward.4} parent=80 // pred_fallthru
          _
      $region81: #{block_dejavu_forward.4} parent=5 // pred_fallthru
        _
      %p1161 = scmp.le.s32.totalorder 2, %s14
      // Predicated region
      $region135: #{block_dejavu_forward.4} parent=5 // pred_check
        %p1162 = pneg %p1161
      $region136: #{block_dejavu_forward.4} parent=5 // pred_check_branch
        %1164 = sbr.rel (%p1162) target = $region138
      $region137: #{block_dejavu_forward.4} parent=5 // pred_region
        %s1165 = ssub.s32 %s14, 2
        // Predicated region
        $region139: #{block_dejavu_forward.4} parent=137 // pred_check
          %p1166 = pneg %p201
        $region140: #{block_dejavu_forward.4} parent=137 // pred_check_branch
          %1168 = sbr.rel (%p1166) target = $region142
        $region141: #{block_dejavu_forward.4} parent=137 // pred_region
          %s1169 = smul.u32 16, %s25
          %p1170 = scmp.lt.s32.totalorder %s1169, 31
          %s1171 = scalar_select %p1170, %s1169, 31
          %s1172 = smul.addr %s1171, 8
          %s1173 = scalar_lea.vmem %s6, %s1172
        $region142: #{block_dejavu_forward.4} parent=137 // pred_fallthru
          _
        // Predicated region
        $region143: #{block_dejavu_forward.4} parent=137 // pred_check
          %p1174 = pneg %p229
        $region144: #{block_dejavu_forward.4} parent=137 // pred_check_branch
          %1176 = sbr.rel (%p1174) target = $region146
        $region145: #{block_dejavu_forward.4} parent=137 // pred_region
          %s1177 = sand.u32 %s214, 1
          %s1178 = sand.u32 %s214, 1
          %s1179 = smul.addr %s1178, 64
          %s1180 = scalar_lea.vmem [#allocation4], %s1179
        $region146: #{block_dejavu_forward.4} parent=137 // pred_fallthru
          _
      $region138: #{block_dejavu_forward.4} parent=5 // pred_fallthru
        _
    $region6: #{block_dejavu_forward.4} parent=1 // loop_footer
      %s18 = sadd.s32 1, %s14
    $region7: #{block_dejavu_forward.4} parent=1 // loop_footer_branch
      %13 = sbr.rel target = $region3
    $region8: #{block_dejavu_forward.4} parent=1 // loop_exit
      _

// kernel: block_dejavu_forward.5
$region0: #{block_dejavu_forward.5}
  #allocation0 [shape = 'u32[]', space=smem, size = 0x4, offset = 0x4, fixed_abs, tag = 'smem constant byte address 0x4 - core index']
  #allocation1 [shape = 'u32[144,128]{1,0:T(1,128)}', space=vmem, size = 0x12000, scoped, tag = 'internal scratch']
  #allocation2 [shape = 'f32[128,1]{1,0:T(8,128)}', space=vmem, size = 0x10000, scoped, tag = 'scratch operand']
  #allocation3 [shape = 'f32[128,1]{1,0:T(8,128)}', space=vmem, size = 0x10000, scoped, tag = 'scratch operand']
  #allocation4 [shape = 'f32[128,64]{1,0:T(8,128)}', space=vmem, size = 0x10000, scoped, tag = 'scratch operand']
  #allocation5 [shape = 'f32[128,1]{1,0:T(8,128)}', space=vmem, size = 0x10000, scoped, tag = 'scratch operand']
  #allocation6 [shape = 'f32[128,1]{1,0:T(8,128)}', space=vmem, size = 0x10000, scoped, tag = 'scratch operand']
  #allocation7 [shape = 'f32[128,64]{1,0:T(8,128)}', space=vmem, size = 0x10000, scoped, tag = 'scratch operand']
  %s0 = inlined_call_operand.vmem [shape: bf16[256,384], index: 0, kind: input, shape index: {}, may-alias: {0,1,2}]
  %s1 = inlined_call_operand.vmem [shape: bf16[256,384], index: 1, kind: input, shape index: {}, may-alias: {0,1,2}]
  %s2 = inlined_call_operand.vmem [shape: bf16[256,384], index: 2, kind: input, shape index: {}, may-alias: {0,1,2}]
  %s3 = inlined_call_operand.vmem [shape: bf16[256,128], index: 3, kind: output, shape index: {}]
  %s4 = sld [smem:[#allocation0]]
  $region176: #{block_dejavu_forward.5} parent=0
    _
  %s6 = ssub.s32 1, %s4
  %s7 = scalar_select 0, %s6, %s4
  $region1: #{block_dejavu_forward.5} parent=0
    #allocation8 [shape = 'u8[65536]{0}', space=vmem, size = 0x10000, scoped, tag = 'input window, operand 0']
    #allocation9 [shape = 'u8[65536]{0}', space=vmem, size = 0x10000, scoped, tag = 'input window, operand 1']
    #allocation10 [shape = 'u8[65536]{0}', space=vmem, size = 0x10000, scoped, tag = 'input window, operand 2']
    loop: start=0, step=1, limit=4
    $region2: #{block_dejavu_forward.5} parent=1 // loop_pre_header
      _
    $region3: #{block_dejavu_forward.5} parent=1 // loop_header
      %s9 = sphi 0, %s13
      %p10 = scmp.ge.s32.totalorder %s9, 4
      %s16 = sphi 0, %s42
      %s17 = sphi 0, %s38
      %s18 = sphi 0, %s34
      %s19 = sphi 0, %s30
      %s20 = sphi 0, %s16
      %s21 = sphi 0, %s17
      %s22 = sphi 0, %s18
      %s23 = sphi 0, %s19
      %s24 = sphi 0, %s20
      %s25 = sphi 0, %s21
      %s26 = sphi 0, %s22
      %s27 = sphi 0, %s23
      %s49 = sphi 0, %s51
      %s52 = sphi 0, %s49
      %s53 = sphi 0, %s52
      %s69 = sphi 0, %s53
      %s81 = sphi 0, %s83
      %s84 = sphi 0, %s81
      %s85 = sphi 0, %s84
      %s101 = sphi 0, %s85
      %s113 = sphi 0, %s115
      %s116 = sphi 0, %s113
      %s117 = sphi 0, %s116
      %s133 = sphi 0, %s117
      %s143 = sphi 0, %s145
      %s146 = sphi 0, %s143
      %s147 = sphi 0, %s146
      %s163 = sphi 0, %s147
    $region4: #{block_dejavu_forward.5} parent=1 // loop_header_branch
      %12 = sbr.rel (%p10) target = $region8
    $region5: #{block_dejavu_forward.5} parent=1 // loop_body
      %s14 = ssub.s32 %s9, 1
      %s15 = ssub.s32 %s9, 2
      %s28 = sadd.s32 1, %s19
      %p29 = scmp.ge.s32.totalorder %s28, 1
      %s30 = scalar_select %p29, 0, %s28
      %s31 = sadd.s32 1, %s18
      %s32 = scalar_select %p29, %s31, %s18
      %p33 = scmp.ge.s32.totalorder %s32, 1
      %s34 = scalar_select %p33, 0, %s32
      %s35 = sadd.s32 1, %s17
      %s36 = scalar_select %p33, %s35, %s17
      %p37 = scmp.ge.s32.totalorder %s36, 1
      %s38 = scalar_select %p37, 0, %s36
      %s39 = sadd.s32 1, %s16
      %s40 = scalar_select %p37, %s39, %s16
      %p41 = scmp.ge.s32.totalorder %s40, 2
      %s42 = scalar_select %p41, 0, %s40
      %s43 = sadd.s32 %s16, %s18
      %s44 = sadd.s32 %s42, %s34
      %s45 = ssub.s32 %s43, %s44
      %s46 = ssub.s32 %s17, %s38
      %s47 = sor.u32 %s45, %s46
      %p48 = scmp.eq.s32.totalorder %s47, 0
      %s50 = sadd.s32 %s49, 1
      %s51 = scalar_select %p48, %s49, %s50
      %p54 = pneg %p48
      %p55 = scmp.eq.s32.totalorder %s9, 1
      %p56 = por %p54, %p55
      %p57 = scmp.ne.s32.totalorder %s49, %s52
      %p58 = scmp.eq.s32.totalorder %s9, 0
      %p59 = por %p57, %p58
      %p60 = scmp.ne.s32.totalorder %s49, %s52
      %p61 = scmp.eq.s32.totalorder %s14, 1
      %p62 = por %p60, %p61
      %p63 = scmp.ne.s32.totalorder %s52, %s53
      %p64 = scmp.eq.s32.totalorder %s14, 0
      %p65 = por %p63, %p64
      %p66 = scmp.ne.s32.totalorder %s52, %s53
      %p67 = scmp.eq.s32.totalorder %s15, 1
      %p68 = por %p66, %p67
      %p70 = scmp.ne.s32.totalorder %s53, %s69
      %p71 = scmp.eq.s32.totalorder %s15, 0
      %p72 = por %p70, %p71
      %s73 = sadd.s32 %s16, %s19
      %s74 = sadd.s32 %s17, 1
      %s75 = sadd.s32 %s42, %s30
      %s76 = sadd.s32 %s38, 1
      %s77 = ssub.s32 %s73, %s75
      %s78 = ssub.s32 %s74, %s76
      %s79 = sor.u32 %s77, %s78
      %p80 = scmp.eq.s32.totalorder %s79, 0
      %s82 = sadd.s32 %s81, 1
      %s83 = scalar_select %p80, %s81, %s82
      %p86 = pneg %p80
      %p87 = scmp.eq.s32.totalorder %s9, 1
      %p88 = por %p86, %p87
      %p89 = scmp.ne.s32.totalorder %s81, %s84
      %p90 = scmp.eq.s32.totalorder %s9, 0
      %p91 = por %p89, %p90
      %p92 = scmp.ne.s32.totalorder %s81, %s84
      %p93 = scmp.eq.s32.totalorder %s14, 1
      %p94 = por %p92, %p93
      %p95 = scmp.ne.s32.totalorder %s84, %s85
      %p96 = scmp.eq.s32.totalorder %s14, 0
      %p97 = por %p95, %p96
      %p98 = scmp.ne.s32.totalorder %s84, %s85
      %p99 = scmp.eq.s32.totalorder %s15, 1
      %p100 = por %p98, %p99
      %p102 = scmp.ne.s32.totalorder %s85, %s101
      %p103 = scmp.eq.s32.totalorder %s15, 0
      %p104 = por %p102, %p103
      %s105 = sadd.s32 %s16, %s19
      %s106 = sadd.s32 %s17, 2
      %s107 = sadd.s32 %s42, %s30
      %s108 = sadd.s32 %s38, 2
      %s109 = ssub.s32 %s105, %s107
      %s110 = ssub.s32 %s106, %s108
      %s111 = sor.u32 %s109, %s110
      %p112 = scmp.eq.s32.totalorder %s111, 0
      %s114 = sadd.s32 %s113, 1
      %s115 = scalar_select %p112, %s113, %s114
      %p118 = pneg %p112
      %p119 = scmp.eq.s32.totalorder %s9, 1
      %p120 = por %p118, %p119
      %p121 = scmp.ne.s32.totalorder %s113, %s116
      %p122 = scmp.eq.s32.totalorder %s9, 0
      %p123 = por %p121, %p122
      %p124 = scmp.ne.s32.totalorder %s113, %s116
      %p125 = scmp.eq.s32.totalorder %s14, 1
      %p126 = por %p124, %p125
      %p127 = scmp.ne.s32.totalorder %s116, %s117
      %p128 = scmp.eq.s32.totalorder %s14, 0
      %p129 = por %p127, %p128
      %p130 = scmp.ne.s32.totalorder %s116, %s117
      %p131 = scmp.eq.s32.totalorder %s15, 1
      %p132 = por %p130, %p131
      %p134 = scmp.ne.s32.totalorder %s117, %s133
      %p135 = scmp.eq.s32.totalorder %s15, 0
      %p136 = por %p134, %p135
      %s137 = sadd.s32 %s16, %s18
      %s138 = sadd.s32 %s42, %s34
      %s139 = ssub.s32 %s137, %s138
      %s140 = ssub.s32 %s17, %s38
      %s141 = sor.u32 %s139, %s140
      %p142 = scmp.eq.s32.totalorder %s141, 0
      %s144 = sadd.s32 %s143, 1
      %s145 = scalar_select %p142, %s143, %s144
      %p148 = pneg %p142
      %p149 = scmp.eq.s32.totalorder %s9, 1
      %p150 = por %p148, %p149
      %p151 = scmp.ne.s32.totalorder %s143, %s146
      %p152 = scmp.eq.s32.totalorder %s9, 0
      %p153 = por %p151, %p152
      %p154 = scmp.ne.s32.totalorder %s143, %s146
      %p155 = scmp.eq.s32.totalorder %s14, 1
      %p156 = por %p154, %p155
      %p157 = scmp.ne.s32.totalorder %s146, %s147
      %p158 = scmp.eq.s32.totalorder %s14, 0
      %p159 = por %p157, %p158
      %p160 = scmp.ne.s32.totalorder %s146, %s147
      %p161 = scmp.eq.s32.totalorder %s15, 1
      %p162 = por %p160, %p161
      %p164 = scmp.ne.s32.totalorder %s147, %s163
      %p165 = scmp.eq.s32.totalorder %s15, 0
      %p166 = por %p164, %p165
      %p167 = scmp.le.s32.totalorder 1, %s9
      %p168 = scmp.lt.s32.totalorder %s9, 3
      %p169 = pnand %p167, %p168
      %p170 = pneg %p169
      // Predicated region
      $region9: #{block_dejavu_forward.5} parent=5 // pred_check
        _
      $region10: #{block_dejavu_forward.5} parent=5 // pred_check_branch
        %172 = sbr.rel (%p169) target = $region12
      $region11: #{block_dejavu_forward.5} parent=5 // pred_region
        %s173 = ssub.s32 %s9, 1
      $region12: #{block_dejavu_forward.5} parent=5 // pred_fallthru
        _
      %p174 = scmp.lt.s32.totalorder %s9, 2
      // Predicated region
      $region13: #{block_dejavu_forward.5} parent=5 // pred_check
        %p175 = pneg %p174
      $region14: #{block_dejavu_forward.5} parent=5 // pred_check_branch
        %177 = sbr.rel (%p175) target = $region16
      $region15: #{block_dejavu_forward.5} parent=5 // pred_region
        // Predicated region
        $region17: #{block_dejavu_forward.5} parent=15 // pred_check
          %p178 = pneg %p59
        $region18: #{block_dejavu_forward.5} parent=15 // pred_check_branch
          %180 = sbr.rel (%p178) target = $region20
        $region19: #{block_dejavu_forward.5} parent=15 // pred_region
          %s181 = sand.u32 %s49, 1
          %s182 = sand.u32 %s49, 1
          %s183 = smul.addr %s182, 64
          %s184 = scalar_lea.vmem [#allocation8], %s183
          %s185 = sadd.s32 %s16, %s18
          %s186 = smul.u32 16, %s185
          %s187 = smul.addr %s186, 3
          %s188 = sadd.s32 %s17, %s187
          %s189 = smul.addr %s188, 4
          %s190 = scalar_lea.vmem %s0, %s189
          // Predicated region
          $region21: #{block_dejavu_forward.5} parent=19 // pred_check
            _
          $region22: #{block_dejavu_forward.5} parent=19 // pred_check_branch
            %192 = sbr.rel (0) target = $region24
          $region23: #{block_dejavu_forward.5} parent=19 // pred_region
            // Predicated region
            $region25: #{block_dejavu_forward.5} parent=23 // pred_check
              _
            $region26: #{block_dejavu_forward.5} parent=23 // pred_check_branch
              %194 = sbr.rel target = $region28
            $region27: #{block_dejavu_forward.5} parent=23 // pred_region
              // Predicated region
              $region40: #{block_dejavu_forward.5} parent=27 // pred_check
                _
              $region41: #{block_dejavu_forward.5} parent=27 // pred_check_branch
                %239 = sbr.rel (0) target = $region43
              $region42: #{block_dejavu_forward.5} parent=27 // pred_region
                loop: start=0, step=1, limit=1
                $region44: #{block_dejavu_forward.5} parent=42 // loop_pre_header
                  _
                $region45: #{block_dejavu_forward.5} parent=42 // loop_header
                  %s241 = sphi 0, %s245
                  %p242 = scmp.ge.s32.totalorder %s241, 1
                  %s246 = sphi %s190, %s190
                  %s247 = sphi %s184, %s184
                $region46: #{block_dejavu_forward.5} parent=42 // loop_header_branch
                  %244 = sbr.rel (%p242) target = $region50
                $region47: #{block_dejavu_forward.5} parent=42 // loop_body
                  _
                $region48: #{block_dejavu_forward.5} parent=42 // loop_footer
                  %s245 = sadd.s32 1, %s241
                $region49: #{block_dejavu_forward.5} parent=42 // loop_footer_branch
                  %240 = sbr.rel target = $region45
                $region50: #{block_dejavu_forward.5} parent=42 // loop_exit
                  _
                loop: start=0, step=1, limit=1
                $region51: #{block_dejavu_forward.5} parent=42 // loop_pre_header
                  _
                $region52: #{block_dejavu_forward.5} parent=42 // loop_header
                  %s250 = sphi 0, %s254
                  %p251 = scmp.ge.s32.totalorder %s250, 1
                  %s255 = sphi %s190, %s190
                  %s256 = sphi %s184, %s184
                $region53: #{block_dejavu_forward.5} parent=42 // loop_header_branch
                  %253 = sbr.rel (%p251) target = $region57
                $region54: #{block_dejavu_forward.5} parent=42 // loop_body
                  %v257 = vld [vmem:[%s255] sm:$0xf]
                  %258 = vst [vmem:[%s256] sm:$0xf] %v257
                  %v259 = vld [vmem:[%s255 + $0xc] sm:$0xf]
                  %260 = vst [vmem:[%s256 + $0x4] sm:$0xf] %v259
                  %v261 = vld [vmem:[%s255 + $0x18] sm:$0xf]
                  %262 = vst [vmem:[%s256 + $0x8] sm:$0xf] %v261
                  %v263 = vld [vmem:[%s255 + $0x24] sm:$0xf]
                  %264 = vst [vmem:[%s256 + $0xc] sm:$0xf] %v263
                  %v265 = vld [vmem:[%s255 + $0x30] sm:$0xf]
                  %266 = vst [vmem:[%s256 + $0x10] sm:$0xf] %v265
                  %v267 = vld [vmem:[%s255 + $0x3c] sm:$0xf]
                  %268 = vst [vmem:[%s256 + $0x14] sm:$0xf] %v267
                  %v269 = vld [vmem:[%s255 + $0x48] sm:$0xf]
                  %270 = vst [vmem:[%s256 + $0x18] sm:$0xf] %v269
                  %v271 = vld [vmem:[%s255 + $0x54] sm:$0xf]
                  %272 = vst [vmem:[%s256 + $0x1c] sm:$0xf] %v271
                  %v273 = vld [vmem:[%s255 + $0x60] sm:$0xf]
                  %274 = vst [vmem:[%s256 + $0x20] sm:$0xf] %v273
                  %v275 = vld [vmem:[%s255 + $0x6c] sm:$0xf]
                  %276 = vst [vmem:[%s256 + $0x24] sm:$0xf] %v275
                  %v277 = vld [vmem:[%s255 + $0x78] sm:$0xf]
                  %278 = vst [vmem:[%s256 + $0x28] sm:$0xf] %v277
                  %v279 = vld [vmem:[%s255 + $0x84] sm:$0xf]
                  %280 = vst [vmem:[%s256 + $0x2c] sm:$0xf] %v279
                  %v281 = vld [vmem:[%s255 + $0x90] sm:$0xf]
                  %282 = vst [vmem:[%s256 + $0x30] sm:$0xf] %v281
                  %v283 = vld [vmem:[%s255 + $0x9c] sm:$0xf]
                  %284 = vst [vmem:[%s256 + $0x34] sm:$0xf] %v283
                  %v285 = vld [vmem:[%s255 + $0xa8] sm:$0xf]
                  %286 = vst [vmem:[%s256 + $0x38] sm:$0xf] %v285
                  %v287 = vld [vmem:[%s255 + $0xb4] sm:$0xf]
                  %288 = vst [vmem:[%s256 + $0x3c] sm:$0xf] %v287
                $region55: #{block_dejavu_forward.5} parent=42 // loop_footer
                  %s254 = sadd.s32 1, %s250
                $region56: #{block_dejavu_forward.5} parent=42 // loop_footer_branch
                  %249 = sbr.rel target = $region52
                $region57: #{block_dejavu_forward.5} parent=42 // loop_exit
                  _
              $region43: #{block_dejavu_forward.5} parent=27 // pred_fallthru
                _
            $region28: #{block_dejavu_forward.5} parent=23 // pred_fallthru
              _
            // Predicated region
            $region29: #{block_dejavu_forward.5} parent=23 // pred_check
              _
            $region30: #{block_dejavu_forward.5} parent=23 // pred_check_branch
              %196 = sbr.rel (0) target = $region32
            $region31: #{block_dejavu_forward.5} parent=23 // pred_region
              loop: start=0, step=1, limit=1
              $region33: #{block_dejavu_forward.5} parent=31 // loop_pre_header
                _
              $region34: #{block_dejavu_forward.5} parent=31 // loop_header
                %s199 = sphi 0, %s203
                %p200 = scmp.ge.s32.totalorder %s199, 1
                %s204 = sphi %s190, %s190
                %s205 = sphi %s184, %s184
              $region35: #{block_dejavu_forward.5} parent=31 // loop_header_branch
                %202 = sbr.rel (%p200) target = $region39
              $region36: #{block_dejavu_forward.5} parent=31 // loop_body
                %v206 = vld [vmem:[%s204] sm:$0xf]
                %207 = vst [vmem:[%s205] sm:$0xf] %v206
                %v208 = vld [vmem:[%s204 + $0xc] sm:$0xf]
                %209 = vst [vmem:[%s205 + $0x4] sm:$0xf] %v208
                %v210 = vld [vmem:[%s204 + $0x18] sm:$0xf]
                %211 = vst [vmem:[%s205 + $0x8] sm:$0xf] %v210
                %v212 = vld [vmem:[%s204 + $0x24] sm:$0xf]
                %213 = vst [vmem:[%s205 + $0xc] sm:$0xf] %v212
                %v214 = vld [vmem:[%s204 + $0x30] sm:$0xf]
                %215 = vst [vmem:[%s205 + $0x10] sm:$0xf] %v214
                %v216 = vld [vmem:[%s204 + $0x3c] sm:$0xf]
                %217 = vst [vmem:[%s205 + $0x14] sm:$0xf] %v216
                %v218 = vld [vmem:[%s204 + $0x48] sm:$0xf]
                %219 = vst [vmem:[%s205 + $0x18] sm:$0xf] %v218
                %v220 = vld [vmem:[%s204 + $0x54] sm:$0xf]
                %221 = vst [vmem:[%s205 + $0x1c] sm:$0xf] %v220
                %v222 = vld [vmem:[%s204 + $0x60] sm:$0xf]
                %223 = vst [vmem:[%s205 + $0x20] sm:$0xf] %v222
                %v224 = vld [vmem:[%s204 + $0x6c] sm:$0xf]
                %225 = vst [vmem:[%s205 + $0x24] sm:$0xf] %v224
                %v226 = vld [vmem:[%s204 + $0x78] sm:$0xf]
                %227 = vst [vmem:[%s205 + $0x28] sm:$0xf] %v226
                %v228 = vld [vmem:[%s204 + $0x84] sm:$0xf]
                %229 = vst [vmem:[%s205 + $0x2c] sm:$0xf] %v228
                %v230 = vld [vmem:[%s204 + $0x90] sm:$0xf]
                %231 = vst [vmem:[%s205 + $0x30] sm:$0xf] %v230
                %v232 = vld [vmem:[%s204 + $0x9c] sm:$0xf]
                %233 = vst [vmem:[%s205 + $0x34] sm:$0xf] %v232
                %v234 = vld [vmem:[%s204 + $0xa8] sm:$0xf]
                %235 = vst [vmem:[%s205 + $0x38] sm:$0xf] %v234
                %v236 = vld [vmem:[%s204 + $0xb4] sm:$0xf]
                %237 = vst [vmem:[%s205 + $0x3c] sm:$0xf] %v236
              $region37: #{block_dejavu_forward.5} parent=31 // loop_footer
                %s203 = sadd.s32 1, %s199
              $region38: #{block_dejavu_forward.5} parent=31 // loop_footer_branch
                %198 = sbr.rel target = $region34
              $region39: #{block_dejavu_forward.5} parent=31 // loop_exit
                _
            $region32: #{block_dejavu_forward.5} parent=23 // pred_fallthru
              _
          $region24: #{block_dejavu_forward.5} parent=19 // pred_fallthru
            _
          %289 = vnop
        $region20: #{block_dejavu_forward.5} parent=15 // pred_fallthru
          _
        // Predicated region
        $region58: #{block_dejavu_forward.5} parent=15 // pred_check
          %p290 = pneg %p91
        $region59: #{block_dejavu_forward.5} parent=15 // pred_check_branch
          %292 = sbr.rel (%p290) target = $region61
        $region60: #{block_dejavu_forward.5} parent=15 // pred_region
          %s293 = sand.u32 %s81, 1
          %s294 = sand.u32 %s81, 1
          %s295 = smul.addr %s294, 64
          %s296 = scalar_lea.vmem [#allocation9], %s295
          %s297 = sadd.s32 %s16, %s19
          %s298 = sadd.s32 %s17, 1
          %s299 = smul.u32 16, %s297
          %s300 = smul.addr %s299, 3
          %s301 = sadd.s32 %s298, %s300
          %s302 = smul.addr %s301, 4
          %s303 = scalar_lea.vmem %s1, %s302
          // Predicated region
          $region62: #{block_dejavu_forward.5} parent=60 // pred_check
            _
          $region63: #{block_dejavu_forward.5} parent=60 // pred_check_branch
            %305 = sbr.rel (0) target = $region65
          $region64: #{block_dejavu_forward.5} parent=60 // pred_region
            // Predicated region
            $region66: #{block_dejavu_forward.5} parent=64 // pred_check
              _
            $region67: #{block_dejavu_forward.5} parent=64 // pred_check_branch
              %307 = sbr.rel target = $region69
            $region68: #{block_dejavu_forward.5} parent=64 // pred_region
              // Predicated region
              $region81: #{block_dejavu_forward.5} parent=68 // pred_check
                _
              $region82: #{block_dejavu_forward.5} parent=68 // pred_check_branch
                %352 = sbr.rel (0) target = $region84
              $region83: #{block_dejavu_forward.5} parent=68 // pred_region
                loop: start=0, step=1, limit=1
                $region85: #{block_dejavu_forward.5} parent=83 // loop_pre_header
                  _
                $region86: #{block_dejavu_forward.5} parent=83 // loop_header
                  %s354 = sphi 0, %s358
                  %p355 = scmp.ge.s32.totalorder %s354, 1
                  %s359 = sphi %s303, %s303
                  %s360 = sphi %s296, %s296
                $region87: #{block_dejavu_forward.5} parent=83 // loop_header_branch
                  %357 = sbr.rel (%p355) target = $region91
                $region88: #{block_dejavu_forward.5} parent=83 // loop_body
                  _
                $region89: #{block_dejavu_forward.5} parent=83 // loop_footer
                  %s358 = sadd.s32 1, %s354
                $region90: #{block_dejavu_forward.5} parent=83 // loop_footer_branch
                  %353 = sbr.rel target = $region86
                $region91: #{block_dejavu_forward.5} parent=83 // loop_exit
                  _
                loop: start=0, step=1, limit=1
                $region92: #{block_dejavu_forward.5} parent=83 // loop_pre_header
                  _
                $region93: #{block_dejavu_forward.5} parent=83 // loop_header
                  %s363 = sphi 0, %s367
                  %p364 = scmp.ge.s32.totalorder %s363, 1
                  %s368 = sphi %s303, %s303
                  %s369 = sphi %s296, %s296
                $region94: #{block_dejavu_forward.5} parent=83 // loop_header_branch
                  %366 = sbr.rel (%p364) target = $region98
                $region95: #{block_dejavu_forward.5} parent=83 // loop_body
                  %v370 = vld [vmem:[%s368] sm:$0xf]
                  %371 = vst [vmem:[%s369] sm:$0xf] %v370
                  %v372 = vld [vmem:[%s368 + $0xc] sm:$0xf]
                  %373 = vst [vmem:[%s369 + $0x4] sm:$0xf] %v372
                  %v374 = vld [vmem:[%s368 + $0x18] sm:$0xf]
                  %375 = vst [vmem:[%s369 + $0x8] sm:$0xf] %v374
                  %v376 = vld [vmem:[%s368 + $0x24] sm:$0xf]
                  %377 = vst [vmem:[%s369 + $0xc] sm:$0xf] %v376
                  %v378 = vld [vmem:[%s368 + $0x30] sm:$0xf]
                  %379 = vst [vmem:[%s369 + $0x10] sm:$0xf] %v378
                  %v380 = vld [vmem:[%s368 + $0x3c] sm:$0xf]
                  %381 = vst [vmem:[%s369 + $0x14] sm:$0xf] %v380
                  %v382 = vld [vmem:[%s368 + $0x48] sm:$0xf]
                  %383 = vst [vmem:[%s369 + $0x18] sm:$0xf] %v382
                  %v384 = vld [vmem:[%s368 + $0x54] sm:$0xf]
                  %385 = vst [vmem:[%s369 + $0x1c] sm:$0xf] %v384
                  %v386 = vld [vmem:[%s368 + $0x60] sm:$0xf]
                  %387 = vst [vmem:[%s369 + $0x20] sm:$0xf] %v386
                  %v388 = vld [vmem:[%s368 + $0x6c] sm:$0xf]
                  %389 = vst [vmem:[%s369 + $0x24] sm:$0xf] %v388
                  %v390 = vld [vmem:[%s368 + $0x78] sm:$0xf]
                  %391 = vst [vmem:[%s369 + $0x28] sm:$0xf] %v390
                  %v392 = vld [vmem:[%s368 + $0x84] sm:$0xf]
                  %393 = vst [vmem:[%s369 + $0x2c] sm:$0xf] %v392
                  %v394 = vld [vmem:[%s368 + $0x90] sm:$0xf]
                  %395 = vst [vmem:[%s369 + $0x30] sm:$0xf] %v394
                  %v396 = vld [vmem:[%s368 + $0x9c] sm:$0xf]
                  %397 = vst [vmem:[%s369 + $0x34] sm:$0xf] %v396
                  %v398 = vld [vmem:[%s368 + $0xa8] sm:$0xf]
                  %399 = vst [vmem:[%s369 + $0x38] sm:$0xf] %v398
                  %v400 = vld [vmem:[%s368 + $0xb4] sm:$0xf]
                  %401 = vst [vmem:[%s369 + $0x3c] sm:$0xf] %v400
                $region96: #{block_dejavu_forward.5} parent=83 // loop_footer
                  %s367 = sadd.s32 1, %s363
                $region97: #{block_dejavu_forward.5} parent=83 // loop_footer_branch
                  %362 = sbr.rel target = $region93
                $region98: #{block_dejavu_forward.5} parent=83 // loop_exit
                  _
              $region84: #{block_dejavu_forward.5} parent=68 // pred_fallthru
                _
            $region69: #{block_dejavu_forward.5} parent=64 // pred_fallthru
              _
            // Predicated region
            $region70: #{block_dejavu_forward.5} parent=64 // pred_check
              _
            $region71: #{block_dejavu_forward.5} parent=64 // pred_check_branch
              %309 = sbr.rel (0) target = $region73
            $region72: #{block_dejavu_forward.5} parent=64 // pred_region
              loop: start=0, step=1, limit=1
              $region74: #{block_dejavu_forward.5} parent=72 // loop_pre_header
                _
              $region75: #{block_dejavu_forward.5} parent=72 // loop_header
                %s312 = sphi 0, %s316
                %p313 = scmp.ge.s32.totalorder %s312, 1
                %s317 = sphi %s303, %s303
                %s318 = sphi %s296, %s296
              $region76: #{block_dejavu_forward.5} parent=72 // loop_header_branch
                %315 = sbr.rel (%p313) target = $region80
              $region77: #{block_dejavu_forward.5} parent=72 // loop_body
                %v319 = vld [vmem:[%s317] sm:$0xf]
                %320 = vst [vmem:[%s318] sm:$0xf] %v319
                %v321 = vld [vmem:[%s317 + $0xc] sm:$0xf]
                %322 = vst [vmem:[%s318 + $0x4] sm:$0xf] %v321
                %v323 = vld [vmem:[%s317 + $0x18] sm:$0xf]
                %324 = vst [vmem:[%s318 + $0x8] sm:$0xf] %v323
                %v325 = vld [vmem:[%s317 + $0x24] sm:$0xf]
                %326 = vst [vmem:[%s318 + $0xc] sm:$0xf] %v325
                %v327 = vld [vmem:[%s317 + $0x30] sm:$0xf]
                %328 = vst [vmem:[%s318 + $0x10] sm:$0xf] %v327
                %v329 = vld [vmem:[%s317 + $0x3c] sm:$0xf]
                %330 = vst [vmem:[%s318 + $0x14] sm:$0xf] %v329
                %v331 = vld [vmem:[%s317 + $0x48] sm:$0xf]
                %332 = vst [vmem:[%s318 + $0x18] sm:$0xf] %v331
                %v333 = vld [vmem:[%s317 + $0x54] sm:$0xf]
                %334 = vst [vmem:[%s318 + $0x1c] sm:$0xf] %v333
                %v335 = vld [vmem:[%s317 + $0x60] sm:$0xf]
                %336 = vst [vmem:[%s318 + $0x20] sm:$0xf] %v335
                %v337 = vld [vmem:[%s317 + $0x6c] sm:$0xf]
                %338 = vst [vmem:[%s318 + $0x24] sm:$0xf] %v337
                %v339 = vld [vmem:[%s317 + $0x78] sm:$0xf]
                %340 = vst [vmem:[%s318 + $0x28] sm:$0xf] %v339
                %v341 = vld [vmem:[%s317 + $0x84] sm:$0xf]
                %342 = vst [vmem:[%s318 + $0x2c] sm:$0xf] %v341
                %v343 = vld [vmem:[%s317 + $0x90] sm:$0xf]
                %344 = vst [vmem:[%s318 + $0x30] sm:$0xf] %v343
                %v345 = vld [vmem:[%s317 + $0x9c] sm:$0xf]
                %346 = vst [vmem:[%s318 + $0x34] sm:$0xf] %v345
                %v347 = vld [vmem:[%s317 + $0xa8] sm:$0xf]
                %348 = vst [vmem:[%s318 + $0x38] sm:$0xf] %v347
                %v349 = vld [vmem:[%s317 + $0xb4] sm:$0xf]
                %350 = vst [vmem:[%s318 + $0x3c] sm:$0xf] %v349
              $region78: #{block_dejavu_forward.5} parent=72 // loop_footer
                %s316 = sadd.s32 1, %s312
              $region79: #{block_dejavu_forward.5} parent=72 // loop_footer_branch
                %311 = sbr.rel target = $region75
              $region80: #{block_dejavu_forward.5} parent=72 // loop_exit
                _
            $region73: #{block_dejavu_forward.5} parent=64 // pred_fallthru
              _
          $region65: #{block_dejavu_forward.5} parent=60 // pred_fallthru
            _
          %402 = vnop
        $region61: #{block_dejavu_forward.5} parent=15 // pred_fallthru
          _
        // Predicated region
        $region99: #{block_dejavu_forward.5} parent=15 // pred_check
          %p403 = pneg %p123
        $region100: #{block_dejavu_forward.5} parent=15 // pred_check_branch
          %405 = sbr.rel (%p403) target = $region102
        $region101: #{block_dejavu_forward.5} parent=15 // pred_region
          %s406 = sand.u32 %s113, 1
          %s407 = sand.u32 %s113, 1
          %s408 = smul.addr %s407, 64
          %s409 = scalar_lea.vmem [#allocation10], %s408
          %s410 = sadd.s32 %s16, %s19
          %s411 = sadd.s32 %s17, 2
          %s412 = smul.u32 16, %s410
          %s413 = smul.addr %s412, 3
          %s414 = sadd.s32 %s411, %s413
          %s415 = smul.addr %s414, 4
          %s416 = scalar_lea.vmem %s2, %s415
          // Predicated region
          $region103: #{block_dejavu_forward.5} parent=101 // pred_check
            _
          $region104: #{block_dejavu_forward.5} parent=101 // pred_check_branch
            %418 = sbr.rel (0) target = $region106
          $region105: #{block_dejavu_forward.5} parent=101 // pred_region
            // Predicated region
            $region107: #{block_dejavu_forward.5} parent=105 // pred_check
              _
            $region108: #{block_dejavu_forward.5} parent=105 // pred_check_branch
              %420 = sbr.rel target = $region110
            $region109: #{block_dejavu_forward.5} parent=105 // pred_region
              // Predicated region
              $region122: #{block_dejavu_forward.5} parent=109 // pred_check
                _
              $region123: #{block_dejavu_forward.5} parent=109 // pred_check_branch
                %465 = sbr.rel (0) target = $region125
              $region124: #{block_dejavu_forward.5} parent=109 // pred_region
                loop: start=0, step=1, limit=1
                $region126: #{block_dejavu_forward.5} parent=124 // loop_pre_header
                  _
                $region127: #{block_dejavu_forward.5} parent=124 // loop_header
                  %s467 = sphi 0, %s471
                  %p468 = scmp.ge.s32.totalorder %s467, 1
                  %s472 = sphi %s416, %s416
                  %s473 = sphi %s409, %s409
                $region128: #{block_dejavu_forward.5} parent=124 // loop_header_branch
                  %470 = sbr.rel (%p468) target = $region132
                $region129: #{block_dejavu_forward.5} parent=124 // loop_body
                  _
                $region130: #{block_dejavu_forward.5} parent=124 // loop_footer
                  %s471 = sadd.s32 1, %s467
                $region131: #{block_dejavu_forward.5} parent=124 // loop_footer_branch
                  %466 = sbr.rel target = $region127
                $region132: #{block_dejavu_forward.5} parent=124 // loop_exit
                  _
                loop: start=0, step=1, limit=1
                $region133: #{block_dejavu_forward.5} parent=124 // loop_pre_header
                  _
                $region134: #{block_dejavu_forward.5} parent=124 // loop_header
                  %s476 = sphi 0, %s480
                  %p477 = scmp.ge.s32.totalorder %s476, 1
                  %s481 = sphi %s416, %s416
                  %s482 = sphi %s409, %s409
                $region135: #{block_dejavu_forward.5} parent=124 // loop_header_branch
                  %479 = sbr.rel (%p477) target = $region139
                $region136: #{block_dejavu_forward.5} parent=124 // loop_body
                  %v483 = vld [vmem:[%s481] sm:$0xf]
                  %484 = vst [vmem:[%s482] sm:$0xf] %v483
                  %v485 = vld [vmem:[%s481 + $0xc] sm:$0xf]
                  %486 = vst [vmem:[%s482 + $0x4] sm:$0xf] %v485
                  %v487 = vld [vmem:[%s481 + $0x18] sm:$0xf]
                  %488 = vst [vmem:[%s482 + $0x8] sm:$0xf] %v487
                  %v489 = vld [vmem:[%s481 + $0x24] sm:$0xf]
                  %490 = vst [vmem:[%s482 + $0xc] sm:$0xf] %v489
                  %v491 = vld [vmem:[%s481 + $0x30] sm:$0xf]
                  %492 = vst [vmem:[%s482 + $0x10] sm:$0xf] %v491
                  %v493 = vld [vmem:[%s481 + $0x3c] sm:$0xf]
                  %494 = vst [vmem:[%s482 + $0x14] sm:$0xf] %v493
                  %v495 = vld [vmem:[%s481 + $0x48] sm:$0xf]
                  %496 = vst [vmem:[%s482 + $0x18] sm:$0xf] %v495
                  %v497 = vld [vmem:[%s481 + $0x54] sm:$0xf]
                  %498 = vst [vmem:[%s482 + $0x1c] sm:$0xf] %v497
                  %v499 = vld [vmem:[%s481 + $0x60] sm:$0xf]
                  %500 = vst [vmem:[%s482 + $0x20] sm:$0xf] %v499
                  %v501 = vld [vmem:[%s481 + $0x6c] sm:$0xf]
                  %502 = vst [vmem:[%s482 + $0x24] sm:$0xf] %v501
                  %v503 = vld [vmem:[%s481 + $0x78] sm:$0xf]
                  %504 = vst [vmem:[%s482 + $0x28] sm:$0xf] %v503
                  %v505 = vld [vmem:[%s481 + $0x84] sm:$0xf]
                  %506 = vst [vmem:[%s482 + $0x2c] sm:$0xf] %v505
                  %v507 = vld [vmem:[%s481 + $0x90] sm:$0xf]
                  %508 = vst [vmem:[%s482 + $0x30] sm:$0xf] %v507
                  %v509 = vld [vmem:[%s481 + $0x9c] sm:$0xf]
                  %510 = vst [vmem:[%s482 + $0x34] sm:$0xf] %v509
                  %v511 = vld [vmem:[%s481 + $0xa8] sm:$0xf]
                  %512 = vst [vmem:[%s482 + $0x38] sm:$0xf] %v511
                  %v513 = vld [vmem:[%s481 + $0xb4] sm:$0xf]
                  %514 = vst [vmem:[%s482 + $0x3c] sm:$0xf] %v513
                $region137: #{block_dejavu_forward.5} parent=124 // loop_footer
                  %s480 = sadd.s32 1, %s476
                $region138: #{block_dejavu_forward.5} parent=124 // loop_footer_branch
                  %475 = sbr.rel target = $region134
                $region139: #{block_dejavu_forward.5} parent=124 // loop_exit
                  _
              $region125: #{block_dejavu_forward.5} parent=109 // pred_fallthru
                _
            $region110: #{block_dejavu_forward.5} parent=105 // pred_fallthru
              _
            // Predicated region
            $region111: #{block_dejavu_forward.5} parent=105 // pred_check
              _
            $region112: #{block_dejavu_forward.5} parent=105 // pred_check_branch
              %422 = sbr.rel (0) target = $region114
            $region113: #{block_dejavu_forward.5} parent=105 // pred_region
              loop: start=0, step=1, limit=1
              $region115: #{block_dejavu_forward.5} parent=113 // loop_pre_header
                _
              $region116: #{block_dejavu_forward.5} parent=113 // loop_header
                %s425 = sphi 0, %s429
                %p426 = scmp.ge.s32.totalorder %s425, 1
                %s430 = sphi %s416, %s416
                %s431 = sphi %s409, %s409
              $region117: #{block_dejavu_forward.5} parent=113 // loop_header_branch
                %428 = sbr.rel (%p426) target = $region121
              $region118: #{block_dejavu_forward.5} parent=113 // loop_body
                %v432 = vld [vmem:[%s430] sm:$0xf]
                %433 = vst [vmem:[%s431] sm:$0xf] %v432
                %v434 = vld [vmem:[%s430 + $0xc] sm:$0xf]
                %435 = vst [vmem:[%s431 + $0x4] sm:$0xf] %v434
                %v436 = vld [vmem:[%s430 + $0x18] sm:$0xf]
                %437 = vst [vmem:[%s431 + $0x8] sm:$0xf] %v436
                %v438 = vld [vmem:[%s430 + $0x24] sm:$0xf]
                %439 = vst [vmem:[%s431 + $0xc] sm:$0xf] %v438
                %v440 = vld [vmem:[%s430 + $0x30] sm:$0xf]
                %441 = vst [vmem:[%s431 + $0x10] sm:$0xf] %v440
                %v442 = vld [vmem:[%s430 + $0x3c] sm:$0xf]
                %443 = vst [vmem:[%s431 + $0x14] sm:$0xf] %v442
                %v444 = vld [vmem:[%s430 + $0x48] sm:$0xf]
                %445 = vst [vmem:[%s431 + $0x18] sm:$0xf] %v444
                %v446 = vld [vmem:[%s430 + $0x54] sm:$0xf]
                %447 = vst [vmem:[%s431 + $0x1c] sm:$0xf] %v446
                %v448 = vld [vmem:[%s430 + $0x60] sm:$0xf]
                %449 = vst [vmem:[%s431 + $0x20] sm:$0xf] %v448
                %v450 = vld [vmem:[%s430 + $0x6c] sm:$0xf]
                %451 = vst [vmem:[%s431 + $0x24] sm:$0xf] %v450
                %v452 = vld [vmem:[%s430 + $0x78] sm:$0xf]
                %453 = vst [vmem:[%s431 + $0x28] sm:$0xf] %v452
                %v454 = vld [vmem:[%s430 + $0x84] sm:$0xf]
                %455 = vst [vmem:[%s431 + $0x2c] sm:$0xf] %v454
                %v456 = vld [vmem:[%s430 + $0x90] sm:$0xf]
                %457 = vst [vmem:[%s431 + $0x30] sm:$0xf] %v456
                %v458 = vld [vmem:[%s430 + $0x9c] sm:$0xf]
                %459 = vst [vmem:[%s431 + $0x34] sm:$0xf] %v458
                %v460 = vld [vmem:[%s430 + $0xa8] sm:$0xf]
                %461 = vst [vmem:[%s431 + $0x38] sm:$0xf] %v460
                %v462 = vld [vmem:[%s430 + $0xb4] sm:$0xf]
                %463 = vst [vmem:[%s431 + $0x3c] sm:$0xf] %v462
              $region119: #{block_dejavu_forward.5} parent=113 // loop_footer
                %s429 = sadd.s32 1, %s425
              $region120: #{block_dejavu_forward.5} parent=113 // loop_footer_branch
                %424 = sbr.rel target = $region116
              $region121: #{block_dejavu_forward.5} parent=113 // loop_exit
                _
            $region114: #{block_dejavu_forward.5} parent=105 // pred_fallthru
              _
          $region106: #{block_dejavu_forward.5} parent=101 // pred_fallthru
            _
          %515 = vnop
        $region102: #{block_dejavu_forward.5} parent=15 // pred_fallthru
          _
      $region16: #{block_dejavu_forward.5} parent=5 // pred_fallthru
        _
      %p516 = scmp.le.s32.totalorder 1, %s9
      %p517 = scmp.lt.s32.totalorder %s9, 3
      %p518 = pnand %p516, %p517
      %p519 = pneg %p518
      // Predicated region
      $region140: #{block_dejavu_forward.5} parent=5 // pred_check
        _
      $region141: #{block_dejavu_forward.5} parent=5 // pred_check_branch
        %521 = sbr.rel (%p518) target = $region143
      $region142: #{block_dejavu_forward.5} parent=5 // pred_region
        %s522 = ssub.s32 %s9, 1
        %s523 = sand.u32 %s52, 1
        %s524 = sand.u32 %s52, 1
        %s525 = smul.addr %s524, 64
        %s526 = scalar_lea.vmem [#allocation8], %s525
        // Predicated region
        $region144: #{block_dejavu_forward.5} parent=142 // pred_check
          %p527 = pneg %p65
        $region145: #{block_dejavu_forward.5} parent=142 // pred_check_branch
          %529 = sbr.rel (%p527) target = $region147
        $region146: #{block_dejavu_forward.5} parent=142 // pred_region
          _
        $region147: #{block_dejavu_forward.5} parent=142 // pred_fallthru
          _
        %s530 = sand.u32 %s84, 1
        %s531 = sand.u32 %s84, 1
        %s532 = smul.addr %s531, 64
        %s533 = scalar_lea.vmem [#allocation9], %s532
        // Predicated region
        $region148: #{block_dejavu_forward.5} parent=142 // pred_check
          %p534 = pneg %p97
        $region149: #{block_dejavu_forward.5} parent=142 // pred_check_branch
          %536 = sbr.rel (%p534) target = $region151
        $region150: #{block_dejavu_forward.5} parent=142 // pred_region
          _
        $region151: #{block_dejavu_forward.5} parent=142 // pred_fallthru
          _
        %s537 = sand.u32 %s116, 1
        %s538 = sand.u32 %s116, 1
        %s539 = smul.addr %s538, 64
        %s540 = scalar_lea.vmem [#allocation10], %s539
        // Predicated region
        $region152: #{block_dejavu_forward.5} parent=142 // pred_check
          %p541 = pneg %p129
        $region153: #{block_dejavu_forward.5} parent=142 // pred_check_branch
          %543 = sbr.rel (%p541) target = $region155
        $region154: #{block_dejavu_forward.5} parent=142 // pred_region
          _
        $region155: #{block_dejavu_forward.5} parent=142 // pred_fallthru
          _
        %s544 = sand.u32 %s52, 1
        %s545 = sand.u32 %s52, 1
        %s546 = smul.addr %s545, 64
        %s547 = scalar_lea.vmem [#allocation8], %s546
        %p548 = pneg %p65
        %p549 = pneg %p62
        %s550 = sand.u32 %s84, 1
        %s551 = sand.u32 %s84, 1
        %s552 = smul.addr %s551, 64
        %s553 = scalar_lea.vmem [#allocation9], %s552
        %p554 = pneg %p97
        %p555 = pneg %p94
        %s556 = sand.u32 %s116, 1
        %s557 = sand.u32 %s116, 1
        %s558 = smul.addr %s557, 64
        %s559 = scalar_lea.vmem [#allocation10], %s558
        %p560 = pneg %p129
        %p561 = pneg %p126
        %p562 = pneg %p159
        %p563 = pneg %p156
        %s564 = sadd.s32 %s20, %s22
        %s565 = smul.u32 16, %s564
        %p566 = scmp.lt.s32.totalorder %s565, 31
        %s567 = scalar_select %p566, %s565, 31
        %p568 = scmp.lt.s32.totalorder %s21, 0
        %s569 = scalar_select %p568, %s21, 0
        %s570 = sadd.s32 %s569, %s567
        %s571 = smul.addr %s570, 4
        %s572 = scalar_lea.vmem %s3, %s571
        %s573 = sadd.s32 %s20, %s22
        %s574 = smul.u32 16, %s573
        %s575 = sadd.s32 %s20, %s23
        %s576 = sadd.s32 %s21, 1
        %s577 = smul.u32 16, %s575
        %s578 = sadd.s32 %s20, %s23
        %s579 = sadd.s32 %s21, 2
        %s580 = smul.u32 16, %s578
        %s581 = sadd.s32 %s20, %s22
        %s582 = smul.u32 16, %s581
        %p583 = scmp.lt.s32.totalorder %s582, 31
        %s584 = scalar_select %p583, %s582, 31
        %p585 = scmp.lt.s32.totalorder %s21, 0
        %s586 = scalar_select %p585, %s21, 0
        %s587 = sadd.s32 %s586, %s584
        %s588 = smul.addr %s587, 4
        %s589 = scalar_lea.vmem %s3, %s588
        %s590 = sadd.s32 %s20, %s22
        %s591 = smul.u32 16, %s590
        %p593 = scmp.eq.s32.totalorder %s23, 0
        // Predicated region
        $region156: #{block_dejavu_forward.5} parent=142 // pred_check
          %p594 = pneg %p593
        $region157: #{block_dejavu_forward.5} parent=142 // pred_check_branch
          %596 = sbr.rel (%p594) target = $region159
        $region158: #{block_dejavu_forward.5} parent=142 // pred_region
          %vm597 = vcmask 7168
          %598 = vst.msk [vmem:[#allocation2] sm:$0xff] %vm597, -inf
          %599 = vst.msk [vmem:[#allocation2 + $0x8] sm:$0xff] %vm597, -inf
          %600 = vst.msk [vmem:[#allocation2 + $0x10] sm:$0xff] %vm597, -inf
          %601 = vst.msk [vmem:[#allocation2 + $0x18] sm:$0xff] %vm597, -inf
          %602 = vst.msk [vmem:[#allocation2 + $0x20] sm:$0xff] %vm597, -inf
          %603 = vst.msk [vmem:[#allocation2 + $0x28] sm:$0xff] %vm597, -inf
          %604 = vst.msk [vmem:[#allocation2 + $0x30] sm:$0xff] %vm597, -inf
          %605 = vst.msk [vmem:[#allocation2 + $0x38] sm:$0xff] %vm597, -inf
          %606 = vst.msk [vmem:[#allocation2 + $0x40] sm:$0xff] %vm597, -inf
          %607 = vst.msk [vmem:[#allocation2 + $0x48] sm:$0xff] %vm597, -inf
          %608 = vst.msk [vmem:[#allocation2 + $0x50] sm:$0xff] %vm597, -inf
          %609 = vst.msk [vmem:[#allocation2 + $0x58] sm:$0xff] %vm597, -inf
          %610 = vst.msk [vmem:[#allocation2 + $0x60] sm:$0xff] %vm597, -inf
          %611 = vst.msk [vmem:[#allocation2 + $0x68] sm:$0xff] %vm597, -inf
          %612 = vst.msk [vmem:[#allocation2 + $0x70] sm:$0xff] %vm597, -inf
          %613 = vst.msk [vmem:[#allocation2 + $0x78] sm:$0xff] %vm597, -inf
          %614 = vst.msk [vmem:[#allocation3] sm:$0xff] %vm597, 0.0
          %615 = vst.msk [vmem:[#allocation3 + $0x8] sm:$0xff] %vm597, 0.0
          %616 = vst.msk [vmem:[#allocation3 + $0x10] sm:$0xff] %vm597, 0.0
          %617 = vst.msk [vmem:[#allocation3 + $0x18] sm:$0xff] %vm597, 0.0
          %618 = vst.msk [vmem:[#allocation3 + $0x20] sm:$0xff] %vm597, 0.0
          %619 = vst.msk [vmem:[#allocation3 + $0x28] sm:$0xff] %vm597, 0.0
          %620 = vst.msk [vmem:[#allocation3 + $0x30] sm:$0xff] %vm597, 0.0
          %621 = vst.msk [vmem:[#allocation3 + $0x38] sm:$0xff] %vm597, 0.0
          %622 = vst.msk [vmem:[#allocation3 + $0x40] sm:$0xff] %vm597, 0.0
          %623 = vst.msk [vmem:[#allocation3 + $0x48] sm:$0xff] %vm597, 0.0
          %624 = vst.msk [vmem:[#allocation3 + $0x50] sm:$0xff] %vm597, 0.0
          %625 = vst.msk [vmem:[#allocation3 + $0x58] sm:$0xff] %vm597, 0.0
          %626 = vst.msk [vmem:[#allocation3 + $0x60] sm:$0xff] %vm597, 0.0
          %627 = vst.msk [vmem:[#allocation3 + $0x68] sm:$0xff] %vm597, 0.0
          %628 = vst.msk [vmem:[#allocation3 + $0x70] sm:$0xff] %vm597, 0.0
          %629 = vst.msk [vmem:[#allocation3 + $0x78] sm:$0xff] %vm597, 0.0
          %vm630 = vcmask 523264
          %631 = vst.msk [vmem:[#allocation4] sm:$0xff] %vm630, 0.0
          %632 = vst.msk [vmem:[#allocation4 + $0x8] sm:$0xff] %vm630, 0.0
          %633 = vst.msk [vmem:[#allocation4 + $0x10] sm:$0xff] %vm630, 0.0
          %634 = vst.msk [vmem:[#allocation4 + $0x18] sm:$0xff] %vm630, 0.0
          %635 = vst.msk [vmem:[#allocation4 + $0x20] sm:$0xff] %vm630, 0.0
          %636 = vst.msk [vmem:[#allocation4 + $0x28] sm:$0xff] %vm630, 0.0
          %637 = vst.msk [vmem:[#allocation4 + $0x30] sm:$0xff] %vm630, 0.0
          %638 = vst.msk [vmem:[#allocation4 + $0x38] sm:$0xff] %vm630, 0.0
          %639 = vst.msk [vmem:[#allocation4 + $0x40] sm:$0xff] %vm630, 0.0
          %640 = vst.msk [vmem:[#allocation4 + $0x48] sm:$0xff] %vm630, 0.0
          %641 = vst.msk [vmem:[#allocation4 + $0x50] sm:$0xff] %vm630, 0.0
          %642 = vst.msk [vmem:[#allocation4 + $0x58] sm:$0xff] %vm630, 0.0
          %643 = vst.msk [vmem:[#allocation4 + $0x60] sm:$0xff] %vm630, 0.0
          %644 = vst.msk [vmem:[#allocation4 + $0x68] sm:$0xff] %vm630, 0.0
          %645 = vst.msk [vmem:[#allocation4 + $0x70] sm:$0xff] %vm630, 0.0
          %646 = vst.msk [vmem:[#allocation4 + $0x78] sm:$0xff] %vm630, 0.0
          %647 = vst.msk [vmem:[#allocation5] sm:$0xff] %vm597, -inf
          %648 = vst.msk [vmem:[#allocation5 + $0x8] sm:$0xff] %vm597, -inf
          %649 = vst.msk [vmem:[#allocation5 + $0x10] sm:$0xff] %vm597, -inf
          %650 = vst.msk [vmem:[#allocation5 + $0x18] sm:$0xff] %vm597, -inf
          %651 = vst.msk [vmem:[#allocation5 + $0x20] sm:$0xff] %vm597, -inf
          %652 = vst.msk [vmem:[#allocation5 + $0x28] sm:$0xff] %vm597, -inf
          %653 = vst.msk [vmem:[#allocation5 + $0x30] sm:$0xff] %vm597, -inf
          %654 = vst.msk [vmem:[#allocation5 + $0x38] sm:$0xff] %vm597, -inf
          %655 = vst.msk [vmem:[#allocation5 + $0x40] sm:$0xff] %vm597, -inf
          %656 = vst.msk [vmem:[#allocation5 + $0x48] sm:$0xff] %vm597, -inf
          %657 = vst.msk [vmem:[#allocation5 + $0x50] sm:$0xff] %vm597, -inf
          %658 = vst.msk [vmem:[#allocation5 + $0x58] sm:$0xff] %vm597, -inf
          %659 = vst.msk [vmem:[#allocation5 + $0x60] sm:$0xff] %vm597, -inf
          %660 = vst.msk [vmem:[#allocation5 + $0x68] sm:$0xff] %vm597, -inf
          %661 = vst.msk [vmem:[#allocation5 + $0x70] sm:$0xff] %vm597, -inf
          %662 = vst.msk [vmem:[#allocation5 + $0x78] sm:$0xff] %vm597, -inf
          %663 = vst.msk [vmem:[#allocation6] sm:$0xff] %vm597, 0.0
          %664 = vst.msk [vmem:[#allocation6 + $0x8] sm:$0xff] %vm597, 0.0
          %665 = vst.msk [vmem:[#allocation6 + $0x10] sm:$0xff] %vm597, 0.0
          %666 = vst.msk [vmem:[#allocation6 + $0x18] sm:$0xff] %vm597, 0.0
          %667 = vst.msk [vmem:[#allocation6 + $0x20] sm:$0xff] %vm597, 0.0
          %668 = vst.msk [vmem:[#allocation6 + $0x28] sm:$0xff] %vm597, 0.0
          %669 = vst.msk [vmem:[#allocation6 + $0x30] sm:$0xff] %vm597, 0.0
          %670 = vst.msk [vmem:[#allocation6 + $0x38] sm:$0xff] %vm597, 0.0
          %671 = vst.msk [vmem:[#allocation6 + $0x40] sm:$0xff] %vm597, 0.0
          %672 = vst.msk [vmem:[#allocation6 + $0x48] sm:$0xff] %vm597, 0.0
          %673 = vst.msk [vmem:[#allocation6 + $0x50] sm:$0xff] %vm597, 0.0
          %674 = vst.msk [vmem:[#allocation6 + $0x58] sm:$0xff] %vm597, 0.0
          %675 = vst.msk [vmem:[#allocation6 + $0x60] sm:$0xff] %vm597, 0.0
          %676 = vst.msk [vmem:[#allocation6 + $0x68] sm:$0xff] %vm597, 0.0
          %677 = vst.msk [vmem:[#allocation6 + $0x70] sm:$0xff] %vm597, 0.0
          %678 = vst.msk [vmem:[#allocation6 + $0x78] sm:$0xff] %vm597, 0.0
          %679 = vst.msk [vmem:[#allocation7] sm:$0xff] %vm630, 0.0
          %680 = vst.msk [vmem:[#allocation7 + $0x8] sm:$0xff] %vm630, 0.0
          %681 = vst.msk [vmem:[#allocation7 + $0x10] sm:$0xff] %vm630, 0.0
          %682 = vst.msk [vmem:[#allocation7 + $0x18] sm:$0xff] %vm630, 0.0
          %683 = vst.msk [vmem:[#allocation7 + $0x20] sm:$0xff] %vm630, 0.0
          %684 = vst.msk [vmem:[#allocation7 + $0x28] sm:$0xff] %vm630, 0.0
          %685 = vst.msk [vmem:[#allocation7 + $0x30] sm:$0xff] %vm630, 0.0
          %686 = vst.msk [vmem:[#allocation7 + $0x38] sm:$0xff] %vm630, 0.0
          %687 = vst.msk [vmem:[#allocation7 + $0x40] sm:$0xff] %vm630, 0.0
          %688 = vst.msk [vmem:[#allocation7 + $0x48] sm:$0xff] %vm630, 0.0
          %689 = vst.msk [vmem:[#allocation7 + $0x50] sm:$0xff] %vm630, 0.0
          %690 = vst.msk [vmem:[#allocation7 + $0x58] sm:$0xff] %vm630, 0.0
          %691 = vst.msk [vmem:[#allocation7 + $0x60] sm:$0xff] %vm630, 0.0
          %692 = vst.msk [vmem:[#allocation7 + $0x68] sm:$0xff] %vm630, 0.0
          %693 = vst.msk [vmem:[#allocation7 + $0x70] sm:$0xff] %vm630, 0.0
          %694 = vst.msk [vmem:[#allocation7 + $0x78] sm:$0xff] %vm630, 0.0
        $region159: #{block_dejavu_forward.5} parent=142 // pred_fallthru
          _
        %v695 = vld [vmem:[%s526] sm:$0xf]
        %v696 = vld [vmem:[%s526 + $0x4] sm:$0xf]
        %v697 = vld [vmem:[%s526 + $0x8] sm:$0xf]
        %v698 = vld [vmem:[%s526 + $0xc] sm:$0xf]
        %v699 = vld [vmem:[%s526 + $0x10] sm:$0xf]
        %v700 = vld [vmem:[%s526 + $0x14] sm:$0xf]
        %v701 = vld [vmem:[%s526 + $0x18] sm:$0xf]
        %v702 = vld [vmem:[%s526 + $0x1c] sm:$0xf]
        %v703 = vld [vmem:[%s526 + $0x20] sm:$0xf]
        %v704 = vld [vmem:[%s526 + $0x24] sm:$0xf]
        %v705 = vld [vmem:[%s526 + $0x28] sm:$0xf]
        %v706 = vld [vmem:[%s526 + $0x2c] sm:$0xf]
        %v707 = vld [vmem:[%s526 + $0x30] sm:$0xf]
        %v708 = vld [vmem:[%s526 + $0x34] sm:$0xf]
        %v709 = vld [vmem:[%s526 + $0x38] sm:$0xf]
        %v710 = vld [vmem:[%s526 + $0x3c] sm:$0xf]
        %v711 = vunpack.c.l.bf16 %v695
        %v712 = vunpack.c.l.bf16 %v696
        %v713 = vunpack.c.l.bf16 %v697
        %v714 = vunpack.c.l.bf16 %v698
        %v715 = vunpack.c.l.bf16 %v699
        %v716 = vunpack.c.l.bf16 %v700
        %v717 = vunpack.c.l.bf16 %v701
        %v718 = vunpack.c.l.bf16 %v702
        %v719 = vunpack.c.l.bf16 %v703
        %v720 = vunpack.c.l.bf16 %v704
        %v721 = vunpack.c.l.bf16 %v705
        %v722 = vunpack.c.l.bf16 %v706
        %v723 = vunpack.c.l.bf16 %v707
        %v724 = vunpack.c.l.bf16 %v708
        %v725 = vunpack.c.l.bf16 %v709
        %v726 = vunpack.c.l.bf16 %v710
        %v727 = vmul.f32 %v711, 0.125
        %v728 = vmul.f32 %v712, 0.125
        %v729 = vmul.f32 %v713, 0.125
        %v730 = vmul.f32 %v714, 0.125
        %v731 = vmul.f32 %v715, 0.125
        %v732 = vmul.f32 %v716, 0.125
        %v733 = vmul.f32 %v717, 0.125
        %v734 = vmul.f32 %v718, 0.125
        %v735 = vmul.f32 %v719, 0.125
        %v736 = vmul.f32 %v720, 0.125
        %v737 = vmul.f32 %v721, 0.125
        %v738 = vmul.f32 %v722, 0.125
        %v739 = vmul.f32 %v723, 0.125
        %v740 = vmul.f32 %v724, 0.125
        %v741 = vmul.f32 %v725, 0.125
        %v742 = vmul.f32 %v726, 0.125
        %v743 = vld [vmem:[%s533] sm:$0xf]
        %v744 = vld [vmem:[%s533 + $0x4] sm:$0xf]
        %v745 = vld [vmem:[%s533 + $0x8] sm:$0xf]
        %v746 = vld [vmem:[%s533 + $0xc] sm:$0xf]
        %v747 = vld [vmem:[%s533 + $0x10] sm:$0xf]
        %v748 = vld [vmem:[%s533 + $0x14] sm:$0xf]
        %v749 = vld [vmem:[%s533 + $0x18] sm:$0xf]
        %v750 = vld [vmem:[%s533 + $0x1c] sm:$0xf]
        %v751 = vld [vmem:[%s533 + $0x20] sm:$0xf]
        %v752 = vld [vmem:[%s533 + $0x24] sm:$0xf]
        %v753 = vld [vmem:[%s533 + $0x28] sm:$0xf]
        %v754 = vld [vmem:[%s533 + $0x2c] sm:$0xf]
        %v755 = vld [vmem:[%s533 + $0x30] sm:$0xf]
        %v756 = vld [vmem:[%s533 + $0x34] sm:$0xf]
        %v757 = vld [vmem:[%s533 + $0x38] sm:$0xf]
        %v758 = vld [vmem:[%s533 + $0x3c] sm:$0xf]
        %v759 = vld [vmem:[%s540] sm:$0xf]
        %v760 = vld [vmem:[%s540 + $0x4] sm:$0xf]
        %v761 = vld [vmem:[%s540 + $0x8] sm:$0xf]
        %v762 = vld [vmem:[%s540 + $0xc] sm:$0xf]
        %v763 = vld [vmem:[%s540 + $0x10] sm:$0xf]
        %v764 = vld [vmem:[%s540 + $0x14] sm:$0xf]
        %v765 = vld [vmem:[%s540 + $0x18] sm:$0xf]
        %v766 = vld [vmem:[%s540 + $0x1c] sm:$0xf]
        %v767 = vld [vmem:[%s540 + $0x20] sm:$0xf]
        %v768 = vld [vmem:[%s540 + $0x24] sm:$0xf]
        %v769 = vld [vmem:[%s540 + $0x28] sm:$0xf]
        %v770 = vld [vmem:[%s540 + $0x2c] sm:$0xf]
        %v771 = vld [vmem:[%s540 + $0x30] sm:$0xf]
        %v772 = vld [vmem:[%s540 + $0x34] sm:$0xf]
        %v773 = vld [vmem:[%s540 + $0x38] sm:$0xf]
        %v774 = vld [vmem:[%s540 + $0x3c] sm:$0xf]
        %v775 = vpack.c.bf16 %v728, %v727
        %v776 = vpack.c.bf16 %v730, %v729
        %v777 = vpack.c.bf16 %v732, %v731
        %v778 = vpack.c.bf16 %v734, %v733
        %v779 = vpack.c.bf16 %v736, %v735
        %v780 = vpack.c.bf16 %v738, %v737
        %v781 = vpack.c.bf16 %v740, %v739
        %v782 = vpack.c.bf16 %v742, %v741
        %v799 = vunpack.c.l.b16 %v743
        %v800 = vunpack.c.l.b16 %v744
        %v801 = vunpack.c.l.b16 %v745
        %v802 = vunpack.c.l.b16 %v746
        %v803 = vunpack.c.l.b16 %v747
        %v804 = vunpack.c.l.b16 %v748
        %v805 = vunpack.c.l.b16 %v749
        %v806 = vunpack.c.l.b16 %v750
        %v807 = vunpack.c.l.b16 %v751
        %v808 = vunpack.c.l.b16 %v752
        %v809 = vunpack.c.l.b16 %v753
        %v810 = vunpack.c.l.b16 %v754
        %v811 = vunpack.c.l.b16 %v755
        %v812 = vunpack.c.l.b16 %v756
        %v813 = vunpack.c.l.b16 %v757
        %v814 = vunpack.c.l.b16 %v758
        %v815 = vpack.c.b16 %v800, %v799
        %v816 = vpack.c.b16 %v802, %v801
        %v817 = vpack.c.b16 %v804, %v803
        %v818 = vpack.c.b16 %v806, %v805
        %v819 = vpack.c.b16 %v808, %v807
        %v820 = vpack.c.b16 %v810, %v809
        %v821 = vpack.c.b16 %v812, %v811
        %v822 = vpack.c.b16 %v814, %v813
        %vm823 = vcmask 523264
        %v825 = vsel %vm823, %v775, 0
        %v828 = vsel %vm823, %v776, 0
        %v831 = vsel %vm823, %v777, 0
        %v834 = vsel %vm823, %v778, 0
        %v837 = vsel %vm823, %v779, 0
        %v840 = vsel %vm823, %v780, 0
        %v843 = vsel %vm823, %v781, 0
        %v846 = vsel %vm823, %v782, 0
        %v849 = vsel %vm823, %v815, 0
        %v852 = vsel %vm823, %v816, 0
        %v855 = vsel %vm823, %v817, 0
        %v858 = vsel %vm823, %v818, 0
        %v861 = vsel %vm823, %v819, 0
        %v864 = vsel %vm823, %v820, 0
        %v867 = vsel %vm823, %v821, 0
        %v870 = vsel %vm823, %v822, 0
        %872 = vmatprep.subr.bf16.mxu0 0
        %873 = vmatpush1.bf16.xpose.msra.mxu0 %v849
        %874 = vmatprep.subr.bf16.mxu0 0
        %875 = vmatpush1.bf16.xpose.msra.mxu0 %v852
        %876 = vmatprep.subr.bf16.mxu0 0
        %877 = vmatpush1.bf16.xpose.msra.mxu0 %v855
        %878 = vmatprep.subr.bf16.mxu0 0
        %879 = vmatpush1.bf16.xpose.msra.mxu0 %v858
        %880 = vmatprep.subr.bf16.mxu0 0
        %881 = vmatpush1.bf16.xpose.msra.mxu0 %v861
        %882 = vmatprep.subr.bf16.mxu0 0
        %883 = vmatpush1.bf16.xpose.msra.mxu0 %v864
        %884 = vmatprep.subr.bf16.mxu0 0
        %885 = vmatpush1.bf16.xpose.msra.mxu0 %v867
        %886 = vmatprep.subr.bf16.mxu0 0
        %887 = vmatpush1.bf16.xpose.msra.mxu0 %v870
        %888 = vmatprep.subr.bf16.mxu0 0
        %889 = vmatpush1.bf16.xpose.msra.mxu0 0
        %890 = vmatprep.subr.bf16.mxu0 0
        %891 = vmatpush1.bf16.xpose.msra.mxu0 0
        %892 = vmatprep.subr.bf16.mxu0 0
        %893 = vmatpush1.bf16.xpose.msra.mxu0 0
        %894 = vmatprep.subr.bf16.mxu0 0
        %895 = vmatpush1.bf16.xpose.msra.mxu0 0
        %896 = vmatprep.subr.bf16.mxu0 0
        %897 = vmatpush1.bf16.xpose.msra.mxu0 0
        %898 = vmatprep.subr.bf16.mxu0 0
        %899 = vmatpush1.bf16.xpose.msra.mxu0 0
        %900 = vmatprep.subr.bf16.mxu0 0
        %901 = vmatpush1.bf16.xpose.msra.mxu0 0
        %902 = vmatprep.subr.bf16.mxu0 0
        %903 = vmatpush1.bf16.xpose.msra.mxu0 0
        %904 = vmatprep.mubr.bf16.mxu0 0
        %905 = vmatmul.mubr.bf16.gmra.mrb[0].mxu0 %v825
        %v906 = vpop.f32.mrb[0].mxu0
        %v907 = vadd.f32 0.0, %v906
        %v908 = vpop.f32.mrb[0].mxu0
        %v909 = vpop.f32.mrb[0].mxu0
        %v910 = vadd.f32 0.0, %v909
        %v911 = vpop.f32.mrb[0].mxu0
        %912 = vmatprep.mubr.bf16.mxu0 0
        %913 = vmatmul.mubr.bf16.gmra.mrb[0].mxu0 %v828
        %v914 = vpop.f32.mrb[0].mxu0
        %v915 = vadd.f32 0.0, %v914
        %v916 = vpop.f32.mrb[0].mxu0
        %v917 = vpop.f32.mrb[0].mxu0
        %v918 = vadd.f32 0.0, %v917
        %v919 = vpop.f32.mrb[0].mxu0
        %920 = vmatprep.mubr.bf16.mxu0 0
        %921 = vmatmul.mubr.bf16.gmra.mrb[0].mxu0 %v831
        %v922 = vpop.f32.mrb[0].mxu0
        %v923 = vadd.f32 0.0, %v922
        %v924 = vpop.f32.mrb[0].mxu0
        %v925 = vpop.f32.mrb[0].mxu0
        %v926 = vadd.f32 0.0, %v925
        %v927 = vpop.f32.mrb[0].mxu0
        %928 = vmatprep.mubr.bf16.mxu0 0
        %929 = vmatmul.mubr.bf16.gmra.mrb[0].mxu0 %v834
        %v930 = vpop.f32.mrb[0].mxu0
        %v931 = vadd.f32 0.0, %v930
        %v932 = vpop.f32.mrb[0].mxu0
        %v933 = vpop.f32.mrb[0].mxu0
        %v934 = vadd.f32 0.0, %v933
        %v935 = vpop.f32.mrb[0].mxu0
        %936 = vmatprep.mubr.bf16.mxu0 0
        %937 = vmatmul.mubr.bf16.gmra.mrb[0].mxu0 %v837
        %v938 = vpop.f32.mrb[0].mxu0
        %v939 = vadd.f32 0.0, %v938
        %v940 = vpop.f32.mrb[0].mxu0
        %v941 = vpop.f32.mrb[0].mxu0
        %v942 = vadd.f32 0.0, %v941
        %v943 = vpop.f32.mrb[0].mxu0
        %944 = vmatprep.mubr.bf16.mxu0 0
        %945 = vmatmul.mubr.bf16.gmra.mrb[0].mxu0 %v840
        %v946 = vpop.f32.mrb[0].mxu0
        %v947 = vadd.f32 0.0, %v946
        %v948 = vpop.f32.mrb[0].mxu0
        %v949 = vpop.f32.mrb[0].mxu0
        %v950 = vadd.f32 0.0, %v949
        %v951 = vpop.f32.mrb[0].mxu0
        %952 = vmatprep.mubr.bf16.mxu0 0
        %953 = vmatmul.mubr.bf16.gmra.mrb[0].mxu0 %v843
        %v954 = vpop.f32.mrb[0].mxu0
        %v955 = vadd.f32 0.0, %v954
        %v956 = vpop.f32.mrb[0].mxu0
        %v957 = vpop.f32.mrb[0].mxu0
        %v958 = vadd.f32 0.0, %v957
        %v959 = vpop.f32.mrb[0].mxu0
        %960 = vmatprep.mubr.bf16.mxu0 0
        %961 = vmatmul.mubr.bf16.gmra.mrb[0].mxu0 %v846
        %v962 = vpop.f32.mrb[0].mxu0
        %v963 = vadd.f32 0.0, %v962
        %v964 = vpop.f32.mrb[0].mxu0
        %v965 = vpop.f32.mrb[0].mxu0
        %v966 = vadd.f32 0.0, %v965
        %v967 = vpop.f32.mrb[0].mxu0
        %968 = vdwg.mxu0
        %v969 = vld [vmem:[#allocation2] sm:$0xff]
        %v970 = vld [vmem:[#allocation2 + $0x8] sm:$0xff]
        %v971 = vld [vmem:[#allocation2 + $0x10] sm:$0xff]
        %v972 = vld [vmem:[#allocation2 + $0x18] sm:$0xff]
        %v973 = vld [vmem:[#allocation2 + $0x20] sm:$0xff]
        %v974 = vld [vmem:[#allocation2 + $0x28] sm:$0xff]
        %v975 = vld [vmem:[#allocation2 + $0x30] sm:$0xff]
        %v976 = vld [vmem:[#allocation2 + $0x38] sm:$0xff]
        %v977 = vld [vmem:[#allocation2 + $0x40] sm:$0xff]
        %v978 = vld [vmem:[#allocation2 + $0x48] sm:$0xff]
        %v979 = vld [vmem:[#allocation2 + $0x50] sm:$0xff]
        %v980 = vld [vmem:[#allocation2 + $0x58] sm:$0xff]
        %v981 = vld [vmem:[#allocation2 + $0x60] sm:$0xff]
        %v982 = vld [vmem:[#allocation2 + $0x68] sm:$0xff]
        %v983 = vld [vmem:[#allocation2 + $0x70] sm:$0xff]
        %v984 = vld [vmem:[#allocation2 + $0x78] sm:$0xff]
        %985 = vmax.xlane.f32.xlu0 %v907
        %v986 = vpop.xlane.xlu0 %985
        %987 = vmax.xlane.f32.xlu0 %v910
        %v988 = vpop.xlane.xlu0 %987
        %989 = vmax.xlane.f32.xlu0 %v915
        %v990 = vpop.xlane.xlu0 %989
        %991 = vmax.xlane.f32.xlu0 %v918
        %v992 = vpop.xlane.xlu0 %991
        %993 = vmax.xlane.f32.xlu0 %v923
        %v994 = vpop.xlane.xlu0 %993
        %995 = vmax.xlane.f32.xlu0 %v926
        %v996 = vpop.xlane.xlu0 %995
        %997 = vmax.xlane.f32.xlu0 %v931
        %v998 = vpop.xlane.xlu0 %997
        %999 = vmax.xlane.f32.xlu0 %v934
        %v1000 = vpop.xlane.xlu0 %999
        %1001 = vmax.xlane.f32.xlu0 %v939
        %v1002 = vpop.xlane.xlu0 %1001
        %1003 = vmax.xlane.f32.xlu0 %v942
        %v1004 = vpop.xlane.xlu0 %1003
        %1005 = vmax.xlane.f32.xlu0 %v947
        %v1006 = vpop.xlane.xlu0 %1005
        %1007 = vmax.xlane.f32.xlu0 %v950
        %v1008 = vpop.xlane.xlu0 %1007
        %1009 = vmax.xlane.f32.xlu0 %v955
        %v1010 = vpop.xlane.xlu0 %1009
        %1011 = vmax.xlane.f32.xlu0 %v958
        %v1012 = vpop.xlane.xlu0 %1011
        %1013 = vmax.xlane.f32.xlu0 %v963
        %v1014 = vpop.xlane.xlu0 %1013
        %1015 = vmax.xlane.f32.xlu0 %v966
        %v1016 = vpop.xlane.xlu0 %1015
        %v1017 = vmax.f32 %v969, %v986
        %v1018 = vmax.f32 %v970, %v988
        %v1019 = vmax.f32 %v971, %v990
        %v1020 = vmax.f32 %v972, %v992
        %v1021 = vmax.f32 %v973, %v994
        %v1022 = vmax.f32 %v974, %v996
        %v1023 = vmax.f32 %v975, %v998
        %v1024 = vmax.f32 %v976, %v1000
        %v1025 = vmax.f32 %v977, %v1002
        %v1026 = vmax.f32 %v978, %v1004
        %v1027 = vmax.f32 %v979, %v1006
        %v1028 = vmax.f32 %v980, %v1008
        %v1029 = vmax.f32 %v981, %v1010
        %v1030 = vmax.f32 %v982, %v1012
        %v1031 = vmax.f32 %v983, %v1014
        %v1032 = vmax.f32 %v984, %v1016
        %v1033 = vsub.f32 %v969, %v1017
        %v1034 = vsub.f32 %v970, %v1018
        %v1035 = vsub.f32 %v971, %v1019
        %v1036 = vsub.f32 %v972, %v1020
        %v1037 = vsub.f32 %v973, %v1021
        %v1038 = vsub.f32 %v974, %v1022
        %v1039 = vsub.f32 %v975, %v1023
        %v1040 = vsub.f32 %v976, %v1024
        %v1041 = vsub.f32 %v977, %v1025
        %v1042 = vsub.f32 %v978, %v1026
        %v1043 = vsub.f32 %v979, %v1027
        %v1044 = vsub.f32 %v980, %v1028
        %v1045 = vsub.f32 %v981, %v1029
        %v1046 = vsub.f32 %v982, %v1030
        %v1047 = vsub.f32 %v983, %v1031
        %v1048 = vsub.f32 %v984, %v1032
        %v1049 = vmul.f32 %v1033, 1.442695
        %v1050 = vpow.pop %v1049
        %v1051 = vmul.f32 %v1034, 1.442695
        %v1052 = vpow.pop %v1051
        %v1053 = vmul.f32 %v1035, 1.442695
        %v1054 = vpow.pop %v1053
        %v1055 = vmul.f32 %v1036, 1.442695
        %v1056 = vpow.pop %v1055
        %v1057 = vmul.f32 %v1037, 1.442695
        %v1058 = vpow.pop %v1057
        %v1059 = vmul.f32 %v1038, 1.442695
        %v1060 = vpow.pop %v1059
        %v1061 = vmul.f32 %v1039, 1.442695
        %v1062 = vpow.pop %v1061
        %v1063 = vmul.f32 %v1040, 1.442695
        %v1064 = vpow.pop %v1063
        %v1065 = vmul.f32 %v1041, 1.442695
        %v1066 = vpow.pop %v1065
        %v1067 = vmul.f32 %v1042, 1.442695
        %v1068 = vpow.pop %v1067
        %v1069 = vmul.f32 %v1043, 1.442695
        %v1070 = vpow.pop %v1069
        %v1071 = vmul.f32 %v1044, 1.442695
        %v1072 = vpow.pop %v1071
        %v1073 = vmul.f32 %v1045, 1.442695
        %v1074 = vpow.pop %v1073
        %v1075 = vmul.f32 %v1046, 1.442695
        %v1076 = vpow.pop %v1075
        %v1077 = vmul.f32 %v1047, 1.442695
        %v1078 = vpow.pop %v1077
        %v1079 = vmul.f32 %v1048, 1.442695
        %v1080 = vpow.pop %v1079
        %1082 = vset.pattern.permute.xlu0 0
        %1083 = vperm.xlu0 %1082, %v1017
        %v1084 = vpop.permute.xlu0 %1083
        %1087 = vset.pattern.permute.xlu0 0
        %1088 = vperm.xlu0 %1087, %v1018
        %v1089 = vpop.permute.xlu0 %1088
        %1092 = vset.pattern.permute.xlu0 0
        %1093 = vperm.xlu0 %1092, %v1019
        %v1094 = vpop.permute.xlu0 %1093
        %1097 = vset.pattern.permute.xlu0 0
        %1098 = vperm.xlu0 %1097, %v1020
        %v1099 = vpop.permute.xlu0 %1098
        %1102 = vset.pattern.permute.xlu0 0
        %1103 = vperm.xlu0 %1102, %v1021
        %v1104 = vpop.permute.xlu0 %1103
        %1107 = vset.pattern.permute.xlu0 0
        %1108 = vperm.xlu0 %1107, %v1022
        %v1109 = vpop.permute.xlu0 %1108
        %1112 = vset.pattern.permute.xlu0 0
        %1113 = vperm.xlu0 %1112, %v1023
        %v1114 = vpop.permute.xlu0 %1113
        %1117 = vset.pattern.permute.xlu0 0
        %1118 = vperm.xlu0 %1117, %v1024
        %v1119 = vpop.permute.xlu0 %1118
        %1122 = vset.pattern.permute.xlu0 0
        %1123 = vperm.xlu0 %1122, %v1025
        %v1124 = vpop.permute.xlu0 %1123
        %1127 = vset.pattern.permute.xlu0 0
        %1128 = vperm.xlu0 %1127, %v1026
        %v1129 = vpop.permute.xlu0 %1128
        %1132 = vset.pattern.permute.xlu0 0
        %1133 = vperm.xlu0 %1132, %v1027
        %v1134 = vpop.permute.xlu0 %1133
        %1137 = vset.pattern.permute.xlu0 0
        %1138 = vperm.xlu0 %1137, %v1028
        %v1139 = vpop.permute.xlu0 %1138
        %1142 = vset.pattern.permute.xlu0 0
        %1143 = vperm.xlu0 %1142, %v1029
        %v1144 = vpop.permute.xlu0 %1143
        %1147 = vset.pattern.permute.xlu0 0
        %1148 = vperm.xlu0 %1147, %v1030
        %v1149 = vpop.permute.xlu0 %1148
        %1152 = vset.pattern.permute.xlu0 0
        %1153 = vperm.xlu0 %1152, %v1031
        %v1154 = vpop.permute.xlu0 %1153
        %1157 = vset.pattern.permute.xlu0 0
        %1158 = vperm.xlu0 %1157, %v1032
        %v1159 = vpop.permute.xlu0 %1158
        %v1161 = vsub.f32 %v907, %v1084
        %v1162 = vsub.f32 %v910, %v1089
        %v1163 = vsub.f32 %v915, %v1094
        %v1164 = vsub.f32 %v918, %v1099
        %v1165 = vsub.f32 %v923, %v1104
        %v1166 = vsub.f32 %v926, %v1109
        %v1167 = vsub.f32 %v931, %v1114
        %v1168 = vsub.f32 %v934, %v1119
        %v1169 = vsub.f32 %v939, %v1124
        %v1170 = vsub.f32 %v942, %v1129
        %v1171 = vsub.f32 %v947, %v1134
        %v1172 = vsub.f32 %v950, %v1139
        %v1173 = vsub.f32 %v955, %v1144
        %v1174 = vsub.f32 %v958, %v1149
        %v1175 = vsub.f32 %v963, %v1154
        %v1176 = vsub.f32 %v966, %v1159
        %v1177 = vmul.f32 %v1161, 1.442695
        %v1178 = vpow.pop %v1177
        %v1179 = vmul.f32 %v1162, 1.442695
        %v1180 = vpow.pop %v1179
        %v1181 = vmul.f32 %v1163, 1.442695
        %v1182 = vpow.pop %v1181
        %v1183 = vmul.f32 %v1164, 1.442695
        %v1184 = vpow.pop %v1183
        %v1185 = vmul.f32 %v1165, 1.442695
        %v1186 = vpow.pop %v1185
        %v1187 = vmul.f32 %v1166, 1.442695
        %v1188 = vpow.pop %v1187
        %v1189 = vmul.f32 %v1167, 1.442695
        %v1190 = vpow.pop %v1189
        %v1191 = vmul.f32 %v1168, 1.442695
        %v1192 = vpow.pop %v1191
        %v1193 = vmul.f32 %v1169, 1.442695
        %v1194 = vpow.pop %v1193
        %v1195 = vmul.f32 %v1170, 1.442695
        %v1196 = vpow.pop %v1195
        %v1197 = vmul.f32 %v1171, 1.442695
        %v1198 = vpow.pop %v1197
        %v1199 = vmul.f32 %v1172, 1.442695
        %v1200 = vpow.pop %v1199
        %v1201 = vmul.f32 %v1173, 1.442695
        %v1202 = vpow.pop %v1201
        %v1203 = vmul.f32 %v1174, 1.442695
        %v1204 = vpow.pop %v1203
        %v1205 = vmul.f32 %v1175, 1.442695
        %v1206 = vpow.pop %v1205
        %v1207 = vmul.f32 %v1176, 1.442695
        %v1208 = vpow.pop %v1207
        %v1209 = vld [vmem:[#allocation3] sm:$0xff]
        %v1210 = vld [vmem:[#allocation3 + $0x8] sm:$0xff]
        %v1211 = vld [vmem:[#allocation3 + $0x10] sm:$0xff]
        %v1212 = vld [vmem:[#allocation3 + $0x18] sm:$0xff]
        %v1213 = vld [vmem:[#allocation3 + $0x20] sm:$0xff]
        %v1214 = vld [vmem:[#allocation3 + $0x28] sm:$0xff]
        %v1215 = vld [vmem:[#allocation3 + $0x30] sm:$0xff]
        %v1216 = vld [vmem:[#allocation3 + $0x38] sm:$0xff]
        %v1217 = vld [vmem:[#allocation3 + $0x40] sm:$0xff]
        %v1218 = vld [vmem:[#allocation3 + $0x48] sm:$0xff]
        %v1219 = vld [vmem:[#allocation3 + $0x50] sm:$0xff]
        %v1220 = vld [vmem:[#allocation3 + $0x58] sm:$0xff]
        %v1221 = vld [vmem:[#allocation3 + $0x60] sm:$0xff]
        %v1222 = vld [vmem:[#allocation3 + $0x68] sm:$0xff]
        %v1223 = vld [vmem:[#allocation3 + $0x70] sm:$0xff]
        %v1224 = vld [vmem:[#allocation3 + $0x78] sm:$0xff]
        %v1225 = vmul.f32 %v1050, %v1209
        %v1226 = vmul.f32 %v1052, %v1210
        %v1227 = vmul.f32 %v1054, %v1211
        %v1228 = vmul.f32 %v1056, %v1212
        %v1229 = vmul.f32 %v1058, %v1213
        %v1230 = vmul.f32 %v1060, %v1214
        %v1231 = vmul.f32 %v1062, %v1215
        %v1232 = vmul.f32 %v1064, %v1216
        %v1233 = vmul.f32 %v1066, %v1217
        %v1234 = vmul.f32 %v1068, %v1218
        %v1235 = vmul.f32 %v1070, %v1219
        %v1236 = vmul.f32 %v1072, %v1220
        %v1237 = vmul.f32 %v1074, %v1221
        %v1238 = vmul.f32 %v1076, %v1222
        %v1239 = vmul.f32 %v1078, %v1223
        %v1240 = vmul.f32 %v1080, %v1224
        %1241 = vadd.xlane.f32.xlu0 %v1178
        %v1242 = vpop.xlane.xlu0 %1241
        %1243 = vadd.xlane.f32.xlu0 %v1180
        %v1244 = vpop.xlane.xlu0 %1243
        %1245 = vadd.xlane.f32.xlu0 %v1182
        %v1246 = vpop.xlane.xlu0 %1245
        %1247 = vadd.xlane.f32.xlu0 %v1184
        %v1248 = vpop.xlane.xlu0 %1247
        %1249 = vadd.xlane.f32.xlu0 %v1186
        %v1250 = vpop.xlane.xlu0 %1249
        %1251 = vadd.xlane.f32.xlu0 %v1188
        %v1252 = vpop.xlane.xlu0 %1251
        %1253 = vadd.xlane.f32.xlu0 %v1190
        %v1254 = vpop.xlane.xlu0 %1253
        %1255 = vadd.xlane.f32.xlu0 %v1192
        %v1256 = vpop.xlane.xlu0 %1255
        %1257 = vadd.xlane.f32.xlu0 %v1194
        %v1258 = vpop.xlane.xlu0 %1257
        %1259 = vadd.xlane.f32.xlu0 %v1196
        %v1260 = vpop.xlane.xlu0 %1259
        %1261 = vadd.xlane.f32.xlu0 %v1198
        %v1262 = vpop.xlane.xlu0 %1261
        %1263 = vadd.xlane.f32.xlu0 %v1200
        %v1264 = vpop.xlane.xlu0 %1263
        %1265 = vadd.xlane.f32.xlu0 %v1202
        %v1266 = vpop.xlane.xlu0 %1265
        %1267 = vadd.xlane.f32.xlu0 %v1204
        %v1268 = vpop.xlane.xlu0 %1267
        %1269 = vadd.xlane.f32.xlu0 %v1206
        %v1270 = vpop.xlane.xlu0 %1269
        %1271 = vadd.xlane.f32.xlu0 %v1208
        %v1272 = vpop.xlane.xlu0 %1271
        %v1273 = vadd.f32 %v1225, %v1242
        %v1274 = vadd.f32 %v1226, %v1244
        %v1275 = vadd.f32 %v1227, %v1246
        %v1276 = vadd.f32 %v1228, %v1248
        %v1277 = vadd.f32 %v1229, %v1250
        %v1278 = vadd.f32 %v1230, %v1252
        %v1279 = vadd.f32 %v1231, %v1254
        %v1280 = vadd.f32 %v1232, %v1256
        %v1281 = vadd.f32 %v1233, %v1258
        %v1282 = vadd.f32 %v1234, %v1260
        %v1283 = vadd.f32 %v1235, %v1262
        %v1284 = vadd.f32 %v1236, %v1264
        %v1285 = vadd.f32 %v1237, %v1266
        %v1286 = vadd.f32 %v1238, %v1268
        %v1287 = vadd.f32 %v1239, %v1270
        %v1288 = vadd.f32 %v1240, %v1272
        %vm1289 = vcmask 7168
        %1290 = vst.msk [vmem:[#allocation3] sm:$0xff] %vm1289, %v1273
        %1291 = vst.msk [vmem:[#allocation3 + $0x8] sm:$0xff] %vm1289, %v1274
        %1292 = vst.msk [vmem:[#allocation3 + $0x10] sm:$0xff] %vm1289, %v1275
        %1293 = vst.msk [vmem:[#allocation3 + $0x18] sm:$0xff] %vm1289, %v1276
        %1294 = vst.msk [vmem:[#allocation3 + $0x20] sm:$0xff] %vm1289, %v1277
        %1295 = vst.msk [vmem:[#allocation3 + $0x28] sm:$0xff] %vm1289, %v1278
        %1296 = vst.msk [vmem:[#allocation3 + $0x30] sm:$0xff] %vm1289, %v1279
        %1297 = vst.msk [vmem:[#allocation3 + $0x38] sm:$0xff] %vm1289, %v1280
        %1298 = vst.msk [vmem:[#allocation3 + $0x40] sm:$0xff] %vm1289, %v1281
        %1299 = vst.msk [vmem:[#allocation3 + $0x48] sm:$0xff] %vm1289, %v1282
        %1300 = vst.msk [vmem:[#allocation3 + $0x50] sm:$0xff] %vm1289, %v1283
        %1301 = vst.msk [vmem:[#allocation3 + $0x58] sm:$0xff] %vm1289, %v1284
        %1302 = vst.msk [vmem:[#allocation3 + $0x60] sm:$0xff] %vm1289, %v1285
        %1303 = vst.msk [vmem:[#allocation3 + $0x68] sm:$0xff] %vm1289, %v1286
        %1304 = vst.msk [vmem:[#allocation3 + $0x70] sm:$0xff] %vm1289, %v1287
        %1305 = vst.msk [vmem:[#allocation3 + $0x78] sm:$0xff] %vm1289, %v1288
        %v1306 = vld [vmem:[#allocation4] sm:$0xff]
        %v1307 = vld [vmem:[#allocation4 + $0x8] sm:$0xff]
        %v1308 = vld [vmem:[#allocation4 + $0x10] sm:$0xff]
        %v1309 = vld [vmem:[#allocation4 + $0x18] sm:$0xff]
        %v1310 = vld [vmem:[#allocation4 + $0x20] sm:$0xff]
        %v1311 = vld [vmem:[#allocation4 + $0x28] sm:$0xff]
        %v1312 = vld [vmem:[#allocation4 + $0x30] sm:$0xff]
        %v1313 = vld [vmem:[#allocation4 + $0x38] sm:$0xff]
        %v1314 = vld [vmem:[#allocation4 + $0x40] sm:$0xff]
        %v1315 = vld [vmem:[#allocation4 + $0x48] sm:$0xff]
        %v1316 = vld [vmem:[#allocation4 + $0x50] sm:$0xff]
        %v1317 = vld [vmem:[#allocation4 + $0x58] sm:$0xff]
        %v1318 = vld [vmem:[#allocation4 + $0x60] sm:$0xff]
        %v1319 = vld [vmem:[#allocation4 + $0x68] sm:$0xff]
        %v1320 = vld [vmem:[#allocation4 + $0x70] sm:$0xff]
        %v1321 = vld [vmem:[#allocation4 + $0x78] sm:$0xff]
        %1323 = vset.pattern.permute.xlu0 0
        %1324 = vperm.xlu0 %1323, %v1050
        %v1325 = vpop.permute.xlu0 %1324
        %1328 = vset.pattern.permute.xlu0 0
        %1329 = vperm.xlu0 %1328, %v1052
        %v1330 = vpop.permute.xlu0 %1329
        %1333 = vset.pattern.permute.xlu0 0
        %1334 = vperm.xlu0 %1333, %v1054
        %v1335 = vpop.permute.xlu0 %1334
        %1338 = vset.pattern.permute.xlu0 0
        %1339 = vperm.xlu0 %1338, %v1056
        %v1340 = vpop.permute.xlu0 %1339
        %1343 = vset.pattern.permute.xlu0 0
        %1344 = vperm.xlu0 %1343, %v1058
        %v1345 = vpop.permute.xlu0 %1344
        %1348 = vset.pattern.permute.xlu0 0
        %1349 = vperm.xlu0 %1348, %v1060
        %v1350 = vpop.permute.xlu0 %1349
        %1353 = vset.pattern.permute.xlu0 0
        %1354 = vperm.xlu0 %1353, %v1062
        %v1355 = vpop.permute.xlu0 %1354
        %1358 = vset.pattern.permute.xlu0 0
        %1359 = vperm.xlu0 %1358, %v1064
        %v1360 = vpop.permute.xlu0 %1359
        %1363 = vset.pattern.permute.xlu0 0
        %1364 = vperm.xlu0 %1363, %v1066
        %v1365 = vpop.permute.xlu0 %1364
        %1368 = vset.pattern.permute.xlu0 0
        %1369 = vperm.xlu0 %1368, %v1068
        %v1370 = vpop.permute.xlu0 %1369
        %1373 = vset.pattern.permute.xlu0 0
        %1374 = vperm.xlu0 %1373, %v1070
        %v1375 = vpop.permute.xlu0 %1374
        %1378 = vset.pattern.permute.xlu0 0
        %1379 = vperm.xlu0 %1378, %v1072
        %v1380 = vpop.permute.xlu0 %1379
        %1383 = vset.pattern.permute.xlu0 0
        %1384 = vperm.xlu0 %1383, %v1074
        %v1385 = vpop.permute.xlu0 %1384
        %1388 = vset.pattern.permute.xlu0 0
        %1389 = vperm.xlu0 %1388, %v1076
        %v1390 = vpop.permute.xlu0 %1389
        %1393 = vset.pattern.permute.xlu0 0
        %1394 = vperm.xlu0 %1393, %v1078
        %v1395 = vpop.permute.xlu0 %1394
        %1398 = vset.pattern.permute.xlu0 0
        %1399 = vperm.xlu0 %1398, %v1080
        %v1400 = vpop.permute.xlu0 %1399
        %v1402 = vmul.f32 %v1325, %v1306
        %v1403 = vmul.f32 %v1330, %v1307
        %v1404 = vmul.f32 %v1335, %v1308
        %v1405 = vmul.f32 %v1340, %v1309
        %v1406 = vmul.f32 %v1345, %v1310
        %v1407 = vmul.f32 %v1350, %v1311
        %v1408 = vmul.f32 %v1355, %v1312
        %v1409 = vmul.f32 %v1360, %v1313
        %v1410 = vmul.f32 %v1365, %v1314
        %v1411 = vmul.f32 %v1370, %v1315
        %v1412 = vmul.f32 %v1375, %v1316
        %v1413 = vmul.f32 %v1380, %v1317
        %v1414 = vmul.f32 %v1385, %v1318
        %v1415 = vmul.f32 %v1390, %v1319
        %v1416 = vmul.f32 %v1395, %v1320
        %v1417 = vmul.f32 %v1400, %v1321
        %v1418 = vpack.c.bf16 %v1180, %v1178
        %v1419 = vpack.c.bf16 %v1184, %v1182
        %v1420 = vpack.c.bf16 %v1188, %v1186
        %v1421 = vpack.c.bf16 %v1192, %v1190
        %v1422 = vpack.c.bf16 %v1196, %v1194
        %v1423 = vpack.c.bf16 %v1200, %v1198
        %v1424 = vpack.c.bf16 %v1204, %v1202
        %v1425 = vpack.c.bf16 %v1208, %v1206
        %v1442 = vunpack.c.l.b16 %v759
        %v1443 = vunpack.c.l.b16 %v760
        %v1444 = vunpack.c.l.b16 %v761
        %v1445 = vunpack.c.l.b16 %v762
        %v1446 = vunpack.c.l.b16 %v763
        %v1447 = vunpack.c.l.b16 %v764
        %v1448 = vunpack.c.l.b16 %v765
        %v1449 = vunpack.c.l.b16 %v766
        %v1450 = vunpack.c.l.b16 %v767
        %v1451 = vunpack.c.l.b16 %v768
        %v1452 = vunpack.c.l.b16 %v769
        %v1453 = vunpack.c.l.b16 %v770
        %v1454 = vunpack.c.l.b16 %v771
        %v1455 = vunpack.c.l.b16 %v772
        %v1456 = vunpack.c.l.b16 %v773
        %v1457 = vunpack.c.l.b16 %v774
        %v1458 = vpack.c.b16 %v1443, %v1442
        %v1459 = vpack.c.b16 %v1445, %v1444
        %v1460 = vpack.c.b16 %v1447, %v1446
        %v1461 = vpack.c.b16 %v1449, %v1448
        %v1462 = vpack.c.b16 %v1451, %v1450
        %v1463 = vpack.c.b16 %v1453, %v1452
        %v1464 = vpack.c.b16 %v1455, %v1454
        %v1465 = vpack.c.b16 %v1457, %v1456
        %1474 = vmatprep.subr.bf16.mxu0 0
        %1475 = vmatpush1.bf16.msra.mxu0 %v1458
        %1476 = vmatprep.subr.bf16.mxu0 0
        %1477 = vmatpush1.bf16.msra.mxu0 %v1459
        %1478 = vmatprep.subr.bf16.mxu0 0
        %1479 = vmatpush1.bf16.msra.mxu0 %v1460
        %1480 = vmatprep.subr.bf16.mxu0 0
        %1481 = vmatpush1.bf16.msra.mxu0 %v1461
        %1482 = vmatprep.subr.bf16.mxu0 0
        %1483 = vmatpush1.bf16.msra.mxu0 %v1462
        %1484 = vmatprep.subr.bf16.mxu0 0
        %1485 = vmatpush1.bf16.msra.mxu0 %v1463
        %1486 = vmatprep.subr.bf16.mxu0 0
        %1487 = vmatpush1.bf16.msra.mxu0 %v1464
        %1488 = vmatprep.subr.bf16.mxu0 0
        %1489 = vmatpush1.bf16.msra.mxu0 %v1465
        %1490 = vmatprep.subr.bf16.mxu0 0
        %1491 = vmatpush1.bf16.msra.mxu0 0
        %1492 = vmatprep.subr.bf16.mxu0 0
        %1493 = vmatpush1.bf16.msra.mxu0 0
        %1494 = vmatprep.subr.bf16.mxu0 0
        %1495 = vmatpush1.bf16.msra.mxu0 0
        %1496 = vmatprep.subr.bf16.mxu0 0
        %1497 = vmatpush1.bf16.msra.mxu0 0
        %1498 = vmatprep.subr.bf16.mxu0 0
        %1499 = vmatpush1.bf16.msra.mxu0 0
        %1500 = vmatprep.subr.bf16.mxu0 0
        %1501 = vmatpush1.bf16.msra.mxu0 0
        %1502 = vmatprep.subr.bf16.mxu0 0
        %1503 = vmatpush1.bf16.msra.mxu0 0
        %1504 = vmatprep.subr.bf16.mxu0 0
        %1505 = vmatpush1.bf16.msra.mxu0 0
        %1506 = vmatprep.mubr.bf16.mxu0 0
        %1507 = vmatmul.mubr.bf16.gmra.mrb[0].mxu0 %v1418
        %v1508 = vpop.f32.mrb[0].mxu0
        %v1509 = vadd.f32 0.0, %v1508
        %v1510 = vpop.f32.mrb[0].mxu0
        %v1511 = vpop.f32.mrb[0].mxu0
        %v1512 = vadd.f32 0.0, %v1511
        %v1513 = vpop.f32.mrb[0].mxu0
        %1514 = vmatprep.mubr.bf16.mxu0 0
        %1515 = vmatmul.mubr.bf16.gmra.mrb[0].mxu0 %v1419
        %v1516 = vpop.f32.mrb[0].mxu0
        %v1517 = vadd.f32 0.0, %v1516
        %v1518 = vpop.f32.mrb[0].mxu0
        %v1519 = vpop.f32.mrb[0].mxu0
        %v1520 = vadd.f32 0.0, %v1519
        %v1521 = vpop.f32.mrb[0].mxu0
        %1522 = vmatprep.mubr.bf16.mxu0 0
        %1523 = vmatmul.mubr.bf16.gmra.mrb[0].mxu0 %v1420
        %v1524 = vpop.f32.mrb[0].mxu0
        %v1525 = vadd.f32 0.0, %v1524
        %v1526 = vpop.f32.mrb[0].mxu0
        %v1527 = vpop.f32.mrb[0].mxu0
        %v1528 = vadd.f32 0.0, %v1527
        %v1529 = vpop.f32.mrb[0].mxu0
        %1530 = vmatprep.mubr.bf16.mxu0 0
        %1531 = vmatmul.mubr.bf16.gmra.mrb[0].mxu0 %v1421
        %v1532 = vpop.f32.mrb[0].mxu0
        %v1533 = vadd.f32 0.0, %v1532
        %v1534 = vpop.f32.mrb[0].mxu0
        %v1535 = vpop.f32.mrb[0].mxu0
        %v1536 = vadd.f32 0.0, %v1535
        %v1537 = vpop.f32.mrb[0].mxu0
        %1538 = vmatprep.mubr.bf16.mxu0 0
        %1539 = vmatmul.mubr.bf16.gmra.mrb[0].mxu0 %v1422
        %v1540 = vpop.f32.mrb[0].mxu0
        %v1541 = vadd.f32 0.0, %v1540
        %v1542 = vpop.f32.mrb[0].mxu0
        %v1543 = vpop.f32.mrb[0].mxu0
        %v1544 = vadd.f32 0.0, %v1543
        %v1545 = vpop.f32.mrb[0].mxu0
        %1546 = vmatprep.mubr.bf16.mxu0 0
        %1547 = vmatmul.mubr.bf16.gmra.mrb[0].mxu0 %v1423
        %v1548 = vpop.f32.mrb[0].mxu0
        %v1549 = vadd.f32 0.0, %v1548
        %v1550 = vpop.f32.mrb[0].mxu0
        %v1551 = vpop.f32.mrb[0].mxu0
        %v1552 = vadd.f32 0.0, %v1551
        %v1553 = vpop.f32.mrb[0].mxu0
        %1554 = vmatprep.mubr.bf16.mxu0 0
        %1555 = vmatmul.mubr.bf16.gmra.mrb[0].mxu0 %v1424
        %v1556 = vpop.f32.mrb[0].mxu0
        %v1557 = vadd.f32 0.0, %v1556
        %v1558 = vpop.f32.mrb[0].mxu0
        %v1559 = vpop.f32.mrb[0].mxu0
        %v1560 = vadd.f32 0.0, %v1559
        %v1561 = vpop.f32.mrb[0].mxu0
        %1562 = vmatprep.mubr.bf16.mxu0 0
        %1563 = vmatmul.mubr.bf16.gmra.mrb[0].mxu0 %v1425
        %v1564 = vpop.f32.mrb[0].mxu0
        %v1565 = vadd.f32 0.0, %v1564
        %v1566 = vpop.f32.mrb[0].mxu0
        %v1567 = vpop.f32.mrb[0].mxu0
        %v1568 = vadd.f32 0.0, %v1567
        %v1569 = vpop.f32.mrb[0].mxu0
        %1570 = vdwg.mxu0
        %v1571 = vadd.f32 %v1402, %v1509
        %v1572 = vadd.f32 %v1403, %v1512
        %v1573 = vadd.f32 %v1404, %v1517
        %v1574 = vadd.f32 %v1405, %v1520
        %v1575 = vadd.f32 %v1406, %v1525
        %v1576 = vadd.f32 %v1407, %v1528
        %v1577 = vadd.f32 %v1408, %v1533
        %v1578 = vadd.f32 %v1409, %v1536
        %v1579 = vadd.f32 %v1410, %v1541
        %v1580 = vadd.f32 %v1411, %v1544
        %v1581 = vadd.f32 %v1412, %v1549
        %v1582 = vadd.f32 %v1413, %v1552
        %v1583 = vadd.f32 %v1414, %v1557
        %v1584 = vadd.f32 %v1415, %v1560
        %v1585 = vadd.f32 %v1416, %v1565
        %v1586 = vadd.f32 %v1417, %v1568
        %1587 = vst.msk [vmem:[#allocation4] sm:$0xff] %vm823, %v1571
        %1588 = vst.msk [vmem:[#allocation4 + $0x8] sm:$0xff] %vm823, %v1572
        %1589 = vst.msk [vmem:[#allocation4 + $0x10] sm:$0xff] %vm823, %v1573
        %1590 = vst.msk [vmem:[#allocation4 + $0x18] sm:$0xff] %vm823, %v1574
        %1591 = vst.msk [vmem:[#allocation4 + $0x20] sm:$0xff] %vm823, %v1575
        %1592 = vst.msk [vmem:[#allocation4 + $0x28] sm:$0xff] %vm823, %v1576
        %1593 = vst.msk [vmem:[#allocation4 + $0x30] sm:$0xff] %vm823, %v1577
        %1594 = vst.msk [vmem:[#allocation4 + $0x38] sm:$0xff] %vm823, %v1578
        %1595 = vst.msk [vmem:[#allocation4 + $0x40] sm:$0xff] %vm823, %v1579
        %1596 = vst.msk [vmem:[#allocation4 + $0x48] sm:$0xff] %vm823, %v1580
        %1597 = vst.msk [vmem:[#allocation4 + $0x50] sm:$0xff] %vm823, %v1581
        %1598 = vst.msk [vmem:[#allocation4 + $0x58] sm:$0xff] %vm823, %v1582
        %1599 = vst.msk [vmem:[#allocation4 + $0x60] sm:$0xff] %vm823, %v1583
        %1600 = vst.msk [vmem:[#allocation4 + $0x68] sm:$0xff] %vm823, %v1584
        %1601 = vst.msk [vmem:[#allocation4 + $0x70] sm:$0xff] %vm823, %v1585
        %1602 = vst.msk [vmem:[#allocation4 + $0x78] sm:$0xff] %vm823, %v1586
        %1603 = vst.msk [vmem:[#allocation2] sm:$0xff] %vm1289, %v1017
        %1604 = vst.msk [vmem:[#allocation2 + $0x8] sm:$0xff] %vm1289, %v1018
        %1605 = vst.msk [vmem:[#allocation2 + $0x10] sm:$0xff] %vm1289, %v1019
        %1606 = vst.msk [vmem:[#allocation2 + $0x18] sm:$0xff] %vm1289, %v1020
        %1607 = vst.msk [vmem:[#allocation2 + $0x20] sm:$0xff] %vm1289, %v1021
        %1608 = vst.msk [vmem:[#allocation2 + $0x28] sm:$0xff] %vm1289, %v1022
        %1609 = vst.msk [vmem:[#allocation2 + $0x30] sm:$0xff] %vm1289, %v1023
        %1610 = vst.msk [vmem:[#allocation2 + $0x38] sm:$0xff] %vm1289, %v1024
        %1611 = vst.msk [vmem:[#allocation2 + $0x40] sm:$0xff] %vm1289, %v1025
        %1612 = vst.msk [vmem:[#allocation2 + $0x48] sm:$0xff] %vm1289, %v1026
        %1613 = vst.msk [vmem:[#allocation2 + $0x50] sm:$0xff] %vm1289, %v1027
        %1614 = vst.msk [vmem:[#allocation2 + $0x58] sm:$0xff] %vm1289, %v1028
        %1615 = vst.msk [vmem:[#allocation2 + $0x60] sm:$0xff] %vm1289, %v1029
        %1616 = vst.msk [vmem:[#allocation2 + $0x68] sm:$0xff] %vm1289, %v1030
        %1617 = vst.msk [vmem:[#allocation2 + $0x70] sm:$0xff] %vm1289, %v1031
        %1618 = vst.msk [vmem:[#allocation2 + $0x78] sm:$0xff] %vm1289, %v1032
        %1627 = vrot.lane.b32.xlu0 %v775, 64
        %v1628 = vpop.permute.xlu0 %1627
        %1629 = vrot.lane.b32.xlu0 %v776, 64
        %v1630 = vpop.permute.xlu0 %1629
        %1631 = vrot.lane.b32.xlu0 %v777, 64
        %v1632 = vpop.permute.xlu0 %1631
        %1633 = vrot.lane.b32.xlu0 %v778, 64
        %v1634 = vpop.permute.xlu0 %1633
        %1635 = vrot.lane.b32.xlu0 %v779, 64
        %v1636 = vpop.permute.xlu0 %1635
        %1637 = vrot.lane.b32.xlu0 %v780, 64
        %v1638 = vpop.permute.xlu0 %1637
        %1639 = vrot.lane.b32.xlu0 %v781, 64
        %v1640 = vpop.permute.xlu0 %1639
        %1641 = vrot.lane.b32.xlu0 %v782, 64
        %v1642 = vpop.permute.xlu0 %1641
        %1643 = vrot.lane.b32.xlu0 %v815, 64
        %v1644 = vpop.permute.xlu0 %1643
        %1645 = vrot.lane.b32.xlu0 %v816, 64
        %v1646 = vpop.permute.xlu0 %1645
        %1647 = vrot.lane.b32.xlu0 %v817, 64
        %v1648 = vpop.permute.xlu0 %1647
        %1649 = vrot.lane.b32.xlu0 %v818, 64
        %v1650 = vpop.permute.xlu0 %1649
        %1651 = vrot.lane.b32.xlu0 %v819, 64
        %v1652 = vpop.permute.xlu0 %1651
        %1653 = vrot.lane.b32.xlu0 %v820, 64
        %v1654 = vpop.permute.xlu0 %1653
        %1655 = vrot.lane.b32.xlu0 %v821, 64
        %v1656 = vpop.permute.xlu0 %1655
        %1657 = vrot.lane.b32.xlu0 %v822, 64
        %v1658 = vpop.permute.xlu0 %1657
        %v1660 = vsel %vm823, %v1628, 0
        %v1663 = vsel %vm823, %v1630, 0
        %v1666 = vsel %vm823, %v1632, 0
        %v1669 = vsel %vm823, %v1634, 0
        %v1672 = vsel %vm823, %v1636, 0
        %v1675 = vsel %vm823, %v1638, 0
        %v1678 = vsel %vm823, %v1640, 0
        %v1681 = vsel %vm823, %v1642, 0
        %v1684 = vsel %vm823, %v1644, 0
        %v1687 = vsel %vm823, %v1646, 0
        %v1690 = vsel %vm823, %v1648, 0
        %v1693 = vsel %vm823, %v1650, 0
        %v1696 = vsel %vm823, %v1652, 0
        %v1699 = vsel %vm823, %v1654, 0
        %v1702 = vsel %vm823, %v1656, 0
        %v1705 = vsel %vm823, %v1658, 0
        %1707 = vmatprep.subr.bf16.mxu0 0
        %1708 = vmatpush1.bf16.xpose.msra.mxu0 %v1684
        %1709 = vmatprep.subr.bf16.mxu0 0
        %1710 = vmatpush1.bf16.xpose.msra.mxu0 %v1687
        %1711 = vmatprep.subr.bf16.mxu0 0
        %1712 = vmatpush1.bf16.xpose.msra.mxu0 %v1690
        %1713 = vmatprep.subr.bf16.mxu0 0
        %1714 = vmatpush1.bf16.xpose.msra.mxu0 %v1693
        %1715 = vmatprep.subr.bf16.mxu0 0
        %1716 = vmatpush1.bf16.xpose.msra.mxu0 %v1696
        %1717 = vmatprep.subr.bf16.mxu0 0
        %1718 = vmatpush1.bf16.xpose.msra.mxu0 %v1699
        %1719 = vmatprep.subr.bf16.mxu0 0
        %1720 = vmatpush1.bf16.xpose.msra.mxu0 %v1702
        %1721 = vmatprep.subr.bf16.mxu0 0
        %1722 = vmatpush1.bf16.xpose.msra.mxu0 %v1705
        %1723 = vmatprep.subr.bf16.mxu0 0
        %1724 = vmatpush1.bf16.xpose.msra.mxu0 0
        %1725 = vmatprep.subr.bf16.mxu0 0
        %1726 = vmatpush1.bf16.xpose.msra.mxu0 0
        %1727 = vmatprep.subr.bf16.mxu0 0
        %1728 = vmatpush1.bf16.xpose.msra.mxu0 0
        %1729 = vmatprep.subr.bf16.mxu0 0
        %1730 = vmatpush1.bf16.xpose.msra.mxu0 0
        %1731 = vmatprep.subr.bf16.mxu0 0
        %1732 = vmatpush1.bf16.xpose.msra.mxu0 0
        %1733 = vmatprep.subr.bf16.mxu0 0
        %1734 = vmatpush1.bf16.xpose.msra.mxu0 0
        %1735 = vmatprep.subr.bf16.mxu0 0
        %1736 = vmatpush1.bf16.xpose.msra.mxu0 0
        %1737 = vmatprep.subr.bf16.mxu0 0
        %1738 = vmatpush1.bf16.xpose.msra.mxu0 0
        %1739 = vmatprep.mubr.bf16.mxu0 0
        %1740 = vmatmul.mubr.bf16.gmra.mrb[0].mxu0 %v1660
        %v1741 = vpop.f32.mrb[0].mxu0
        %v1742 = vadd.f32 0.0, %v1741
        %v1743 = vpop.f32.mrb[0].mxu0
        %v1744 = vpop.f32.mrb[0].mxu0
        %v1745 = vadd.f32 0.0, %v1744
        %v1746 = vpop.f32.mrb[0].mxu0
        %1747 = vmatprep.mubr.bf16.mxu0 0
        %1748 = vmatmul.mubr.bf16.gmra.mrb[0].mxu0 %v1663
        %v1749 = vpop.f32.mrb[0].mxu0
        %v1750 = vadd.f32 0.0, %v1749
        %v1751 = vpop.f32.mrb[0].mxu0
        %v1752 = vpop.f32.mrb[0].mxu0
        %v1753 = vadd.f32 0.0, %v1752
        %v1754 = vpop.f32.mrb[0].mxu0
        %1755 = vmatprep.mubr.bf16.mxu0 0
        %1756 = vmatmul.mubr.bf16.gmra.mrb[0].mxu0 %v1666
        %v1757 = vpop.f32.mrb[0].mxu0
        %v1758 = vadd.f32 0.0, %v1757
        %v1759 = vpop.f32.mrb[0].mxu0
        %v1760 = vpop.f32.mrb[0].mxu0
        %v1761 = vadd.f32 0.0, %v1760
        %v1762 = vpop.f32.mrb[0].mxu0
        %1763 = vmatprep.mubr.bf16.mxu0 0
        %1764 = vmatmul.mubr.bf16.gmra.mrb[0].mxu0 %v1669
        %v1765 = vpop.f32.mrb[0].mxu0
        %v1766 = vadd.f32 0.0, %v1765
        %v1767 = vpop.f32.mrb[0].mxu0
        %v1768 = vpop.f32.mrb[0].mxu0
        %v1769 = vadd.f32 0.0, %v1768
        %v1770 = vpop.f32.mrb[0].mxu0
        %1771 = vmatprep.mubr.bf16.mxu0 0
        %1772 = vmatmul.mubr.bf16.gmra.mrb[0].mxu0 %v1672
        %v1773 = vpop.f32.mrb[0].mxu0
        %v1774 = vadd.f32 0.0, %v1773
        %v1775 = vpop.f32.mrb[0].mxu0
        %v1776 = vpop.f32.mrb[0].mxu0
        %v1777 = vadd.f32 0.0, %v1776
        %v1778 = vpop.f32.mrb[0].mxu0
        %1779 = vmatprep.mubr.bf16.mxu0 0
        %1780 = vmatmul.mubr.bf16.gmra.mrb[0].mxu0 %v1675
        %v1781 = vpop.f32.mrb[0].mxu0
        %v1782 = vadd.f32 0.0, %v1781
        %v1783 = vpop.f32.mrb[0].mxu0
        %v1784 = vpop.f32.mrb[0].mxu0
        %v1785 = vadd.f32 0.0, %v1784
        %v1786 = vpop.f32.mrb[0].mxu0
        %1787 = vmatprep.mubr.bf16.mxu0 0
        %1788 = vmatmul.mubr.bf16.gmra.mrb[0].mxu0 %v1678
        %v1789 = vpop.f32.mrb[0].mxu0
        %v1790 = vadd.f32 0.0, %v1789
        %v1791 = vpop.f32.mrb[0].mxu0
        %v1792 = vpop.f32.mrb[0].mxu0
        %v1793 = vadd.f32 0.0, %v1792
        %v1794 = vpop.f32.mrb[0].mxu0
        %1795 = vmatprep.mubr.bf16.mxu0 0
        %1796 = vmatmul.mubr.bf16.gmra.mrb[0].mxu0 %v1681
        %v1797 = vpop.f32.mrb[0].mxu0
        %v1798 = vadd.f32 0.0, %v1797
        %v1799 = vpop.f32.mrb[0].mxu0
        %v1800 = vpop.f32.mrb[0].mxu0
        %v1801 = vadd.f32 0.0, %v1800
        %v1802 = vpop.f32.mrb[0].mxu0
        %1803 = vdwg.mxu0
        %v1804 = vld [vmem:[#allocation5] sm:$0xff]
        %v1805 = vld [vmem:[#allocation5 + $0x8] sm:$0xff]
        %v1806 = vld [vmem:[#allocation5 + $0x10] sm:$0xff]
        %v1807 = vld [vmem:[#allocation5 + $0x18] sm:$0xff]
        %v1808 = vld [vmem:[#allocation5 + $0x20] sm:$0xff]
        %v1809 = vld [vmem:[#allocation5 + $0x28] sm:$0xff]
        %v1810 = vld [vmem:[#allocation5 + $0x30] sm:$0xff]
        %v1811 = vld [vmem:[#allocation5 + $0x38] sm:$0xff]
        %v1812 = vld [vmem:[#allocation5 + $0x40] sm:$0xff]
        %v1813 = vld [vmem:[#allocation5 + $0x48] sm:$0xff]
        %v1814 = vld [vmem:[#allocation5 + $0x50] sm:$0xff]
        %v1815 = vld [vmem:[#allocation5 + $0x58] sm:$0xff]
        %v1816 = vld [vmem:[#allocation5 + $0x60] sm:$0xff]
        %v1817 = vld [vmem:[#allocation5 + $0x68] sm:$0xff]
        %v1818 = vld [vmem:[#allocation5 + $0x70] sm:$0xff]
        %v1819 = vld [vmem:[#allocation5 + $0x78] sm:$0xff]
        %1820 = vmax.xlane.f32.xlu0 %v1742
        %v1821 = vpop.xlane.xlu0 %1820
        %1822 = vmax.xlane.f32.xlu0 %v1745
        %v1823 = vpop.xlane.xlu0 %1822
        %1824 = vmax.xlane.f32.xlu0 %v1750
        %v1825 = vpop.xlane.xlu0 %1824
        %1826 = vmax.xlane.f32.xlu0 %v1753
        %v1827 = vpop.xlane.xlu0 %1826
        %1828 = vmax.xlane.f32.xlu0 %v1758
        %v1829 = vpop.xlane.xlu0 %1828
        %1830 = vmax.xlane.f32.xlu0 %v1761
        %v1831 = vpop.xlane.xlu0 %1830
        %1832 = vmax.xlane.f32.xlu0 %v1766
        %v1833 = vpop.xlane.xlu0 %1832
        %1834 = vmax.xlane.f32.xlu0 %v1769
        %v1835 = vpop.xlane.xlu0 %1834
        %1836 = vmax.xlane.f32.xlu0 %v1774
        %v1837 = vpop.xlane.xlu0 %1836
        %1838 = vmax.xlane.f32.xlu0 %v1777
        %v1839 = vpop.xlane.xlu0 %1838
        %1840 = vmax.xlane.f32.xlu0 %v1782
        %v1841 = vpop.xlane.xlu0 %1840
        %1842 = vmax.xlane.f32.xlu0 %v1785
        %v1843 = vpop.xlane.xlu0 %1842
        %1844 = vmax.xlane.f32.xlu0 %v1790
        %v1845 = vpop.xlane.xlu0 %1844
        %1846 = vmax.xlane.f32.xlu0 %v1793
        %v1847 = vpop.xlane.xlu0 %1846
        %1848 = vmax.xlane.f32.xlu0 %v1798
        %v1849 = vpop.xlane.xlu0 %1848
        %1850 = vmax.xlane.f32.xlu0 %v1801
        %v1851 = vpop.xlane.xlu0 %1850
        %v1852 = vmax.f32 %v1804, %v1821
        %v1853 = vmax.f32 %v1805, %v1823
        %v1854 = vmax.f32 %v1806, %v1825
        %v1855 = vmax.f32 %v1807, %v1827
        %v1856 = vmax.f32 %v1808, %v1829
        %v1857 = vmax.f32 %v1809, %v1831
        %v1858 = vmax.f32 %v1810, %v1833
        %v1859 = vmax.f32 %v1811, %v1835
        %v1860 = vmax.f32 %v1812, %v1837
        %v1861 = vmax.f32 %v1813, %v1839
        %v1862 = vmax.f32 %v1814, %v1841
        %v1863 = vmax.f32 %v1815, %v1843
        %v1864 = vmax.f32 %v1816, %v1845
        %v1865 = vmax.f32 %v1817, %v1847
        %v1866 = vmax.f32 %v1818, %v1849
        %v1867 = vmax.f32 %v1819, %v1851
        %v1868 = vsub.f32 %v1804, %v1852
        %v1869 = vsub.f32 %v1805, %v1853
        %v1870 = vsub.f32 %v1806, %v1854
        %v1871 = vsub.f32 %v1807, %v1855
        %v1872 = vsub.f32 %v1808, %v1856
        %v1873 = vsub.f32 %v1809, %v1857
        %v1874 = vsub.f32 %v1810, %v1858
        %v1875 = vsub.f32 %v1811, %v1859
        %v1876 = vsub.f32 %v1812, %v1860
        %v1877 = vsub.f32 %v1813, %v1861
        %v1878 = vsub.f32 %v1814, %v1862
        %v1879 = vsub.f32 %v1815, %v1863
        %v1880 = vsub.f32 %v1816, %v1864
        %v1881 = vsub.f32 %v1817, %v1865
        %v1882 = vsub.f32 %v1818, %v1866
        %v1883 = vsub.f32 %v1819, %v1867
        %v1884 = vmul.f32 %v1868, 1.442695
        %v1885 = vpow.pop %v1884
        %v1886 = vmul.f32 %v1869, 1.442695
        %v1887 = vpow.pop %v1886
        %v1888 = vmul.f32 %v1870, 1.442695
        %v1889 = vpow.pop %v1888
        %v1890 = vmul.f32 %v1871, 1.442695
        %v1891 = vpow.pop %v1890
        %v1892 = vmul.f32 %v1872, 1.442695
        %v1893 = vpow.pop %v1892
        %v1894 = vmul.f32 %v1873, 1.442695
        %v1895 = vpow.pop %v1894
        %v1896 = vmul.f32 %v1874, 1.442695
        %v1897 = vpow.pop %v1896
        %v1898 = vmul.f32 %v1875, 1.442695
        %v1899 = vpow.pop %v1898
        %v1900 = vmul.f32 %v1876, 1.442695
        %v1901 = vpow.pop %v1900
        %v1902 = vmul.f32 %v1877, 1.442695
        %v1903 = vpow.pop %v1902
        %v1904 = vmul.f32 %v1878, 1.442695
        %v1905 = vpow.pop %v1904
        %v1906 = vmul.f32 %v1879, 1.442695
        %v1907 = vpow.pop %v1906
        %v1908 = vmul.f32 %v1880, 1.442695
        %v1909 = vpow.pop %v1908
        %v1910 = vmul.f32 %v1881, 1.442695
        %v1911 = vpow.pop %v1910
        %v1912 = vmul.f32 %v1882, 1.442695
        %v1913 = vpow.pop %v1912
        %v1914 = vmul.f32 %v1883, 1.442695
        %v1915 = vpow.pop %v1914
        %1917 = vset.pattern.permute.xlu0 0
        %1918 = vperm.xlu0 %1917, %v1852
        %v1919 = vpop.permute.xlu0 %1918
        %1922 = vset.pattern.permute.xlu0 0
        %1923 = vperm.xlu0 %1922, %v1853
        %v1924 = vpop.permute.xlu0 %1923
        %1927 = vset.pattern.permute.xlu0 0
        %1928 = vperm.xlu0 %1927, %v1854
        %v1929 = vpop.permute.xlu0 %1928
        %1932 = vset.pattern.permute.xlu0 0
        %1933 = vperm.xlu0 %1932, %v1855
        %v1934 = vpop.permute.xlu0 %1933
        %1937 = vset.pattern.permute.xlu0 0
        %1938 = vperm.xlu0 %1937, %v1856
        %v1939 = vpop.permute.xlu0 %1938
        %1942 = vset.pattern.permute.xlu0 0
        %1943 = vperm.xlu0 %1942, %v1857
        %v1944 = vpop.permute.xlu0 %1943
        %1947 = vset.pattern.permute.xlu0 0
        %1948 = vperm.xlu0 %1947, %v1858
        %v1949 = vpop.permute.xlu0 %1948
        %1952 = vset.pattern.permute.xlu0 0
        %1953 = vperm.xlu0 %1952, %v1859
        %v1954 = vpop.permute.xlu0 %1953
        %1957 = vset.pattern.permute.xlu0 0
        %1958 = vperm.xlu0 %1957, %v1860
        %v1959 = vpop.permute.xlu0 %1958
        %1962 = vset.pattern.permute.xlu0 0
        %1963 = vperm.xlu0 %1962, %v1861
        %v1964 = vpop.permute.xlu0 %1963
        %1967 = vset.pattern.permute.xlu0 0
        %1968 = vperm.xlu0 %1967, %v1862
        %v1969 = vpop.permute.xlu0 %1968
        %1972 = vset.pattern.permute.xlu0 0
        %1973 = vperm.xlu0 %1972, %v1863
        %v1974 = vpop.permute.xlu0 %1973
        %1977 = vset.pattern.permute.xlu0 0
        %1978 = vperm.xlu0 %1977, %v1864
        %v1979 = vpop.permute.xlu0 %1978
        %1982 = vset.pattern.permute.xlu0 0
        %1983 = vperm.xlu0 %1982, %v1865
        %v1984 = vpop.permute.xlu0 %1983
        %1987 = vset.pattern.permute.xlu0 0
        %1988 = vperm.xlu0 %1987, %v1866
        %v1989 = vpop.permute.xlu0 %1988
        %1992 = vset.pattern.permute.xlu0 0
        %1993 = vperm.xlu0 %1992, %v1867
        %v1994 = vpop.permute.xlu0 %1993
        %v1996 = vsub.f32 %v1742, %v1919
        %v1997 = vsub.f32 %v1745, %v1924
        %v1998 = vsub.f32 %v1750, %v1929
        %v1999 = vsub.f32 %v1753, %v1934
        %v2000 = vsub.f32 %v1758, %v1939
        %v2001 = vsub.f32 %v1761, %v1944
        %v2002 = vsub.f32 %v1766, %v1949
        %v2003 = vsub.f32 %v1769, %v1954
        %v2004 = vsub.f32 %v1774, %v1959
        %v2005 = vsub.f32 %v1777, %v1964
        %v2006 = vsub.f32 %v1782, %v1969
        %v2007 = vsub.f32 %v1785, %v1974
        %v2008 = vsub.f32 %v1790, %v1979
        %v2009 = vsub.f32 %v1793, %v1984
        %v2010 = vsub.f32 %v1798, %v1989
        %v2011 = vsub.f32 %v1801, %v1994
        %v2012 = vmul.f32 %v1996, 1.442695
        %v2013 = vpow.pop %v2012
        %v2014 = vmul.f32 %v1997, 1.442695
        %v2015 = vpow.pop %v2014
        %v2016 = vmul.f32 %v1998, 1.442695
        %v2017 = vpow.pop %v2016
        %v2018 = vmul.f32 %v1999, 1.442695
        %v2019 = vpow.pop %v2018
        %v2020 = vmul.f32 %v2000, 1.442695
        %v2021 = vpow.pop %v2020
        %v2022 = vmul.f32 %v2001, 1.442695
        %v2023 = vpow.pop %v2022
        %v2024 = vmul.f32 %v2002, 1.442695
        %v2025 = vpow.pop %v2024
        %v2026 = vmul.f32 %v2003, 1.442695
        %v2027 = vpow.pop %v2026
        %v2028 = vmul.f32 %v2004, 1.442695
        %v2029 = vpow.pop %v2028
        %v2030 = vmul.f32 %v2005, 1.442695
        %v2031 = vpow.pop %v2030
        %v2032 = vmul.f32 %v2006, 1.442695
        %v2033 = vpow.pop %v2032
        %v2034 = vmul.f32 %v2007, 1.442695
        %v2035 = vpow.pop %v2034
        %v2036 = vmul.f32 %v2008, 1.442695
        %v2037 = vpow.pop %v2036
        %v2038 = vmul.f32 %v2009, 1.442695
        %v2039 = vpow.pop %v2038
        %v2040 = vmul.f32 %v2010, 1.442695
        %v2041 = vpow.pop %v2040
        %v2042 = vmul.f32 %v2011, 1.442695
        %v2043 = vpow.pop %v2042
        %v2044 = vld [vmem:[#allocation6] sm:$0xff]
        %v2045 = vld [vmem:[#allocation6 + $0x8] sm:$0xff]
        %v2046 = vld [vmem:[#allocation6 + $0x10] sm:$0xff]
        %v2047 = vld [vmem:[#allocation6 + $0x18] sm:$0xff]
        %v2048 = vld [vmem:[#allocation6 + $0x20] sm:$0xff]
        %v2049 = vld [vmem:[#allocation6 + $0x28] sm:$0xff]
        %v2050 = vld [vmem:[#allocation6 + $0x30] sm:$0xff]
        %v2051 = vld [vmem:[#allocation6 + $0x38] sm:$0xff]
        %v2052 = vld [vmem:[#allocation6 + $0x40] sm:$0xff]
        %v2053 = vld [vmem:[#allocation6 + $0x48] sm:$0xff]
        %v2054 = vld [vmem:[#allocation6 + $0x50] sm:$0xff]
        %v2055 = vld [vmem:[#allocation6 + $0x58] sm:$0xff]
        %v2056 = vld [vmem:[#allocation6 + $0x60] sm:$0xff]
        %v2057 = vld [vmem:[#allocation6 + $0x68] sm:$0xff]
        %v2058 = vld [vmem:[#allocation6 + $0x70] sm:$0xff]
        %v2059 = vld [vmem:[#allocation6 + $0x78] sm:$0xff]
        %v2060 = vmul.f32 %v1885, %v2044
        %v2061 = vmul.f32 %v1887, %v2045
        %v2062 = vmul.f32 %v1889, %v2046
        %v2063 = vmul.f32 %v1891, %v2047
        %v2064 = vmul.f32 %v1893, %v2048
        %v2065 = vmul.f32 %v1895, %v2049
        %v2066 = vmul.f32 %v1897, %v2050
        %v2067 = vmul.f32 %v1899, %v2051
        %v2068 = vmul.f32 %v1901, %v2052
        %v2069 = vmul.f32 %v1903, %v2053
        %v2070 = vmul.f32 %v1905, %v2054
        %v2071 = vmul.f32 %v1907, %v2055
        %v2072 = vmul.f32 %v1909, %v2056
        %v2073 = vmul.f32 %v1911, %v2057
        %v2074 = vmul.f32 %v1913, %v2058
        %v2075 = vmul.f32 %v1915, %v2059
        %2076 = vadd.xlane.f32.xlu0 %v2013
        %v2077 = vpop.xlane.xlu0 %2076
        %2078 = vadd.xlane.f32.xlu0 %v2015
        %v2079 = vpop.xlane.xlu0 %2078
        %2080 = vadd.xlane.f32.xlu0 %v2017
        %v2081 = vpop.xlane.xlu0 %2080
        %2082 = vadd.xlane.f32.xlu0 %v2019
        %v2083 = vpop.xlane.xlu0 %2082
        %2084 = vadd.xlane.f32.xlu0 %v2021
        %v2085 = vpop.xlane.xlu0 %2084
        %2086 = vadd.xlane.f32.xlu0 %v2023
        %v2087 = vpop.xlane.xlu0 %2086
        %2088 = vadd.xlane.f32.xlu0 %v2025
        %v2089 = vpop.xlane.xlu0 %2088
        %2090 = vadd.xlane.f32.xlu0 %v2027
        %v2091 = vpop.xlane.xlu0 %2090
        %2092 = vadd.xlane.f32.xlu0 %v2029
        %v2093 = vpop.xlane.xlu0 %2092
        %2094 = vadd.xlane.f32.xlu0 %v2031
        %v2095 = vpop.xlane.xlu0 %2094
        %2096 = vadd.xlane.f32.xlu0 %v2033
        %v2097 = vpop.xlane.xlu0 %2096
        %2098 = vadd.xlane.f32.xlu0 %v2035
        %v2099 = vpop.xlane.xlu0 %2098
        %2100 = vadd.xlane.f32.xlu0 %v2037
        %v2101 = vpop.xlane.xlu0 %2100
        %2102 = vadd.xlane.f32.xlu0 %v2039
        %v2103 = vpop.xlane.xlu0 %2102
        %2104 = vadd.xlane.f32.xlu0 %v2041
        %v2105 = vpop.xlane.xlu0 %2104
        %2106 = vadd.xlane.f32.xlu0 %v2043
        %v2107 = vpop.xlane.xlu0 %2106
        %v2108 = vadd.f32 %v2060, %v2077
        %v2109 = vadd.f32 %v2061, %v2079
        %v2110 = vadd.f32 %v2062, %v2081
        %v2111 = vadd.f32 %v2063, %v2083
        %v2112 = vadd.f32 %v2064, %v2085
        %v2113 = vadd.f32 %v2065, %v2087
        %v2114 = vadd.f32 %v2066, %v2089
        %v2115 = vadd.f32 %v2067, %v2091
        %v2116 = vadd.f32 %v2068, %v2093
        %v2117 = vadd.f32 %v2069, %v2095
        %v2118 = vadd.f32 %v2070, %v2097
        %v2119 = vadd.f32 %v2071, %v2099
        %v2120 = vadd.f32 %v2072, %v2101
        %v2121 = vadd.f32 %v2073, %v2103
        %v2122 = vadd.f32 %v2074, %v2105
        %v2123 = vadd.f32 %v2075, %v2107
        %2124 = vst.msk [vmem:[#allocation6] sm:$0xff] %vm1289, %v2108
        %2125 = vst.msk [vmem:[#allocation6 + $0x8] sm:$0xff] %vm1289, %v2109
        %2126 = vst.msk [vmem:[#allocation6 + $0x10] sm:$0xff] %vm1289, %v2110
        %2127 = vst.msk [vmem:[#allocation6 + $0x18] sm:$0xff] %vm1289, %v2111
        %2128 = vst.msk [vmem:[#allocation6 + $0x20] sm:$0xff] %vm1289, %v2112
        %2129 = vst.msk [vmem:[#allocation6 + $0x28] sm:$0xff] %vm1289, %v2113
        %2130 = vst.msk [vmem:[#allocation6 + $0x30] sm:$0xff] %vm1289, %v2114
        %2131 = vst.msk [vmem:[#allocation6 + $0x38] sm:$0xff] %vm1289, %v2115
        %2132 = vst.msk [vmem:[#allocation6 + $0x40] sm:$0xff] %vm1289, %v2116
        %2133 = vst.msk [vmem:[#allocation6 + $0x48] sm:$0xff] %vm1289, %v2117
        %2134 = vst.msk [vmem:[#allocation6 + $0x50] sm:$0xff] %vm1289, %v2118
        %2135 = vst.msk [vmem:[#allocation6 + $0x58] sm:$0xff] %vm1289, %v2119
        %2136 = vst.msk [vmem:[#allocation6 + $0x60] sm:$0xff] %vm1289, %v2120
        %2137 = vst.msk [vmem:[#allocation6 + $0x68] sm:$0xff] %vm1289, %v2121
        %2138 = vst.msk [vmem:[#allocation6 + $0x70] sm:$0xff] %vm1289, %v2122
        %2139 = vst.msk [vmem:[#allocation6 + $0x78] sm:$0xff] %vm1289, %v2123
        %v2140 = vld [vmem:[#allocation7] sm:$0xff]
        %v2141 = vld [vmem:[#allocation7 + $0x8] sm:$0xff]
        %v2142 = vld [vmem:[#allocation7 + $0x10] sm:$0xff]
        %v2143 = vld [vmem:[#allocation7 + $0x18] sm:$0xff]
        %v2144 = vld [vmem:[#allocation7 + $0x20] sm:$0xff]
        %v2145 = vld [vmem:[#allocation7 + $0x28] sm:$0xff]
        %v2146 = vld [vmem:[#allocation7 + $0x30] sm:$0xff]
        %v2147 = vld [vmem:[#allocation7 + $0x38] sm:$0xff]
        %v2148 = vld [vmem:[#allocation7 + $0x40] sm:$0xff]
        %v2149 = vld [vmem:[#allocation7 + $0x48] sm:$0xff]
        %v2150 = vld [vmem:[#allocation7 + $0x50] sm:$0xff]
        %v2151 = vld [vmem:[#allocation7 + $0x58] sm:$0xff]
        %v2152 = vld [vmem:[#allocation7 + $0x60] sm:$0xff]
        %v2153 = vld [vmem:[#allocation7 + $0x68] sm:$0xff]
        %v2154 = vld [vmem:[#allocation7 + $0x70] sm:$0xff]
        %v2155 = vld [vmem:[#allocation7 + $0x78] sm:$0xff]
        %2157 = vset.pattern.permute.xlu0 0
        %2158 = vperm.xlu0 %2157, %v1885
        %v2159 = vpop.permute.xlu0 %2158
        %2162 = vset.pattern.permute.xlu0 0
        %2163 = vperm.xlu0 %2162, %v1887
        %v2164 = vpop.permute.xlu0 %2163
        %2167 = vset.pattern.permute.xlu0 0
        %2168 = vperm.xlu0 %2167, %v1889
        %v2169 = vpop.permute.xlu0 %2168
        %2172 = vset.pattern.permute.xlu0 0
        %2173 = vperm.xlu0 %2172, %v1891
        %v2174 = vpop.permute.xlu0 %2173
        %2177 = vset.pattern.permute.xlu0 0
        %2178 = vperm.xlu0 %2177, %v1893
        %v2179 = vpop.permute.xlu0 %2178
        %2182 = vset.pattern.permute.xlu0 0
        %2183 = vperm.xlu0 %2182, %v1895
        %v2184 = vpop.permute.xlu0 %2183
        %2187 = vset.pattern.permute.xlu0 0
        %2188 = vperm.xlu0 %2187, %v1897
        %v2189 = vpop.permute.xlu0 %2188
        %2192 = vset.pattern.permute.xlu0 0
        %2193 = vperm.xlu0 %2192, %v1899
        %v2194 = vpop.permute.xlu0 %2193
        %2197 = vset.pattern.permute.xlu0 0
        %2198 = vperm.xlu0 %2197, %v1901
        %v2199 = vpop.permute.xlu0 %2198
        %2202 = vset.pattern.permute.xlu0 0
        %2203 = vperm.xlu0 %2202, %v1903
        %v2204 = vpop.permute.xlu0 %2203
        %2207 = vset.pattern.permute.xlu0 0
        %2208 = vperm.xlu0 %2207, %v1905
        %v2209 = vpop.permute.xlu0 %2208
        %2212 = vset.pattern.permute.xlu0 0
        %2213 = vperm.xlu0 %2212, %v1907
        %v2214 = vpop.permute.xlu0 %2213
        %2217 = vset.pattern.permute.xlu0 0
        %2218 = vperm.xlu0 %2217, %v1909
        %v2219 = vpop.permute.xlu0 %2218
        %2222 = vset.pattern.permute.xlu0 0
        %2223 = vperm.xlu0 %2222, %v1911
        %v2224 = vpop.permute.xlu0 %2223
        %2227 = vset.pattern.permute.xlu0 0
        %2228 = vperm.xlu0 %2227, %v1913
        %v2229 = vpop.permute.xlu0 %2228
        %2232 = vset.pattern.permute.xlu0 0
        %2233 = vperm.xlu0 %2232, %v1915
        %v2234 = vpop.permute.xlu0 %2233
        %v2236 = vmul.f32 %v2159, %v2140
        %v2237 = vmul.f32 %v2164, %v2141
        %v2238 = vmul.f32 %v2169, %v2142
        %v2239 = vmul.f32 %v2174, %v2143
        %v2240 = vmul.f32 %v2179, %v2144
        %v2241 = vmul.f32 %v2184, %v2145
        %v2242 = vmul.f32 %v2189, %v2146
        %v2243 = vmul.f32 %v2194, %v2147
        %v2244 = vmul.f32 %v2199, %v2148
        %v2245 = vmul.f32 %v2204, %v2149
        %v2246 = vmul.f32 %v2209, %v2150
        %v2247 = vmul.f32 %v2214, %v2151
        %v2248 = vmul.f32 %v2219, %v2152
        %v2249 = vmul.f32 %v2224, %v2153
        %v2250 = vmul.f32 %v2229, %v2154
        %v2251 = vmul.f32 %v2234, %v2155
        %v2252 = vpack.c.bf16 %v2015, %v2013
        %v2253 = vpack.c.bf16 %v2019, %v2017
        %v2254 = vpack.c.bf16 %v2023, %v2021
        %v2255 = vpack.c.bf16 %v2027, %v2025
        %v2256 = vpack.c.bf16 %v2031, %v2029
        %v2257 = vpack.c.bf16 %v2035, %v2033
        %v2258 = vpack.c.bf16 %v2039, %v2037
        %v2259 = vpack.c.bf16 %v2043, %v2041
        %2260 = vrot.lane.b32.xlu0 %v1458, 64
        %v2261 = vpop.permute.xlu0 %2260
        %2262 = vrot.lane.b32.xlu0 %v1459, 64
        %v2263 = vpop.permute.xlu0 %2262
        %2264 = vrot.lane.b32.xlu0 %v1460, 64
        %v2265 = vpop.permute.xlu0 %2264
        %2266 = vrot.lane.b32.xlu0 %v1461, 64
        %v2267 = vpop.permute.xlu0 %2266
        %2268 = vrot.lane.b32.xlu0 %v1462, 64
        %v2269 = vpop.permute.xlu0 %2268
        %2270 = vrot.lane.b32.xlu0 %v1463, 64
        %v2271 = vpop.permute.xlu0 %2270
        %2272 = vrot.lane.b32.xlu0 %v1464, 64
        %v2273 = vpop.permute.xlu0 %2272
        %2274 = vrot.lane.b32.xlu0 %v1465, 64
        %v2275 = vpop.permute.xlu0 %2274
        %2284 = vmatprep.subr.bf16.mxu0 0
        %2285 = vmatpush1.bf16.msra.mxu0 %v2261
        %2286 = vmatprep.subr.bf16.mxu0 0
        %2287 = vmatpush1.bf16.msra.mxu0 %v2263
        %2288 = vmatprep.subr.bf16.mxu0 0
        %2289 = vmatpush1.bf16.msra.mxu0 %v2265
        %2290 = vmatprep.subr.bf16.mxu0 0
        %2291 = vmatpush1.bf16.msra.mxu0 %v2267
        %2292 = vmatprep.subr.bf16.mxu0 0
        %2293 = vmatpush1.bf16.msra.mxu0 %v2269
        %2294 = vmatprep.subr.bf16.mxu0 0
        %2295 = vmatpush1.bf16.msra.mxu0 %v2271
        %2296 = vmatprep.subr.bf16.mxu0 0
        %2297 = vmatpush1.bf16.msra.mxu0 %v2273
        %2298 = vmatprep.subr.bf16.mxu0 0
        %2299 = vmatpush1.bf16.msra.mxu0 %v2275
        %2300 = vmatprep.subr.bf16.mxu0 0
        %2301 = vmatpush1.bf16.msra.mxu0 0
        %2302 = vmatprep.subr.bf16.mxu0 0
        %2303 = vmatpush1.bf16.msra.mxu0 0
        %2304 = vmatprep.subr.bf16.mxu0 0
        %2305 = vmatpush1.bf16.msra.mxu0 0
        %2306 = vmatprep.subr.bf16.mxu0 0
        %2307 = vmatpush1.bf16.msra.mxu0 0
        %2308 = vmatprep.subr.bf16.mxu0 0
        %2309 = vmatpush1.bf16.msra.mxu0 0
        %2310 = vmatprep.subr.bf16.mxu0 0
        %2311 = vmatpush1.bf16.msra.mxu0 0
        %2312 = vmatprep.subr.bf16.mxu0 0
        %2313 = vmatpush1.bf16.msra.mxu0 0
        %2314 = vmatprep.subr.bf16.mxu0 0
        %2315 = vmatpush1.bf16.msra.mxu0 0
        %2316 = vmatprep.mubr.bf16.mxu0 0
        %2317 = vmatmul.mubr.bf16.gmra.mrb[0].mxu0 %v2252
        %v2318 = vpop.f32.mrb[0].mxu0
        %v2319 = vadd.f32 0.0, %v2318
        %v2320 = vpop.f32.mrb[0].mxu0
        %v2321 = vpop.f32.mrb[0].mxu0
        %v2322 = vadd.f32 0.0, %v2321
        %v2323 = vpop.f32.mrb[0].mxu0
        %2324 = vmatprep.mubr.bf16.mxu0 0
        %2325 = vmatmul.mubr.bf16.gmra.mrb[0].mxu0 %v2253
        %v2326 = vpop.f32.mrb[0].mxu0
        %v2327 = vadd.f32 0.0, %v2326
        %v2328 = vpop.f32.mrb[0].mxu0
        %v2329 = vpop.f32.mrb[0].mxu0
        %v2330 = vadd.f32 0.0, %v2329
        %v2331 = vpop.f32.mrb[0].mxu0
        %2332 = vmatprep.mubr.bf16.mxu0 0
        %2333 = vmatmul.mubr.bf16.gmra.mrb[0].mxu0 %v2254
        %v2334 = vpop.f32.mrb[0].mxu0
        %v2335 = vadd.f32 0.0, %v2334
        %v2336 = vpop.f32.mrb[0].mxu0
        %v2337 = vpop.f32.mrb[0].mxu0
        %v2338 = vadd.f32 0.0, %v2337
        %v2339 = vpop.f32.mrb[0].mxu0
        %2340 = vmatprep.mubr.bf16.mxu0 0
        %2341 = vmatmul.mubr.bf16.gmra.mrb[0].mxu0 %v2255
        %v2342 = vpop.f32.mrb[0].mxu0
        %v2343 = vadd.f32 0.0, %v2342
        %v2344 = vpop.f32.mrb[0].mxu0
        %v2345 = vpop.f32.mrb[0].mxu0
        %v2346 = vadd.f32 0.0, %v2345
        %v2347 = vpop.f32.mrb[0].mxu0
        %2348 = vmatprep.mubr.bf16.mxu0 0
        %2349 = vmatmul.mubr.bf16.gmra.mrb[0].mxu0 %v2256
        %v2350 = vpop.f32.mrb[0].mxu0
        %v2351 = vadd.f32 0.0, %v2350
        %v2352 = vpop.f32.mrb[0].mxu0
        %v2353 = vpop.f32.mrb[0].mxu0
        %v2354 = vadd.f32 0.0, %v2353
        %v2355 = vpop.f32.mrb[0].mxu0
        %2356 = vmatprep.mubr.bf16.mxu0 0
        %2357 = vmatmul.mubr.bf16.gmra.mrb[0].mxu0 %v2257
        %v2358 = vpop.f32.mrb[0].mxu0
        %v2359 = vadd.f32 0.0, %v2358
        %v2360 = vpop.f32.mrb[0].mxu0
        %v2361 = vpop.f32.mrb[0].mxu0
        %v2362 = vadd.f32 0.0, %v2361
        %v2363 = vpop.f32.mrb[0].mxu0
        %2364 = vmatprep.mubr.bf16.mxu0 0
        %2365 = vmatmul.mubr.bf16.gmra.mrb[0].mxu0 %v2258
        %v2366 = vpop.f32.mrb[0].mxu0
        %v2367 = vadd.f32 0.0, %v2366
        %v2368 = vpop.f32.mrb[0].mxu0
        %v2369 = vpop.f32.mrb[0].mxu0
        %v2370 = vadd.f32 0.0, %v2369
        %v2371 = vpop.f32.mrb[0].mxu0
        %2372 = vmatprep.mubr.bf16.mxu0 0
        %2373 = vmatmul.mubr.bf16.gmra.mrb[0].mxu0 %v2259
        %v2374 = vpop.f32.mrb[0].mxu0
        %v2375 = vadd.f32 0.0, %v2374
        %v2376 = vpop.f32.mrb[0].mxu0
        %v2377 = vpop.f32.mrb[0].mxu0
        %v2378 = vadd.f32 0.0, %v2377
        %v2379 = vpop.f32.mrb[0].mxu0
        %2380 = vdwg.mxu0
        %v2381 = vadd.f32 %v2236, %v2319
        %v2382 = vadd.f32 %v2237, %v2322
        %v2383 = vadd.f32 %v2238, %v2327
        %v2384 = vadd.f32 %v2239, %v2330
        %v2385 = vadd.f32 %v2240, %v2335
        %v2386 = vadd.f32 %v2241, %v2338
        %v2387 = vadd.f32 %v2242, %v2343
        %v2388 = vadd.f32 %v2243, %v2346
        %v2389 = vadd.f32 %v2244, %v2351
        %v2390 = vadd.f32 %v2245, %v2354
        %v2391 = vadd.f32 %v2246, %v2359
        %v2392 = vadd.f32 %v2247, %v2362
        %v2393 = vadd.f32 %v2248, %v2367
        %v2394 = vadd.f32 %v2249, %v2370
        %v2395 = vadd.f32 %v2250, %v2375
        %v2396 = vadd.f32 %v2251, %v2378
        %2397 = vst.msk [vmem:[#allocation7] sm:$0xff] %vm823, %v2381
        %2398 = vst.msk [vmem:[#allocation7 + $0x8] sm:$0xff] %vm823, %v2382
        %2399 = vst.msk [vmem:[#allocation7 + $0x10] sm:$0xff] %vm823, %v2383
        %2400 = vst.msk [vmem:[#allocation7 + $0x18] sm:$0xff] %vm823, %v2384
        %2401 = vst.msk [vmem:[#allocation7 + $0x20] sm:$0xff] %vm823, %v2385
        %2402 = vst.msk [vmem:[#allocation7 + $0x28] sm:$0xff] %vm823, %v2386
        %2403 = vst.msk [vmem:[#allocation7 + $0x30] sm:$0xff] %vm823, %v2387
        %2404 = vst.msk [vmem:[#allocation7 + $0x38] sm:$0xff] %vm823, %v2388
        %2405 = vst.msk [vmem:[#allocation7 + $0x40] sm:$0xff] %vm823, %v2389
        %2406 = vst.msk [vmem:[#allocation7 + $0x48] sm:$0xff] %vm823, %v2390
        %2407 = vst.msk [vmem:[#allocation7 + $0x50] sm:$0xff] %vm823, %v2391
        %2408 = vst.msk [vmem:[#allocation7 + $0x58] sm:$0xff] %vm823, %v2392
        %2409 = vst.msk [vmem:[#allocation7 + $0x60] sm:$0xff] %vm823, %v2393
        %2410 = vst.msk [vmem:[#allocation7 + $0x68] sm:$0xff] %vm823, %v2394
        %2411 = vst.msk [vmem:[#allocation7 + $0x70] sm:$0xff] %vm823, %v2395
        %2412 = vst.msk [vmem:[#allocation7 + $0x78] sm:$0xff] %vm823, %v2396
        %2413 = vst.msk [vmem:[#allocation5] sm:$0xff] %vm1289, %v1852
        %2414 = vst.msk [vmem:[#allocation5 + $0x8] sm:$0xff] %vm1289, %v1853
        %2415 = vst.msk [vmem:[#allocation5 + $0x10] sm:$0xff] %vm1289, %v1854
        %2416 = vst.msk [vmem:[#allocation5 + $0x18] sm:$0xff] %vm1289, %v1855
        %2417 = vst.msk [vmem:[#allocation5 + $0x20] sm:$0xff] %vm1289, %v1856
        %2418 = vst.msk [vmem:[#allocation5 + $0x28] sm:$0xff] %vm1289, %v1857
        %2419 = vst.msk [vmem:[#allocation5 + $0x30] sm:$0xff] %vm1289, %v1858
        %2420 = vst.msk [vmem:[#allocation5 + $0x38] sm:$0xff] %vm1289, %v1859
        %2421 = vst.msk [vmem:[#allocation5 + $0x40] sm:$0xff] %vm1289, %v1860
        %2422 = vst.msk [vmem:[#allocation5 + $0x48] sm:$0xff] %vm1289, %v1861
        %2423 = vst.msk [vmem:[#allocation5 + $0x50] sm:$0xff] %vm1289, %v1862
        %2424 = vst.msk [vmem:[#allocation5 + $0x58] sm:$0xff] %vm1289, %v1863
        %2425 = vst.msk [vmem:[#allocation5 + $0x60] sm:$0xff] %vm1289, %v1864
        %2426 = vst.msk [vmem:[#allocation5 + $0x68] sm:$0xff] %vm1289, %v1865
        %2427 = vst.msk [vmem:[#allocation5 + $0x70] sm:$0xff] %vm1289, %v1866
        %2428 = vst.msk [vmem:[#allocation5 + $0x78] sm:$0xff] %vm1289, %v1867
        // Predicated region
        $region160: #{block_dejavu_forward.5} parent=142 // pred_check
          %p2429 = pneg %p593
        $region161: #{block_dejavu_forward.5} parent=142 // pred_check_branch
          %2431 = sbr.rel (%p2429) target = $region163
        $region162: #{block_dejavu_forward.5} parent=142 // pred_region
          %v2432 = vld [vmem:[#allocation4] sm:$0xff]
          %v2433 = vld [vmem:[#allocation4 + $0x8] sm:$0xff]
          %v2434 = vld [vmem:[#allocation4 + $0x10] sm:$0xff]
          %v2435 = vld [vmem:[#allocation4 + $0x18] sm:$0xff]
          %v2436 = vld [vmem:[#allocation4 + $0x20] sm:$0xff]
          %v2437 = vld [vmem:[#allocation4 + $0x28] sm:$0xff]
          %v2438 = vld [vmem:[#allocation4 + $0x30] sm:$0xff]
          %v2439 = vld [vmem:[#allocation4 + $0x38] sm:$0xff]
          %v2440 = vld [vmem:[#allocation4 + $0x40] sm:$0xff]
          %v2441 = vld [vmem:[#allocation4 + $0x48] sm:$0xff]
          %v2442 = vld [vmem:[#allocation4 + $0x50] sm:$0xff]
          %v2443 = vld [vmem:[#allocation4 + $0x58] sm:$0xff]
          %v2444 = vld [vmem:[#allocation4 + $0x60] sm:$0xff]
          %v2445 = vld [vmem:[#allocation4 + $0x68] sm:$0xff]
          %v2446 = vld [vmem:[#allocation4 + $0x70] sm:$0xff]
          %v2447 = vld [vmem:[#allocation4 + $0x78] sm:$0xff]
          %v2448 = vld [vmem:[#allocation3] sm:$0xff]
          %v2449 = vld [vmem:[#allocation3 + $0x8] sm:$0xff]
          %v2450 = vld [vmem:[#allocation3 + $0x10] sm:$0xff]
          %v2451 = vld [vmem:[#allocation3 + $0x18] sm:$0xff]
          %v2452 = vld [vmem:[#allocation3 + $0x20] sm:$0xff]
          %v2453 = vld [vmem:[#allocation3 + $0x28] sm:$0xff]
          %v2454 = vld [vmem:[#allocation3 + $0x30] sm:$0xff]
          %v2455 = vld [vmem:[#allocation3 + $0x38] sm:$0xff]
          %v2456 = vld [vmem:[#allocation3 + $0x40] sm:$0xff]
          %v2457 = vld [vmem:[#allocation3 + $0x48] sm:$0xff]
          %v2458 = vld [vmem:[#allocation3 + $0x50] sm:$0xff]
          %v2459 = vld [vmem:[#allocation3 + $0x58] sm:$0xff]
          %v2460 = vld [vmem:[#allocation3 + $0x60] sm:$0xff]
          %v2461 = vld [vmem:[#allocation3 + $0x68] sm:$0xff]
          %v2462 = vld [vmem:[#allocation3 + $0x70] sm:$0xff]
          %v2463 = vld [vmem:[#allocation3 + $0x78] sm:$0xff]
          %v2464 = vrcp.pop %v2448
          %v2465 = vrcp.pop %v2449
          %v2466 = vrcp.pop %v2450
          %v2467 = vrcp.pop %v2451
          %v2468 = vrcp.pop %v2452
          %v2469 = vrcp.pop %v2453
          %v2470 = vrcp.pop %v2454
          %v2471 = vrcp.pop %v2455
          %v2472 = vrcp.pop %v2456
          %v2473 = vrcp.pop %v2457
          %v2474 = vrcp.pop %v2458
          %v2475 = vrcp.pop %v2459
          %v2476 = vrcp.pop %v2460
          %v2477 = vrcp.pop %v2461
          %v2478 = vrcp.pop %v2462
          %v2479 = vrcp.pop %v2463
          %2481 = vset.pattern.permute.xlu0 0
          %2482 = vperm.xlu0 %2481, %v2464
          %v2483 = vpop.permute.xlu0 %2482
          %2486 = vset.pattern.permute.xlu0 0
          %2487 = vperm.xlu0 %2486, %v2465
          %v2488 = vpop.permute.xlu0 %2487
          %2491 = vset.pattern.permute.xlu0 0
          %2492 = vperm.xlu0 %2491, %v2466
          %v2493 = vpop.permute.xlu0 %2492
          %2496 = vset.pattern.permute.xlu0 0
          %2497 = vperm.xlu0 %2496, %v2467
          %v2498 = vpop.permute.xlu0 %2497
          %2501 = vset.pattern.permute.xlu0 0
          %2502 = vperm.xlu0 %2501, %v2468
          %v2503 = vpop.permute.xlu0 %2502
          %2506 = vset.pattern.permute.xlu0 0
          %2507 = vperm.xlu0 %2506, %v2469
          %v2508 = vpop.permute.xlu0 %2507
          %2511 = vset.pattern.permute.xlu0 0
          %2512 = vperm.xlu0 %2511, %v2470
          %v2513 = vpop.permute.xlu0 %2512
          %2516 = vset.pattern.permute.xlu0 0
          %2517 = vperm.xlu0 %2516, %v2471
          %v2518 = vpop.permute.xlu0 %2517
          %2521 = vset.pattern.permute.xlu0 0
          %2522 = vperm.xlu0 %2521, %v2472
          %v2523 = vpop.permute.xlu0 %2522
          %2526 = vset.pattern.permute.xlu0 0
          %2527 = vperm.xlu0 %2526, %v2473
          %v2528 = vpop.permute.xlu0 %2527
          %2531 = vset.pattern.permute.xlu0 0
          %2532 = vperm.xlu0 %2531, %v2474
          %v2533 = vpop.permute.xlu0 %2532
          %2536 = vset.pattern.permute.xlu0 0
          %2537 = vperm.xlu0 %2536, %v2475
          %v2538 = vpop.permute.xlu0 %2537
          %2541 = vset.pattern.permute.xlu0 0
          %2542 = vperm.xlu0 %2541, %v2476
          %v2543 = vpop.permute.xlu0 %2542
          %2546 = vset.pattern.permute.xlu0 0
          %2547 = vperm.xlu0 %2546, %v2477
          %v2548 = vpop.permute.xlu0 %2547
          %2551 = vset.pattern.permute.xlu0 0
          %2552 = vperm.xlu0 %2551, %v2478
          %v2553 = vpop.permute.xlu0 %2552
          %2556 = vset.pattern.permute.xlu0 0
          %2557 = vperm.xlu0 %2556, %v2479
          %v2558 = vpop.permute.xlu0 %2557
          %v2560 = vmul.f32 %v2432, %v2483
          %v2561 = vmul.f32 %v2433, %v2488
          %v2562 = vmul.f32 %v2434, %v2493
          %v2563 = vmul.f32 %v2435, %v2498
          %v2564 = vmul.f32 %v2436, %v2503
          %v2565 = vmul.f32 %v2437, %v2508
          %v2566 = vmul.f32 %v2438, %v2513
          %v2567 = vmul.f32 %v2439, %v2518
          %v2568 = vmul.f32 %v2440, %v2523
          %v2569 = vmul.f32 %v2441, %v2528
          %v2570 = vmul.f32 %v2442, %v2533
          %v2571 = vmul.f32 %v2443, %v2538
          %v2572 = vmul.f32 %v2444, %v2543
          %v2573 = vmul.f32 %v2445, %v2548
          %v2574 = vmul.f32 %v2446, %v2553
          %v2575 = vmul.f32 %v2447, %v2558
          %v2576 = vld [vmem:[#allocation7] sm:$0xff]
          %v2577 = vld [vmem:[#allocation7 + $0x8] sm:$0xff]
          %v2578 = vld [vmem:[#allocation7 + $0x10] sm:$0xff]
          %v2579 = vld [vmem:[#allocation7 + $0x18] sm:$0xff]
          %v2580 = vld [vmem:[#allocation7 + $0x20] sm:$0xff]
          %v2581 = vld [vmem:[#allocation7 + $0x28] sm:$0xff]
          %v2582 = vld [vmem:[#allocation7 + $0x30] sm:$0xff]
          %v2583 = vld [vmem:[#allocation7 + $0x38] sm:$0xff]
          %v2584 = vld [vmem:[#allocation7 + $0x40] sm:$0xff]
          %v2585 = vld [vmem:[#allocation7 + $0x48] sm:$0xff]
          %v2586 = vld [vmem:[#allocation7 + $0x50] sm:$0xff]
          %v2587 = vld [vmem:[#allocation7 + $0x58] sm:$0xff]
          %v2588 = vld [vmem:[#allocation7 + $0x60] sm:$0xff]
          %v2589 = vld [vmem:[#allocation7 + $0x68] sm:$0xff]
          %v2590 = vld [vmem:[#allocation7 + $0x70] sm:$0xff]
          %v2591 = vld [vmem:[#allocation7 + $0x78] sm:$0xff]
          %v2592 = vld [vmem:[#allocation6] sm:$0xff]
          %v2593 = vld [vmem:[#allocation6 + $0x8] sm:$0xff]
          %v2594 = vld [vmem:[#allocation6 + $0x10] sm:$0xff]
          %v2595 = vld [vmem:[#allocation6 + $0x18] sm:$0xff]
          %v2596 = vld [vmem:[#allocation6 + $0x20] sm:$0xff]
          %v2597 = vld [vmem:[#allocation6 + $0x28] sm:$0xff]
          %v2598 = vld [vmem:[#allocation6 + $0x30] sm:$0xff]
          %v2599 = vld [vmem:[#allocation6 + $0x38] sm:$0xff]
          %v2600 = vld [vmem:[#allocation6 + $0x40] sm:$0xff]
          %v2601 = vld [vmem:[#allocation6 + $0x48] sm:$0xff]
          %v2602 = vld [vmem:[#allocation6 + $0x50] sm:$0xff]
          %v2603 = vld [vmem:[#allocation6 + $0x58] sm:$0xff]
          %v2604 = vld [vmem:[#allocation6 + $0x60] sm:$0xff]
          %v2605 = vld [vmem:[#allocation6 + $0x68] sm:$0xff]
          %v2606 = vld [vmem:[#allocation6 + $0x70] sm:$0xff]
          %v2607 = vld [vmem:[#allocation6 + $0x78] sm:$0xff]
          %v2608 = vrcp.pop %v2592
          %v2609 = vrcp.pop %v2593
          %v2610 = vrcp.pop %v2594
          %v2611 = vrcp.pop %v2595
          %v2612 = vrcp.pop %v2596
          %v2613 = vrcp.pop %v2597
          %v2614 = vrcp.pop %v2598
          %v2615 = vrcp.pop %v2599
          %v2616 = vrcp.pop %v2600
          %v2617 = vrcp.pop %v2601
          %v2618 = vrcp.pop %v2602
          %v2619 = vrcp.pop %v2603
          %v2620 = vrcp.pop %v2604
          %v2621 = vrcp.pop %v2605
          %v2622 = vrcp.pop %v2606
          %v2623 = vrcp.pop %v2607
          %2625 = vset.pattern.permute.xlu0 0
          %2626 = vperm.xlu0 %2625, %v2608
          %v2627 = vpop.permute.xlu0 %2626
          %2630 = vset.pattern.permute.xlu0 0
          %2631 = vperm.xlu0 %2630, %v2609
          %v2632 = vpop.permute.xlu0 %2631
          %2635 = vset.pattern.permute.xlu0 0
          %2636 = vperm.xlu0 %2635, %v2610
          %v2637 = vpop.permute.xlu0 %2636
          %2640 = vset.pattern.permute.xlu0 0
          %2641 = vperm.xlu0 %2640, %v2611
          %v2642 = vpop.permute.xlu0 %2641
          %2645 = vset.pattern.permute.xlu0 0
          %2646 = vperm.xlu0 %2645, %v2612
          %v2647 = vpop.permute.xlu0 %2646
          %2650 = vset.pattern.permute.xlu0 0
          %2651 = vperm.xlu0 %2650, %v2613
          %v2652 = vpop.permute.xlu0 %2651
          %2655 = vset.pattern.permute.xlu0 0
          %2656 = vperm.xlu0 %2655, %v2614
          %v2657 = vpop.permute.xlu0 %2656
          %2660 = vset.pattern.permute.xlu0 0
          %2661 = vperm.xlu0 %2660, %v2615
          %v2662 = vpop.permute.xlu0 %2661
          %2665 = vset.pattern.permute.xlu0 0
          %2666 = vperm.xlu0 %2665, %v2616
          %v2667 = vpop.permute.xlu0 %2666
          %2670 = vset.pattern.permute.xlu0 0
          %2671 = vperm.xlu0 %2670, %v2617
          %v2672 = vpop.permute.xlu0 %2671
          %2675 = vset.pattern.permute.xlu0 0
          %2676 = vperm.xlu0 %2675, %v2618
          %v2677 = vpop.permute.xlu0 %2676
          %2680 = vset.pattern.permute.xlu0 0
          %2681 = vperm.xlu0 %2680, %v2619
          %v2682 = vpop.permute.xlu0 %2681
          %2685 = vset.pattern.permute.xlu0 0
          %2686 = vperm.xlu0 %2685, %v2620
          %v2687 = vpop.permute.xlu0 %2686
          %2690 = vset.pattern.permute.xlu0 0
          %2691 = vperm.xlu0 %2690, %v2621
          %v2692 = vpop.permute.xlu0 %2691
          %2695 = vset.pattern.permute.xlu0 0
          %2696 = vperm.xlu0 %2695, %v2622
          %v2697 = vpop.permute.xlu0 %2696
          %2700 = vset.pattern.permute.xlu0 0
          %2701 = vperm.xlu0 %2700, %v2623
          %v2702 = vpop.permute.xlu0 %2701
          %v2704 = vmul.f32 %v2576, %v2627
          %v2705 = vmul.f32 %v2577, %v2632
          %v2706 = vmul.f32 %v2578, %v2637
          %v2707 = vmul.f32 %v2579, %v2642
          %v2708 = vmul.f32 %v2580, %v2647
          %v2709 = vmul.f32 %v2581, %v2652
          %v2710 = vmul.f32 %v2582, %v2657
          %v2711 = vmul.f32 %v2583, %v2662
          %v2712 = vmul.f32 %v2584, %v2667
          %v2713 = vmul.f32 %v2585, %v2672
          %v2714 = vmul.f32 %v2586, %v2677
          %v2715 = vmul.f32 %v2587, %v2682
          %v2716 = vmul.f32 %v2588, %v2687
          %v2717 = vmul.f32 %v2589, %v2692
          %v2718 = vmul.f32 %v2590, %v2697
          %v2719 = vmul.f32 %v2591, %v2702
          %2736 = vrot.lane.b32.xlu0 %v2704, 64
          %v2737 = vpop.permute.xlu0 %2736
          %2738 = vrot.lane.b32.xlu0 %v2705, 64
          %v2739 = vpop.permute.xlu0 %2738
          %2740 = vrot.lane.b32.xlu0 %v2706, 64
          %v2741 = vpop.permute.xlu0 %2740
          %2742 = vrot.lane.b32.xlu0 %v2707, 64
          %v2743 = vpop.permute.xlu0 %2742
          %2744 = vrot.lane.b32.xlu0 %v2708, 64
          %v2745 = vpop.permute.xlu0 %2744
          %2746 = vrot.lane.b32.xlu0 %v2709, 64
          %v2747 = vpop.permute.xlu0 %2746
          %2748 = vrot.lane.b32.xlu0 %v2710, 64
          %v2749 = vpop.permute.xlu0 %2748
          %2750 = vrot.lane.b32.xlu0 %v2711, 64
          %v2751 = vpop.permute.xlu0 %2750
          %2752 = vrot.lane.b32.xlu0 %v2712, 64
          %v2753 = vpop.permute.xlu0 %2752
          %2754 = vrot.lane.b32.xlu0 %v2713, 64
          %v2755 = vpop.permute.xlu0 %2754
          %2756 = vrot.lane.b32.xlu0 %v2714, 64
          %v2757 = vpop.permute.xlu0 %2756
          %2758 = vrot.lane.b32.xlu0 %v2715, 64
          %v2759 = vpop.permute.xlu0 %2758
          %2760 = vrot.lane.b32.xlu0 %v2716, 64
          %v2761 = vpop.permute.xlu0 %2760
          %2762 = vrot.lane.b32.xlu0 %v2717, 64
          %v2763 = vpop.permute.xlu0 %2762
          %2764 = vrot.lane.b32.xlu0 %v2718, 64
          %v2765 = vpop.permute.xlu0 %2764
          %2766 = vrot.lane.b32.xlu0 %v2719, 64
          %v2767 = vpop.permute.xlu0 %2766
          %v2784 = vsel %vm823, %v2560, %v2737
          %v2785 = vsel %vm823, %v2561, %v2739
          %v2786 = vsel %vm823, %v2562, %v2741
          %v2787 = vsel %vm823, %v2563, %v2743
          %v2788 = vsel %vm823, %v2564, %v2745
          %v2789 = vsel %vm823, %v2565, %v2747
          %v2790 = vsel %vm823, %v2566, %v2749
          %v2791 = vsel %vm823, %v2567, %v2751
          %v2792 = vsel %vm823, %v2568, %v2753
          %v2793 = vsel %vm823, %v2569, %v2755
          %v2794 = vsel %vm823, %v2570, %v2757
          %v2795 = vsel %vm823, %v2571, %v2759
          %v2796 = vsel %vm823, %v2572, %v2761
          %v2797 = vsel %vm823, %v2573, %v2763
          %v2798 = vsel %vm823, %v2574, %v2765
          %v2799 = vsel %vm823, %v2575, %v2767
          %v2800 = vpack.c.bf16 %v2785, %v2784
          %v2801 = vpack.c.bf16 %v2787, %v2786
          %v2802 = vpack.c.bf16 %v2789, %v2788
          %v2803 = vpack.c.bf16 %v2791, %v2790
          %v2804 = vpack.c.bf16 %v2793, %v2792
          %v2805 = vpack.c.bf16 %v2795, %v2794
          %v2806 = vpack.c.bf16 %v2797, %v2796
          %v2807 = vpack.c.bf16 %v2799, %v2798
          %v2816 = vunpack.c.l.b16 %v2800
          %v2817 = vunpack.c.h.b16 %v2800
          %v2818 = vunpack.c.l.b16 %v2801
          %v2819 = vunpack.c.h.b16 %v2801
          %v2820 = vunpack.c.l.b16 %v2802
          %v2821 = vunpack.c.h.b16 %v2802
          %v2822 = vunpack.c.l.b16 %v2803
          %v2823 = vunpack.c.h.b16 %v2803
          %v2824 = vunpack.c.l.b16 %v2804
          %v2825 = vunpack.c.h.b16 %v2804
          %v2826 = vunpack.c.l.b16 %v2805
          %v2827 = vunpack.c.h.b16 %v2805
          %v2828 = vunpack.c.l.b16 %v2806
          %v2829 = vunpack.c.h.b16 %v2806
          %v2830 = vunpack.c.l.b16 %v2807
          %v2831 = vunpack.c.h.b16 %v2807
          %v2832 = vpack.c.b16 %v2816, %v2816
          %v2833 = vpack.c.b16 %v2817, %v2817
          %v2834 = vpack.c.b16 %v2818, %v2818
          %v2835 = vpack.c.b16 %v2819, %v2819
          %v2836 = vpack.c.b16 %v2820, %v2820
          %v2837 = vpack.c.b16 %v2821, %v2821
          %v2838 = vpack.c.b16 %v2822, %v2822
          %v2839 = vpack.c.b16 %v2823, %v2823
          %v2840 = vpack.c.b16 %v2824, %v2824
          %v2841 = vpack.c.b16 %v2825, %v2825
          %v2842 = vpack.c.b16 %v2826, %v2826
          %v2843 = vpack.c.b16 %v2827, %v2827
          %v2844 = vpack.c.b16 %v2828, %v2828
          %v2845 = vpack.c.b16 %v2829, %v2829
          %v2846 = vpack.c.b16 %v2830, %v2830
          %v2847 = vpack.c.b16 %v2831, %v2831
          %2864 = vst [vmem:[%s589] sm:$0xf] %v2832
          %2865 = vst [vmem:[%s589 + $0x4] sm:$0xf] %v2833
          %2866 = vst [vmem:[%s589 + $0x8] sm:$0xf] %v2834
          %2867 = vst [vmem:[%s589 + $0xc] sm:$0xf] %v2835
          %2868 = vst [vmem:[%s589 + $0x10] sm:$0xf] %v2836
          %2869 = vst [vmem:[%s589 + $0x14] sm:$0xf] %v2837
          %2870 = vst [vmem:[%s589 + $0x18] sm:$0xf] %v2838
          %2871 = vst [vmem:[%s589 + $0x1c] sm:$0xf] %v2839
          %2872 = vst [vmem:[%s589 + $0x20] sm:$0xf] %v2840
          %2873 = vst [vmem:[%s589 + $0x24] sm:$0xf] %v2841
          %2874 = vst [vmem:[%s589 + $0x28] sm:$0xf] %v2842
          %2875 = vst [vmem:[%s589 + $0x2c] sm:$0xf] %v2843
          %2876 = vst [vmem:[%s589 + $0x30] sm:$0xf] %v2844
          %2877 = vst [vmem:[%s589 + $0x34] sm:$0xf] %v2845
          %2878 = vst [vmem:[%s589 + $0x38] sm:$0xf] %v2846
          %2879 = vst [vmem:[%s589 + $0x3c] sm:$0xf] %v2847
        $region163: #{block_dejavu_forward.5} parent=142 // pred_fallthru
          _
        %s2880 = sadd.s32 %s20, %s22
        %s2881 = smul.u32 16, %s2880
        %p2882 = scmp.lt.s32.totalorder %s2881, 31
        %s2883 = scalar_select %p2882, %s2881, 31
        %p2884 = scmp.lt.s32.totalorder %s21, 0
        %s2885 = scalar_select %p2884, %s21, 0
        %s2886 = sadd.s32 %s2885, %s2883
        %s2887 = smul.addr %s2886, 4
        %s2888 = scalar_lea.vmem %s3, %s2887
        // Predicated region
        $region164: #{block_dejavu_forward.5} parent=142 // pred_check
          %p2889 = pneg %p156
        $region165: #{block_dejavu_forward.5} parent=142 // pred_check_branch
          %2891 = sbr.rel (%p2889) target = $region167
        $region166: #{block_dejavu_forward.5} parent=142 // pred_region
          %s2892 = sadd.s32 %s20, %s22
          %s2893 = smul.u32 16, %s2892
        $region167: #{block_dejavu_forward.5} parent=142 // pred_fallthru
          _
      $region143: #{block_dejavu_forward.5} parent=5 // pred_fallthru
        _
      %p2894 = scmp.le.s32.totalorder 2, %s9
      // Predicated region
      $region168: #{block_dejavu_forward.5} parent=5 // pred_check
        %p2895 = pneg %p2894
      $region169: #{block_dejavu_forward.5} parent=5 // pred_check_branch
        %2897 = sbr.rel (%p2895) target = $region171
      $region170: #{block_dejavu_forward.5} parent=5 // pred_region
        %s2898 = ssub.s32 %s9, 2
        // Predicated region
        $region172: #{block_dejavu_forward.5} parent=170 // pred_check
          %p2899 = pneg %p162
        $region173: #{block_dejavu_forward.5} parent=170 // pred_check_branch
          %2901 = sbr.rel (%p2899) target = $region175
        $region174: #{block_dejavu_forward.5} parent=170 // pred_region
          %s2902 = sadd.s32 %s24, %s26
          %s2903 = smul.u32 16, %s2902
          %p2904 = scmp.lt.s32.totalorder %s2903, 31
          %s2905 = scalar_select %p2904, %s2903, 31
          %p2906 = scmp.lt.s32.totalorder %s25, 0
          %s2907 = scalar_select %p2906, %s25, 0
          %s2908 = sadd.s32 %s2907, %s2905
          %s2909 = smul.addr %s2908, 4
          %s2910 = scalar_lea.vmem %s3, %s2909
        $region175: #{block_dejavu_forward.5} parent=170 // pred_fallthru
          _
      $region171: #{block_dejavu_forward.5} parent=5 // pred_fallthru
        _
    $region6: #{block_dejavu_forward.5} parent=1 // loop_footer
      %s13 = sadd.s32 1, %s9
    $region7: #{block_dejavu_forward.5} parent=1 // loop_footer_branch
      %8 = sbr.rel target = $region3
    $region8: #{block_dejavu_forward.5} parent=1 // loop_exit
      _

// kernel: block_dejavu_forward.7
$region0: #{block_dejavu_forward.7}
  #allocation0 [shape = 'u32[]', space=smem, size = 0x4, offset = 0x4, fixed_abs, tag = 'smem constant byte address 0x4 - core index']
  #allocation1 [shape = 'u32[144,128]{1,0:T(1,128)}', space=vmem, size = 0x12000, scoped, tag = 'internal scratch']
  #allocation2 [shape = 'bf16[128,128]{1,0:T(16,128)(2,1)}', space=vmem, size = 0x8000, scoped, tag = 'scratch operand']
  #allocation3 [shape = 'bf16[128,128]{1,0:T(16,128)(2,1)}', space=vmem, size = 0x8000, scoped, tag = 'scratch operand']
  #allocation4 [shape = 'f32[128,128]{1,0:T(8,128)}', space=vmem, size = 0x10000, scoped, tag = 'scratch operand']
  %s0 = inlined_call_operand.vmem [shape: bf16[256,128], index: 0, kind: input, shape index: {}]
  %s1 = inlined_call_operand.vmem [shape: f32[256,128], index: 1, kind: input, shape index: {}]
  %s2 = inlined_call_operand.vmem [shape: f32[1,128], index: 2, kind: input, shape index: {}]
  %s3 = inlined_call_operand.vmem [shape: f32[1,128], index: 3, kind: input, shape index: {}]
  %s4 = inlined_call_operand.vmem [shape: s8[256,512], index: 4, kind: input, shape index: {}]
  %s5 = inlined_call_operand.vmem [shape: bf16[128,512], index: 5, kind: input, shape index: {}]
  %s6 = inlined_call_operand.vmem [shape: f32[1,512], index: 6, kind: input, shape index: {}]
  %s7 = inlined_call_operand.vmem [shape: bf16[512,128], index: 7, kind: input, shape index: {}]
  %s8 = inlined_call_operand.vmem [shape: f32[1,128], index: 8, kind: input, shape index: {}]
  %s9 = inlined_call_operand.vmem [shape: bf16[128,512], index: 9, kind: input, shape index: {}]
  %s10 = inlined_call_operand.vmem [shape: f32[1,512], index: 10, kind: input, shape index: {}]
  %s11 = inlined_call_operand.hbm [shape: bf16[256,128], index: 11, kind: output, shape index: {0}]
  %s12 = inlined_call_operand.hbm [shape: f32[256,128], index: 12, kind: output, shape index: {1}]
  %s13 = inlined_call_operand.hbm [shape: f32[256,512], index: 13, kind: output, shape index: {2}]
  %14 = xla_tuple %s11, %s12, %s13
  %s15 = sld [smem:[#allocation0]]
  $region200: #{block_dejavu_forward.7} parent=0
    _
  %s17 = ssub.s32 1, %s15
  %s18 = scalar_select 0, %s17, %s15
  $region1: #{block_dejavu_forward.7} parent=0
    #allocation5 [shape = 'u8[65536]{0}', space=vmem, size = 0x10000, scoped, tag = 'input window, operand 4']
    #allocation6 [shape = 'u8[131072]{0}', space=vmem, size = 0x20000, scoped, tag = 'input window, operand 5']
    #allocation7 [shape = 'u8[131072]{0}', space=vmem, size = 0x20000, scoped, tag = 'input window, operand 9']
    #allocation8 [shape = 'u8[65536]{0}', space=vmem, size = 0x10000, scoped, tag = 'output window, operand 0']
    #allocation9 [shape = 's32[2]{0}', space=sflag, size = 0x8, scoped, tag = 'scoped memory for block_dejavu_forward.7']
    #allocation10 [shape = 'u8[131072]{0}', space=vmem, size = 0x20000, scoped, tag = 'output window, operand 1']
    #allocation11 [shape = 's32[2]{0}', space=sflag, size = 0x8, scoped, tag = 'scoped memory for block_dejavu_forward.7']
    #allocation12 [shape = 'u8[262144]{0}', space=vmem, size = 0x40000, scoped, tag = 'output window, operand 2']
    %19 = vsyncpa [#allocation9], 0
    %s20 = scalar_lea.sflag [#allocation9], 1
    %21 = vsyncpa %s20, 0
    %22 = vsyncpa [#allocation11], 0
    %s23 = scalar_lea.sflag [#allocation11], 1
    %24 = vsyncpa %s23, 0
    loop: start=0, step=1, limit=6
    $region2: #{block_dejavu_forward.7} parent=1 // loop_pre_header
      _
    $region3: #{block_dejavu_forward.7} parent=1 // loop_header
      %s26 = sphi 0, %s30
      %p27 = scmp.ge.s32.totalorder %s26, 6
      %s33 = sphi 0, %s45
      %s34 = sphi 0, %s41
      %s35 = sphi 0, %s33
      %s36 = sphi 0, %s34
      %s37 = sphi 0, %s35
      %s38 = sphi 0, %s36
      %s48 = sphi 0, %s50
      %s51 = sphi 0, %s48
      %s52 = sphi 0, %s51
      %s68 = sphi 0, %s52
      %s74 = sphi 0, %s76
      %s77 = sphi 0, %s74
      %s78 = sphi 0, %s77
      %s94 = sphi 0, %s78
      %s98 = sphi 0, %s98
      %s100 = sphi 0, %s98
      %s101 = sphi 0, %s100
      %s115 = sphi 0, %s101
      %s119 = sphi 0, %s119
      %s121 = sphi 0, %s119
      %s122 = sphi 0, %s121
      %s136 = sphi 0, %s122
      %s144 = sphi 0, %s146
      %s147 = sphi 0, %s144
      %s148 = sphi 0, %s147
      %s164 = sphi 0, %s148
      %s170 = sphi 0, %s172
      %s173 = sphi 0, %s170
      %s174 = sphi 0, %s173
      %s190 = sphi 0, %s174
      %s196 = sphi 0, %s198
      %s199 = sphi 0, %s196
      %s200 = sphi 0, %s199
      %s216 = sphi 0, %s200
      %s222 = sphi 0, %s224
      %s225 = sphi 0, %s222
      %s226 = sphi 0, %s225
      %s242 = sphi 0, %s226
      %s246 = sphi 0, %s246
      %s248 = sphi 0, %s246
      %s249 = sphi 0, %s248
      %s263 = sphi 0, %s249
      %s269 = sphi 0, %s271
      %s272 = sphi 0, %s269
      %s273 = sphi 0, %s272
      %s289 = sphi 0, %s273
      %s295 = sphi 0, %s297
      %s298 = sphi 0, %s295
      %s299 = sphi 0, %s298
      %s315 = sphi 0, %s299
      %s321 = sphi 0, %s323
      %s324 = sphi 0, %s321
      %s325 = sphi 0, %s324
      %s341 = sphi 0, %s325
      %s347 = sphi 0, %s349
      %s350 = sphi 0, %s347
      %s351 = sphi 0, %s350
      %s367 = sphi 0, %s351
      %s375 = sphi 0, %s377
      %s378 = sphi 0, %s375
      %s379 = sphi 0, %s378
      %s395 = sphi 0, %s379
    $region4: #{block_dejavu_forward.7} parent=1 // loop_header_branch
      %29 = sbr.rel (%p27) target = $region8
    $region5: #{block_dejavu_forward.7} parent=1 // loop_body
      %s31 = ssub.s32 %s26, 1
      %s32 = ssub.s32 %s26, 2
      %s39 = sadd.s32 1, %s34
      %p40 = scmp.ge.s32.totalorder %s39, 2
      %s41 = scalar_select %p40, 0, %s39
      %s42 = sadd.s32 1, %s33
      %s43 = scalar_select %p40, %s42, %s33
      %p44 = scmp.ge.s32.totalorder %s43, 2
      %s45 = scalar_select %p44, 0, %s43
      %s46 = ssub.s32 %s33, %s45
      %p47 = scmp.eq.s32.totalorder %s46, 0
      %s49 = sadd.s32 %s48, 1
      %s50 = scalar_select %p47, %s48, %s49
      %p53 = pneg %p47
      %p54 = scmp.eq.s32.totalorder %s26, 3
      %p55 = por %p53, %p54
      %p56 = scmp.ne.s32.totalorder %s48, %s51
      %p57 = scmp.eq.s32.totalorder %s26, 0
      %p58 = por %p56, %p57
      %p59 = scmp.ne.s32.totalorder %s48, %s51
      %p60 = scmp.eq.s32.totalorder %s31, 3
      %p61 = por %p59, %p60
      %p62 = scmp.ne.s32.totalorder %s51, %s52
      %p63 = scmp.eq.s32.totalorder %s31, 0
      %p64 = por %p62, %p63
      %p65 = scmp.ne.s32.totalorder %s51, %s52
      %p66 = scmp.eq.s32.totalorder %s32, 3
      %p67 = por %p65, %p66
      %p69 = scmp.ne.s32.totalorder %s52, %s68
      %p70 = scmp.eq.s32.totalorder %s32, 0
      %p71 = por %p69, %p70
      %s72 = ssub.s32 %s33, %s45
      %p73 = scmp.eq.s32.totalorder %s72, 0
      %s75 = sadd.s32 %s74, 1
      %s76 = scalar_select %p73, %s74, %s75
      %p79 = pneg %p73
      %p80 = scmp.eq.s32.totalorder %s26, 3
      %p81 = por %p79, %p80
      %p82 = scmp.ne.s32.totalorder %s74, %s77
      %p83 = scmp.eq.s32.totalorder %s26, 0
      %p84 = por %p82, %p83
      %p85 = scmp.ne.s32.totalorder %s74, %s77
      %p86 = scmp.eq.s32.totalorder %s31, 3
      %p87 = por %p85, %p86
      %p88 = scmp.ne.s32.totalorder %s77, %s78
      %p89 = scmp.eq.s32.totalorder %s31, 0
      %p90 = por %p88, %p89
      %p91 = scmp.ne.s32.totalorder %s77, %s78
      %p92 = scmp.eq.s32.totalorder %s32, 3
      %p93 = por %p91, %p92
      %p95 = scmp.ne.s32.totalorder %s78, %s94
      %p96 = scmp.eq.s32.totalorder %s32, 0
      %p97 = por %p95, %p96
      %s99 = sadd.s32 %s98, 1
      %p102 = scmp.eq.s32.totalorder %s26, 3
      %p103 = scmp.ne.s32.totalorder %s98, %s100
      %p104 = scmp.eq.s32.totalorder %s26, 0
      %p105 = por %p103, %p104
      %p106 = scmp.ne.s32.totalorder %s98, %s100
      %p107 = scmp.eq.s32.totalorder %s31, 3
      %p108 = por %p106, %p107
      %p109 = scmp.ne.s32.totalorder %s100, %s101
      %p110 = scmp.eq.s32.totalorder %s31, 0
      %p111 = por %p109, %p110
      %p112 = scmp.ne.s32.totalorder %s100, %s101
      %p113 = scmp.eq.s32.totalorder %s32, 3
      %p114 = por %p112, %p113
      %p116 = scmp.ne.s32.totalorder %s101, %s115
      %p117 = scmp.eq.s32.totalorder %s32, 0
      %p118 = por %p116, %p117
      %s120 = sadd.s32 %s119, 1
      %p123 = scmp.eq.s32.totalorder %s26, 3
      %p124 = scmp.ne.s32.totalorder %s119, %s121
      %p125 = scmp.eq.s32.totalorder %s26, 0
      %p126 = por %p124, %p125
      %p127 = scmp.ne.s32.totalorder %s119, %s121
      %p128 = scmp.eq.s32.totalorder %s31, 3
      %p129 = por %p127, %p128
      %p130 = scmp.ne.s32.totalorder %s121, %s122
      %p131 = scmp.eq.s32.totalorder %s31, 0
      %p132 = por %p130, %p131
      %p133 = scmp.ne.s32.totalorder %s121, %s122
      %p134 = scmp.eq.s32.totalorder %s32, 3
      %p135 = por %p133, %p134
      %p137 = scmp.ne.s32.totalorder %s122, %s136
      %p138 = scmp.eq.s32.totalorder %s32, 0
      %p139 = por %p137, %p138
      %s140 = ssub.s32 %s33, %s45
      %s141 = ssub.s32 %s34, %s41
      %s142 = sor.u32 %s140, %s141
      %p143 = scmp.eq.s32.totalorder %s142, 0
      %s145 = sadd.s32 %s144, 1
      %s146 = scalar_select %p143, %s144, %s145
      %p149 = pneg %p143
      %p150 = scmp.eq.s32.totalorder %s26, 3
      %p151 = por %p149, %p150
      %p152 = scmp.ne.s32.totalorder %s144, %s147
      %p153 = scmp.eq.s32.totalorder %s26, 0
      %p154 = por %p152, %p153
      %p155 = scmp.ne.s32.totalorder %s144, %s147
      %p156 = scmp.eq.s32.totalorder %s31, 3
      %p157 = por %p155, %p156
      %p158 = scmp.ne.s32.totalorder %s147, %s148
      %p159 = scmp.eq.s32.totalorder %s31, 0
      %p160 = por %p158, %p159
      %p161 = scmp.ne.s32.totalorder %s147, %s148
      %p162 = scmp.eq.s32.totalorder %s32, 3
      %p163 = por %p161, %p162
      %p165 = scmp.ne.s32.totalorder %s148, %s164
      %p166 = scmp.eq.s32.totalorder %s32, 0
      %p167 = por %p165, %p166
      %s168 = ssub.s32 %s34, %s41
      %p169 = scmp.eq.s32.totalorder %s168, 0
      %s171 = sadd.s32 %s170, 1
      %s172 = scalar_select %p169, %s170, %s171
      %p175 = pneg %p169
      %p176 = scmp.eq.s32.totalorder %s26, 3
      %p177 = por %p175, %p176
      %p178 = scmp.ne.s32.totalorder %s170, %s173
      %p179 = scmp.eq.s32.totalorder %s26, 0
      %p180 = por %p178, %p179
      %p181 = scmp.ne.s32.totalorder %s170, %s173
      %p182 = scmp.eq.s32.totalorder %s31, 3
      %p183 = por %p181, %p182
      %p184 = scmp.ne.s32.totalorder %s173, %s174
      %p185 = scmp.eq.s32.totalorder %s31, 0
      %p186 = por %p184, %p185
      %p187 = scmp.ne.s32.totalorder %s173, %s174
      %p188 = scmp.eq.s32.totalorder %s32, 3
      %p189 = por %p187, %p188
      %p191 = scmp.ne.s32.totalorder %s174, %s190
      %p192 = scmp.eq.s32.totalorder %s32, 0
      %p193 = por %p191, %p192
      %s194 = ssub.s32 %s34, %s41
      %p195 = scmp.eq.s32.totalorder %s194, 0
      %s197 = sadd.s32 %s196, 1
      %s198 = scalar_select %p195, %s196, %s197
      %p201 = pneg %p195
      %p202 = scmp.eq.s32.totalorder %s26, 3
      %p203 = por %p201, %p202
      %p204 = scmp.ne.s32.totalorder %s196, %s199
      %p205 = scmp.eq.s32.totalorder %s26, 0
      %p206 = por %p204, %p205
      %p207 = scmp.ne.s32.totalorder %s196, %s199
      %p208 = scmp.eq.s32.totalorder %s31, 3
      %p209 = por %p207, %p208
      %p210 = scmp.ne.s32.totalorder %s199, %s200
      %p211 = scmp.eq.s32.totalorder %s31, 0
      %p212 = por %p210, %p211
      %p213 = scmp.ne.s32.totalorder %s199, %s200
      %p214 = scmp.eq.s32.totalorder %s32, 3
      %p215 = por %p213, %p214
      %p217 = scmp.ne.s32.totalorder %s200, %s216
      %p218 = scmp.eq.s32.totalorder %s32, 0
      %p219 = por %p217, %p218
      %s220 = ssub.s32 %s34, %s41
      %p221 = scmp.eq.s32.totalorder %s220, 0
      %s223 = sadd.s32 %s222, 1
      %s224 = scalar_select %p221, %s222, %s223
      %p227 = pneg %p221
      %p228 = scmp.eq.s32.totalorder %s26, 3
      %p229 = por %p227, %p228
      %p230 = scmp.ne.s32.totalorder %s222, %s225
      %p231 = scmp.eq.s32.totalorder %s26, 0
      %p232 = por %p230, %p231
      %p233 = scmp.ne.s32.totalorder %s222, %s225
      %p234 = scmp.eq.s32.totalorder %s31, 3
      %p235 = por %p233, %p234
      %p236 = scmp.ne.s32.totalorder %s225, %s226
      %p237 = scmp.eq.s32.totalorder %s31, 0
      %p238 = por %p236, %p237
      %p239 = scmp.ne.s32.totalorder %s225, %s226
      %p240 = scmp.eq.s32.totalorder %s32, 3
      %p241 = por %p239, %p240
      %p243 = scmp.ne.s32.totalorder %s226, %s242
      %p244 = scmp.eq.s32.totalorder %s32, 0
      %p245 = por %p243, %p244
      %s247 = sadd.s32 %s246, 1
      %p250 = scmp.eq.s32.totalorder %s26, 3
      %p251 = scmp.ne.s32.totalorder %s246, %s248
      %p252 = scmp.eq.s32.totalorder %s26, 0
      %p253 = por %p251, %p252
      %p254 = scmp.ne.s32.totalorder %s246, %s248
      %p255 = scmp.eq.s32.totalorder %s31, 3
      %p256 = por %p254, %p255
      %p257 = scmp.ne.s32.totalorder %s248, %s249
      %p258 = scmp.eq.s32.totalorder %s31, 0
      %p259 = por %p257, %p258
      %p260 = scmp.ne.s32.totalorder %s248, %s249
      %p261 = scmp.eq.s32.totalorder %s32, 3
      %p262 = por %p260, %p261
      %p264 = scmp.ne.s32.totalorder %s249, %s263
      %p265 = scmp.eq.s32.totalorder %s32, 0
      %p266 = por %p264, %p265
      %s267 = ssub.s32 %s34, %s41
      %p268 = scmp.eq.s32.totalorder %s267, 0
      %s270 = sadd.s32 %s269, 1
      %s271 = scalar_select %p268, %s269, %s270
      %p274 = pneg %p268
      %p275 = scmp.eq.s32.totalorder %s26, 3
      %p276 = por %p274, %p275
      %p277 = scmp.ne.s32.totalorder %s269, %s272
      %p278 = scmp.eq.s32.totalorder %s26, 0
      %p279 = por %p277, %p278
      %p280 = scmp.ne.s32.totalorder %s269, %s272
      %p281 = scmp.eq.s32.totalorder %s31, 3
      %p282 = por %p280, %p281
      %p283 = scmp.ne.s32.totalorder %s272, %s273
      %p284 = scmp.eq.s32.totalorder %s31, 0
      %p285 = por %p283, %p284
      %p286 = scmp.ne.s32.totalorder %s272, %s273
      %p287 = scmp.eq.s32.totalorder %s32, 3
      %p288 = por %p286, %p287
      %p290 = scmp.ne.s32.totalorder %s273, %s289
      %p291 = scmp.eq.s32.totalorder %s32, 0
      %p292 = por %p290, %p291
      %s293 = ssub.s32 %s34, %s41
      %p294 = scmp.eq.s32.totalorder %s293, 0
      %s296 = sadd.s32 %s295, 1
      %s297 = scalar_select %p294, %s295, %s296
      %p300 = pneg %p294
      %p301 = scmp.eq.s32.totalorder %s26, 3
      %p302 = por %p300, %p301
      %p303 = scmp.ne.s32.totalorder %s295, %s298
      %p304 = scmp.eq.s32.totalorder %s26, 0
      %p305 = por %p303, %p304
      %p306 = scmp.ne.s32.totalorder %s295, %s298
      %p307 = scmp.eq.s32.totalorder %s31, 3
      %p308 = por %p306, %p307
      %p309 = scmp.ne.s32.totalorder %s298, %s299
      %p310 = scmp.eq.s32.totalorder %s31, 0
      %p311 = por %p309, %p310
      %p312 = scmp.ne.s32.totalorder %s298, %s299
      %p313 = scmp.eq.s32.totalorder %s32, 3
      %p314 = por %p312, %p313
      %p316 = scmp.ne.s32.totalorder %s299, %s315
      %p317 = scmp.eq.s32.totalorder %s32, 0
      %p318 = por %p316, %p317
      %s319 = ssub.s32 %s33, %s45
      %p320 = scmp.eq.s32.totalorder %s319, 0
      %s322 = sadd.s32 %s321, 1
      %s323 = scalar_select %p320, %s321, %s322
      %p326 = pneg %p320
      %p327 = scmp.eq.s32.totalorder %s26, 3
      %p328 = por %p326, %p327
      %p329 = scmp.ne.s32.totalorder %s321, %s324
      %p330 = scmp.eq.s32.totalorder %s26, 0
      %p331 = por %p329, %p330
      %p332 = scmp.ne.s32.totalorder %s321, %s324
      %p333 = scmp.eq.s32.totalorder %s31, 3
      %p334 = por %p332, %p333
      %p335 = scmp.ne.s32.totalorder %s324, %s325
      %p336 = scmp.eq.s32.totalorder %s31, 0
      %p337 = por %p335, %p336
      %p338 = scmp.ne.s32.totalorder %s324, %s325
      %p339 = scmp.eq.s32.totalorder %s32, 3
      %p340 = por %p338, %p339
      %p342 = scmp.ne.s32.totalorder %s325, %s341
      %p343 = scmp.eq.s32.totalorder %s32, 0
      %p344 = por %p342, %p343
      %s345 = ssub.s32 %s33, %s45
      %p346 = scmp.eq.s32.totalorder %s345, 0
      %s348 = sadd.s32 %s347, 1
      %s349 = scalar_select %p346, %s347, %s348
      %p352 = pneg %p346
      %p353 = scmp.eq.s32.totalorder %s26, 3
      %p354 = por %p352, %p353
      %p355 = scmp.ne.s32.totalorder %s347, %s350
      %p356 = scmp.eq.s32.totalorder %s26, 0
      %p357 = por %p355, %p356
      %p358 = scmp.ne.s32.totalorder %s347, %s350
      %p359 = scmp.eq.s32.totalorder %s31, 3
      %p360 = por %p358, %p359
      %p361 = scmp.ne.s32.totalorder %s350, %s351
      %p362 = scmp.eq.s32.totalorder %s31, 0
      %p363 = por %p361, %p362
      %p364 = scmp.ne.s32.totalorder %s350, %s351
      %p365 = scmp.eq.s32.totalorder %s32, 3
      %p366 = por %p364, %p365
      %p368 = scmp.ne.s32.totalorder %s351, %s367
      %p369 = scmp.eq.s32.totalorder %s32, 0
      %p370 = por %p368, %p369
      %s371 = ssub.s32 %s33, %s45
      %s372 = ssub.s32 %s34, %s41
      %s373 = sor.u32 %s371, %s372
      %p374 = scmp.eq.s32.totalorder %s373, 0
      %s376 = sadd.s32 %s375, 1
      %s377 = scalar_select %p374, %s375, %s376
      %p380 = pneg %p374
      %p381 = scmp.eq.s32.totalorder %s26, 3
      %p382 = por %p380, %p381
      %p383 = scmp.ne.s32.totalorder %s375, %s378
      %p384 = scmp.eq.s32.totalorder %s26, 0
      %p385 = por %p383, %p384
      %p386 = scmp.ne.s32.totalorder %s375, %s378
      %p387 = scmp.eq.s32.totalorder %s31, 3
      %p388 = por %p386, %p387
      %p389 = scmp.ne.s32.totalorder %s378, %s379
      %p390 = scmp.eq.s32.totalorder %s31, 0
      %p391 = por %p389, %p390
      %p392 = scmp.ne.s32.totalorder %s378, %s379
      %p393 = scmp.eq.s32.totalorder %s32, 3
      %p394 = por %p392, %p393
      %p396 = scmp.ne.s32.totalorder %s379, %s395
      %p397 = scmp.eq.s32.totalorder %s32, 0
      %p398 = por %p396, %p397
      %p399 = scmp.le.s32.totalorder 1, %s26
      %p400 = scmp.lt.s32.totalorder %s26, 5
      %p401 = pnand %p399, %p400
      %p402 = pneg %p401
      // Predicated region
      $region9: #{block_dejavu_forward.7} parent=5 // pred_check
        _
      $region10: #{block_dejavu_forward.7} parent=5 // pred_check_branch
        %404 = sbr.rel (%p401) target = $region12
      $region11: #{block_dejavu_forward.7} parent=5 // pred_region
        %s405 = ssub.s32 %s26, 1
        // Predicated region
        $region13: #{block_dejavu_forward.7} parent=11 // pred_check
          %p406 = pneg %p111
        $region14: #{block_dejavu_forward.7} parent=11 // pred_check_branch
          %408 = sbr.rel (%p406) target = $region16
        $region15: #{block_dejavu_forward.7} parent=11 // pred_region
          _
        $region16: #{block_dejavu_forward.7} parent=11 // pred_fallthru
          _
        // Predicated region
        $region17: #{block_dejavu_forward.7} parent=11 // pred_check
          %p409 = pneg %p132
        $region18: #{block_dejavu_forward.7} parent=11 // pred_check_branch
          %411 = sbr.rel (%p409) target = $region20
        $region19: #{block_dejavu_forward.7} parent=11 // pred_region
          _
        $region20: #{block_dejavu_forward.7} parent=11 // pred_fallthru
          _
        // Predicated region
        $region21: #{block_dejavu_forward.7} parent=11 // pred_check
          %p412 = pneg %p259
        $region22: #{block_dejavu_forward.7} parent=11 // pred_check_branch
          %414 = sbr.rel (%p412) target = $region24
        $region23: #{block_dejavu_forward.7} parent=11 // pred_region
          _
        $region24: #{block_dejavu_forward.7} parent=11 // pred_fallthru
          _
      $region12: #{block_dejavu_forward.7} parent=5 // pred_fallthru
        _
      %p415 = scmp.lt.s32.totalorder %s26, 4
      // Predicated region
      $region25: #{block_dejavu_forward.7} parent=5 // pred_check
        %p416 = pneg %p415
      $region26: #{block_dejavu_forward.7} parent=5 // pred_check_branch
        %418 = sbr.rel (%p416) target = $region28
      $region27: #{block_dejavu_forward.7} parent=5 // pred_region
        // Predicated region
        $region29: #{block_dejavu_forward.7} parent=27 // pred_check
          %p419 = pneg %p58
        $region30: #{block_dejavu_forward.7} parent=27 // pred_check_branch
          %421 = sbr.rel (%p419) target = $region32
        $region31: #{block_dejavu_forward.7} parent=27 // pred_region
          %s422 = smul.u32 16, %s33
          %p423 = scmp.lt.s32.totalorder %s422, 31
          %s424 = scalar_select %p423, %s422, 31
          %s425 = smul.addr %s424, 4
          %s426 = scalar_lea.vmem %s0, %s425
          %s427 = smul.u32 16, %s33
        $region32: #{block_dejavu_forward.7} parent=27 // pred_fallthru
          _
        // Predicated region
        $region33: #{block_dejavu_forward.7} parent=27 // pred_check
          %p428 = pneg %p84
        $region34: #{block_dejavu_forward.7} parent=27 // pred_check_branch
          %430 = sbr.rel (%p428) target = $region36
        $region35: #{block_dejavu_forward.7} parent=27 // pred_region
          %s431 = smul.u32 16, %s33
          %p432 = scmp.lt.s32.totalorder %s431, 31
          %s433 = scalar_select %p432, %s431, 31
          %s434 = smul.addr %s433, 8
          %s435 = scalar_lea.vmem %s1, %s434
          %s436 = smul.u32 16, %s33
        $region36: #{block_dejavu_forward.7} parent=27 // pred_fallthru
          _
        // Predicated region
        $region37: #{block_dejavu_forward.7} parent=27 // pred_check
          %p437 = pneg %p154
        $region38: #{block_dejavu_forward.7} parent=27 // pred_check_branch
          %439 = sbr.rel (%p437) target = $region40
        $region39: #{block_dejavu_forward.7} parent=27 // pred_region
          %s440 = sand.u32 %s144, 1
          %s441 = sand.u32 %s144, 1
          %s442 = smul.addr %s441, 64
          %s443 = scalar_lea.vmem [#allocation5], %s442
          %s444 = smul.u32 4, %s33
          %s445 = smul.u32 2, %s34
          %s446 = smul.addr %s444, 4
          %s447 = sadd.s32 %s445, %s446
          %s448 = smul.addr %s447, 8
          %s449 = scalar_lea.vmem %s4, %s448
          // Predicated region
          $region41: #{block_dejavu_forward.7} parent=39 // pred_check
            _
          $region42: #{block_dejavu_forward.7} parent=39 // pred_check_branch
            %451 = sbr.rel (0) target = $region44
          $region43: #{block_dejavu_forward.7} parent=39 // pred_region
            // Predicated region
            $region45: #{block_dejavu_forward.7} parent=43 // pred_check
              _
            $region46: #{block_dejavu_forward.7} parent=43 // pred_check_branch
              %453 = sbr.rel (0) target = $region48
            $region47: #{block_dejavu_forward.7} parent=43 // pred_region
              loop: start=0, step=1, limit=1
              $region49: #{block_dejavu_forward.7} parent=47 // loop_pre_header
                _
              $region50: #{block_dejavu_forward.7} parent=47 // loop_header
                %s455 = sphi 0, %s459
                %p456 = scmp.ge.s32.totalorder %s455, 1
                %s460 = sphi %s449, %s449
                %s461 = sphi %s443, %s443
              $region51: #{block_dejavu_forward.7} parent=47 // loop_header_branch
                %458 = sbr.rel (%p456) target = $region55
              $region52: #{block_dejavu_forward.7} parent=47 // loop_body
                %v462 = vld [vmem:[%s460] sm:$0xff]
                %463 = vst [vmem:[%s461] sm:$0xff] %v462
                %v464 = vld [vmem:[%s460 + $0x8] sm:$0xff]
                %465 = vst [vmem:[%s461 + $0x8] sm:$0xff] %v464
                %v466 = vld [vmem:[%s460 + $0x20] sm:$0xff]
                %467 = vst [vmem:[%s461 + $0x10] sm:$0xff] %v466
                %v468 = vld [vmem:[%s460 + $0x28] sm:$0xff]
                %469 = vst [vmem:[%s461 + $0x18] sm:$0xff] %v468
                %v470 = vld [vmem:[%s460 + $0x40] sm:$0xff]
                %471 = vst [vmem:[%s461 + $0x20] sm:$0xff] %v470
                %v472 = vld [vmem:[%s460 + $0x48] sm:$0xff]
                %473 = vst [vmem:[%s461 + $0x28] sm:$0xff] %v472
                %v474 = vld [vmem:[%s460 + $0x60] sm:$0xff]
                %475 = vst [vmem:[%s461 + $0x30] sm:$0xff] %v474
                %v476 = vld [vmem:[%s460 + $0x68] sm:$0xff]
                %477 = vst [vmem:[%s461 + $0x38] sm:$0xff] %v476
              $region53: #{block_dejavu_forward.7} parent=47 // loop_footer
                %s459 = sadd.s32 1, %s455
              $region54: #{block_dejavu_forward.7} parent=47 // loop_footer_branch
                %454 = sbr.rel target = $region50
              $region55: #{block_dejavu_forward.7} parent=47 // loop_exit
                _
            $region48: #{block_dejavu_forward.7} parent=43 // pred_fallthru
              _
            // Predicated region
            $region56: #{block_dejavu_forward.7} parent=43 // pred_check
              _
            $region57: #{block_dejavu_forward.7} parent=43 // pred_check_branch
              %479 = sbr.rel target = $region59
            $region58: #{block_dejavu_forward.7} parent=43 // pred_region
              _
            $region59: #{block_dejavu_forward.7} parent=43 // pred_fallthru
              _
          $region44: #{block_dejavu_forward.7} parent=39 // pred_fallthru
            _
          %480 = vnop
        $region40: #{block_dejavu_forward.7} parent=27 // pred_fallthru
          _
        // Predicated region
        $region60: #{block_dejavu_forward.7} parent=27 // pred_check
          %p481 = pneg %p180
        $region61: #{block_dejavu_forward.7} parent=27 // pred_check_branch
          %483 = sbr.rel (%p481) target = $region63
        $region62: #{block_dejavu_forward.7} parent=27 // pred_region
          %s484 = sand.u32 %s170, 1
          %s485 = sand.u32 %s170, 1
          %s486 = smul.addr %s485, 128
          %s487 = scalar_lea.vmem [#allocation6], %s486
          %s488 = smul.u32 2, %s34
          %s489 = smul.addr %s488, 4
          %s490 = scalar_lea.vmem %s5, %s489
          // Predicated region
          $region64: #{block_dejavu_forward.7} parent=62 // pred_check
            _
          $region65: #{block_dejavu_forward.7} parent=62 // pred_check_branch
            %492 = sbr.rel (0) target = $region67
          $region66: #{block_dejavu_forward.7} parent=62 // pred_region
            // Predicated region
            $region68: #{block_dejavu_forward.7} parent=66 // pred_check
              _
            $region69: #{block_dejavu_forward.7} parent=66 // pred_check_branch
              %494 = sbr.rel (0) target = $region71
            $region70: #{block_dejavu_forward.7} parent=66 // pred_region
              // Predicated region
              $region83: #{block_dejavu_forward.7} parent=70 // pred_check
                _
              $region84: #{block_dejavu_forward.7} parent=70 // pred_check_branch
                %539 = sbr.rel (0) target = $region86
              $region85: #{block_dejavu_forward.7} parent=70 // pred_region
                loop: start=0, step=1, limit=1
                $region87: #{block_dejavu_forward.7} parent=85 // loop_pre_header
                  _
                $region88: #{block_dejavu_forward.7} parent=85 // loop_header
                  %s541 = sphi 0, %s545
                  %p542 = scmp.ge.s32.totalorder %s541, 1
                  %s546 = sphi %s490, %s490
                  %s547 = sphi %s487, %s487
                $region89: #{block_dejavu_forward.7} parent=85 // loop_header_branch
                  %544 = sbr.rel (%p542) target = $region93
                $region90: #{block_dejavu_forward.7} parent=85 // loop_body
                  %v548 = vld [vmem:[%s546] sm:$0xff]
                  %549 = vst [vmem:[%s547] sm:$0xff] %v548
                  %v550 = vld [vmem:[%s546 + $0x10] sm:$0xff]
                  %551 = vst [vmem:[%s547 + $0x8] sm:$0xff] %v550
                  %v552 = vld [vmem:[%s546 + $0x20] sm:$0xff]
                  %553 = vst [vmem:[%s547 + $0x10] sm:$0xff] %v552
                  %v554 = vld [vmem:[%s546 + $0x30] sm:$0xff]
                  %555 = vst [vmem:[%s547 + $0x18] sm:$0xff] %v554
                  %v556 = vld [vmem:[%s546 + $0x40] sm:$0xff]
                  %557 = vst [vmem:[%s547 + $0x20] sm:$0xff] %v556
                  %v558 = vld [vmem:[%s546 + $0x50] sm:$0xff]
                  %559 = vst [vmem:[%s547 + $0x28] sm:$0xff] %v558
                  %v560 = vld [vmem:[%s546 + $0x60] sm:$0xff]
                  %561 = vst [vmem:[%s547 + $0x30] sm:$0xff] %v560
                  %v562 = vld [vmem:[%s546 + $0x70] sm:$0xff]
                  %563 = vst [vmem:[%s547 + $0x38] sm:$0xff] %v562
                  %v564 = vld [vmem:[%s546 + $0x80] sm:$0xff]
                  %565 = vst [vmem:[%s547 + $0x40] sm:$0xff] %v564
                  %v566 = vld [vmem:[%s546 + $0x90] sm:$0xff]
                  %567 = vst [vmem:[%s547 + $0x48] sm:$0xff] %v566
                  %v568 = vld [vmem:[%s546 + $0xa0] sm:$0xff]
                  %569 = vst [vmem:[%s547 + $0x50] sm:$0xff] %v568
                  %v570 = vld [vmem:[%s546 + $0xb0] sm:$0xff]
                  %571 = vst [vmem:[%s547 + $0x58] sm:$0xff] %v570
                  %v572 = vld [vmem:[%s546 + $0xc0] sm:$0xff]
                  %573 = vst [vmem:[%s547 + $0x60] sm:$0xff] %v572
                  %v574 = vld [vmem:[%s546 + $0xd0] sm:$0xff]
                  %575 = vst [vmem:[%s547 + $0x68] sm:$0xff] %v574
                  %v576 = vld [vmem:[%s546 + $0xe0] sm:$0xff]
                  %577 = vst [vmem:[%s547 + $0x70] sm:$0xff] %v576
                  %v578 = vld [vmem:[%s546 + $0xf0] sm:$0xff]
                  %579 = vst [vmem:[%s547 + $0x78] sm:$0xff] %v578
                $region91: #{block_dejavu_forward.7} parent=85 // loop_footer
                  %s545 = sadd.s32 1, %s541
                $region92: #{block_dejavu_forward.7} parent=85 // loop_footer_branch
                  %540 = sbr.rel target = $region88
                $region93: #{block_dejavu_forward.7} parent=85 // loop_exit
                  _
              $region86: #{block_dejavu_forward.7} parent=70 // pred_fallthru
                _
              // Predicated region
              $region94: #{block_dejavu_forward.7} parent=70 // pred_check
                _
              $region95: #{block_dejavu_forward.7} parent=70 // pred_check_branch
                %581 = sbr.rel target = $region97
              $region96: #{block_dejavu_forward.7} parent=70 // pred_region
                _
              $region97: #{block_dejavu_forward.7} parent=70 // pred_fallthru
                _
            $region71: #{block_dejavu_forward.7} parent=66 // pred_fallthru
              _
            // Predicated region
            $region72: #{block_dejavu_forward.7} parent=66 // pred_check
              _
            $region73: #{block_dejavu_forward.7} parent=66 // pred_check_branch
              %496 = sbr.rel target = $region75
            $region74: #{block_dejavu_forward.7} parent=66 // pred_region
              loop: start=0, step=1, limit=1
              $region76: #{block_dejavu_forward.7} parent=74 // loop_pre_header
                _
              $region77: #{block_dejavu_forward.7} parent=74 // loop_header
                %s499 = sphi 0, %s503
                %p500 = scmp.ge.s32.totalorder %s499, 1
                %s504 = sphi %s490, %s490
                %s505 = sphi %s487, %s487
              $region78: #{block_dejavu_forward.7} parent=74 // loop_header_branch
                %502 = sbr.rel (%p500) target = $region82
              $region79: #{block_dejavu_forward.7} parent=74 // loop_body
                %v506 = vld [vmem:[%s504] sm:$0xff]
                %507 = vst [vmem:[%s505] sm:$0xff] %v506
                %v508 = vld [vmem:[%s504 + $0x10] sm:$0xff]
                %509 = vst [vmem:[%s505 + $0x8] sm:$0xff] %v508
                %v510 = vld [vmem:[%s504 + $0x20] sm:$0xff]
                %511 = vst [vmem:[%s505 + $0x10] sm:$0xff] %v510
                %v512 = vld [vmem:[%s504 + $0x30] sm:$0xff]
                %513 = vst [vmem:[%s505 + $0x18] sm:$0xff] %v512
                %v514 = vld [vmem:[%s504 + $0x40] sm:$0xff]
                %515 = vst [vmem:[%s505 + $0x20] sm:$0xff] %v514
                %v516 = vld [vmem:[%s504 + $0x50] sm:$0xff]
                %517 = vst [vmem:[%s505 + $0x28] sm:$0xff] %v516
                %v518 = vld [vmem:[%s504 + $0x60] sm:$0xff]
                %519 = vst [vmem:[%s505 + $0x30] sm:$0xff] %v518
                %v520 = vld [vmem:[%s504 + $0x70] sm:$0xff]
                %521 = vst [vmem:[%s505 + $0x38] sm:$0xff] %v520
                %v522 = vld [vmem:[%s504 + $0x80] sm:$0xff]
                %523 = vst [vmem:[%s505 + $0x40] sm:$0xff] %v522
                %v524 = vld [vmem:[%s504 + $0x90] sm:$0xff]
                %525 = vst [vmem:[%s505 + $0x48] sm:$0xff] %v524
                %v526 = vld [vmem:[%s504 + $0xa0] sm:$0xff]
                %527 = vst [vmem:[%s505 + $0x50] sm:$0xff] %v526
                %v528 = vld [vmem:[%s504 + $0xb0] sm:$0xff]
                %529 = vst [vmem:[%s505 + $0x58] sm:$0xff] %v528
                %v530 = vld [vmem:[%s504 + $0xc0] sm:$0xff]
                %531 = vst [vmem:[%s505 + $0x60] sm:$0xff] %v530
                %v532 = vld [vmem:[%s504 + $0xd0] sm:$0xff]
                %533 = vst [vmem:[%s505 + $0x68] sm:$0xff] %v532
                %v534 = vld [vmem:[%s504 + $0xe0] sm:$0xff]
                %535 = vst [vmem:[%s505 + $0x70] sm:$0xff] %v534
                %v536 = vld [vmem:[%s504 + $0xf0] sm:$0xff]
                %537 = vst [vmem:[%s505 + $0x78] sm:$0xff] %v536
              $region80: #{block_dejavu_forward.7} parent=74 // loop_footer
                %s503 = sadd.s32 1, %s499
              $region81: #{block_dejavu_forward.7} parent=74 // loop_footer_branch
                %498 = sbr.rel target = $region77
              $region82: #{block_dejavu_forward.7} parent=74 // loop_exit
                _
            $region75: #{block_dejavu_forward.7} parent=66 // pred_fallthru
              _
          $region67: #{block_dejavu_forward.7} parent=62 // pred_fallthru
            _
          %582 = vnop
        $region63: #{block_dejavu_forward.7} parent=27 // pred_fallthru
          _
        // Predicated region
        $region98: #{block_dejavu_forward.7} parent=27 // pred_check
          %p583 = pneg %p206
        $region99: #{block_dejavu_forward.7} parent=27 // pred_check_branch
          %585 = sbr.rel (%p583) target = $region101
        $region100: #{block_dejavu_forward.7} parent=27 // pred_region
          %s586 = smul.u32 2, %s34
          %p587 = scmp.lt.s32.totalorder %s586, 3
          %s588 = scalar_select %p587, %s586, 3
          %s589 = scalar_lea.vmem %s6, %s588
          %s590 = smul.u32 2, %s34
        $region101: #{block_dejavu_forward.7} parent=27 // pred_fallthru
          _
        // Predicated region
        $region102: #{block_dejavu_forward.7} parent=27 // pred_check
          %p591 = pneg %p232
        $region103: #{block_dejavu_forward.7} parent=27 // pred_check_branch
          %593 = sbr.rel (%p591) target = $region105
        $region104: #{block_dejavu_forward.7} parent=27 // pred_region
          %s594 = smul.u32 32, %s34
          %p595 = scmp.lt.s32.totalorder %s594, 63
          %s596 = scalar_select %p595, %s594, 63
          %s597 = smul.addr %s596, 4
          %s598 = scalar_lea.vmem %s7, %s597
          %s599 = smul.u32 32, %s34
        $region105: #{block_dejavu_forward.7} parent=27 // pred_fallthru
          _
        // Predicated region
        $region106: #{block_dejavu_forward.7} parent=27 // pred_check
          %p600 = pneg %p279
        $region107: #{block_dejavu_forward.7} parent=27 // pred_check_branch
          %602 = sbr.rel (%p600) target = $region109
        $region108: #{block_dejavu_forward.7} parent=27 // pred_region
          %s603 = sand.u32 %s269, 1
          %s604 = sand.u32 %s269, 1
          %s605 = smul.addr %s604, 128
          %s606 = scalar_lea.vmem [#allocation7], %s605
          %s607 = smul.u32 2, %s34
          %s608 = smul.addr %s607, 4
          %s609 = scalar_lea.vmem %s9, %s608
          // Predicated region
          $region110: #{block_dejavu_forward.7} parent=108 // pred_check
            _
          $region111: #{block_dejavu_forward.7} parent=108 // pred_check_branch
            %611 = sbr.rel (0) target = $region113
          $region112: #{block_dejavu_forward.7} parent=108 // pred_region
            // Predicated region
            $region114: #{block_dejavu_forward.7} parent=112 // pred_check
              _
            $region115: #{block_dejavu_forward.7} parent=112 // pred_check_branch
              %613 = sbr.rel (0) target = $region117
            $region116: #{block_dejavu_forward.7} parent=112 // pred_region
              // Predicated region
              $region129: #{block_dejavu_forward.7} parent=116 // pred_check
                _
              $region130: #{block_dejavu_forward.7} parent=116 // pred_check_branch
                %658 = sbr.rel (0) target = $region132
              $region131: #{block_dejavu_forward.7} parent=116 // pred_region
                loop: start=0, step=1, limit=1
                $region133: #{block_dejavu_forward.7} parent=131 // loop_pre_header
                  _
                $region134: #{block_dejavu_forward.7} parent=131 // loop_header
                  %s660 = sphi 0, %s664
                  %p661 = scmp.ge.s32.totalorder %s660, 1
                  %s665 = sphi %s609, %s609
                  %s666 = sphi %s606, %s606
                $region135: #{block_dejavu_forward.7} parent=131 // loop_header_branch
                  %663 = sbr.rel (%p661) target = $region139
                $region136: #{block_dejavu_forward.7} parent=131 // loop_body
                  %v667 = vld [vmem:[%s665] sm:$0xff]
                  %668 = vst [vmem:[%s666] sm:$0xff] %v667
                  %v669 = vld [vmem:[%s665 + $0x10] sm:$0xff]
                  %670 = vst [vmem:[%s666 + $0x8] sm:$0xff] %v669
                  %v671 = vld [vmem:[%s665 + $0x20] sm:$0xff]
                  %672 = vst [vmem:[%s666 + $0x10] sm:$0xff] %v671
                  %v673 = vld [vmem:[%s665 + $0x30] sm:$0xff]
                  %674 = vst [vmem:[%s666 + $0x18] sm:$0xff] %v673
                  %v675 = vld [vmem:[%s665 + $0x40] sm:$0xff]
                  %676 = vst [vmem:[%s666 + $0x20] sm:$0xff] %v675
                  %v677 = vld [vmem:[%s665 + $0x50] sm:$0xff]
                  %678 = vst [vmem:[%s666 + $0x28] sm:$0xff] %v677
                  %v679 = vld [vmem:[%s665 + $0x60] sm:$0xff]
                  %680 = vst [vmem:[%s666 + $0x30] sm:$0xff] %v679
                  %v681 = vld [vmem:[%s665 + $0x70] sm:$0xff]
                  %682 = vst [vmem:[%s666 + $0x38] sm:$0xff] %v681
                  %v683 = vld [vmem:[%s665 + $0x80] sm:$0xff]
                  %684 = vst [vmem:[%s666 + $0x40] sm:$0xff] %v683
                  %v685 = vld [vmem:[%s665 + $0x90] sm:$0xff]
                  %686 = vst [vmem:[%s666 + $0x48] sm:$0xff] %v685
                  %v687 = vld [vmem:[%s665 + $0xa0] sm:$0xff]
                  %688 = vst [vmem:[%s666 + $0x50] sm:$0xff] %v687
                  %v689 = vld [vmem:[%s665 + $0xb0] sm:$0xff]
                  %690 = vst [vmem:[%s666 + $0x58] sm:$0xff] %v689
                  %v691 = vld [vmem:[%s665 + $0xc0] sm:$0xff]
                  %692 = vst [vmem:[%s666 + $0x60] sm:$0xff] %v691
                  %v693 = vld [vmem:[%s665 + $0xd0] sm:$0xff]
                  %694 = vst [vmem:[%s666 + $0x68] sm:$0xff] %v693
                  %v695 = vld [vmem:[%s665 + $0xe0] sm:$0xff]
                  %696 = vst [vmem:[%s666 + $0x70] sm:$0xff] %v695
                  %v697 = vld [vmem:[%s665 + $0xf0] sm:$0xff]
                  %698 = vst [vmem:[%s666 + $0x78] sm:$0xff] %v697
                $region137: #{block_dejavu_forward.7} parent=131 // loop_footer
                  %s664 = sadd.s32 1, %s660
                $region138: #{block_dejavu_forward.7} parent=131 // loop_footer_branch
                  %659 = sbr.rel target = $region134
                $region139: #{block_dejavu_forward.7} parent=131 // loop_exit
                  _
              $region132: #{block_dejavu_forward.7} parent=116 // pred_fallthru
                _
              // Predicated region
              $region140: #{block_dejavu_forward.7} parent=116 // pred_check
                _
              $region141: #{block_dejavu_forward.7} parent=116 // pred_check_branch
                %700 = sbr.rel target = $region143
              $region142: #{block_dejavu_forward.7} parent=116 // pred_region
                _
              $region143: #{block_dejavu_forward.7} parent=116 // pred_fallthru
                _
            $region117: #{block_dejavu_forward.7} parent=112 // pred_fallthru
              _
            // Predicated region
            $region118: #{block_dejavu_forward.7} parent=112 // pred_check
              _
            $region119: #{block_dejavu_forward.7} parent=112 // pred_check_branch
              %615 = sbr.rel target = $region121
            $region120: #{block_dejavu_forward.7} parent=112 // pred_region
              loop: start=0, step=1, limit=1
              $region122: #{block_dejavu_forward.7} parent=120 // loop_pre_header
                _
              $region123: #{block_dejavu_forward.7} parent=120 // loop_header
                %s618 = sphi 0, %s622
                %p619 = scmp.ge.s32.totalorder %s618, 1
                %s623 = sphi %s609, %s609
                %s624 = sphi %s606, %s606
              $region124: #{block_dejavu_forward.7} parent=120 // loop_header_branch
                %621 = sbr.rel (%p619) target = $region128
              $region125: #{block_dejavu_forward.7} parent=120 // loop_body
                %v625 = vld [vmem:[%s623] sm:$0xff]
                %626 = vst [vmem:[%s624] sm:$0xff] %v625
                %v627 = vld [vmem:[%s623 + $0x10] sm:$0xff]
                %628 = vst [vmem:[%s624 + $0x8] sm:$0xff] %v627
                %v629 = vld [vmem:[%s623 + $0x20] sm:$0xff]
                %630 = vst [vmem:[%s624 + $0x10] sm:$0xff] %v629
                %v631 = vld [vmem:[%s623 + $0x30] sm:$0xff]
                %632 = vst [vmem:[%s624 + $0x18] sm:$0xff] %v631
                %v633 = vld [vmem:[%s623 + $0x40] sm:$0xff]
                %634 = vst [vmem:[%s624 + $0x20] sm:$0xff] %v633
                %v635 = vld [vmem:[%s623 + $0x50] sm:$0xff]
                %636 = vst [vmem:[%s624 + $0x28] sm:$0xff] %v635
                %v637 = vld [vmem:[%s623 + $0x60] sm:$0xff]
                %638 = vst [vmem:[%s624 + $0x30] sm:$0xff] %v637
                %v639 = vld [vmem:[%s623 + $0x70] sm:$0xff]
                %640 = vst [vmem:[%s624 + $0x38] sm:$0xff] %v639
                %v641 = vld [vmem:[%s623 + $0x80] sm:$0xff]
                %642 = vst [vmem:[%s624 + $0x40] sm:$0xff] %v641
                %v643 = vld [vmem:[%s623 + $0x90] sm:$0xff]
                %644 = vst [vmem:[%s624 + $0x48] sm:$0xff] %v643
                %v645 = vld [vmem:[%s623 + $0xa0] sm:$0xff]
                %646 = vst [vmem:[%s624 + $0x50] sm:$0xff] %v645
                %v647 = vld [vmem:[%s623 + $0xb0] sm:$0xff]
                %648 = vst [vmem:[%s624 + $0x58] sm:$0xff] %v647
                %v649 = vld [vmem:[%s623 + $0xc0] sm:$0xff]
                %650 = vst [vmem:[%s624 + $0x60] sm:$0xff] %v649
                %v651 = vld [vmem:[%s623 + $0xd0] sm:$0xff]
                %652 = vst [vmem:[%s624 + $0x68] sm:$0xff] %v651
                %v653 = vld [vmem:[%s623 + $0xe0] sm:$0xff]
                %654 = vst [vmem:[%s624 + $0x70] sm:$0xff] %v653
                %v655 = vld [vmem:[%s623 + $0xf0] sm:$0xff]
                %656 = vst [vmem:[%s624 + $0x78] sm:$0xff] %v655
              $region126: #{block_dejavu_forward.7} parent=120 // loop_footer
                %s622 = sadd.s32 1, %s618
              $region127: #{block_dejavu_forward.7} parent=120 // loop_footer_branch
                %617 = sbr.rel target = $region123
              $region128: #{block_dejavu_forward.7} parent=120 // loop_exit
                _
            $region121: #{block_dejavu_forward.7} parent=112 // pred_fallthru
              _
          $region113: #{block_dejavu_forward.7} parent=108 // pred_fallthru
            _
          %701 = vnop
        $region109: #{block_dejavu_forward.7} parent=27 // pred_fallthru
          _
        // Predicated region
        $region144: #{block_dejavu_forward.7} parent=27 // pred_check
          %p702 = pneg %p305
        $region145: #{block_dejavu_forward.7} parent=27 // pred_check_branch
          %704 = sbr.rel (%p702) target = $region147
        $region146: #{block_dejavu_forward.7} parent=27 // pred_region
          %s705 = smul.u32 2, %s34
          %p706 = scmp.lt.s32.totalorder %s705, 3
          %s707 = scalar_select %p706, %s705, 3
          %s708 = scalar_lea.vmem %s10, %s707
          %s709 = smul.u32 2, %s34
        $region147: #{block_dejavu_forward.7} parent=27 // pred_fallthru
          _
      $region28: #{block_dejavu_forward.7} parent=5 // pred_fallthru
        _
      %p710 = scmp.le.s32.totalorder 1, %s26
      %p711 = scmp.lt.s32.totalorder %s26, 5
      %p712 = pnand %p710, %p711
      %p713 = pneg %p712
      // Predicated region
      $region148: #{block_dejavu_forward.7} parent=5 // pred_check
        _
      $region149: #{block_dejavu_forward.7} parent=5 // pred_check_branch
        %715 = sbr.rel (%p712) target = $region151
      $region150: #{block_dejavu_forward.7} parent=5 // pred_region
        %s716 = ssub.s32 %s26, 1
        %s717 = sand.u32 %s147, 1
        %s718 = sand.u32 %s147, 1
        %s719 = smul.addr %s718, 64
        %s720 = scalar_lea.vmem [#allocation5], %s719
        // Predicated region
        $region152: #{block_dejavu_forward.7} parent=150 // pred_check
          %p721 = pneg %p160
        $region153: #{block_dejavu_forward.7} parent=150 // pred_check_branch
          %723 = sbr.rel (%p721) target = $region155
        $region154: #{block_dejavu_forward.7} parent=150 // pred_region
          _
        $region155: #{block_dejavu_forward.7} parent=150 // pred_fallthru
          _
        %s724 = sand.u32 %s173, 1
        %s725 = sand.u32 %s173, 1
        %s726 = smul.addr %s725, 128
        %s727 = scalar_lea.vmem [#allocation6], %s726
        // Predicated region
        $region156: #{block_dejavu_forward.7} parent=150 // pred_check
          %p728 = pneg %p186
        $region157: #{block_dejavu_forward.7} parent=150 // pred_check_branch
          %730 = sbr.rel (%p728) target = $region159
        $region158: #{block_dejavu_forward.7} parent=150 // pred_region
          _
        $region159: #{block_dejavu_forward.7} parent=150 // pred_fallthru
          _
        %s731 = sand.u32 %s272, 1
        %s732 = sand.u32 %s272, 1
        %s733 = smul.addr %s732, 128
        %s734 = scalar_lea.vmem [#allocation7], %s733
        // Predicated region
        $region160: #{block_dejavu_forward.7} parent=150 // pred_check
          %p735 = pneg %p285
        $region161: #{block_dejavu_forward.7} parent=150 // pred_check_branch
          %737 = sbr.rel (%p735) target = $region163
        $region162: #{block_dejavu_forward.7} parent=150 // pred_region
          _
        $region163: #{block_dejavu_forward.7} parent=150 // pred_fallthru
          _
        %s738 = smul.u32 16, %s35
        %p739 = scmp.lt.s32.totalorder %s738, 31
        %s740 = scalar_select %p739, %s738, 31
        %s741 = smul.addr %s740, 4
        %s742 = scalar_lea.vmem %s0, %s741
        %p743 = pneg %p64
        %p744 = pneg %p61
        %s745 = smul.u32 16, %s35
        %p746 = scmp.lt.s32.totalorder %s745, 31
        %s747 = scalar_select %p746, %s745, 31
        %s748 = smul.addr %s747, 8
        %s749 = scalar_lea.vmem %s1, %s748
        %p750 = pneg %p90
        %p751 = pneg %p87
        %p752 = pneg %p111
        %p753 = pneg %p108
        %p754 = pneg %p132
        %p755 = pneg %p129
        %s756 = sand.u32 %s147, 1
        %s757 = sand.u32 %s147, 1
        %s758 = smul.addr %s757, 64
        %s759 = scalar_lea.vmem [#allocation5], %s758
        %p760 = pneg %p160
        %p761 = pneg %p157
        %s762 = sand.u32 %s173, 1
        %s763 = sand.u32 %s173, 1
        %s764 = smul.addr %s763, 128
        %s765 = scalar_lea.vmem [#allocation6], %s764
        %p766 = pneg %p186
        %p767 = pneg %p183
        %s768 = smul.u32 2, %s36
        %p769 = scmp.lt.s32.totalorder %s768, 3
        %s770 = scalar_select %p769, %s768, 3
        %s771 = scalar_lea.vmem %s6, %s770
        %p772 = pneg %p212
        %p773 = pneg %p209
        %s774 = smul.u32 32, %s36
        %p775 = scmp.lt.s32.totalorder %s774, 63
        %s776 = scalar_select %p775, %s774, 63
        %s777 = smul.addr %s776, 4
        %s778 = scalar_lea.vmem %s7, %s777
        %p779 = pneg %p238
        %p780 = pneg %p235
        %p781 = pneg %p259
        %p782 = pneg %p256
        %s783 = sand.u32 %s272, 1
        %s784 = sand.u32 %s272, 1
        %s785 = smul.addr %s784, 128
        %s786 = scalar_lea.vmem [#allocation7], %s785
        %p787 = pneg %p285
        %p788 = pneg %p282
        %s789 = smul.u32 2, %s36
        %p790 = scmp.lt.s32.totalorder %s789, 3
        %s791 = scalar_select %p790, %s789, 3
        %s792 = scalar_lea.vmem %s10, %s791
        %p793 = pneg %p311
        %p794 = pneg %p308
        %p795 = pneg %p337
        %p796 = pneg %p334
        %s797 = sand.u32 %s324, 1
        %s798 = scalar_lea.sflag [#allocation9], %s797
        %s799 = sand.u32 %s324, 1
        %s800 = smul.addr %s799, 64
        %s801 = scalar_lea.vmem [#allocation8], %s800
        %p802 = pneg %p363
        %p803 = pneg %p360
        %s804 = sand.u32 %s31, 1
        %s805 = scalar_lea.sflag [#allocation11], %s804
        %s806 = sand.u32 %s350, 1
        %s807 = smul.addr %s806, 128
        %s808 = scalar_lea.vmem [#allocation10], %s807
        %p809 = pneg %p391
        %p810 = pneg %p388
        %s811 = sand.u32 %s31, 1
        %s812 = scalar_lea.sflag [#allocation11], %s811
        %s813 = sand.u32 %s378, 1
        %s814 = smul.addr %s813, 256
        %s815 = scalar_lea.vmem [#allocation12], %s814
        %s816 = smul.u32 16, %s35
        %p817 = scmp.lt.s32.totalorder %s816, 31
        %s818 = scalar_select %p817, %s816, 31
        %s819 = smul.addr %s818, 4
        %s820 = scalar_lea.vmem %s0, %s819
        %s821 = smul.u32 16, %s35
        %s822 = smul.u32 16, %s35
        %p823 = scmp.lt.s32.totalorder %s822, 31
        %s824 = scalar_select %p823, %s822, 31
        %s825 = smul.addr %s824, 8
        %s826 = scalar_lea.vmem %s1, %s825
        %s827 = smul.u32 16, %s35
        %s828 = smul.u32 4, %s35
        %s829 = smul.u32 2, %s36
        %s830 = smul.u32 2, %s36
        %s831 = smul.u32 2, %s36
        %p832 = scmp.lt.s32.totalorder %s831, 3
        %s833 = scalar_select %p832, %s831, 3
        %s834 = scalar_lea.vmem %s6, %s833
        %s835 = smul.u32 2, %s36
        %s836 = smul.u32 32, %s36
        %p837 = scmp.lt.s32.totalorder %s836, 63
        %s838 = scalar_select %p837, %s836, 63
        %s839 = smul.addr %s838, 4
        %s840 = scalar_lea.vmem %s7, %s839
        %s841 = smul.u32 32, %s36
        %s842 = smul.u32 2, %s36
        %s843 = smul.u32 2, %s36
        %p844 = scmp.lt.s32.totalorder %s843, 3
        %s845 = scalar_select %p844, %s843, 3
        %s846 = scalar_lea.vmem %s10, %s845
        %s847 = smul.u32 2, %s36
        %s848 = smul.u32 16, %s35
        %s849 = smul.u32 16, %s35
        %s850 = smul.u32 16, %s35
        %s851 = smul.u32 2, %s36
        %p853 = scmp.eq.s32.totalorder %s36, 0
        // Predicated region
        $region164: #{block_dejavu_forward.7} parent=150 // pred_check
          %p854 = pneg %p853
        $region165: #{block_dejavu_forward.7} parent=150 // pred_check_branch
          %856 = sbr.rel (%p854) target = $region167
        $region166: #{block_dejavu_forward.7} parent=150 // pred_region
          %v857 = vld [vmem:[%s820] sm:$0xf]
          %v858 = vld [vmem:[%s820 + $0x4] sm:$0xf]
          %v859 = vld [vmem:[%s820 + $0x8] sm:$0xf]
          %v860 = vld [vmem:[%s820 + $0xc] sm:$0xf]
          %v861 = vld [vmem:[%s820 + $0x10] sm:$0xf]
          %v862 = vld [vmem:[%s820 + $0x14] sm:$0xf]
          %v863 = vld [vmem:[%s820 + $0x18] sm:$0xf]
          %v864 = vld [vmem:[%s820 + $0x1c] sm:$0xf]
          %v865 = vld [vmem:[%s820 + $0x20] sm:$0xf]
          %v866 = vld [vmem:[%s820 + $0x24] sm:$0xf]
          %v867 = vld [vmem:[%s820 + $0x28] sm:$0xf]
          %v868 = vld [vmem:[%s820 + $0x2c] sm:$0xf]
          %v869 = vld [vmem:[%s820 + $0x30] sm:$0xf]
          %v870 = vld [vmem:[%s820 + $0x34] sm:$0xf]
          %v871 = vld [vmem:[%s820 + $0x38] sm:$0xf]
          %v872 = vld [vmem:[%s820 + $0x3c] sm:$0xf]
          %v873 = vunpack.c.l.bf16 %v857
          %v874 = vunpack.c.l.bf16 %v858
          %v875 = vunpack.c.l.bf16 %v859
          %v876 = vunpack.c.l.bf16 %v860
          %v877 = vunpack.c.l.bf16 %v861
          %v878 = vunpack.c.l.bf16 %v862
          %v879 = vunpack.c.l.bf16 %v863
          %v880 = vunpack.c.l.bf16 %v864
          %v881 = vunpack.c.l.bf16 %v865
          %v882 = vunpack.c.l.bf16 %v866
          %v883 = vunpack.c.l.bf16 %v867
          %v884 = vunpack.c.l.bf16 %v868
          %v885 = vunpack.c.l.bf16 %v869
          %v886 = vunpack.c.l.bf16 %v870
          %v887 = vunpack.c.l.bf16 %v871
          %v888 = vunpack.c.l.bf16 %v872
          %v889 = vld [vmem:[%s826] sm:$0xff]
          %v890 = vld [vmem:[%s826 + $0x8] sm:$0xff]
          %v891 = vld [vmem:[%s826 + $0x10] sm:$0xff]
          %v892 = vld [vmem:[%s826 + $0x18] sm:$0xff]
          %v893 = vld [vmem:[%s826 + $0x20] sm:$0xff]
          %v894 = vld [vmem:[%s826 + $0x28] sm:$0xff]
          %v895 = vld [vmem:[%s826 + $0x30] sm:$0xff]
          %v896 = vld [vmem:[%s826 + $0x38] sm:$0xff]
          %v897 = vld [vmem:[%s826 + $0x40] sm:$0xff]
          %v898 = vld [vmem:[%s826 + $0x48] sm:$0xff]
          %v899 = vld [vmem:[%s826 + $0x50] sm:$0xff]
          %v900 = vld [vmem:[%s826 + $0x58] sm:$0xff]
          %v901 = vld [vmem:[%s826 + $0x60] sm:$0xff]
          %v902 = vld [vmem:[%s826 + $0x68] sm:$0xff]
          %v903 = vld [vmem:[%s826 + $0x70] sm:$0xff]
          %v904 = vld [vmem:[%s826 + $0x78] sm:$0xff]
          %v905 = vadd.f32 %v873, %v889
          %v906 = vadd.f32 %v874, %v890
          %v907 = vadd.f32 %v875, %v891
          %v908 = vadd.f32 %v876, %v892
          %v909 = vadd.f32 %v877, %v893
          %v910 = vadd.f32 %v878, %v894
          %v911 = vadd.f32 %v879, %v895
          %v912 = vadd.f32 %v880, %v896
          %v913 = vadd.f32 %v881, %v897
          %v914 = vadd.f32 %v882, %v898
          %v915 = vadd.f32 %v883, %v899
          %v916 = vadd.f32 %v884, %v900
          %v917 = vadd.f32 %v885, %v901
          %v918 = vadd.f32 %v886, %v902
          %v919 = vadd.f32 %v887, %v903
          %v920 = vadd.f32 %v888, %v904
          %921 = vst [vmem:[%s808] sm:$0xff] %v905
          %922 = vst [vmem:[%s808 + $0x8] sm:$0xff] %v906
          %923 = vst [vmem:[%s808 + $0x10] sm:$0xff] %v907
          %924 = vst [vmem:[%s808 + $0x18] sm:$0xff] %v908
          %925 = vst [vmem:[%s808 + $0x20] sm:$0xff] %v909
          %926 = vst [vmem:[%s808 + $0x28] sm:$0xff] %v910
          %927 = vst [vmem:[%s808 + $0x30] sm:$0xff] %v911
          %928 = vst [vmem:[%s808 + $0x38] sm:$0xff] %v912
          %929 = vst [vmem:[%s808 + $0x40] sm:$0xff] %v913
          %930 = vst [vmem:[%s808 + $0x48] sm:$0xff] %v914
          %931 = vst [vmem:[%s808 + $0x50] sm:$0xff] %v915
          %932 = vst [vmem:[%s808 + $0x58] sm:$0xff] %v916
          %933 = vst [vmem:[%s808 + $0x60] sm:$0xff] %v917
          %934 = vst [vmem:[%s808 + $0x68] sm:$0xff] %v918
          %935 = vst [vmem:[%s808 + $0x70] sm:$0xff] %v919
          %936 = vst [vmem:[%s808 + $0x78] sm:$0xff] %v920
          %v937 = vpack.c.bf16 %v906, %v905
          %v938 = vpack.c.bf16 %v908, %v907
          %v939 = vpack.c.bf16 %v910, %v909
          %v940 = vpack.c.bf16 %v912, %v911
          %v941 = vpack.c.bf16 %v914, %v913
          %v942 = vpack.c.bf16 %v916, %v915
          %v943 = vpack.c.bf16 %v918, %v917
          %v944 = vpack.c.bf16 %v920, %v919
          %945 = vst [vmem:[#allocation3] sm:$0xff] %v937
          %946 = vst [vmem:[#allocation3 + $0x8] sm:$0xff] %v938
          %947 = vst [vmem:[#allocation3 + $0x10] sm:$0xff] %v939
          %948 = vst [vmem:[#allocation3 + $0x18] sm:$0xff] %v940
          %949 = vst [vmem:[#allocation3 + $0x20] sm:$0xff] %v941
          %950 = vst [vmem:[#allocation3 + $0x28] sm:$0xff] %v942
          %951 = vst [vmem:[#allocation3 + $0x30] sm:$0xff] %v943
          %952 = vst [vmem:[#allocation3 + $0x38] sm:$0xff] %v944
          %953 = vadd.xlane.f32.xlu0 %v905
          %v954 = vpop.xlane.xlu0 %953
          %955 = vadd.xlane.f32.xlu0 %v906
          %v956 = vpop.xlane.xlu0 %955
          %957 = vadd.xlane.f32.xlu0 %v907
          %v958 = vpop.xlane.xlu0 %957
          %959 = vadd.xlane.f32.xlu0 %v908
          %v960 = vpop.xlane.xlu0 %959
          %961 = vadd.xlane.f32.xlu0 %v909
          %v962 = vpop.xlane.xlu0 %961
          %963 = vadd.xlane.f32.xlu0 %v910
          %v964 = vpop.xlane.xlu0 %963
          %965 = vadd.xlane.f32.xlu0 %v911
          %v966 = vpop.xlane.xlu0 %965
          %967 = vadd.xlane.f32.xlu0 %v912
          %v968 = vpop.xlane.xlu0 %967
          %969 = vadd.xlane.f32.xlu0 %v913
          %v970 = vpop.xlane.xlu0 %969
          %971 = vadd.xlane.f32.xlu0 %v914
          %v972 = vpop.xlane.xlu0 %971
          %973 = vadd.xlane.f32.xlu0 %v915
          %v974 = vpop.xlane.xlu0 %973
          %975 = vadd.xlane.f32.xlu0 %v916
          %v976 = vpop.xlane.xlu0 %975
          %977 = vadd.xlane.f32.xlu0 %v917
          %v978 = vpop.xlane.xlu0 %977
          %979 = vadd.xlane.f32.xlu0 %v918
          %v980 = vpop.xlane.xlu0 %979
          %981 = vadd.xlane.f32.xlu0 %v919
          %v982 = vpop.xlane.xlu0 %981
          %983 = vadd.xlane.f32.xlu0 %v920
          %v984 = vpop.xlane.xlu0 %983
          %v985 = vrcp.pop 128.0
          %v986 = vmul.f32 %v954, %v985
          %v987 = vmul.f32 %v956, %v985
          %v988 = vmul.f32 %v958, %v985
          %v989 = vmul.f32 %v960, %v985
          %v990 = vmul.f32 %v962, %v985
          %v991 = vmul.f32 %v964, %v985
          %v992 = vmul.f32 %v966, %v985
          %v993 = vmul.f32 %v968, %v985
          %v994 = vmul.f32 %v970, %v985
          %v995 = vmul.f32 %v972, %v985
          %v996 = vmul.f32 %v974, %v985
          %v997 = vmul.f32 %v976, %v985
          %v998 = vmul.f32 %v978, %v985
          %v999 = vmul.f32 %v980, %v985
          %v1000 = vmul.f32 %v982, %v985
          %v1001 = vmul.f32 %v984, %v985
          %v1002 = vsub.f32 %v905, %v986
          %v1003 = vsub.f32 %v906, %v987
          %v1004 = vsub.f32 %v907, %v988
          %v1005 = vsub.f32 %v908, %v989
          %v1006 = vsub.f32 %v909, %v990
          %v1007 = vsub.f32 %v910, %v991
          %v1008 = vsub.f32 %v911, %v992
          %v1009 = vsub.f32 %v912, %v993
          %v1010 = vsub.f32 %v913, %v994
          %v1011 = vsub.f32 %v914, %v995
          %v1012 = vsub.f32 %v915, %v996
          %v1013 = vsub.f32 %v916, %v997
          %v1014 = vsub.f32 %v917, %v998
          %v1015 = vsub.f32 %v918, %v999
          %v1016 = vsub.f32 %v919, %v1000
          %v1017 = vsub.f32 %v920, %v1001
          %v1018 = vmul.f32 %v1002, %v1002
          %v1019 = vmul.f32 %v1003, %v1003
          %v1020 = vmul.f32 %v1004, %v1004
          %v1021 = vmul.f32 %v1005, %v1005
          %v1022 = vmul.f32 %v1006, %v1006
          %v1023 = vmul.f32 %v1007, %v1007
          %v1024 = vmul.f32 %v1008, %v1008
          %v1025 = vmul.f32 %v1009, %v1009
          %v1026 = vmul.f32 %v1010, %v1010
          %v1027 = vmul.f32 %v1011, %v1011
          %v1028 = vmul.f32 %v1012, %v1012
          %v1029 = vmul.f32 %v1013, %v1013
          %v1030 = vmul.f32 %v1014, %v1014
          %v1031 = vmul.f32 %v1015, %v1015
          %v1032 = vmul.f32 %v1016, %v1016
          %v1033 = vmul.f32 %v1017, %v1017
          %1034 = vadd.xlane.f32.xlu0 %v1018
          %v1035 = vpop.xlane.xlu0 %1034
          %1036 = vadd.xlane.f32.xlu0 %v1019
          %v1037 = vpop.xlane.xlu0 %1036
          %1038 = vadd.xlane.f32.xlu0 %v1020
          %v1039 = vpop.xlane.xlu0 %1038
          %1040 = vadd.xlane.f32.xlu0 %v1021
          %v1041 = vpop.xlane.xlu0 %1040
          %1042 = vadd.xlane.f32.xlu0 %v1022
          %v1043 = vpop.xlane.xlu0 %1042
          %1044 = vadd.xlane.f32.xlu0 %v1023
          %v1045 = vpop.xlane.xlu0 %1044
          %1046 = vadd.xlane.f32.xlu0 %v1024
          %v1047 = vpop.xlane.xlu0 %1046
          %1048 = vadd.xlane.f32.xlu0 %v1025
          %v1049 = vpop.xlane.xlu0 %1048
          %1050 = vadd.xlane.f32.xlu0 %v1026
          %v1051 = vpop.xlane.xlu0 %1050
          %1052 = vadd.xlane.f32.xlu0 %v1027
          %v1053 = vpop.xlane.xlu0 %1052
          %1054 = vadd.xlane.f32.xlu0 %v1028
          %v1055 = vpop.xlane.xlu0 %1054
          %1056 = vadd.xlane.f32.xlu0 %v1029
          %v1057 = vpop.xlane.xlu0 %1056
          %1058 = vadd.xlane.f32.xlu0 %v1030
          %v1059 = vpop.xlane.xlu0 %1058
          %1060 = vadd.xlane.f32.xlu0 %v1031
          %v1061 = vpop.xlane.xlu0 %1060
          %1062 = vadd.xlane.f32.xlu0 %v1032
          %v1063 = vpop.xlane.xlu0 %1062
          %1064 = vadd.xlane.f32.xlu0 %v1033
          %v1065 = vpop.xlane.xlu0 %1064
          %v1066 = vmul.f32 %v1035, %v985
          %v1067 = vmul.f32 %v1037, %v985
          %v1068 = vmul.f32 %v1039, %v985
          %v1069 = vmul.f32 %v1041, %v985
          %v1070 = vmul.f32 %v1043, %v985
          %v1071 = vmul.f32 %v1045, %v985
          %v1072 = vmul.f32 %v1047, %v985
          %v1073 = vmul.f32 %v1049, %v985
          %v1074 = vmul.f32 %v1051, %v985
          %v1075 = vmul.f32 %v1053, %v985
          %v1076 = vmul.f32 %v1055, %v985
          %v1077 = vmul.f32 %v1057, %v985
          %v1078 = vmul.f32 %v1059, %v985
          %v1079 = vmul.f32 %v1061, %v985
          %v1080 = vmul.f32 %v1063, %v985
          %v1081 = vmul.f32 %v1065, %v985
          %v1082 = vadd.f32 %v1066, 1e-05
          %v1083 = vadd.f32 %v1067, 1e-05
          %v1084 = vadd.f32 %v1068, 1e-05
          %v1085 = vadd.f32 %v1069, 1e-05
          %v1086 = vadd.f32 %v1070, 1e-05
          %v1087 = vadd.f32 %v1071, 1e-05
          %v1088 = vadd.f32 %v1072, 1e-05
          %v1089 = vadd.f32 %v1073, 1e-05
          %v1090 = vadd.f32 %v1074, 1e-05
          %v1091 = vadd.f32 %v1075, 1e-05
          %v1092 = vadd.f32 %v1076, 1e-05
          %v1093 = vadd.f32 %v1077, 1e-05
          %v1094 = vadd.f32 %v1078, 1e-05
          %v1095 = vadd.f32 %v1079, 1e-05
          %v1096 = vadd.f32 %v1080, 1e-05
          %v1097 = vadd.f32 %v1081, 1e-05
          %v1098 = vrsqrt.pop %v1082
          %v1099 = vrsqrt.pop %v1083
          %v1100 = vrsqrt.pop %v1084
          %v1101 = vrsqrt.pop %v1085
          %v1102 = vrsqrt.pop %v1086
          %v1103 = vrsqrt.pop %v1087
          %v1104 = vrsqrt.pop %v1088
          %v1105 = vrsqrt.pop %v1089
          %v1106 = vrsqrt.pop %v1090
          %v1107 = vrsqrt.pop %v1091
          %v1108 = vrsqrt.pop %v1092
          %v1109 = vrsqrt.pop %v1093
          %v1110 = vrsqrt.pop %v1094
          %v1111 = vrsqrt.pop %v1095
          %v1112 = vrsqrt.pop %v1096
          %v1113 = vrsqrt.pop %v1097
          %v1114 = vmul.f32 %v1002, %v1098
          %v1115 = vmul.f32 %v1003, %v1099
          %v1116 = vmul.f32 %v1004, %v1100
          %v1117 = vmul.f32 %v1005, %v1101
          %v1118 = vmul.f32 %v1006, %v1102
          %v1119 = vmul.f32 %v1007, %v1103
          %v1120 = vmul.f32 %v1008, %v1104
          %v1121 = vmul.f32 %v1009, %v1105
          %v1122 = vmul.f32 %v1010, %v1106
          %v1123 = vmul.f32 %v1011, %v1107
          %v1124 = vmul.f32 %v1012, %v1108
          %v1125 = vmul.f32 %v1013, %v1109
          %v1126 = vmul.f32 %v1014, %v1110
          %v1127 = vmul.f32 %v1015, %v1111
          %v1128 = vmul.f32 %v1016, %v1112
          %v1129 = vmul.f32 %v1017, %v1113
          %v1130 = vld [vmem:[%s2] sm:$0x1]
          %v1132 = vlaneseq
          %v1133 = vshrl.u32 %v1132, 7
          %v1134 = vsub.s32 0, %v1133
          %v1135 = vrot.slane %v1130, %v1134
          %v1137 = vmul.f32 %v1114, %v1135
          %v1138 = vmul.f32 %v1115, %v1135
          %v1139 = vmul.f32 %v1116, %v1135
          %v1140 = vmul.f32 %v1117, %v1135
          %v1141 = vmul.f32 %v1118, %v1135
          %v1142 = vmul.f32 %v1119, %v1135
          %v1143 = vmul.f32 %v1120, %v1135
          %v1144 = vmul.f32 %v1121, %v1135
          %v1145 = vmul.f32 %v1122, %v1135
          %v1146 = vmul.f32 %v1123, %v1135
          %v1147 = vmul.f32 %v1124, %v1135
          %v1148 = vmul.f32 %v1125, %v1135
          %v1149 = vmul.f32 %v1126, %v1135
          %v1150 = vmul.f32 %v1127, %v1135
          %v1151 = vmul.f32 %v1128, %v1135
          %v1152 = vmul.f32 %v1129, %v1135
          %v1153 = vld [vmem:[%s3] sm:$0x1]
          %v1155 = vlaneseq
          %v1156 = vshrl.u32 %v1155, 7
          %v1157 = vsub.s32 0, %v1156
          %v1158 = vrot.slane %v1153, %v1157
          %v1160 = vadd.f32 %v1137, %v1158
          %v1161 = vadd.f32 %v1138, %v1158
          %v1162 = vadd.f32 %v1139, %v1158
          %v1163 = vadd.f32 %v1140, %v1158
          %v1164 = vadd.f32 %v1141, %v1158
          %v1165 = vadd.f32 %v1142, %v1158
          %v1166 = vadd.f32 %v1143, %v1158
          %v1167 = vadd.f32 %v1144, %v1158
          %v1168 = vadd.f32 %v1145, %v1158
          %v1169 = vadd.f32 %v1146, %v1158
          %v1170 = vadd.f32 %v1147, %v1158
          %v1171 = vadd.f32 %v1148, %v1158
          %v1172 = vadd.f32 %v1149, %v1158
          %v1173 = vadd.f32 %v1150, %v1158
          %v1174 = vadd.f32 %v1151, %v1158
          %v1175 = vadd.f32 %v1152, %v1158
          %v1176 = vpack.c.bf16 %v1161, %v1160
          %v1177 = vpack.c.bf16 %v1163, %v1162
          %v1178 = vpack.c.bf16 %v1165, %v1164
          %v1179 = vpack.c.bf16 %v1167, %v1166
          %v1180 = vpack.c.bf16 %v1169, %v1168
          %v1181 = vpack.c.bf16 %v1171, %v1170
          %v1182 = vpack.c.bf16 %v1173, %v1172
          %v1183 = vpack.c.bf16 %v1175, %v1174
          %1184 = vst [vmem:[#allocation2] sm:$0xff] %v1176
          %1185 = vst [vmem:[#allocation2 + $0x8] sm:$0xff] %v1177
          %1186 = vst [vmem:[#allocation2 + $0x10] sm:$0xff] %v1178
          %1187 = vst [vmem:[#allocation2 + $0x18] sm:$0xff] %v1179
          %1188 = vst [vmem:[#allocation2 + $0x20] sm:$0xff] %v1180
          %1189 = vst [vmem:[#allocation2 + $0x28] sm:$0xff] %v1181
          %1190 = vst [vmem:[#allocation2 + $0x30] sm:$0xff] %v1182
          %1191 = vst [vmem:[#allocation2 + $0x38] sm:$0xff] %v1183
          %1192 = vst [vmem:[#allocation4] sm:$0xff] 0.0
          %1193 = vst [vmem:[#allocation4 + $0x8] sm:$0xff] 0.0
          %1194 = vst [vmem:[#allocation4 + $0x10] sm:$0xff] 0.0
          %1195 = vst [vmem:[#allocation4 + $0x18] sm:$0xff] 0.0
          %1196 = vst [vmem:[#allocation4 + $0x20] sm:$0xff] 0.0
          %1197 = vst [vmem:[#allocation4 + $0x28] sm:$0xff] 0.0
          %1198 = vst [vmem:[#allocation4 + $0x30] sm:$0xff] 0.0
          %1199 = vst [vmem:[#allocation4 + $0x38] sm:$0xff] 0.0
          %1200 = vst [vmem:[#allocation4 + $0x40] sm:$0xff] 0.0
          %1201 = vst [vmem:[#allocation4 + $0x48] sm:$0xff] 0.0
          %1202 = vst [vmem:[#allocation4 + $0x50] sm:$0xff] 0.0
          %1203 = vst [vmem:[#allocation4 + $0x58] sm:$0xff] 0.0
          %1204 = vst [vmem:[#allocation4 + $0x60] sm:$0xff] 0.0
          %1205 = vst [vmem:[#allocation4 + $0x68] sm:$0xff] 0.0
          %1206 = vst [vmem:[#allocation4 + $0x70] sm:$0xff] 0.0
          %1207 = vst [vmem:[#allocation4 + $0x78] sm:$0xff] 0.0
        $region167: #{block_dejavu_forward.7} parent=150 // pred_fallthru
          _
        %v1208 = vld [vmem:[#allocation2] sm:$0xff]
        %v1209 = vld [vmem:[#allocation2 + $0x8] sm:$0xff]
        %v1210 = vld [vmem:[#allocation2 + $0x10] sm:$0xff]
        %v1211 = vld [vmem:[#allocation2 + $0x18] sm:$0xff]
        %v1212 = vld [vmem:[#allocation2 + $0x20] sm:$0xff]
        %v1213 = vld [vmem:[#allocation2 + $0x28] sm:$0xff]
        %v1214 = vld [vmem:[#allocation2 + $0x30] sm:$0xff]
        %v1215 = vld [vmem:[#allocation2 + $0x38] sm:$0xff]
        %v1216 = vld [vmem:[%s727] sm:$0xff]
        %v1217 = vld [vmem:[%s727 + $0x8] sm:$0xff]
        %v1218 = vld [vmem:[%s727 + $0x10] sm:$0xff]
        %v1219 = vld [vmem:[%s727 + $0x18] sm:$0xff]
        %v1220 = vld [vmem:[%s727 + $0x20] sm:$0xff]
        %v1221 = vld [vmem:[%s727 + $0x28] sm:$0xff]
        %v1222 = vld [vmem:[%s727 + $0x30] sm:$0xff]
        %v1223 = vld [vmem:[%s727 + $0x38] sm:$0xff]
        %v1224 = vld [vmem:[%s727 + $0x40] sm:$0xff]
        %v1225 = vld [vmem:[%s727 + $0x48] sm:$0xff]
        %v1226 = vld [vmem:[%s727 + $0x50] sm:$0xff]
        %v1227 = vld [vmem:[%s727 + $0x58] sm:$0xff]
        %v1228 = vld [vmem:[%s727 + $0x60] sm:$0xff]
        %v1229 = vld [vmem:[%s727 + $0x68] sm:$0xff]
        %v1230 = vld [vmem:[%s727 + $0x70] sm:$0xff]
        %v1231 = vld [vmem:[%s727 + $0x78] sm:$0xff]
        %v1232 = vld [vmem:[%s834] sm:$0x3]
        %v1234 = vlaneseq
        %v1235 = vshrl.u32 %v1234, 7
        %v1236 = vsub.s32 0, %v1235
        %v1237 = vrot.slane %v1232, %v1236
        %v1238 = vlaneseq
        %v1239 = vshrl.u32 %v1238, 7
        %v1240 = vsub.s32 1, %v1239
        %v1241 = vrot.slane %v1232, %v1240
        %v1260 = vunpack.c.l.b16 %v1216
        %v1261 = vunpack.c.h.b16 %v1216
        %v1262 = vunpack.c.l.b16 %v1217
        %v1263 = vunpack.c.h.b16 %v1217
        %v1264 = vunpack.c.l.b16 %v1218
        %v1265 = vunpack.c.h.b16 %v1218
        %v1266 = vunpack.c.l.b16 %v1219
        %v1267 = vunpack.c.h.b16 %v1219
        %v1268 = vunpack.c.l.b16 %v1220
        %v1269 = vunpack.c.h.b16 %v1220
        %v1270 = vunpack.c.l.b16 %v1221
        %v1271 = vunpack.c.h.b16 %v1221
        %v1272 = vunpack.c.l.b16 %v1222
        %v1273 = vunpack.c.h.b16 %v1222
        %v1274 = vunpack.c.l.b16 %v1223
        %v1275 = vunpack.c.h.b16 %v1223
        %v1276 = vunpack.c.l.b16 %v1224
        %v1277 = vunpack.c.h.b16 %v1224
        %v1278 = vunpack.c.l.b16 %v1225
        %v1279 = vunpack.c.h.b16 %v1225
        %v1280 = vunpack.c.l.b16 %v1226
        %v1281 = vunpack.c.h.b16 %v1226
        %v1282 = vunpack.c.l.b16 %v1227
        %v1283 = vunpack.c.h.b16 %v1227
        %v1284 = vunpack.c.l.b16 %v1228
        %v1285 = vunpack.c.h.b16 %v1228
        %v1286 = vunpack.c.l.b16 %v1229
        %v1287 = vunpack.c.h.b16 %v1229
        %v1288 = vunpack.c.l.b16 %v1230
        %v1289 = vunpack.c.h.b16 %v1230
        %v1290 = vunpack.c.l.b16 %v1231
        %v1291 = vunpack.c.h.b16 %v1231
        %v1292 = vpack.c.b16 %v1262, %v1260
        %v1293 = vpack.c.b16 %v1263, %v1261
        %v1294 = vpack.c.b16 %v1266, %v1264
        %v1295 = vpack.c.b16 %v1267, %v1265
        %v1296 = vpack.c.b16 %v1270, %v1268
        %v1297 = vpack.c.b16 %v1271, %v1269
        %v1298 = vpack.c.b16 %v1274, %v1272
        %v1299 = vpack.c.b16 %v1275, %v1273
        %v1300 = vpack.c.b16 %v1278, %v1276
        %v1301 = vpack.c.b16 %v1279, %v1277
        %v1302 = vpack.c.b16 %v1282, %v1280
        %v1303 = vpack.c.b16 %v1283, %v1281
        %v1304 = vpack.c.b16 %v1286, %v1284
        %v1305 = vpack.c.b16 %v1287, %v1285
        %v1306 = vpack.c.b16 %v1290, %v1288
        %v1307 = vpack.c.b16 %v1291, %v1289
        %1324 = vmatprep.subr.bf16.mxu0 %v1293
        %1325 = vmatpush1.bf16.msra.mxu0 %v1292
        %1326 = vmatprep.subr.bf16.mxu0 %v1295
        %1327 = vmatpush1.bf16.msra.mxu0 %v1294
        %1328 = vmatprep.subr.bf16.mxu0 %v1297
        %1329 = vmatpush1.bf16.msra.mxu0 %v1296
        %1330 = vmatprep.subr.bf16.mxu0 %v1299
        %1331 = vmatpush1.bf16.msra.mxu0 %v1298
        %1332 = vmatprep.subr.bf16.mxu0 %v1301
        %1333 = vmatpush1.bf16.msra.mxu0 %v1300
        %1334 = vmatprep.subr.bf16.mxu0 %v1303
        %1335 = vmatpush1.bf16.msra.mxu0 %v1302
        %1336 = vmatprep.subr.bf16.mxu0 %v1305
        %1337 = vmatpush1.bf16.msra.mxu0 %v1304
        %1338 = vmatprep.subr.bf16.mxu0 %v1307
        %1339 = vmatpush1.bf16.msra.mxu0 %v1306
        %1340 = vmatprep.subr.bf16.mxu0 0
        %1341 = vmatpush1.bf16.msra.mxu0 0
        %1342 = vmatprep.subr.bf16.mxu0 0
        %1343 = vmatpush1.bf16.msra.mxu0 0
        %1344 = vmatprep.subr.bf16.mxu0 0
        %1345 = vmatpush1.bf16.msra.mxu0 0
        %1346 = vmatprep.subr.bf16.mxu0 0
        %1347 = vmatpush1.bf16.msra.mxu0 0
        %1348 = vmatprep.subr.bf16.mxu0 0
        %1349 = vmatpush1.bf16.msra.mxu0 0
        %1350 = vmatprep.subr.bf16.mxu0 0
        %1351 = vmatpush1.bf16.msra.mxu0 0
        %1352 = vmatprep.subr.bf16.mxu0 0
        %1353 = vmatpush1.bf16.msra.mxu0 0
        %1354 = vmatprep.subr.bf16.mxu0 0
        %1355 = vmatpush1.bf16.msra.mxu0 0
        %1356 = vmatprep.mubr.bf16.mxu0 0
        %1357 = vmatmul.mubr.bf16.gmra.mrb[0].mxu0 %v1208
        %v1358 = vpop.f32.mrb[0].mxu0
        %v1359 = vadd.f32 %v1237, %v1358
        %v1360 = vpop.f32.mrb[0].mxu0
        %v1361 = vadd.f32 %v1241, %v1360
        %v1362 = vpop.f32.mrb[0].mxu0
        %v1363 = vadd.f32 %v1237, %v1362
        %v1364 = vpop.f32.mrb[0].mxu0
        %v1365 = vadd.f32 %v1241, %v1364
        %1366 = vmatprep.mubr.bf16.mxu0 0
        %1367 = vmatmul.mubr.bf16.gmra.mrb[0].mxu0 %v1209
        %v1368 = vpop.f32.mrb[0].mxu0
        %v1369 = vadd.f32 %v1237, %v1368
        %v1370 = vpop.f32.mrb[0].mxu0
        %v1371 = vadd.f32 %v1241, %v1370
        %v1372 = vpop.f32.mrb[0].mxu0
        %v1373 = vadd.f32 %v1237, %v1372
        %v1374 = vpop.f32.mrb[0].mxu0
        %v1375 = vadd.f32 %v1241, %v1374
        %1376 = vmatprep.mubr.bf16.mxu0 0
        %1377 = vmatmul.mubr.bf16.gmra.mrb[0].mxu0 %v1210
        %v1378 = vpop.f32.mrb[0].mxu0
        %v1379 = vadd.f32 %v1237, %v1378
        %v1380 = vpop.f32.mrb[0].mxu0
        %v1381 = vadd.f32 %v1241, %v1380
        %v1382 = vpop.f32.mrb[0].mxu0
        %v1383 = vadd.f32 %v1237, %v1382
        %v1384 = vpop.f32.mrb[0].mxu0
        %v1385 = vadd.f32 %v1241, %v1384
        %1386 = vmatprep.mubr.bf16.mxu0 0
        %1387 = vmatmul.mubr.bf16.gmra.mrb[0].mxu0 %v1211
        %v1388 = vpop.f32.mrb[0].mxu0
        %v1389 = vadd.f32 %v1237, %v1388
        %v1390 = vpop.f32.mrb[0].mxu0
        %v1391 = vadd.f32 %v1241, %v1390
        %v1392 = vpop.f32.mrb[0].mxu0
        %v1393 = vadd.f32 %v1237, %v1392
        %v1394 = vpop.f32.mrb[0].mxu0
        %v1395 = vadd.f32 %v1241, %v1394
        %1396 = vmatprep.mubr.bf16.mxu0 0
        %1397 = vmatmul.mubr.bf16.gmra.mrb[0].mxu0 %v1212
        %v1398 = vpop.f32.mrb[0].mxu0
        %v1399 = vadd.f32 %v1237, %v1398
        %v1400 = vpop.f32.mrb[0].mxu0
        %v1401 = vadd.f32 %v1241, %v1400
        %v1402 = vpop.f32.mrb[0].mxu0
        %v1403 = vadd.f32 %v1237, %v1402
        %v1404 = vpop.f32.mrb[0].mxu0
        %v1405 = vadd.f32 %v1241, %v1404
        %1406 = vmatprep.mubr.bf16.mxu0 0
        %1407 = vmatmul.mubr.bf16.gmra.mrb[0].mxu0 %v1213
        %v1408 = vpop.f32.mrb[0].mxu0
        %v1409 = vadd.f32 %v1237, %v1408
        %v1410 = vpop.f32.mrb[0].mxu0
        %v1411 = vadd.f32 %v1241, %v1410
        %v1412 = vpop.f32.mrb[0].mxu0
        %v1413 = vadd.f32 %v1237, %v1412
        %v1414 = vpop.f32.mrb[0].mxu0
        %v1415 = vadd.f32 %v1241, %v1414
        %1416 = vmatprep.mubr.bf16.mxu0 0
        %1417 = vmatmul.mubr.bf16.gmra.mrb[0].mxu0 %v1214
        %v1418 = vpop.f32.mrb[0].mxu0
        %v1419 = vadd.f32 %v1237, %v1418
        %v1420 = vpop.f32.mrb[0].mxu0
        %v1421 = vadd.f32 %v1241, %v1420
        %v1422 = vpop.f32.mrb[0].mxu0
        %v1423 = vadd.f32 %v1237, %v1422
        %v1424 = vpop.f32.mrb[0].mxu0
        %v1425 = vadd.f32 %v1241, %v1424
        %1426 = vmatprep.mubr.bf16.mxu0 0
        %1427 = vmatmul.mubr.bf16.gmra.mrb[0].mxu0 %v1215
        %v1428 = vpop.f32.mrb[0].mxu0
        %v1429 = vadd.f32 %v1237, %v1428
        %v1430 = vpop.f32.mrb[0].mxu0
        %v1431 = vadd.f32 %v1241, %v1430
        %v1432 = vpop.f32.mrb[0].mxu0
        %v1433 = vadd.f32 %v1237, %v1432
        %v1434 = vpop.f32.mrb[0].mxu0
        %v1435 = vadd.f32 %v1241, %v1434
        %1436 = vdwg.mxu0
        %v1437 = vmul.f32 %v1359, %v1359
        %v1438 = vmul.f32 %v1361, %v1361
        %v1439 = vmul.f32 %v1363, %v1363
        %v1440 = vmul.f32 %v1365, %v1365
        %v1441 = vmul.f32 %v1369, %v1369
        %v1442 = vmul.f32 %v1371, %v1371
        %v1443 = vmul.f32 %v1373, %v1373
        %v1444 = vmul.f32 %v1375, %v1375
        %v1445 = vmul.f32 %v1379, %v1379
        %v1446 = vmul.f32 %v1381, %v1381
        %v1447 = vmul.f32 %v1383, %v1383
        %v1448 = vmul.f32 %v1385, %v1385
        %v1449 = vmul.f32 %v1389, %v1389
        %v1450 = vmul.f32 %v1391, %v1391
        %v1451 = vmul.f32 %v1393, %v1393
        %v1452 = vmul.f32 %v1395, %v1395
        %v1453 = vmul.f32 %v1399, %v1399
        %v1454 = vmul.f32 %v1401, %v1401
        %v1455 = vmul.f32 %v1403, %v1403
        %v1456 = vmul.f32 %v1405, %v1405
        %v1457 = vmul.f32 %v1409, %v1409
        %v1458 = vmul.f32 %v1411, %v1411
        %v1459 = vmul.f32 %v1413, %v1413
        %v1460 = vmul.f32 %v1415, %v1415
        %v1461 = vmul.f32 %v1419, %v1419
        %v1462 = vmul.f32 %v1421, %v1421
        %v1463 = vmul.f32 %v1423, %v1423
        %v1464 = vmul.f32 %v1425, %v1425
        %v1465 = vmul.f32 %v1429, %v1429
        %v1466 = vmul.f32 %v1431, %v1431
        %v1467 = vmul.f32 %v1433, %v1433
        %v1468 = vmul.f32 %v1435, %v1435
        %v1469 = vmul.f32 %v1359, %v1437
        %v1470 = vmul.f32 %v1361, %v1438
        %v1471 = vmul.f32 %v1363, %v1439
        %v1472 = vmul.f32 %v1365, %v1440
        %v1473 = vmul.f32 %v1369, %v1441
        %v1474 = vmul.f32 %v1371, %v1442
        %v1475 = vmul.f32 %v1373, %v1443
        %v1476 = vmul.f32 %v1375, %v1444
        %v1477 = vmul.f32 %v1379, %v1445
        %v1478 = vmul.f32 %v1381, %v1446
        %v1479 = vmul.f32 %v1383, %v1447
        %v1480 = vmul.f32 %v1385, %v1448
        %v1481 = vmul.f32 %v1389, %v1449
        %v1482 = vmul.f32 %v1391, %v1450
        %v1483 = vmul.f32 %v1393, %v1451
        %v1484 = vmul.f32 %v1395, %v1452
        %v1485 = vmul.f32 %v1399, %v1453
        %v1486 = vmul.f32 %v1401, %v1454
        %v1487 = vmul.f32 %v1403, %v1455
        %v1488 = vmul.f32 %v1405, %v1456
        %v1489 = vmul.f32 %v1409, %v1457
        %v1490 = vmul.f32 %v1411, %v1458
        %v1491 = vmul.f32 %v1413, %v1459
        %v1492 = vmul.f32 %v1415, %v1460
        %v1493 = vmul.f32 %v1419, %v1461
        %v1494 = vmul.f32 %v1421, %v1462
        %v1495 = vmul.f32 %v1423, %v1463
        %v1496 = vmul.f32 %v1425, %v1464
        %v1497 = vmul.f32 %v1429, %v1465
        %v1498 = vmul.f32 %v1431, %v1466
        %v1499 = vmul.f32 %v1433, %v1467
        %v1500 = vmul.f32 %v1435, %v1468
        %v1501 = vmul.f32 %v1469, 0.044715
        %v1502 = vmul.f32 %v1470, 0.044715
        %v1503 = vmul.f32 %v1471, 0.044715
        %v1504 = vmul.f32 %v1472, 0.044715
        %v1505 = vmul.f32 %v1473, 0.044715
        %v1506 = vmul.f32 %v1474, 0.044715
        %v1507 = vmul.f32 %v1475, 0.044715
        %v1508 = vmul.f32 %v1476, 0.044715
        %v1509 = vmul.f32 %v1477, 0.044715
        %v1510 = vmul.f32 %v1478, 0.044715
        %v1511 = vmul.f32 %v1479, 0.044715
        %v1512 = vmul.f32 %v1480, 0.044715
        %v1513 = vmul.f32 %v1481, 0.044715
        %v1514 = vmul.f32 %v1482, 0.044715
        %v1515 = vmul.f32 %v1483, 0.044715
        %v1516 = vmul.f32 %v1484, 0.044715
        %v1517 = vmul.f32 %v1485, 0.044715
        %v1518 = vmul.f32 %v1486, 0.044715
        %v1519 = vmul.f32 %v1487, 0.044715
        %v1520 = vmul.f32 %v1488, 0.044715
        %v1521 = vmul.f32 %v1489, 0.044715
        %v1522 = vmul.f32 %v1490, 0.044715
        %v1523 = vmul.f32 %v1491, 0.044715
        %v1524 = vmul.f32 %v1492, 0.044715
        %v1525 = vmul.f32 %v1493, 0.044715
        %v1526 = vmul.f32 %v1494, 0.044715
        %v1527 = vmul.f32 %v1495, 0.044715
        %v1528 = vmul.f32 %v1496, 0.044715
        %v1529 = vmul.f32 %v1497, 0.044715
        %v1530 = vmul.f32 %v1498, 0.044715
        %v1531 = vmul.f32 %v1499, 0.044715
        %v1532 = vmul.f32 %v1500, 0.044715
        %v1533 = vadd.f32 %v1359, %v1501
        %v1534 = vadd.f32 %v1361, %v1502
        %v1535 = vadd.f32 %v1363, %v1503
        %v1536 = vadd.f32 %v1365, %v1504
        %v1537 = vadd.f32 %v1369, %v1505
        %v1538 = vadd.f32 %v1371, %v1506
        %v1539 = vadd.f32 %v1373, %v1507
        %v1540 = vadd.f32 %v1375, %v1508
        %v1541 = vadd.f32 %v1379, %v1509
        %v1542 = vadd.f32 %v1381, %v1510
        %v1543 = vadd.f32 %v1383, %v1511
        %v1544 = vadd.f32 %v1385, %v1512
        %v1545 = vadd.f32 %v1389, %v1513
        %v1546 = vadd.f32 %v1391, %v1514
        %v1547 = vadd.f32 %v1393, %v1515
        %v1548 = vadd.f32 %v1395, %v1516
        %v1549 = vadd.f32 %v1399, %v1517
        %v1550 = vadd.f32 %v1401, %v1518
        %v1551 = vadd.f32 %v1403, %v1519
        %v1552 = vadd.f32 %v1405, %v1520
        %v1553 = vadd.f32 %v1409, %v1521
        %v1554 = vadd.f32 %v1411, %v1522
        %v1555 = vadd.f32 %v1413, %v1523
        %v1556 = vadd.f32 %v1415, %v1524
        %v1557 = vadd.f32 %v1419, %v1525
        %v1558 = vadd.f32 %v1421, %v1526
        %v1559 = vadd.f32 %v1423, %v1527
        %v1560 = vadd.f32 %v1425, %v1528
        %v1561 = vadd.f32 %v1429, %v1529
        %v1562 = vadd.f32 %v1431, %v1530
        %v1563 = vadd.f32 %v1433, %v1531
        %v1564 = vadd.f32 %v1435, %v1532
        %v1565 = vmul.f32 %v1533, 0.7978846
        %v1566 = vmul.f32 %v1534, 0.7978846
        %v1567 = vmul.f32 %v1535, 0.7978846
        %v1568 = vmul.f32 %v1536, 0.7978846
        %v1569 = vmul.f32 %v1537, 0.7978846
        %v1570 = vmul.f32 %v1538, 0.7978846
        %v1571 = vmul.f32 %v1539, 0.7978846
        %v1572 = vmul.f32 %v1540, 0.7978846
        %v1573 = vmul.f32 %v1541, 0.7978846
        %v1574 = vmul.f32 %v1542, 0.7978846
        %v1575 = vmul.f32 %v1543, 0.7978846
        %v1576 = vmul.f32 %v1544, 0.7978846
        %v1577 = vmul.f32 %v1545, 0.7978846
        %v1578 = vmul.f32 %v1546, 0.7978846
        %v1579 = vmul.f32 %v1547, 0.7978846
        %v1580 = vmul.f32 %v1548, 0.7978846
        %v1581 = vmul.f32 %v1549, 0.7978846
        %v1582 = vmul.f32 %v1550, 0.7978846
        %v1583 = vmul.f32 %v1551, 0.7978846
        %v1584 = vmul.f32 %v1552, 0.7978846
        %v1585 = vmul.f32 %v1553, 0.7978846
        %v1586 = vmul.f32 %v1554, 0.7978846
        %v1587 = vmul.f32 %v1555, 0.7978846
        %v1588 = vmul.f32 %v1556, 0.7978846
        %v1589 = vmul.f32 %v1557, 0.7978846
        %v1590 = vmul.f32 %v1558, 0.7978846
        %v1591 = vmul.f32 %v1559, 0.7978846
        %v1592 = vmul.f32 %v1560, 0.7978846
        %v1593 = vmul.f32 %v1561, 0.7978846
        %v1594 = vmul.f32 %v1562, 0.7978846
        %v1595 = vmul.f32 %v1563, 0.7978846
        %v1596 = vmul.f32 %v1564, 0.7978846
        %v1597 = vtanh.pop %v1565
        %v1598 = vtanh.pop %v1566
        %v1599 = vtanh.pop %v1567
        %v1600 = vtanh.pop %v1568
        %v1601 = vtanh.pop %v1569
        %v1602 = vtanh.pop %v1570
        %v1603 = vtanh.pop %v1571
        %v1604 = vtanh.pop %v1572
        %v1605 = vtanh.pop %v1573
        %v1606 = vtanh.pop %v1574
        %v1607 = vtanh.pop %v1575
        %v1608 = vtanh.pop %v1576
        %v1609 = vtanh.pop %v1577
        %v1610 = vtanh.pop %v1578
        %v1611 = vtanh.pop %v1579
        %v1612 = vtanh.pop %v1580
        %v1613 = vtanh.pop %v1581
        %v1614 = vtanh.pop %v1582
        %v1615 = vtanh.pop %v1583
        %v1616 = vtanh.pop %v1584
        %v1617 = vtanh.pop %v1585
        %v1618 = vtanh.pop %v1586
        %v1619 = vtanh.pop %v1587
        %v1620 = vtanh.pop %v1588
        %v1621 = vtanh.pop %v1589
        %v1622 = vtanh.pop %v1590
        %v1623 = vtanh.pop %v1591
        %v1624 = vtanh.pop %v1592
        %v1625 = vtanh.pop %v1593
        %v1626 = vtanh.pop %v1594
        %v1627 = vtanh.pop %v1595
        %v1628 = vtanh.pop %v1596
        %v1629 = vadd.f32 %v1597, 1.0
        %v1630 = vadd.f32 %v1598, 1.0
        %v1631 = vadd.f32 %v1599, 1.0
        %v1632 = vadd.f32 %v1600, 1.0
        %v1633 = vadd.f32 %v1601, 1.0
        %v1634 = vadd.f32 %v1602, 1.0
        %v1635 = vadd.f32 %v1603, 1.0
        %v1636 = vadd.f32 %v1604, 1.0
        %v1637 = vadd.f32 %v1605, 1.0
        %v1638 = vadd.f32 %v1606, 1.0
        %v1639 = vadd.f32 %v1607, 1.0
        %v1640 = vadd.f32 %v1608, 1.0
        %v1641 = vadd.f32 %v1609, 1.0
        %v1642 = vadd.f32 %v1610, 1.0
        %v1643 = vadd.f32 %v1611, 1.0
        %v1644 = vadd.f32 %v1612, 1.0
        %v1645 = vadd.f32 %v1613, 1.0
        %v1646 = vadd.f32 %v1614, 1.0
        %v1647 = vadd.f32 %v1615, 1.0
        %v1648 = vadd.f32 %v1616, 1.0
        %v1649 = vadd.f32 %v1617, 1.0
        %v1650 = vadd.f32 %v1618, 1.0
        %v1651 = vadd.f32 %v1619, 1.0
        %v1652 = vadd.f32 %v1620, 1.0
        %v1653 = vadd.f32 %v1621, 1.0
        %v1654 = vadd.f32 %v1622, 1.0
        %v1655 = vadd.f32 %v1623, 1.0
        %v1656 = vadd.f32 %v1624, 1.0
        %v1657 = vadd.f32 %v1625, 1.0
        %v1658 = vadd.f32 %v1626, 1.0
        %v1659 = vadd.f32 %v1627, 1.0
        %v1660 = vadd.f32 %v1628, 1.0
        %v1661 = vmul.f32 %v1629, 0.5
        %v1662 = vmul.f32 %v1630, 0.5
        %v1663 = vmul.f32 %v1631, 0.5
        %v1664 = vmul.f32 %v1632, 0.5
        %v1665 = vmul.f32 %v1633, 0.5
        %v1666 = vmul.f32 %v1634, 0.5
        %v1667 = vmul.f32 %v1635, 0.5
        %v1668 = vmul.f32 %v1636, 0.5
        %v1669 = vmul.f32 %v1637, 0.5
        %v1670 = vmul.f32 %v1638, 0.5
        %v1671 = vmul.f32 %v1639, 0.5
        %v1672 = vmul.f32 %v1640, 0.5
        %v1673 = vmul.f32 %v1641, 0.5
        %v1674 = vmul.f32 %v1642, 0.5
        %v1675 = vmul.f32 %v1643, 0.5
        %v1676 = vmul.f32 %v1644, 0.5
        %v1677 = vmul.f32 %v1645, 0.5
        %v1678 = vmul.f32 %v1646, 0.5
        %v1679 = vmul.f32 %v1647, 0.5
        %v1680 = vmul.f32 %v1648, 0.5
        %v1681 = vmul.f32 %v1649, 0.5
        %v1682 = vmul.f32 %v1650, 0.5
        %v1683 = vmul.f32 %v1651, 0.5
        %v1684 = vmul.f32 %v1652, 0.5
        %v1685 = vmul.f32 %v1653, 0.5
        %v1686 = vmul.f32 %v1654, 0.5
        %v1687 = vmul.f32 %v1655, 0.5
        %v1688 = vmul.f32 %v1656, 0.5
        %v1689 = vmul.f32 %v1657, 0.5
        %v1690 = vmul.f32 %v1658, 0.5
        %v1691 = vmul.f32 %v1659, 0.5
        %v1692 = vmul.f32 %v1660, 0.5
        %v1693 = vmul.f32 %v1359, %v1661
        %v1694 = vmul.f32 %v1361, %v1662
        %v1695 = vmul.f32 %v1363, %v1663
        %v1696 = vmul.f32 %v1365, %v1664
        %v1697 = vmul.f32 %v1369, %v1665
        %v1698 = vmul.f32 %v1371, %v1666
        %v1699 = vmul.f32 %v1373, %v1667
        %v1700 = vmul.f32 %v1375, %v1668
        %v1701 = vmul.f32 %v1379, %v1669
        %v1702 = vmul.f32 %v1381, %v1670
        %v1703 = vmul.f32 %v1383, %v1671
        %v1704 = vmul.f32 %v1385, %v1672
        %v1705 = vmul.f32 %v1389, %v1673
        %v1706 = vmul.f32 %v1391, %v1674
        %v1707 = vmul.f32 %v1393, %v1675
        %v1708 = vmul.f32 %v1395, %v1676
        %v1709 = vmul.f32 %v1399, %v1677
        %v1710 = vmul.f32 %v1401, %v1678
        %v1711 = vmul.f32 %v1403, %v1679
        %v1712 = vmul.f32 %v1405, %v1680
        %v1713 = vmul.f32 %v1409, %v1681
        %v1714 = vmul.f32 %v1411, %v1682
        %v1715 = vmul.f32 %v1413, %v1683
        %v1716 = vmul.f32 %v1415, %v1684
        %v1717 = vmul.f32 %v1419, %v1685
        %v1718 = vmul.f32 %v1421, %v1686
        %v1719 = vmul.f32 %v1423, %v1687
        %v1720 = vmul.f32 %v1425, %v1688
        %v1721 = vmul.f32 %v1429, %v1689
        %v1722 = vmul.f32 %v1431, %v1690
        %v1723 = vmul.f32 %v1433, %v1691
        %v1724 = vmul.f32 %v1435, %v1692
        %v1725 = vld [vmem:[%s720] sm:$0xff]
        %v1726 = vld [vmem:[%s720 + $0x8] sm:$0xff]
        %v1727 = vld [vmem:[%s720 + $0x10] sm:$0xff]
        %v1728 = vld [vmem:[%s720 + $0x18] sm:$0xff]
        %v1729 = vld [vmem:[%s720 + $0x20] sm:$0xff]
        %v1730 = vld [vmem:[%s720 + $0x28] sm:$0xff]
        %v1731 = vld [vmem:[%s720 + $0x30] sm:$0xff]
        %v1732 = vld [vmem:[%s720 + $0x38] sm:$0xff]
        %v1733 = vunpack.c.0.s8 %v1725
        %v1734 = vunpack.c.0.s8 %v1726
        %v1735 = vunpack.c.1.s8 %v1725
        %v1736 = vunpack.c.1.s8 %v1726
        %v1737 = vunpack.c.2.s8 %v1725
        %v1738 = vunpack.c.2.s8 %v1726
        %v1739 = vunpack.c.3.s8 %v1725
        %v1740 = vunpack.c.3.s8 %v1726
        %v1741 = vunpack.c.0.s8 %v1727
        %v1742 = vunpack.c.0.s8 %v1728
        %v1743 = vunpack.c.1.s8 %v1727
        %v1744 = vunpack.c.1.s8 %v1728
        %v1745 = vunpack.c.2.s8 %v1727
        %v1746 = vunpack.c.2.s8 %v1728
        %v1747 = vunpack.c.3.s8 %v1727
        %v1748 = vunpack.c.3.s8 %v1728
        %v1749 = vunpack.c.0.s8 %v1729
        %v1750 = vunpack.c.0.s8 %v1730
        %v1751 = vunpack.c.1.s8 %v1729
        %v1752 = vunpack.c.1.s8 %v1730
        %v1753 = vunpack.c.2.s8 %v1729
        %v1754 = vunpack.c.2.s8 %v1730
        %v1755 = vunpack.c.3.s8 %v1729
        %v1756 = vunpack.c.3.s8 %v1730
        %v1757 = vunpack.c.0.s8 %v1731
        %v1758 = vunpack.c.0.s8 %v1732
        %v1759 = vunpack.c.1.s8 %v1731
        %v1760 = vunpack.c.1.s8 %v1732
        %v1761 = vunpack.c.2.s8 %v1731
        %v1762 = vunpack.c.2.s8 %v1732
        %v1763 = vunpack.c.3.s8 %v1731
        %v1764 = vunpack.c.3.s8 %v1732
        %v1765 = vcvt.s32.f32 %v1733
        %v1766 = vcvt.s32.f32 %v1734
        %v1767 = vcvt.s32.f32 %v1735
        %v1768 = vcvt.s32.f32 %v1736
        %v1769 = vcvt.s32.f32 %v1737
        %v1770 = vcvt.s32.f32 %v1738
        %v1771 = vcvt.s32.f32 %v1739
        %v1772 = vcvt.s32.f32 %v1740
        %v1773 = vcvt.s32.f32 %v1741
        %v1774 = vcvt.s32.f32 %v1742
        %v1775 = vcvt.s32.f32 %v1743
        %v1776 = vcvt.s32.f32 %v1744
        %v1777 = vcvt.s32.f32 %v1745
        %v1778 = vcvt.s32.f32 %v1746
        %v1779 = vcvt.s32.f32 %v1747
        %v1780 = vcvt.s32.f32 %v1748
        %v1781 = vcvt.s32.f32 %v1749
        %v1782 = vcvt.s32.f32 %v1750
        %v1783 = vcvt.s32.f32 %v1751
        %v1784 = vcvt.s32.f32 %v1752
        %v1785 = vcvt.s32.f32 %v1753
        %v1786 = vcvt.s32.f32 %v1754
        %v1787 = vcvt.s32.f32 %v1755
        %v1788 = vcvt.s32.f32 %v1756
        %v1789 = vcvt.s32.f32 %v1757
        %v1790 = vcvt.s32.f32 %v1758
        %v1791 = vcvt.s32.f32 %v1759
        %v1792 = vcvt.s32.f32 %v1760
        %v1793 = vcvt.s32.f32 %v1761
        %v1794 = vcvt.s32.f32 %v1762
        %v1795 = vcvt.s32.f32 %v1763
        %v1796 = vcvt.s32.f32 %v1764
        %v1797 = vmul.f32 %v1693, %v1765
        %v1798 = vmul.f32 %v1694, %v1766
        %v1799 = vmul.f32 %v1695, %v1767
        %v1800 = vmul.f32 %v1696, %v1768
        %v1801 = vmul.f32 %v1697, %v1769
        %v1802 = vmul.f32 %v1698, %v1770
        %v1803 = vmul.f32 %v1699, %v1771
        %v1804 = vmul.f32 %v1700, %v1772
        %v1805 = vmul.f32 %v1701, %v1773
        %v1806 = vmul.f32 %v1702, %v1774
        %v1807 = vmul.f32 %v1703, %v1775
        %v1808 = vmul.f32 %v1704, %v1776
        %v1809 = vmul.f32 %v1705, %v1777
        %v1810 = vmul.f32 %v1706, %v1778
        %v1811 = vmul.f32 %v1707, %v1779
        %v1812 = vmul.f32 %v1708, %v1780
        %v1813 = vmul.f32 %v1709, %v1781
        %v1814 = vmul.f32 %v1710, %v1782
        %v1815 = vmul.f32 %v1711, %v1783
        %v1816 = vmul.f32 %v1712, %v1784
        %v1817 = vmul.f32 %v1713, %v1785
        %v1818 = vmul.f32 %v1714, %v1786
        %v1819 = vmul.f32 %v1715, %v1787
        %v1820 = vmul.f32 %v1716, %v1788
        %v1821 = vmul.f32 %v1717, %v1789
        %v1822 = vmul.f32 %v1718, %v1790
        %v1823 = vmul.f32 %v1719, %v1791
        %v1824 = vmul.f32 %v1720, %v1792
        %v1825 = vmul.f32 %v1721, %v1793
        %v1826 = vmul.f32 %v1722, %v1794
        %v1827 = vmul.f32 %v1723, %v1795
        %v1828 = vmul.f32 %v1724, %v1796
        %v1829 = vld [vmem:[#allocation4] sm:$0xff]
        %v1830 = vld [vmem:[#allocation4 + $0x8] sm:$0xff]
        %v1831 = vld [vmem:[#allocation4 + $0x10] sm:$0xff]
        %v1832 = vld [vmem:[#allocation4 + $0x18] sm:$0xff]
        %v1833 = vld [vmem:[#allocation4 + $0x20] sm:$0xff]
        %v1834 = vld [vmem:[#allocation4 + $0x28] sm:$0xff]
        %v1835 = vld [vmem:[#allocation4 + $0x30] sm:$0xff]
        %v1836 = vld [vmem:[#allocation4 + $0x38] sm:$0xff]
        %v1837 = vld [vmem:[#allocation4 + $0x40] sm:$0xff]
        %v1838 = vld [vmem:[#allocation4 + $0x48] sm:$0xff]
        %v1839 = vld [vmem:[#allocation4 + $0x50] sm:$0xff]
        %v1840 = vld [vmem:[#allocation4 + $0x58] sm:$0xff]
        %v1841 = vld [vmem:[#allocation4 + $0x60] sm:$0xff]
        %v1842 = vld [vmem:[#allocation4 + $0x68] sm:$0xff]
        %v1843 = vld [vmem:[#allocation4 + $0x70] sm:$0xff]
        %v1844 = vld [vmem:[#allocation4 + $0x78] sm:$0xff]
        %v1845 = vpack.c.bf16 %v1799, %v1797
        %v1846 = vpack.c.bf16 %v1800, %v1798
        %v1847 = vpack.c.bf16 %v1803, %v1801
        %v1848 = vpack.c.bf16 %v1804, %v1802
        %v1849 = vpack.c.bf16 %v1807, %v1805
        %v1850 = vpack.c.bf16 %v1808, %v1806
        %v1851 = vpack.c.bf16 %v1811, %v1809
        %v1852 = vpack.c.bf16 %v1812, %v1810
        %v1853 = vpack.c.bf16 %v1815, %v1813
        %v1854 = vpack.c.bf16 %v1816, %v1814
        %v1855 = vpack.c.bf16 %v1819, %v1817
        %v1856 = vpack.c.bf16 %v1820, %v1818
        %v1857 = vpack.c.bf16 %v1823, %v1821
        %v1858 = vpack.c.bf16 %v1824, %v1822
        %v1859 = vpack.c.bf16 %v1827, %v1825
        %v1860 = vpack.c.bf16 %v1828, %v1826
        %v1861 = vld [vmem:[%s840] sm:$0xf]
        %v1862 = vld [vmem:[%s840 + $0x4] sm:$0xf]
        %v1863 = vld [vmem:[%s840 + $0x8] sm:$0xf]
        %v1864 = vld [vmem:[%s840 + $0xc] sm:$0xf]
        %v1865 = vld [vmem:[%s840 + $0x10] sm:$0xf]
        %v1866 = vld [vmem:[%s840 + $0x14] sm:$0xf]
        %v1867 = vld [vmem:[%s840 + $0x18] sm:$0xf]
        %v1868 = vld [vmem:[%s840 + $0x1c] sm:$0xf]
        %v1869 = vld [vmem:[%s840 + $0x20] sm:$0xf]
        %v1870 = vld [vmem:[%s840 + $0x24] sm:$0xf]
        %v1871 = vld [vmem:[%s840 + $0x28] sm:$0xf]
        %v1872 = vld [vmem:[%s840 + $0x2c] sm:$0xf]
        %v1873 = vld [vmem:[%s840 + $0x30] sm:$0xf]
        %v1874 = vld [vmem:[%s840 + $0x34] sm:$0xf]
        %v1875 = vld [vmem:[%s840 + $0x38] sm:$0xf]
        %v1876 = vld [vmem:[%s840 + $0x3c] sm:$0xf]
        %v1877 = vld [vmem:[%s840 + $0x40] sm:$0xf]
        %v1878 = vld [vmem:[%s840 + $0x44] sm:$0xf]
        %v1879 = vld [vmem:[%s840 + $0x48] sm:$0xf]
        %v1880 = vld [vmem:[%s840 + $0x4c] sm:$0xf]
        %v1881 = vld [vmem:[%s840 + $0x50] sm:$0xf]
        %v1882 = vld [vmem:[%s840 + $0x54] sm:$0xf]
        %v1883 = vld [vmem:[%s840 + $0x58] sm:$0xf]
        %v1884 = vld [vmem:[%s840 + $0x5c] sm:$0xf]
        %v1885 = vld [vmem:[%s840 + $0x60] sm:$0xf]
        %v1886 = vld [vmem:[%s840 + $0x64] sm:$0xf]
        %v1887 = vld [vmem:[%s840 + $0x68] sm:$0xf]
        %v1888 = vld [vmem:[%s840 + $0x6c] sm:$0xf]
        %v1889 = vld [vmem:[%s840 + $0x70] sm:$0xf]
        %v1890 = vld [vmem:[%s840 + $0x74] sm:$0xf]
        %v1891 = vld [vmem:[%s840 + $0x78] sm:$0xf]
        %v1892 = vld [vmem:[%s840 + $0x7c] sm:$0xf]
        %v1925 = vunpack.c.l.b16 %v1861
        %v1926 = vunpack.c.l.b16 %v1862
        %v1927 = vunpack.c.l.b16 %v1863
        %v1928 = vunpack.c.l.b16 %v1864
        %v1929 = vunpack.c.l.b16 %v1865
        %v1930 = vunpack.c.l.b16 %v1866
        %v1931 = vunpack.c.l.b16 %v1867
        %v1932 = vunpack.c.l.b16 %v1868
        %v1933 = vunpack.c.l.b16 %v1869
        %v1934 = vunpack.c.l.b16 %v1870
        %v1935 = vunpack.c.l.b16 %v1871
        %v1936 = vunpack.c.l.b16 %v1872
        %v1937 = vunpack.c.l.b16 %v1873
        %v1938 = vunpack.c.l.b16 %v1874
        %v1939 = vunpack.c.l.b16 %v1875
        %v1940 = vunpack.c.l.b16 %v1876
        %v1941 = vunpack.c.l.b16 %v1877
        %v1942 = vunpack.c.l.b16 %v1878
        %v1943 = vunpack.c.l.b16 %v1879
        %v1944 = vunpack.c.l.b16 %v1880
        %v1945 = vunpack.c.l.b16 %v1881
        %v1946 = vunpack.c.l.b16 %v1882
        %v1947 = vunpack.c.l.b16 %v1883
        %v1948 = vunpack.c.l.b16 %v1884
        %v1949 = vunpack.c.l.b16 %v1885
        %v1950 = vunpack.c.l.b16 %v1886
        %v1951 = vunpack.c.l.b16 %v1887
        %v1952 = vunpack.c.l.b16 %v1888
        %v1953 = vunpack.c.l.b16 %v1889
        %v1954 = vunpack.c.l.b16 %v1890
        %v1955 = vunpack.c.l.b16 %v1891
        %v1956 = vunpack.c.l.b16 %v1892
        %v1957 = vpack.c.b16 %v1926, %v1925
        %v1958 = vpack.c.b16 %v1928, %v1927
        %v1959 = vpack.c.b16 %v1930, %v1929
        %v1960 = vpack.c.b16 %v1932, %v1931
        %v1961 = vpack.c.b16 %v1934, %v1933
        %v1962 = vpack.c.b16 %v1936, %v1935
        %v1963 = vpack.c.b16 %v1938, %v1937
        %v1964 = vpack.c.b16 %v1940, %v1939
        %v1965 = vpack.c.b16 %v1942, %v1941
        %v1966 = vpack.c.b16 %v1944, %v1943
        %v1967 = vpack.c.b16 %v1946, %v1945
        %v1968 = vpack.c.b16 %v1948, %v1947
        %v1969 = vpack.c.b16 %v1950, %v1949
        %v1970 = vpack.c.b16 %v1952, %v1951
        %v1971 = vpack.c.b16 %v1954, %v1953
        %v1972 = vpack.c.b16 %v1956, %v1955
        %1989 = vmatprep.subr.bf16.mxu0 0
        %1990 = vmatpush1.bf16.msra.mxu0 %v1957
        %1991 = vmatprep.subr.bf16.mxu0 0
        %1992 = vmatpush1.bf16.msra.mxu0 %v1958
        %1993 = vmatprep.subr.bf16.mxu0 0
        %1994 = vmatpush1.bf16.msra.mxu0 %v1959
        %1995 = vmatprep.subr.bf16.mxu0 0
        %1996 = vmatpush1.bf16.msra.mxu0 %v1960
        %1997 = vmatprep.subr.bf16.mxu0 0
        %1998 = vmatpush1.bf16.msra.mxu0 %v1961
        %1999 = vmatprep.subr.bf16.mxu0 0
        %2000 = vmatpush1.bf16.msra.mxu0 %v1962
        %2001 = vmatprep.subr.bf16.mxu0 0
        %2002 = vmatpush1.bf16.msra.mxu0 %v1963
        %2003 = vmatprep.subr.bf16.mxu0 0
        %2004 = vmatpush1.bf16.msra.mxu0 %v1964
        %2005 = vmatprep.subr.bf16.mxu0 0
        %2006 = vmatpush1.bf16.msra.mxu0 %v1965
        %2007 = vmatprep.subr.bf16.mxu0 0
        %2008 = vmatpush1.bf16.msra.mxu0 %v1966
        %2009 = vmatprep.subr.bf16.mxu0 0
        %2010 = vmatpush1.bf16.msra.mxu0 %v1967
        %2011 = vmatprep.subr.bf16.mxu0 0
        %2012 = vmatpush1.bf16.msra.mxu0 %v1968
        %2013 = vmatprep.subr.bf16.mxu0 0
        %2014 = vmatpush1.bf16.msra.mxu0 %v1969
        %2015 = vmatprep.subr.bf16.mxu0 0
        %2016 = vmatpush1.bf16.msra.mxu0 %v1970
        %2017 = vmatprep.subr.bf16.mxu0 0
        %2018 = vmatpush1.bf16.msra.mxu0 %v1971
        %2019 = vmatprep.subr.bf16.mxu0 0
        %2020 = vmatpush1.bf16.msra.mxu0 %v1972
        %2021 = vmatprep.mubr.bf16.mxu0 %v1846
        %2022 = vmatmul.mubr.bf16.gmra.mrb[0].mxu0 %v1845
        %v2023 = vpop.f32.mrb[0].mxu0
        %v2024 = vadd.f32 0.0, %v2023
        %v2025 = vpop.f32.mrb[0].mxu0
        %v2026 = vpop.f32.mrb[0].mxu0
        %v2027 = vadd.f32 0.0, %v2026
        %v2028 = vpop.f32.mrb[0].mxu0
        %2029 = vmatprep.mubr.bf16.mxu0 %v1848
        %2030 = vmatmul.mubr.bf16.gmra.mrb[0].mxu0 %v1847
        %v2031 = vpop.f32.mrb[0].mxu0
        %v2032 = vadd.f32 0.0, %v2031
        %v2033 = vpop.f32.mrb[0].mxu0
        %v2034 = vpop.f32.mrb[0].mxu0
        %v2035 = vadd.f32 0.0, %v2034
        %v2036 = vpop.f32.mrb[0].mxu0
        %2037 = vmatprep.mubr.bf16.mxu0 %v1850
        %2038 = vmatmul.mubr.bf16.gmra.mrb[0].mxu0 %v1849
        %v2039 = vpop.f32.mrb[0].mxu0
        %v2040 = vadd.f32 0.0, %v2039
        %v2041 = vpop.f32.mrb[0].mxu0
        %v2042 = vpop.f32.mrb[0].mxu0
        %v2043 = vadd.f32 0.0, %v2042
        %v2044 = vpop.f32.mrb[0].mxu0
        %2045 = vmatprep.mubr.bf16.mxu0 %v1852
        %2046 = vmatmul.mubr.bf16.gmra.mrb[0].mxu0 %v1851
        %v2047 = vpop.f32.mrb[0].mxu0
        %v2048 = vadd.f32 0.0, %v2047
        %v2049 = vpop.f32.mrb[0].mxu0
        %v2050 = vpop.f32.mrb[0].mxu0
        %v2051 = vadd.f32 0.0, %v2050
        %v2052 = vpop.f32.mrb[0].mxu0
        %2053 = vmatprep.mubr.bf16.mxu0 %v1854
        %2054 = vmatmul.mubr.bf16.gmra.mrb[0].mxu0 %v1853
        %v2055 = vpop.f32.mrb[0].mxu0
        %v2056 = vadd.f32 0.0, %v2055
        %v2057 = vpop.f32.mrb[0].mxu0
        %v2058 = vpop.f32.mrb[0].mxu0
        %v2059 = vadd.f32 0.0, %v2058
        %v2060 = vpop.f32.mrb[0].mxu0
        %2061 = vmatprep.mubr.bf16.mxu0 %v1856
        %2062 = vmatmul.mubr.bf16.gmra.mrb[0].mxu0 %v1855
        %v2063 = vpop.f32.mrb[0].mxu0
        %v2064 = vadd.f32 0.0, %v2063
        %v2065 = vpop.f32.mrb[0].mxu0
        %v2066 = vpop.f32.mrb[0].mxu0
        %v2067 = vadd.f32 0.0, %v2066
        %v2068 = vpop.f32.mrb[0].mxu0
        %2069 = vmatprep.mubr.bf16.mxu0 %v1858
        %2070 = vmatmul.mubr.bf16.gmra.mrb[0].mxu0 %v1857
        %v2071 = vpop.f32.mrb[0].mxu0
        %v2072 = vadd.f32 0.0, %v2071
        %v2073 = vpop.f32.mrb[0].mxu0
        %v2074 = vpop.f32.mrb[0].mxu0
        %v2075 = vadd.f32 0.0, %v2074
        %v2076 = vpop.f32.mrb[0].mxu0
        %2077 = vmatprep.mubr.bf16.mxu0 %v1860
        %2078 = vmatmul.mubr.bf16.gmra.mrb[0].mxu0 %v1859
        %v2079 = vpop.f32.mrb[0].mxu0
        %v2080 = vadd.f32 0.0, %v2079
        %v2081 = vpop.f32.mrb[0].mxu0
        %v2082 = vpop.f32.mrb[0].mxu0
        %v2083 = vadd.f32 0.0, %v2082
        %v2084 = vpop.f32.mrb[0].mxu0
        %2085 = vdwg.mxu0
        %v2086 = vadd.f32 %v1829, %v2024
        %v2087 = vadd.f32 %v1830, %v2027
        %v2088 = vadd.f32 %v1831, %v2032
        %v2089 = vadd.f32 %v1832, %v2035
        %v2090 = vadd.f32 %v1833, %v2040
        %v2091 = vadd.f32 %v1834, %v2043
        %v2092 = vadd.f32 %v1835, %v2048
        %v2093 = vadd.f32 %v1836, %v2051
        %v2094 = vadd.f32 %v1837, %v2056
        %v2095 = vadd.f32 %v1838, %v2059
        %v2096 = vadd.f32 %v1839, %v2064
        %v2097 = vadd.f32 %v1840, %v2067
        %v2098 = vadd.f32 %v1841, %v2072
        %v2099 = vadd.f32 %v1842, %v2075
        %v2100 = vadd.f32 %v1843, %v2080
        %v2101 = vadd.f32 %v1844, %v2083
        %2102 = vst [vmem:[#allocation4] sm:$0xff] %v2086
        %2103 = vst [vmem:[#allocation4 + $0x8] sm:$0xff] %v2087
        %2104 = vst [vmem:[#allocation4 + $0x10] sm:$0xff] %v2088
        %2105 = vst [vmem:[#allocation4 + $0x18] sm:$0xff] %v2089
        %2106 = vst [vmem:[#allocation4 + $0x20] sm:$0xff] %v2090
        %2107 = vst [vmem:[#allocation4 + $0x28] sm:$0xff] %v2091
        %2108 = vst [vmem:[#allocation4 + $0x30] sm:$0xff] %v2092
        %2109 = vst [vmem:[#allocation4 + $0x38] sm:$0xff] %v2093
        %2110 = vst [vmem:[#allocation4 + $0x40] sm:$0xff] %v2094
        %2111 = vst [vmem:[#allocation4 + $0x48] sm:$0xff] %v2095
        %2112 = vst [vmem:[#allocation4 + $0x50] sm:$0xff] %v2096
        %2113 = vst [vmem:[#allocation4 + $0x58] sm:$0xff] %v2097
        %2114 = vst [vmem:[#allocation4 + $0x60] sm:$0xff] %v2098
        %2115 = vst [vmem:[#allocation4 + $0x68] sm:$0xff] %v2099
        %2116 = vst [vmem:[#allocation4 + $0x70] sm:$0xff] %v2100
        %2117 = vst [vmem:[#allocation4 + $0x78] sm:$0xff] %v2101
        %v2118 = vld [vmem:[#allocation3] sm:$0xff]
        %v2119 = vld [vmem:[#allocation3 + $0x8] sm:$0xff]
        %v2120 = vld [vmem:[#allocation3 + $0x10] sm:$0xff]
        %v2121 = vld [vmem:[#allocation3 + $0x18] sm:$0xff]
        %v2122 = vld [vmem:[#allocation3 + $0x20] sm:$0xff]
        %v2123 = vld [vmem:[#allocation3 + $0x28] sm:$0xff]
        %v2124 = vld [vmem:[#allocation3 + $0x30] sm:$0xff]
        %v2125 = vld [vmem:[#allocation3 + $0x38] sm:$0xff]
        %v2126 = vld [vmem:[%s734] sm:$0xff]
        %v2127 = vld [vmem:[%s734 + $0x8] sm:$0xff]
        %v2128 = vld [vmem:[%s734 + $0x10] sm:$0xff]
        %v2129 = vld [vmem:[%s734 + $0x18] sm:$0xff]
        %v2130 = vld [vmem:[%s734 + $0x20] sm:$0xff]
        %v2131 = vld [vmem:[%s734 + $0x28] sm:$0xff]
        %v2132 = vld [vmem:[%s734 + $0x30] sm:$0xff]
        %v2133 = vld [vmem:[%s734 + $0x38] sm:$0xff]
        %v2134 = vld [vmem:[%s734 + $0x40] sm:$0xff]
        %v2135 = vld [vmem:[%s734 + $0x48] sm:$0xff]
        %v2136 = vld [vmem:[%s734 + $0x50] sm:$0xff]
        %v2137 = vld [vmem:[%s734 + $0x58] sm:$0xff]
        %v2138 = vld [vmem:[%s734 + $0x60] sm:$0xff]
        %v2139 = vld [vmem:[%s734 + $0x68] sm:$0xff]
        %v2140 = vld [vmem:[%s734 + $0x70] sm:$0xff]
        %v2141 = vld [vmem:[%s734 + $0x78] sm:$0xff]
        %v2142 = vld [vmem:[%s846] sm:$0x3]
        %v2144 = vlaneseq
        %v2145 = vshrl.u32 %v2144, 7
        %v2146 = vsub.s32 0, %v2145
        %v2147 = vrot.slane %v2142, %v2146
        %v2148 = vlaneseq
        %v2149 = vshrl.u32 %v2148, 7
        %v2150 = vsub.s32 1, %v2149
        %v2151 = vrot.slane %v2142, %v2150
        %v2170 = vunpack.c.l.b16 %v2126
        %v2171 = vunpack.c.h.b16 %v2126
        %v2172 = vunpack.c.l.b16 %v2127
        %v2173 = vunpack.c.h.b16 %v2127
        %v2174 = vunpack.c.l.b16 %v2128
        %v2175 = vunpack.c.h.b16 %v2128
        %v2176 = vunpack.c.l.b16 %v2129
        %v2177 = vunpack.c.h.b16 %v2129
        %v2178 = vunpack.c.l.b16 %v2130
        %v2179 = vunpack.c.h.b16 %v2130
        %v2180 = vunpack.c.l.b16 %v2131
        %v2181 = vunpack.c.h.b16 %v2131
        %v2182 = vunpack.c.l.b16 %v2132
        %v2183 = vunpack.c.h.b16 %v2132
        %v2184 = vunpack.c.l.b16 %v2133
        %v2185 = vunpack.c.h.b16 %v2133
        %v2186 = vunpack.c.l.b16 %v2134
        %v2187 = vunpack.c.h.b16 %v2134
        %v2188 = vunpack.c.l.b16 %v2135
        %v2189 = vunpack.c.h.b16 %v2135
        %v2190 = vunpack.c.l.b16 %v2136
        %v2191 = vunpack.c.h.b16 %v2136
        %v2192 = vunpack.c.l.b16 %v2137
        %v2193 = vunpack.c.h.b16 %v2137
        %v2194 = vunpack.c.l.b16 %v2138
        %v2195 = vunpack.c.h.b16 %v2138
        %v2196 = vunpack.c.l.b16 %v2139
        %v2197 = vunpack.c.h.b16 %v2139
        %v2198 = vunpack.c.l.b16 %v2140
        %v2199 = vunpack.c.h.b16 %v2140
        %v2200 = vunpack.c.l.b16 %v2141
        %v2201 = vunpack.c.h.b16 %v2141
        %v2202 = vpack.c.b16 %v2172, %v2170
        %v2203 = vpack.c.b16 %v2173, %v2171
        %v2204 = vpack.c.b16 %v2176, %v2174
        %v2205 = vpack.c.b16 %v2177, %v2175
        %v2206 = vpack.c.b16 %v2180, %v2178
        %v2207 = vpack.c.b16 %v2181, %v2179
        %v2208 = vpack.c.b16 %v2184, %v2182
        %v2209 = vpack.c.b16 %v2185, %v2183
        %v2210 = vpack.c.b16 %v2188, %v2186
        %v2211 = vpack.c.b16 %v2189, %v2187
        %v2212 = vpack.c.b16 %v2192, %v2190
        %v2213 = vpack.c.b16 %v2193, %v2191
        %v2214 = vpack.c.b16 %v2196, %v2194
        %v2215 = vpack.c.b16 %v2197, %v2195
        %v2216 = vpack.c.b16 %v2200, %v2198
        %v2217 = vpack.c.b16 %v2201, %v2199
        %2234 = vmatprep.subr.bf16.mxu0 %v2203
        %2235 = vmatpush1.bf16.msra.mxu0 %v2202
        %2236 = vmatprep.subr.bf16.mxu0 %v2205
        %2237 = vmatpush1.bf16.msra.mxu0 %v2204
        %2238 = vmatprep.subr.bf16.mxu0 %v2207
        %2239 = vmatpush1.bf16.msra.mxu0 %v2206
        %2240 = vmatprep.subr.bf16.mxu0 %v2209
        %2241 = vmatpush1.bf16.msra.mxu0 %v2208
        %2242 = vmatprep.subr.bf16.mxu0 %v2211
        %2243 = vmatpush1.bf16.msra.mxu0 %v2210
        %2244 = vmatprep.subr.bf16.mxu0 %v2213
        %2245 = vmatpush1.bf16.msra.mxu0 %v2212
        %2246 = vmatprep.subr.bf16.mxu0 %v2215
        %2247 = vmatpush1.bf16.msra.mxu0 %v2214
        %2248 = vmatprep.subr.bf16.mxu0 %v2217
        %2249 = vmatpush1.bf16.msra.mxu0 %v2216
        %2250 = vmatprep.subr.bf16.mxu0 0
        %2251 = vmatpush1.bf16.msra.mxu0 0
        %2252 = vmatprep.subr.bf16.mxu0 0
        %2253 = vmatpush1.bf16.msra.mxu0 0
        %2254 = vmatprep.subr.bf16.mxu0 0
        %2255 = vmatpush1.bf16.msra.mxu0 0
        %2256 = vmatprep.subr.bf16.mxu0 0
        %2257 = vmatpush1.bf16.msra.mxu0 0
        %2258 = vmatprep.subr.bf16.mxu0 0
        %2259 = vmatpush1.bf16.msra.mxu0 0
        %2260 = vmatprep.subr.bf16.mxu0 0
        %2261 = vmatpush1.bf16.msra.mxu0 0
        %2262 = vmatprep.subr.bf16.mxu0 0
        %2263 = vmatpush1.bf16.msra.mxu0 0
        %2264 = vmatprep.subr.bf16.mxu0 0
        %2265 = vmatpush1.bf16.msra.mxu0 0
        %2266 = vmatprep.mubr.bf16.mxu0 0
        %2267 = vmatmul.mubr.bf16.gmra.mrb[0].mxu0 %v2118
        %v2268 = vpop.f32.mrb[0].mxu0
        %v2269 = vadd.f32 %v2147, %v2268
        %v2270 = vpop.f32.mrb[0].mxu0
        %v2271 = vadd.f32 %v2151, %v2270
        %v2272 = vpop.f32.mrb[0].mxu0
        %v2273 = vadd.f32 %v2147, %v2272
        %v2274 = vpop.f32.mrb[0].mxu0
        %v2275 = vadd.f32 %v2151, %v2274
        %2276 = vmatprep.mubr.bf16.mxu0 0
        %2277 = vmatmul.mubr.bf16.gmra.mrb[0].mxu0 %v2119
        %v2278 = vpop.f32.mrb[0].mxu0
        %v2279 = vadd.f32 %v2147, %v2278
        %v2280 = vpop.f32.mrb[0].mxu0
        %v2281 = vadd.f32 %v2151, %v2280
        %v2282 = vpop.f32.mrb[0].mxu0
        %v2283 = vadd.f32 %v2147, %v2282
        %v2284 = vpop.f32.mrb[0].mxu0
        %v2285 = vadd.f32 %v2151, %v2284
        %2286 = vmatprep.mubr.bf16.mxu0 0
        %2287 = vmatmul.mubr.bf16.gmra.mrb[0].mxu0 %v2120
        %v2288 = vpop.f32.mrb[0].mxu0
        %v2289 = vadd.f32 %v2147, %v2288
        %v2290 = vpop.f32.mrb[0].mxu0
        %v2291 = vadd.f32 %v2151, %v2290
        %v2292 = vpop.f32.mrb[0].mxu0
        %v2293 = vadd.f32 %v2147, %v2292
        %v2294 = vpop.f32.mrb[0].mxu0
        %v2295 = vadd.f32 %v2151, %v2294
        %2296 = vmatprep.mubr.bf16.mxu0 0
        %2297 = vmatmul.mubr.bf16.gmra.mrb[0].mxu0 %v2121
        %v2298 = vpop.f32.mrb[0].mxu0
        %v2299 = vadd.f32 %v2147, %v2298
        %v2300 = vpop.f32.mrb[0].mxu0
        %v2301 = vadd.f32 %v2151, %v2300
        %v2302 = vpop.f32.mrb[0].mxu0
        %v2303 = vadd.f32 %v2147, %v2302
        %v2304 = vpop.f32.mrb[0].mxu0
        %v2305 = vadd.f32 %v2151, %v2304
        %2306 = vmatprep.mubr.bf16.mxu0 0
        %2307 = vmatmul.mubr.bf16.gmra.mrb[0].mxu0 %v2122
        %v2308 = vpop.f32.mrb[0].mxu0
        %v2309 = vadd.f32 %v2147, %v2308
        %v2310 = vpop.f32.mrb[0].mxu0
        %v2311 = vadd.f32 %v2151, %v2310
        %v2312 = vpop.f32.mrb[0].mxu0
        %v2313 = vadd.f32 %v2147, %v2312
        %v2314 = vpop.f32.mrb[0].mxu0
        %v2315 = vadd.f32 %v2151, %v2314
        %2316 = vmatprep.mubr.bf16.mxu0 0
        %2317 = vmatmul.mubr.bf16.gmra.mrb[0].mxu0 %v2123
        %v2318 = vpop.f32.mrb[0].mxu0
        %v2319 = vadd.f32 %v2147, %v2318
        %v2320 = vpop.f32.mrb[0].mxu0
        %v2321 = vadd.f32 %v2151, %v2320
        %v2322 = vpop.f32.mrb[0].mxu0
        %v2323 = vadd.f32 %v2147, %v2322
        %v2324 = vpop.f32.mrb[0].mxu0
        %v2325 = vadd.f32 %v2151, %v2324
        %2326 = vmatprep.mubr.bf16.mxu0 0
        %2327 = vmatmul.mubr.bf16.gmra.mrb[0].mxu0 %v2124
        %v2328 = vpop.f32.mrb[0].mxu0
        %v2329 = vadd.f32 %v2147, %v2328
        %v2330 = vpop.f32.mrb[0].mxu0
        %v2331 = vadd.f32 %v2151, %v2330
        %v2332 = vpop.f32.mrb[0].mxu0
        %v2333 = vadd.f32 %v2147, %v2332
        %v2334 = vpop.f32.mrb[0].mxu0
        %v2335 = vadd.f32 %v2151, %v2334
        %2336 = vmatprep.mubr.bf16.mxu0 0
        %2337 = vmatmul.mubr.bf16.gmra.mrb[0].mxu0 %v2125
        %v2338 = vpop.f32.mrb[0].mxu0
        %v2339 = vadd.f32 %v2147, %v2338
        %v2340 = vpop.f32.mrb[0].mxu0
        %v2341 = vadd.f32 %v2151, %v2340
        %v2342 = vpop.f32.mrb[0].mxu0
        %v2343 = vadd.f32 %v2147, %v2342
        %v2344 = vpop.f32.mrb[0].mxu0
        %v2345 = vadd.f32 %v2151, %v2344
        %2346 = vdwg.mxu0
        %2347 = vst [vmem:[%s815] sm:$0xff] %v2269
        %2348 = vst [vmem:[%s815 + $0x8] sm:$0xff] %v2271
        %2349 = vst [vmem:[%s815 + $0x10] sm:$0xff] %v2273
        %2350 = vst [vmem:[%s815 + $0x18] sm:$0xff] %v2275
        %2351 = vst [vmem:[%s815 + $0x20] sm:$0xff] %v2279
        %2352 = vst [vmem:[%s815 + $0x28] sm:$0xff] %v2281
        %2353 = vst [vmem:[%s815 + $0x30] sm:$0xff] %v2283
        %2354 = vst [vmem:[%s815 + $0x38] sm:$0xff] %v2285
        %2355 = vst [vmem:[%s815 + $0x40] sm:$0xff] %v2289
        %2356 = vst [vmem:[%s815 + $0x48] sm:$0xff] %v2291
        %2357 = vst [vmem:[%s815 + $0x50] sm:$0xff] %v2293
        %2358 = vst [vmem:[%s815 + $0x58] sm:$0xff] %v2295
        %2359 = vst [vmem:[%s815 + $0x60] sm:$0xff] %v2299
        %2360 = vst [vmem:[%s815 + $0x68] sm:$0xff] %v2301
        %2361 = vst [vmem:[%s815 + $0x70] sm:$0xff] %v2303
        %2362 = vst [vmem:[%s815 + $0x78] sm:$0xff] %v2305
        %2363 = vst [vmem:[%s815 + $0x80] sm:$0xff] %v2309
        %2364 = vst [vmem:[%s815 + $0x88] sm:$0xff] %v2311
        %2365 = vst [vmem:[%s815 + $0x90] sm:$0xff] %v2313
        %2366 = vst [vmem:[%s815 + $0x98] sm:$0xff] %v2315
        %2367 = vst [vmem:[%s815 + $0xa0] sm:$0xff] %v2319
        %2368 = vst [vmem:[%s815 + $0xa8] sm:$0xff] %v2321
        %2369 = vst [vmem:[%s815 + $0xb0] sm:$0xff] %v2323
        %2370 = vst [vmem:[%s815 + $0xb8] sm:$0xff] %v2325
        %2371 = vst [vmem:[%s815 + $0xc0] sm:$0xff] %v2329
        %2372 = vst [vmem:[%s815 + $0xc8] sm:$0xff] %v2331
        %2373 = vst [vmem:[%s815 + $0xd0] sm:$0xff] %v2333
        %2374 = vst [vmem:[%s815 + $0xd8] sm:$0xff] %v2335
        %2375 = vst [vmem:[%s815 + $0xe0] sm:$0xff] %v2339
        %2376 = vst [vmem:[%s815 + $0xe8] sm:$0xff] %v2341
        %2377 = vst [vmem:[%s815 + $0xf0] sm:$0xff] %v2343
        %2378 = vst [vmem:[%s815 + $0xf8] sm:$0xff] %v2345
        %p2379 = scmp.eq.s32.totalorder %s36, 1
        // Predicated region
        $region168: #{block_dejavu_forward.7} parent=150 // pred_check
          %p2380 = pneg %p2379
        $region169: #{block_dejavu_forward.7} parent=150 // pred_check_branch
          %2382 = sbr.rel (%p2380) target = $region171
        $region170: #{block_dejavu_forward.7} parent=150 // pred_region
          %v2383 = vld [vmem:[#allocation4] sm:$0xff]
          %v2384 = vld [vmem:[#allocation4 + $0x8] sm:$0xff]
          %v2385 = vld [vmem:[#allocation4 + $0x10] sm:$0xff]
          %v2386 = vld [vmem:[#allocation4 + $0x18] sm:$0xff]
          %v2387 = vld [vmem:[#allocation4 + $0x20] sm:$0xff]
          %v2388 = vld [vmem:[#allocation4 + $0x28] sm:$0xff]
          %v2389 = vld [vmem:[#allocation4 + $0x30] sm:$0xff]
          %v2390 = vld [vmem:[#allocation4 + $0x38] sm:$0xff]
          %v2391 = vld [vmem:[#allocation4 + $0x40] sm:$0xff]
          %v2392 = vld [vmem:[#allocation4 + $0x48] sm:$0xff]
          %v2393 = vld [vmem:[#allocation4 + $0x50] sm:$0xff]
          %v2394 = vld [vmem:[#allocation4 + $0x58] sm:$0xff]
          %v2395 = vld [vmem:[#allocation4 + $0x60] sm:$0xff]
          %v2396 = vld [vmem:[#allocation4 + $0x68] sm:$0xff]
          %v2397 = vld [vmem:[#allocation4 + $0x70] sm:$0xff]
          %v2398 = vld [vmem:[#allocation4 + $0x78] sm:$0xff]
          %v2399 = vld [vmem:[%s8] sm:$0x1]
          %v2401 = vlaneseq
          %v2402 = vshrl.u32 %v2401, 7
          %v2403 = vsub.s32 0, %v2402
          %v2404 = vrot.slane %v2399, %v2403
          %v2406 = vadd.f32 %v2383, %v2404
          %v2407 = vadd.f32 %v2384, %v2404
          %v2408 = vadd.f32 %v2385, %v2404
          %v2409 = vadd.f32 %v2386, %v2404
          %v2410 = vadd.f32 %v2387, %v2404
          %v2411 = vadd.f32 %v2388, %v2404
          %v2412 = vadd.f32 %v2389, %v2404
          %v2413 = vadd.f32 %v2390, %v2404
          %v2414 = vadd.f32 %v2391, %v2404
          %v2415 = vadd.f32 %v2392, %v2404
          %v2416 = vadd.f32 %v2393, %v2404
          %v2417 = vadd.f32 %v2394, %v2404
          %v2418 = vadd.f32 %v2395, %v2404
          %v2419 = vadd.f32 %v2396, %v2404
          %v2420 = vadd.f32 %v2397, %v2404
          %v2421 = vadd.f32 %v2398, %v2404
          %v2422 = vpack.c.bf16 %v2407, %v2406
          %v2423 = vpack.c.bf16 %v2409, %v2408
          %v2424 = vpack.c.bf16 %v2411, %v2410
          %v2425 = vpack.c.bf16 %v2413, %v2412
          %v2426 = vpack.c.bf16 %v2415, %v2414
          %v2427 = vpack.c.bf16 %v2417, %v2416
          %v2428 = vpack.c.bf16 %v2419, %v2418
          %v2429 = vpack.c.bf16 %v2421, %v2420
          %v2438 = vunpack.c.l.b16 %v2422
          %v2439 = vunpack.c.h.b16 %v2422
          %v2440 = vunpack.c.l.b16 %v2423
          %v2441 = vunpack.c.h.b16 %v2423
          %v2442 = vunpack.c.l.b16 %v2424
          %v2443 = vunpack.c.h.b16 %v2424
          %v2444 = vunpack.c.l.b16 %v2425
          %v2445 = vunpack.c.h.b16 %v2425
          %v2446 = vunpack.c.l.b16 %v2426
          %v2447 = vunpack.c.h.b16 %v2426
          %v2448 = vunpack.c.l.b16 %v2427
          %v2449 = vunpack.c.h.b16 %v2427
          %v2450 = vunpack.c.l.b16 %v2428
          %v2451 = vunpack.c.h.b16 %v2428
          %v2452 = vunpack.c.l.b16 %v2429
          %v2453 = vunpack.c.h.b16 %v2429
          %v2454 = vpack.c.b16 %v2438, %v2438
          %v2455 = vpack.c.b16 %v2439, %v2439
          %v2456 = vpack.c.b16 %v2440, %v2440
          %v2457 = vpack.c.b16 %v2441, %v2441
          %v2458 = vpack.c.b16 %v2442, %v2442
          %v2459 = vpack.c.b16 %v2443, %v2443
          %v2460 = vpack.c.b16 %v2444, %v2444
          %v2461 = vpack.c.b16 %v2445, %v2445
          %v2462 = vpack.c.b16 %v2446, %v2446
          %v2463 = vpack.c.b16 %v2447, %v2447
          %v2464 = vpack.c.b16 %v2448, %v2448
          %v2465 = vpack.c.b16 %v2449, %v2449
          %v2466 = vpack.c.b16 %v2450, %v2450
          %v2467 = vpack.c.b16 %v2451, %v2451
          %v2468 = vpack.c.b16 %v2452, %v2452
          %v2469 = vpack.c.b16 %v2453, %v2453
          %2486 = vst [vmem:[%s801] sm:$0xf] %v2454
          %2487 = vst [vmem:[%s801 + $0x4] sm:$0xf] %v2455
          %2488 = vst [vmem:[%s801 + $0x8] sm:$0xf] %v2456
          %2489 = vst [vmem:[%s801 + $0xc] sm:$0xf] %v2457
          %2490 = vst [vmem:[%s801 + $0x10] sm:$0xf] %v2458
          %2491 = vst [vmem:[%s801 + $0x14] sm:$0xf] %v2459
          %2492 = vst [vmem:[%s801 + $0x18] sm:$0xf] %v2460
          %2493 = vst [vmem:[%s801 + $0x1c] sm:$0xf] %v2461
          %2494 = vst [vmem:[%s801 + $0x20] sm:$0xf] %v2462
          %2495 = vst [vmem:[%s801 + $0x24] sm:$0xf] %v2463
          %2496 = vst [vmem:[%s801 + $0x28] sm:$0xf] %v2464
          %2497 = vst [vmem:[%s801 + $0x2c] sm:$0xf] %v2465
          %2498 = vst [vmem:[%s801 + $0x30] sm:$0xf] %v2466
          %2499 = vst [vmem:[%s801 + $0x34] sm:$0xf] %v2467
          %2500 = vst [vmem:[%s801 + $0x38] sm:$0xf] %v2468
          %2501 = vst [vmem:[%s801 + $0x3c] sm:$0xf] %v2469
        $region171: #{block_dejavu_forward.7} parent=150 // pred_fallthru
          _
        %s2502 = sand.u32 %s324, 1
        %s2503 = scalar_lea.sflag [#allocation9], %s2502
        %s2504 = sand.u32 %s324, 1
        %s2505 = smul.addr %s2504, 64
        %s2506 = scalar_lea.vmem [#allocation8], %s2505
        %s2507 = sand.u32 %s31, 1
        %s2508 = scalar_lea.sflag [#allocation11], %s2507
        %s2509 = sand.u32 %s350, 1
        %s2510 = smul.addr %s2509, 128
        %s2511 = scalar_lea.vmem [#allocation10], %s2510
        %s2512 = sand.u32 %s31, 1
        %s2513 = scalar_lea.sflag [#allocation11], %s2512
        %s2514 = sand.u32 %s378, 1
        %s2515 = smul.addr %s2514, 256
        %s2516 = scalar_lea.vmem [#allocation12], %s2515
        // Predicated region
        $region172: #{block_dejavu_forward.7} parent=150 // pred_check
          %p2517 = pneg %p334
        $region173: #{block_dejavu_forward.7} parent=150 // pred_check_branch
          %2519 = sbr.rel (%p2517) target = $region175
        $region174: #{block_dejavu_forward.7} parent=150 // pred_region
          %s2520 = smul.u32 16, %s35
          %s2522 = ssub.s32 1024, 1024
          %2523 = vsyncadd %s2503, %s2522
          %s2524 = smul.addr %s2520, 64
          %s2525 = scalar_lea.hbm %s11, %s2524
          %s2526 = sshll.u32 %s2506, 4
          %s2527 = int_to_ptr.vmem [resolvable:$true] %s2526
          %2532 = dma.vmem_to_hbm [thread:$0]  %s2527, 1024, %s2525, %s2503, 64, 64, 4
        $region175: #{block_dejavu_forward.7} parent=150 // pred_fallthru
          _
        // Predicated region
        $region176: #{block_dejavu_forward.7} parent=150 // pred_check
          %p2533 = pneg %p360
        $region177: #{block_dejavu_forward.7} parent=150 // pred_check_branch
          %2535 = sbr.rel (%p2533) target = $region179
        $region178: #{block_dejavu_forward.7} parent=150 // pred_region
          %s2536 = smul.u32 16, %s35
          %s2538 = ssub.s32 2048, 2048
          %2539 = vsyncadd %s2508, %s2538
          %s2540 = smul.addr %s2536, 128
          %s2541 = scalar_lea.hbm %s12, %s2540
          %s2542 = sshll.u32 %s2511, 4
          %s2543 = int_to_ptr.vmem [resolvable:$true] %s2542
          %2548 = dma.vmem_to_hbm [thread:$0]  %s2543, 2048, %s2541, %s2508, 128, 128, 8
        $region179: #{block_dejavu_forward.7} parent=150 // pred_fallthru
          _
        // Predicated region
        $region180: #{block_dejavu_forward.7} parent=150 // pred_check
          %p2549 = pneg %p388
        $region181: #{block_dejavu_forward.7} parent=150 // pred_check_branch
          %2551 = sbr.rel (%p2549) target = $region183
        $region182: #{block_dejavu_forward.7} parent=150 // pred_region
          %s2552 = smul.u32 16, %s35
          %s2553 = smul.u32 2, %s36
          %s2555 = ssub.s32 4096, 4096
          %2556 = vsyncadd %s2513, %s2555
          %s2557 = smul.addr %s2552, 4
          %s2558 = sadd.s32 %s2553, %s2557
          %s2559 = smul.addr %s2558, 128
          %s2560 = scalar_lea.hbm %s13, %s2559
          %s2561 = sshll.u32 %s2516, 4
          %s2562 = int_to_ptr.vmem [resolvable:$true] %s2561
          %2567 = dma.vmem_to_hbm [thread:$0]  %s2562, 4096, %s2560, %s2513, 256, 512, 16
        $region183: #{block_dejavu_forward.7} parent=150 // pred_fallthru
          _
      $region151: #{block_dejavu_forward.7} parent=5 // pred_fallthru
        _
      %p2568 = scmp.le.s32.totalorder 2, %s26
      // Predicated region
      $region184: #{block_dejavu_forward.7} parent=5 // pred_check
        %p2569 = pneg %p2568
      $region185: #{block_dejavu_forward.7} parent=5 // pred_check_branch
        %2571 = sbr.rel (%p2569) target = $region187
      $region186: #{block_dejavu_forward.7} parent=5 // pred_region
        %s2572 = ssub.s32 %s26, 2
        // Predicated region
        $region188: #{block_dejavu_forward.7} parent=186 // pred_check
          %p2573 = pneg %p340
        $region189: #{block_dejavu_forward.7} parent=186 // pred_check_branch
          %2575 = sbr.rel (%p2573) target = $region191
        $region190: #{block_dejavu_forward.7} parent=186 // pred_region
          %s2576 = sand.u32 %s325, 1
          %s2577 = scalar_lea.sflag [#allocation9], %s2576
          %s2578 = sand.u32 %s325, 1
          %s2579 = smul.addr %s2578, 64
          %s2580 = scalar_lea.vmem [#allocation8], %s2579
          %2581 = dma.done %s2577, 1024
        $region191: #{block_dejavu_forward.7} parent=186 // pred_fallthru
          _
        // Predicated region
        $region192: #{block_dejavu_forward.7} parent=186 // pred_check
          %p2582 = pneg %p366
        $region193: #{block_dejavu_forward.7} parent=186 // pred_check_branch
          %2584 = sbr.rel (%p2582) target = $region195
        $region194: #{block_dejavu_forward.7} parent=186 // pred_region
          %s2585 = sand.u32 %s32, 1
          %s2586 = scalar_lea.sflag [#allocation11], %s2585
          %s2587 = sand.u32 %s351, 1
          %s2588 = smul.addr %s2587, 128
          %s2589 = scalar_lea.vmem [#allocation10], %s2588
          %2590 = dma.done %s2586, 2048
        $region195: #{block_dejavu_forward.7} parent=186 // pred_fallthru
          _
        // Predicated region
        $region196: #{block_dejavu_forward.7} parent=186 // pred_check
          %p2591 = pneg %p394
        $region197: #{block_dejavu_forward.7} parent=186 // pred_check_branch
          %2593 = sbr.rel (%p2591) target = $region199
        $region198: #{block_dejavu_forward.7} parent=186 // pred_region
          %s2594 = sand.u32 %s32, 1
          %s2595 = scalar_lea.sflag [#allocation11], %s2594
          %s2596 = sand.u32 %s379, 1
          %s2597 = smul.addr %s2596, 256
          %s2598 = scalar_lea.vmem [#allocation12], %s2597
          %2599 = dma.done %s2595, 4096
        $region199: #{block_dejavu_forward.7} parent=186 // pred_fallthru
          _
      $region187: #{block_dejavu_forward.7} parent=5 // pred_fallthru
        _
    $region6: #{block_dejavu_forward.7} parent=1 // loop_footer
      %s30 = sadd.s32 1, %s26
    $region7: #{block_dejavu_forward.7} parent=1 // loop_footer_branch
      %25 = sbr.rel target = $region3
    $region8: #{block_dejavu_forward.7} parent=1 // loop_exit
      _
    %2600 = vsyncpa [#allocation9], 1
    %s2601 = scalar_lea.sflag [#allocation9], 1
    %2602 = vsyncpa %s2601, 1
    %2603 = vsyncpa [#allocation11], 1
    %s2604 = scalar_lea.sflag [#allocation11], 1
    %2605 = vsyncpa %s2604, 1

</llo_original>
